<compile_context>
chip_gen: v5e
topology: v5e:2x2
jax: 0.10.0
libtpu: 0.0.40
codegen_flags: <defaults>
</compile_context>

<pallas_src>
import functools

import jax
import jax.numpy as jnp
from jax.experimental import pallas as pl
from jax.experimental.pallas import tpu as pltpu


def _round_up(x, m):
    return (x + m - 1) // m * m


def _choose_tm(m, cap=1024):
    """Row-tile: single full block for small M, else ~even split <= cap."""
    if m <= cap:
        return _round_up(m, 16)
    steps = -(-m // cap)
    return _round_up(-(-m // steps), 16)


# ----------------------------- Pallas kernels -----------------------------

def _matmul_bias_kernel(a_ref, b_ref, bias_ref, o_ref, *, apply_relu):
    # a, b in bf16; accumulate + bias in f32 on the MXU.
    acc = jnp.dot(a_ref[...], b_ref[...], preferred_element_type=jnp.float32)
    acc = acc + bias_ref[...]            # bias is (1, Np), broadcasts over rows
    if apply_relu:
        acc = jnp.maximum(acc, 0.0)
    o_ref[...] = acc.astype(o_ref.dtype)


def _fc_stack_kernel(x_ref, w1_ref, b1_ref, w2_ref, b2_ref,
                     w3_ref, b3_ref, w4_ref, b4_ref, o_ref):
    """fc1..fc4 fused; all weights resident in VMEM."""
    def dense(h, w_ref, b_ref, relu):
        acc = jnp.dot(h, w_ref[...], preferred_element_type=jnp.float32)
        acc = acc + b_ref[...]
        if relu:
            acc = jnp.maximum(acc, 0.0)
        return acc

    h = dense(x_ref[...], w1_ref, b1_ref, True).astype(x_ref.dtype)
    h = dense(h, w2_ref, b2_ref, True).astype(x_ref.dtype)
    h = dense(h, w3_ref, b3_ref, True).astype(x_ref.dtype)
    o_ref[...] = dense(h, w4_ref, b4_ref, False).astype(o_ref.dtype)


# ----------------------------- Pallas wrappers -----------------------------

def matmul_bias(a, b_p, bias_p, *, apply_relu, out_dtype):
    """out = [relu](a @ b_p + bias_p).

    a: (M, K) bf16 (K already a multiple of 128).
    b_p: (K, Np) bf16, Np multiple of 128 (pre-padded once).
    bias_p: (1, Np) f32.
    """
    M, K = a.shape
    Kb, Np = b_p.shape
    assert K == Kb and K % 128 == 0 and Np % 128 == 0

    tm = _choose_tm(M)
    Mp = _round_up(M, tm)
    if Mp != M:
        a = jnp.zeros((Mp, K), a.dtype).at[:M].set(a)

    kernel = functools.partial(_matmul_bias_kernel, apply_relu=apply_relu)
    out = pl.pallas_call(
        kernel,
        out_shape=jax.ShapeDtypeStruct((Mp, Np), out_dtype),
        grid_spec=pltpu.PrefetchScalarGridSpec(
            num_scalar_prefetch=0,
            grid=(Mp // tm,),
            in_specs=[
                pl.BlockSpec((tm, K), lambda i: (i, 0)),
                pl.BlockSpec((Kb, Np), lambda i: (0, 0)),   # weights resident
                pl.BlockSpec((1, Np), lambda i: (0, 0)),
            ],
            out_specs=pl.BlockSpec((tm, Np), lambda i: (i, 0)),
        ),
        compiler_params=pltpu.CompilerParams(
            dimension_semantics=("parallel",),
            vmem_limit_bytes=32 * 1024 * 1024,
        ),
    )(a, b_p, bias_p)
    return out[:M] if Mp != M else out


def fc_stack(x, prepped):
    """Fused fc1..fc4 (ReLU on 1-3).  x: (B, 1152) bf16 -> (B, 1) f32."""
    B, K = x.shape
    Bp = _round_up(max(B, 8), 8)
    xp = x if Bp == B else jnp.zeros((Bp, K), x.dtype).at[:B].set(x)
    w1, b1 = prepped["fc1"]
    w2, b2 = prepped["fc2"]
    w3, b3 = prepped["fc3"]
    w4, b4 = prepped["fc4"]
    out = pl.pallas_call(
        _fc_stack_kernel,
        out_shape=jax.ShapeDtypeStruct((Bp, w4.shape[1]), jnp.float32),
        compiler_params=pltpu.CompilerParams(
            vmem_limit_bytes=32 * 1024 * 1024),
    )(xp, w1, b1, w2, b2, w3, b3, w4, b4)
    return out[:B, :1]


# ----------------------------- Conv via im2col (NHWC, no transposes) --------

def conv2d_relu(x, w_p, b_p, ksize, stride, oc):
    """x: (B, H, W, C) bf16 NHWC.  w_p: (Kp, 128) bf16 pre-padded weight."""
    B, H, W, C = x.shape
    kh = kw = ksize
    oh = (H - kh) // stride + 1
    ow = (W - kw) // stride + 1
    k = kh * kw * C
    kp = w_p.shape[0]

    cols = [x[:, i:i + stride * oh:stride, j:j + stride * ow:stride, :]
            for i in range(kh) for j in range(kw)]
    if kp > k:  # fold lane (K) padding into the same concat -- no extra pass
        cols.append(jnp.zeros((B, oh, ow, kp - k), x.dtype))
    patches = jnp.concatenate(cols, axis=-1).reshape(B * oh * ow, kp)

    out = matmul_bias(patches, w_p, b_p, apply_relu=True, out_dtype=x.dtype)
    return out[:, :oc].reshape(B, oh, ow, oc)


# ----------------------------- PilotNet forward -----------------------------

# (name, kernel_size, stride, out_channels) -- static architecture config.
_CONV_CFG = (
    ("conv1", 5, 2, 24),
    ("conv2", 5, 2, 36),
    ("conv3", 5, 2, 48),
    ("conv4", 3, 1, 64),
    ("conv5", 3, 1, 64),
)


def pilot_net_forward(prepped, x):
    # x: (B, 3, 66, 200) NCHW f32, same convention as the PyTorch module.
    # Normalization (x-0.5)*2 is folded into conv1's prepared weights.
    x = jnp.transpose(x, (0, 2, 3, 1)).astype(jnp.bfloat16)   # NHWC, once
    for name, ksize, stride, oc in _CONV_CFG:
        w_p, b_p = prepped[name]
        x = conv2d_relu(x, w_p, b_p, ksize, stride, oc)
    B = x.shape[0]
    x = x.reshape(B, -1)                 # (B, 1*18*64) = (B, 1152), NHWC order
    return fc_stack(x, prepped)          # (B, 1) f32


# ----------------------------- Parameter prep -------------------------------

def _prep_conv(w, b, dtype):
    # w: (OC, C, KH, KW) PyTorch conv weight -> (Kp, 128) with rows ordered
    # (kh, kw, c) to match the NHWC im2col concat order.
    oc, c, kh, kw = w.shape
    k = kh * kw * c
    kp = _round_up(k, 128)
    w2 = w.transpose(2, 3, 1, 0).reshape(k, oc)
    w_p = jnp.zeros((kp, 128), dtype).at[:k, :oc].set(w2.astype(dtype))
    b_p = jnp.zeros((1, 128), jnp.float32).at[0, :oc].set(b)
    return w_p, b_p


def _prep_fc(w, b, dtype):
    out_f, in_f = w.shape
    kp = _round_up(in_f, 128)
    np_ = _round_up(out_f, 128)
    w_p = jnp.zeros((kp, np_), dtype).at[:in_f, :out_f].set(w.T.astype(dtype))
    b_p = jnp.zeros((1, np_), jnp.float32).at[0, :out_f].set(b)
    return w_p, b_p


def prepare_params(params, dtype=jnp.bfloat16):
    """One-time conversion of PyTorch-convention params to padded/cast
    TPU-friendly matrices (weights are static; do this outside the forward)."""
    prepped = {}

    # conv1 with the input normalization (x-0.5)*2 = 2x-1 folded in.
    w1, b1 = params["conv1"]
    prepped["conv1"] = _prep_conv(w1 * 2.0, b1 - w1.sum(axis=(1, 2, 3)), dtype)
    for name in ("conv2", "conv3", "conv4", "conv5"):
        prepped[name] = _prep_conv(*params[name], dtype)

    # fc1: permute columns from NCHW flatten (c*18 + w) to NHWC flatten
    # (w*64 + c) so the NHWC conv5 output can be used directly.
    wf1, bf1 = params["fc1"]
    wf1 = wf1.reshape(100, 64, 1, 18).transpose(0, 2, 3, 1).reshape(100, 1152)
    prepped["fc1"] = _prep_fc(wf1, bf1, dtype)
    prepped["fc2"] = _prep_fc(*params["fc2"], dtype)
    prepped["fc3"] = _prep_fc(*params["fc3"], dtype)
    prepped["fc4"] = _prep_fc(*params["fc4"], dtype)
    return prepped


def init_params(key):
    """Deterministic init (PyTorch-style uniform(+-1/sqrt(fan_in)))."""
    def conv_p(k, oc, ic, kh, kw):
        bound = 1.0 / (ic * kh * kw) ** 0.5
        kw_, kb_ = jax.random.split(k)
        w = jax.random.uniform(kw_, (oc, ic, kh, kw), jnp.float32, -bound, bound)
        b = jax.random.uniform(kb_, (oc,), jnp.float32, -bound, bound)
        return w, b

    def fc_p(k, in_f, out_f):
        bound = 1.0 / in_f ** 0.5
        kw_, kb_ = jax.random.split(k)
        w = jax.random.uniform(kw_, (out_f, in_f), jnp.float32, -bound, bound)
        b = jax.random.uniform(kb_, (out_f,), jnp.float32, -bound, bound)
        return w, b

    ks = jax.random.split(key, 9)
    return {
        "conv1": conv_p(ks[0], 24, 3, 5, 5),
        "conv2": conv_p(ks[1], 36, 24, 5, 5),
        "conv3": conv_p(ks[2], 48, 36, 5, 5),
        "conv4": conv_p(ks[3], 64, 48, 3, 3),
        "conv5": conv_p(ks[4], 64, 64, 3, 3),
        "fc1": fc_p(ks[5], 64 * 1 * 18, 100),
        "fc2": fc_p(ks[6], 100, 50),
        "fc3": fc_p(ks[7], 50, 10),
        "fc4": fc_p(ks[8], 10, 1),
    }


if __name__ == "__main__":
    key = jax.random.PRNGKey(0)
    k_params, k_x = jax.random.split(key)
    params = init_params(k_params)
    prepped = prepare_params(params)        # one-time weight pad/cast/fold

    # NVIDIA PilotNet input: (B, 3, 66, 200) NCHW -> flatten 64*1*18 before fc1.
    x = jax.random.uniform(k_x, (2, 3, 66, 200), jnp.float32)

    fwd = jax.jit(pilot_net_forward)
    out = fwd(prepped, x)
    jax.block_until_ready(out)
    assert out.shape == (2, 1), out.shape
    print("KERNEL_OK")
</pallas_src>

<mosaic_0001>
module attributes {stable_mosaic.version = 11 : i64} {
  func.func @_matmul_bias_kernel(%arg0: i32, %arg1: memref<1024x128xbf16, #tpu.memory_space<vmem>>, %arg2: memref<128x128xbf16, #tpu.memory_space<vmem>>, %arg3: memref<1x128xf32, #tpu.memory_space<vmem>>, %arg4: memref<1024x128xbf16, #tpu.memory_space<vmem>>) attributes {dimension_semantics = [#tpu.dimension_semantics<parallel>], iteration_bounds = array<i64: 6>, scalar_prefetch = 0 : i64, scratch_operands = 0 : i64, tpu.core_type = #tpu.core_type<tc>, window_params = [{transform_indices = @transform_0, window_bounds = array<i64: 1024, 128>}, {pipeline_mode = #tpu.pipeline_mode<synchronous>, transform_indices = @transform_1, window_bounds = array<i64: 128, 128>}, {pipeline_mode = #tpu.pipeline_mode<synchronous>, transform_indices = @transform_2, window_bounds = array<i64: 1, 128>}, {transform_indices = @transform_3, window_bounds = array<i64: 1024, 128>}]} {
    %c0 = arith.constant 0 : index
    %c0_0 = arith.constant 0 : index
    %0 = vector.load %arg1[%c0, %c0_0] : memref<1024x128xbf16, #tpu.memory_space<vmem>>, vector<1024x128xbf16>
    %c0_1 = arith.constant 0 : index
    %c0_2 = arith.constant 0 : index
    %1 = vector.load %arg2[%c0_1, %c0_2] : memref<128x128xbf16, #tpu.memory_space<vmem>>, vector<128x128xbf16>
    %cst = arith.constant dense<0.000000e+00> : vector<1024x128xf32>
    %2 = tpu.matmul %0, %1, %cst {dimension_numbers = #tpu.dot_dimension_numbers<[1], [0], [0], [1], [0, 0, 1, 1], [], []>} : vector<1024x128xbf16>, vector<128x128xbf16>, vector<1024x128xf32> -> vector<1024x128xf32>
    %c0_3 = arith.constant 0 : index
    %c0_4 = arith.constant 0 : index
    %3 = vector.load %arg3[%c0_3, %c0_4] : memref<1x128xf32, #tpu.memory_space<vmem>>, vector<1x128xf32>
    %4 = vector.broadcast %3 : vector<1x128xf32> to vector<1024x128xf32>
    %5 = arith.addf %2, %4 : vector<1024x128xf32>
    %cst_5 = arith.constant 0.000000e+00 : f32
    %6 = vector.broadcast %cst_5 : f32 to vector<1024x128xf32>
    %7 = arith.maximumf %5, %6 : vector<1024x128xf32>
    %8 = arith.truncf %7 : vector<1024x128xf32> to vector<1024x128xbf16>
    %c0_6 = arith.constant 0 : index
    %c0_7 = arith.constant 0 : index
    %9 = vector.load %arg4[%c0_6, %c0_7] : memref<1024x128xbf16, #tpu.memory_space<vmem>>, vector<1024x128xbf16>
    tpu.vector_store %arg4[%c0_6, %c0_7], %8 {strides = array<i32>} : memref<1024x128xbf16, #tpu.memory_space<vmem>>, vector<1024x128xbf16>,
    return
  }
  func.func @transform_0(%arg0: i32) -> (i32, i32) {
    %c0_i32 = arith.constant 0 : i32
    %c0_i32_0 = arith.constant 0 : i32
    return %arg0, %c0_i32 : i32, i32
  }
  func.func @transform_1(%arg0: i32) -> (i32, i32) {
    %c0_i32 = arith.constant 0 : i32
    %c0_i32_0 = arith.constant 0 : i32
    %c0_i32_1 = arith.constant 0 : i32
    return %c0_i32, %c0_i32_0 : i32, i32
  }
  func.func @transform_2(%arg0: i32) -> (i32, i32) {
    %c0_i32 = arith.constant 0 : i32
    %c0_i32_0 = arith.constant 0 : i32
    %c0_i32_1 = arith.constant 0 : i32
    return %c0_i32, %c0_i32_0 : i32, i32
  }
  func.func @transform_3(%arg0: i32) -> (i32, i32) {
    %c0_i32 = arith.constant 0 : i32
    %c0_i32_0 = arith.constant 0 : i32
    return %arg0, %c0_i32 : i32, i32
  }
}

module attributes {stable_mosaic.version = 11 : i64} {
  func.func @_matmul_bias_kernel(%arg0: i32, %arg1: memref<672x640xbf16, #tpu.memory_space<vmem>>, %arg2: memref<640x128xbf16, #tpu.memory_space<vmem>>, %arg3: memref<1x128xf32, #tpu.memory_space<vmem>>, %arg4: memref<672x128xbf16, #tpu.memory_space<vmem>>) attributes {dimension_semantics = [#tpu.dimension_semantics<parallel>], iteration_bounds = array<i64: 2>, scalar_prefetch = 0 : i64, scratch_operands = 0 : i64, tpu.core_type = #tpu.core_type<tc>, window_params = [{transform_indices = @transform_0, window_bounds = array<i64: 672, 640>}, {pipeline_mode = #tpu.pipeline_mode<synchronous>, transform_indices = @transform_1, window_bounds = array<i64: 640, 128>}, {pipeline_mode = #tpu.pipeline_mode<synchronous>, transform_indices = @transform_2, window_bounds = array<i64: 1, 128>}, {transform_indices = @transform_3, window_bounds = array<i64: 672, 128>}]} {
    %c0 = arith.constant 0 : index
    %c0_0 = arith.constant 0 : index
    %0 = vector.load %arg1[%c0, %c0_0] : memref<672x640xbf16, #tpu.memory_space<vmem>>, vector<672x640xbf16>
    %c0_1 = arith.constant 0 : index
    %c0_2 = arith.constant 0 : index
    %1 = vector.load %arg2[%c0_1, %c0_2] : memref<640x128xbf16, #tpu.memory_space<vmem>>, vector<640x128xbf16>
    %cst = arith.constant dense<0.000000e+00> : vector<672x128xf32>
    %2 = tpu.matmul %0, %1, %cst {dimension_numbers = #tpu.dot_dimension_numbers<[1], [0], [0], [1], [0, 0, 1, 1], [], []>} : vector<672x640xbf16>, vector<640x128xbf16>, vector<672x128xf32> -> vector<672x128xf32>
    %c0_3 = arith.constant 0 : index
    %c0_4 = arith.constant 0 : index
    %3 = vector.load %arg3[%c0_3, %c0_4] : memref<1x128xf32, #tpu.memory_space<vmem>>, vector<1x128xf32>
    %4 = vector.broadcast %3 : vector<1x128xf32> to vector<672x128xf32>
    %5 = arith.addf %2, %4 : vector<672x128xf32>
    %cst_5 = arith.constant 0.000000e+00 : f32
    %6 = vector.broadcast %cst_5 : f32 to vector<672x128xf32>
    %7 = arith.maximumf %5, %6 : vector<672x128xf32>
    %8 = arith.truncf %7 : vector<672x128xf32> to vector<672x128xbf16>
    %c0_6 = arith.constant 0 : index
    %c0_7 = arith.constant 0 : index
    %9 = vector.load %arg4[%c0_6, %c0_7] : memref<672x128xbf16, #tpu.memory_space<vmem>>, vector<672x128xbf16>
    tpu.vector_store %arg4[%c0_6, %c0_7], %8 {strides = array<i32>} : memref<672x128xbf16, #tpu.memory_space<vmem>>, vector<672x128xbf16>,
    return
  }
  func.func @transform_0(%arg0: i32) -> (i32, i32) {
    %c0_i32 = arith.constant 0 : i32
    %c0_i32_0 = arith.constant 0 : i32
    return %arg0, %c0_i32 : i32, i32
  }
  func.func @transform_1(%arg0: i32) -> (i32, i32) {
    %c0_i32 = arith.constant 0 : i32
    %c0_i32_0 = arith.constant 0 : i32
    %c0_i32_1 = arith.constant 0 : i32
    return %c0_i32, %c0_i32_0 : i32, i32
  }
  func.func @transform_2(%arg0: i32) -> (i32, i32) {
    %c0_i32 = arith.constant 0 : i32
    %c0_i32_0 = arith.constant 0 : i32
    %c0_i32_1 = arith.constant 0 : i32
    return %c0_i32, %c0_i32_0 : i32, i32
  }
  func.func @transform_3(%arg0: i32) -> (i32, i32) {
    %c0_i32 = arith.constant 0 : i32
    %c0_i32_0 = arith.constant 0 : i32
    return %arg0, %c0_i32 : i32, i32
  }
}

module attributes {stable_mosaic.version = 11 : i64} {
  func.func @_matmul_bias_kernel(%arg0: i32, %arg1: memref<224x1024xbf16, #tpu.memory_space<vmem>>, %arg2: memref<1024x128xbf16, #tpu.memory_space<vmem>>, %arg3: memref<1x128xf32, #tpu.memory_space<vmem>>, %arg4: memref<224x128xbf16, #tpu.memory_space<vmem>>) attributes {dimension_semantics = [#tpu.dimension_semantics<parallel>], iteration_bounds = array<i64: 1>, scalar_prefetch = 0 : i64, scratch_operands = 0 : i64, tpu.core_type = #tpu.core_type<tc>, window_params = [{transform_indices = @transform_0, window_bounds = array<i64: 224, 1024>}, {pipeline_mode = #tpu.pipeline_mode<synchronous>, transform_indices = @transform_1, window_bounds = array<i64: 1024, 128>}, {pipeline_mode = #tpu.pipeline_mode<synchronous>, transform_indices = @transform_2, window_bounds = array<i64: 1, 128>}, {transform_indices = @transform_3, window_bounds = array<i64: 224, 128>}]} {
    %c0 = arith.constant 0 : index
    %c0_0 = arith.constant 0 : index
    %0 = vector.load %arg1[%c0, %c0_0] : memref<224x1024xbf16, #tpu.memory_space<vmem>>, vector<224x1024xbf16>
    %c0_1 = arith.constant 0 : index
    %c0_2 = arith.constant 0 : index
    %1 = vector.load %arg2[%c0_1, %c0_2] : memref<1024x128xbf16, #tpu.memory_space<vmem>>, vector<1024x128xbf16>
    %cst = arith.constant dense<0.000000e+00> : vector<224x128xf32>
    %2 = tpu.matmul %0, %1, %cst {dimension_numbers = #tpu.dot_dimension_numbers<[1], [0], [0], [1], [0, 0, 1, 1], [], []>} : vector<224x1024xbf16>, vector<1024x128xbf16>, vector<224x128xf32> -> vector<224x128xf32>
    %c0_3 = arith.constant 0 : index
    %c0_4 = arith.constant 0 : index
    %3 = vector.load %arg3[%c0_3, %c0_4] : memref<1x128xf32, #tpu.memory_space<vmem>>, vector<1x128xf32>
    %4 = vector.broadcast %3 : vector<1x128xf32> to vector<224x128xf32>
    %5 = arith.addf %2, %4 : vector<224x128xf32>
    %cst_5 = arith.constant 0.000000e+00 : f32
    %6 = vector.broadcast %cst_5 : f32 to vector<224x128xf32>
    %7 = arith.maximumf %5, %6 : vector<224x128xf32>
    %8 = arith.truncf %7 : vector<224x128xf32> to vector<224x128xbf16>
    %c0_6 = arith.constant 0 : index
    %c0_7 = arith.constant 0 : index
    %9 = vector.load %arg4[%c0_6, %c0_7] : memref<224x128xbf16, #tpu.memory_space<vmem>>, vector<224x128xbf16>
    tpu.vector_store %arg4[%c0_6, %c0_7], %8 {strides = array<i32>} : memref<224x128xbf16, #tpu.memory_space<vmem>>, vector<224x128xbf16>,
    return
  }
  func.func @transform_0(%arg0: i32) -> (i32, i32) {
    %c0_i32 = arith.constant 0 : i32
    %c0_i32_0 = arith.constant 0 : i32
    return %arg0, %c0_i32 : i32, i32
  }
  func.func @transform_1(%arg0: i32) -> (i32, i32) {
    %c0_i32 = arith.constant 0 : i32
    %c0_i32_0 = arith.constant 0 : i32
    %c0_i32_1 = arith.constant 0 : i32
    return %c0_i32, %c0_i32_0 : i32, i32
  }
  func.func @transform_2(%arg0: i32) -> (i32, i32) {
    %c0_i32 = arith.constant 0 : i32
    %c0_i32_0 = arith.constant 0 : i32
    %c0_i32_1 = arith.constant 0 : i32
    return %c0_i32, %c0_i32_0 : i32, i32
  }
  func.func @transform_3(%arg0: i32) -> (i32, i32) {
    %c0_i32 = arith.constant 0 : i32
    %c0_i32_0 = arith.constant 0 : i32
    return %arg0, %c0_i32 : i32, i32
  }
}

module attributes {stable_mosaic.version = 11 : i64} {
  func.func @_matmul_bias_kernel(%arg0: i32, %arg1: memref<128x512xbf16, #tpu.memory_space<vmem>>, %arg2: memref<512x128xbf16, #tpu.memory_space<vmem>>, %arg3: memref<1x128xf32, #tpu.memory_space<vmem>>, %arg4: memref<128x128xbf16, #tpu.memory_space<vmem>>) attributes {dimension_semantics = [#tpu.dimension_semantics<parallel>], iteration_bounds = array<i64: 1>, scalar_prefetch = 0 : i64, scratch_operands = 0 : i64, tpu.core_type = #tpu.core_type<tc>, window_params = [{transform_indices = @transform_0, window_bounds = array<i64: 128, 512>}, {pipeline_mode = #tpu.pipeline_mode<synchronous>, transform_indices = @transform_1, window_bounds = array<i64: 512, 128>}, {pipeline_mode = #tpu.pipeline_mode<synchronous>, transform_indices = @transform_2, window_bounds = array<i64: 1, 128>}, {transform_indices = @transform_3, window_bounds = array<i64: 128, 128>}]} {
    %c0 = arith.constant 0 : index
    %c0_0 = arith.constant 0 : index
    %0 = vector.load %arg1[%c0, %c0_0] : memref<128x512xbf16, #tpu.memory_space<vmem>>, vector<128x512xbf16>
    %c0_1 = arith.constant 0 : index
    %c0_2 = arith.constant 0 : index
    %1 = vector.load %arg2[%c0_1, %c0_2] : memref<512x128xbf16, #tpu.memory_space<vmem>>, vector<512x128xbf16>
    %cst = arith.constant dense<0.000000e+00> : vector<128x128xf32>
    %2 = tpu.matmul %0, %1, %cst {dimension_numbers = #tpu.dot_dimension_numbers<[1], [0], [0], [1], [0, 0, 1, 1], [], []>} : vector<128x512xbf16>, vector<512x128xbf16>, vector<128x128xf32> -> vector<128x128xf32>
    %c0_3 = arith.constant 0 : index
    %c0_4 = arith.constant 0 : index
    %3 = vector.load %arg3[%c0_3, %c0_4] : memref<1x128xf32, #tpu.memory_space<vmem>>, vector<1x128xf32>
    %4 = vector.broadcast %3 : vector<1x128xf32> to vector<128x128xf32>
    %5 = arith.addf %2, %4 : vector<128x128xf32>
    %cst_5 = arith.constant 0.000000e+00 : f32
    %6 = vector.broadcast %cst_5 : f32 to vector<128x128xf32>
    %7 = arith.maximumf %5, %6 : vector<128x128xf32>
    %8 = arith.truncf %7 : vector<128x128xf32> to vector<128x128xbf16>
    %c0_6 = arith.constant 0 : index
    %c0_7 = arith.constant 0 : index
    %9 = vector.load %arg4[%c0_6, %c0_7] : memref<128x128xbf16, #tpu.memory_space<vmem>>, vector<128x128xbf16>
    tpu.vector_store %arg4[%c0_6, %c0_7], %8 {strides = array<i32>} : memref<128x128xbf16, #tpu.memory_space<vmem>>, vector<128x128xbf16>,
    return
  }
  func.func @transform_0(%arg0: i32) -> (i32, i32) {
    %c0_i32 = arith.constant 0 : i32
    %c0_i32_0 = arith.constant 0 : i32
    return %arg0, %c0_i32 : i32, i32
  }
  func.func @transform_1(%arg0: i32) -> (i32, i32) {
    %c0_i32 = arith.constant 0 : i32
    %c0_i32_0 = arith.constant 0 : i32
    %c0_i32_1 = arith.constant 0 : i32
    return %c0_i32, %c0_i32_0 : i32, i32
  }
  func.func @transform_2(%arg0: i32) -> (i32, i32) {
    %c0_i32 = arith.constant 0 : i32
    %c0_i32_0 = arith.constant 0 : i32
    %c0_i32_1 = arith.constant 0 : i32
    return %c0_i32, %c0_i32_0 : i32, i32
  }
  func.func @transform_3(%arg0: i32) -> (i32, i32) {
    %c0_i32 = arith.constant 0 : i32
    %c0_i32_0 = arith.constant 0 : i32
    return %arg0, %c0_i32 : i32, i32
  }
}

module attributes {stable_mosaic.version = 11 : i64} {
  func.func @_matmul_bias_kernel(%arg0: i32, %arg1: memref<48x640xbf16, #tpu.memory_space<vmem>>, %arg2: memref<640x128xbf16, #tpu.memory_space<vmem>>, %arg3: memref<1x128xf32, #tpu.memory_space<vmem>>, %arg4: memref<48x128xbf16, #tpu.memory_space<vmem>>) attributes {dimension_semantics = [#tpu.dimension_semantics<parallel>], iteration_bounds = array<i64: 1>, scalar_prefetch = 0 : i64, scratch_operands = 0 : i64, tpu.core_type = #tpu.core_type<tc>, window_params = [{transform_indices = @transform_0, window_bounds = array<i64: 48, 640>}, {pipeline_mode = #tpu.pipeline_mode<synchronous>, transform_indices = @transform_1, window_bounds = array<i64: 640, 128>}, {pipeline_mode = #tpu.pipeline_mode<synchronous>, transform_indices = @transform_2, window_bounds = array<i64: 1, 128>}, {transform_indices = @transform_3, window_bounds = array<i64: 48, 128>}]} {
    %c0 = arith.constant 0 : index
    %c0_0 = arith.constant 0 : index
    %0 = vector.load %arg1[%c0, %c0_0] : memref<48x640xbf16, #tpu.memory_space<vmem>>, vector<48x640xbf16>
    %c0_1 = arith.constant 0 : index
    %c0_2 = arith.constant 0 : index
    %1 = vector.load %arg2[%c0_1, %c0_2] : memref<640x128xbf16, #tpu.memory_space<vmem>>, vector<640x128xbf16>
    %cst = arith.constant dense<0.000000e+00> : vector<48x128xf32>
    %2 = tpu.matmul %0, %1, %cst {dimension_numbers = #tpu.dot_dimension_numbers<[1], [0], [0], [1], [0, 0, 1, 1], [], []>} : vector<48x640xbf16>, vector<640x128xbf16>, vector<48x128xf32> -> vector<48x128xf32>
    %c0_3 = arith.constant 0 : index
    %c0_4 = arith.constant 0 : index
    %3 = vector.load %arg3[%c0_3, %c0_4] : memref<1x128xf32, #tpu.memory_space<vmem>>, vector<1x128xf32>
    %4 = vector.broadcast %3 : vector<1x128xf32> to vector<48x128xf32>
    %5 = arith.addf %2, %4 : vector<48x128xf32>
    %cst_5 = arith.constant 0.000000e+00 : f32
    %6 = vector.broadcast %cst_5 : f32 to vector<48x128xf32>
    %7 = arith.maximumf %5, %6 : vector<48x128xf32>
    %8 = arith.truncf %7 : vector<48x128xf32> to vector<48x128xbf16>
    %c0_6 = arith.constant 0 : index
    %c0_7 = arith.constant 0 : index
    %9 = vector.load %arg4[%c0_6, %c0_7] : memref<48x128xbf16, #tpu.memory_space<vmem>>, vector<48x128xbf16>
    tpu.vector_store %arg4[%c0_6, %c0_7], %8 {strides = array<i32>} : memref<48x128xbf16, #tpu.memory_space<vmem>>, vector<48x128xbf16>,
    return
  }
  func.func @transform_0(%arg0: i32) -> (i32, i32) {
    %c0_i32 = arith.constant 0 : i32
    %c0_i32_0 = arith.constant 0 : i32
    return %arg0, %c0_i32 : i32, i32
  }
  func.func @transform_1(%arg0: i32) -> (i32, i32) {
    %c0_i32 = arith.constant 0 : i32
    %c0_i32_0 = arith.constant 0 : i32
    %c0_i32_1 = arith.constant 0 : i32
    return %c0_i32, %c0_i32_0 : i32, i32
  }
  func.func @transform_2(%arg0: i32) -> (i32, i32) {
    %c0_i32 = arith.constant 0 : i32
    %c0_i32_0 = arith.constant 0 : i32
    %c0_i32_1 = arith.constant 0 : i32
    return %c0_i32, %c0_i32_0 : i32, i32
  }
  func.func @transform_3(%arg0: i32) -> (i32, i32) {
    %c0_i32 = arith.constant 0 : i32
    %c0_i32_0 = arith.constant 0 : i32
    return %arg0, %c0_i32 : i32, i32
  }
}

module attributes {stable_mosaic.version = 11 : i64} {
  func.func @_fc_stack_kernel(%arg0: memref<8x1152xbf16, #tpu.memory_space<vmem>>, %arg1: memref<1152x128xbf16, #tpu.memory_space<vmem>>, %arg2: memref<1x128xf32, #tpu.memory_space<vmem>>, %arg3: memref<128x128xbf16, #tpu.memory_space<vmem>>, %arg4: memref<1x128xf32, #tpu.memory_space<vmem>>, %arg5: memref<128x128xbf16, #tpu.memory_space<vmem>>, %arg6: memref<1x128xf32, #tpu.memory_space<vmem>>, %arg7: memref<128x128xbf16, #tpu.memory_space<vmem>>, %arg8: memref<1x128xf32, #tpu.memory_space<vmem>>, %arg9: memref<8x128xf32, #tpu.memory_space<vmem>>) attributes {dimension_semantics = [], scalar_prefetch = 0 : i64, scratch_operands = 0 : i64, tpu.core_type = #tpu.core_type<tc>} {
    %c0 = arith.constant 0 : index
    %c0_0 = arith.constant 0 : index
    %0 = vector.load %arg0[%c0, %c0_0] : memref<8x1152xbf16, #tpu.memory_space<vmem>>, vector<8x1152xbf16>
    %c0_1 = arith.constant 0 : index
    %c0_2 = arith.constant 0 : index
    %1 = vector.load %arg1[%c0_1, %c0_2] : memref<1152x128xbf16, #tpu.memory_space<vmem>>, vector<1152x128xbf16>
    %cst = arith.constant dense<0.000000e+00> : vector<8x128xf32>
    %2 = tpu.matmul %0, %1, %cst {dimension_numbers = #tpu.dot_dimension_numbers<[1], [0], [0], [1], [0, 0, 1, 1], [], []>} : vector<8x1152xbf16>, vector<1152x128xbf16>, vector<8x128xf32> -> vector<8x128xf32>
    %c0_3 = arith.constant 0 : index
    %c0_4 = arith.constant 0 : index
    %3 = vector.load %arg2[%c0_3, %c0_4] : memref<1x128xf32, #tpu.memory_space<vmem>>, vector<1x128xf32>
    %4 = vector.broadcast %3 : vector<1x128xf32> to vector<8x128xf32>
    %5 = arith.addf %2, %4 : vector<8x128xf32>
    %cst_5 = arith.constant 0.000000e+00 : f32
    %6 = vector.broadcast %cst_5 : f32 to vector<8x128xf32>
    %7 = arith.maximumf %5, %6 : vector<8x128xf32>
    %8 = arith.truncf %7 : vector<8x128xf32> to vector<8x128xbf16>
    %c0_6 = arith.constant 0 : index
    %c0_7 = arith.constant 0 : index
    %9 = vector.load %arg3[%c0_6, %c0_7] : memref<128x128xbf16, #tpu.memory_space<vmem>>, vector<128x128xbf16>
    %cst_8 = arith.constant dense<0.000000e+00> : vector<8x128xf32>
    %10 = tpu.matmul %8, %9, %cst_8 {dimension_numbers = #tpu.dot_dimension_numbers<[1], [0], [0], [1], [0, 0, 1, 1], [], []>} : vector<8x128xbf16>, vector<128x128xbf16>, vector<8x128xf32> -> vector<8x128xf32>
    %c0_9 = arith.constant 0 : index
    %c0_10 = arith.constant 0 : index
    %11 = vector.load %arg4[%c0_9, %c0_10] : memref<1x128xf32, #tpu.memory_space<vmem>>, vector<1x128xf32>
    %12 = vector.broadcast %11 : vector<1x128xf32> to vector<8x128xf32>
    %13 = arith.addf %10, %12 : vector<8x128xf32>
    %cst_11 = arith.constant 0.000000e+00 : f32
    %14 = vector.broadcast %cst_11 : f32 to vector<8x128xf32>
    %15 = arith.maximumf %13, %14 : vector<8x128xf32>
    %16 = arith.truncf %15 : vector<8x128xf32> to vector<8x128xbf16>
    %c0_12 = arith.constant 0 : index
    %c0_13 = arith.constant 0 : index
    %17 = vector.load %arg5[%c0_12, %c0_13] : memref<128x128xbf16, #tpu.memory_space<vmem>>, vector<128x128xbf16>
    %cst_14 = arith.constant dense<0.000000e+00> : vector<8x128xf32>
    %18 = tpu.matmul %16, %17, %cst_14 {dimension_numbers = #tpu.dot_dimension_numbers<[1], [0], [0], [1], [0, 0, 1, 1], [], []>} : vector<8x128xbf16>, vector<128x128xbf16>, vector<8x128xf32> -> vector<8x128xf32>
    %c0_15 = arith.constant 0 : index
    %c0_16 = arith.constant 0 : index
    %19 = vector.load %arg6[%c0_15, %c0_16] : memref<1x128xf32, #tpu.memory_space<vmem>>, vector<1x128xf32>
    %20 = vector.broadcast %19 : vector<1x128xf32> to vector<8x128xf32>
    %21 = arith.addf %18, %20 : vector<8x128xf32>
    %cst_17 = arith.constant 0.000000e+00 : f32
    %22 = vector.broadcast %cst_17 : f32 to vector<8x128xf32>
    %23 = arith.maximumf %21, %22 : vector<8x128xf32>
    %24 = arith.truncf %23 : vector<8x128xf32> to vector<8x128xbf16>
    %c0_18 = arith.constant 0 : index
    %c0_19 = arith.constant 0 : index
    %25 = vector.load %arg7[%c0_18, %c0_19] : memref<128x128xbf16, #tpu.memory_space<vmem>>, vector<128x128xbf16>
    %cst_20 = arith.constant dense<0.000000e+00> : vector<8x128xf32>
    %26 = tpu.matmul %24, %25, %cst_20 {dimension_numbers = #tpu.dot_dimension_numbers<[1], [0], [0], [1], [0, 0, 1, 1], [], []>} : vector<8x128xbf16>, vector<128x128xbf16>, vector<8x128xf32> -> vector<8x128xf32>
    %c0_21 = arith.constant 0 : index
    %c0_22 = arith.constant 0 : index
    %27 = vector.load %arg8[%c0_21, %c0_22] : memref<1x128xf32, #tpu.memory_space<vmem>>, vector<1x128xf32>
    %28 = vector.broadcast %27 : vector<1x128xf32> to vector<8x128xf32>
    %29 = arith.addf %26, %28 : vector<8x128xf32>
    %c0_23 = arith.constant 0 : index
    %c0_24 = arith.constant 0 : index
    %30 = vector.load %arg9[%c0_23, %c0_24] : memref<8x128xf32, #tpu.memory_space<vmem>>, vector<8x128xf32>
    tpu.vector_store %arg9[%c0_23, %c0_24], %29 {strides = array<i32>} : memref<8x128xf32, #tpu.memory_space<vmem>>, vector<8x128xf32>,
    return
  }
}

</mosaic_0001>

<llo_original>
// kernel: pilot_net_forward.6
$region0: #{pilot_net_forward.6}
  #allocation0 [shape = 'u32[]', space=smem, size = 0x4, offset = 0x4, fixed_abs, tag = 'smem constant byte address 0x4 - core index']
  #allocation1 [shape = 'u32[72,128]{1,0:T(1,128)}', space=vmem, size = 0x9000, scoped, tag = 'internal scratch']
  %s0 = inlined_call_operand.vmem [shape: bf16[6144,128], index: 0, kind: input, shape index: {}]
  %s1 = inlined_call_operand.vmem [shape: bf16[128,128], index: 1, kind: input, shape index: {}]
  %s2 = inlined_call_operand.vmem [shape: f32[1,128], index: 2, kind: input, shape index: {}]
  %s3 = inlined_call_operand.vmem [shape: bf16[6144,128], index: 3, kind: output, shape index: {}]
  %s4 = sld [smem:[#allocation0]]
  $region45: #{pilot_net_forward.6} parent=0
    _
  %s6 = ssub.s32 1, %s4
  %s7 = scalar_select 0, %s6, %s4
  loop: start=0, step=1, limit=8
  $region2: #{pilot_net_forward.6} parent=0 // loop_pre_header
    _
  $region3: #{pilot_net_forward.6} parent=0 // loop_header
    %s9 = sphi 0, %s13
    %p10 = scmp.ge.s32.totalorder %s9, 8
    %s19 = sphi 0, %s21
    %s22 = sphi 0, %s19
    %s23 = sphi 0, %s22
    %s39 = sphi 0, %s23
    %s43 = sphi 0, %s43
    %s45 = sphi 0, %s43
    %s46 = sphi 0, %s45
    %s60 = sphi 0, %s46
    %s64 = sphi 0, %s64
    %s66 = sphi 0, %s64
    %s67 = sphi 0, %s66
    %s81 = sphi 0, %s67
    %s87 = sphi 0, %s89
    %s90 = sphi 0, %s87
    %s91 = sphi 0, %s90
    %s107 = sphi 0, %s91
  $region4: #{pilot_net_forward.6} parent=0 // loop_header_branch
    %12 = sbr.rel (%p10) target = $region8
  $region5: #{pilot_net_forward.6} parent=0 // loop_body
    %s14 = ssub.s32 %s9, 1
    %s15 = ssub.s32 %s9, 2
    %s16 = sadd.s32 %s9, 1
    %s17 = ssub.s32 %s9, %s16
    %p18 = scmp.eq.s32.totalorder %s17, 0
    %s20 = sadd.s32 %s19, 1
    %s21 = scalar_select %p18, %s19, %s20
    %p24 = pneg %p18
    %p25 = scmp.eq.s32.totalorder %s9, 5
    %p26 = por %p24, %p25
    %p27 = scmp.ne.s32.totalorder %s19, %s22
    %p28 = scmp.eq.s32.totalorder %s9, 0
    %p29 = por %p27, %p28
    %p30 = scmp.ne.s32.totalorder %s19, %s22
    %p31 = scmp.eq.s32.totalorder %s14, 5
    %p32 = por %p30, %p31
    %p33 = scmp.ne.s32.totalorder %s22, %s23
    %p34 = scmp.eq.s32.totalorder %s14, 0
    %p35 = por %p33, %p34
    %p36 = scmp.ne.s32.totalorder %s22, %s23
    %p37 = scmp.eq.s32.totalorder %s15, 5
    %p38 = por %p36, %p37
    %p40 = scmp.ne.s32.totalorder %s23, %s39
    %p41 = scmp.eq.s32.totalorder %s15, 0
    %p42 = por %p40, %p41
    %s44 = sadd.s32 %s43, 1
    %p47 = scmp.eq.s32.totalorder %s9, 5
    %p48 = scmp.ne.s32.totalorder %s43, %s45
    %p49 = scmp.eq.s32.totalorder %s9, 0
    %p50 = por %p48, %p49
    %p51 = scmp.ne.s32.totalorder %s43, %s45
    %p52 = scmp.eq.s32.totalorder %s14, 5
    %p53 = por %p51, %p52
    %p54 = scmp.ne.s32.totalorder %s45, %s46
    %p55 = scmp.eq.s32.totalorder %s14, 0
    %p56 = por %p54, %p55
    %p57 = scmp.ne.s32.totalorder %s45, %s46
    %p58 = scmp.eq.s32.totalorder %s15, 5
    %p59 = por %p57, %p58
    %p61 = scmp.ne.s32.totalorder %s46, %s60
    %p62 = scmp.eq.s32.totalorder %s15, 0
    %p63 = por %p61, %p62
    %s65 = sadd.s32 %s64, 1
    %p68 = scmp.eq.s32.totalorder %s9, 5
    %p69 = scmp.ne.s32.totalorder %s64, %s66
    %p70 = scmp.eq.s32.totalorder %s9, 0
    %p71 = por %p69, %p70
    %p72 = scmp.ne.s32.totalorder %s64, %s66
    %p73 = scmp.eq.s32.totalorder %s14, 5
    %p74 = por %p72, %p73
    %p75 = scmp.ne.s32.totalorder %s66, %s67
    %p76 = scmp.eq.s32.totalorder %s14, 0
    %p77 = por %p75, %p76
    %p78 = scmp.ne.s32.totalorder %s66, %s67
    %p79 = scmp.eq.s32.totalorder %s15, 5
    %p80 = por %p78, %p79
    %p82 = scmp.ne.s32.totalorder %s67, %s81
    %p83 = scmp.eq.s32.totalorder %s15, 0
    %p84 = por %p82, %p83
    %s85 = ssub.s32 %s9, %s16
    %p86 = scmp.eq.s32.totalorder %s85, 0
    %s88 = sadd.s32 %s87, 1
    %s89 = scalar_select %p86, %s87, %s88
    %p92 = pneg %p86
    %p93 = scmp.eq.s32.totalorder %s9, 5
    %p94 = por %p92, %p93
    %p95 = scmp.ne.s32.totalorder %s87, %s90
    %p96 = scmp.eq.s32.totalorder %s9, 0
    %p97 = por %p95, %p96
    %p98 = scmp.ne.s32.totalorder %s87, %s90
    %p99 = scmp.eq.s32.totalorder %s14, 5
    %p100 = por %p98, %p99
    %p101 = scmp.ne.s32.totalorder %s90, %s91
    %p102 = scmp.eq.s32.totalorder %s14, 0
    %p103 = por %p101, %p102
    %p104 = scmp.ne.s32.totalorder %s90, %s91
    %p105 = scmp.eq.s32.totalorder %s15, 5
    %p106 = por %p104, %p105
    %p108 = scmp.ne.s32.totalorder %s91, %s107
    %p109 = scmp.eq.s32.totalorder %s15, 0
    %p110 = por %p108, %p109
    %p111 = scmp.le.s32.totalorder 1, %s9
    %p112 = scmp.lt.s32.totalorder %s9, 7
    %p113 = pnand %p111, %p112
    %p114 = pneg %p113
    // Predicated region
    $region9: #{pilot_net_forward.6} parent=5 // pred_check
      _
    $region10: #{pilot_net_forward.6} parent=5 // pred_check_branch
      %116 = sbr.rel (%p113) target = $region12
    $region11: #{pilot_net_forward.6} parent=5 // pred_region
      %s117 = ssub.s32 %s9, 1
      // Predicated region
      $region13: #{pilot_net_forward.6} parent=11 // pred_check
        %p118 = pneg %p56
      $region14: #{pilot_net_forward.6} parent=11 // pred_check_branch
        %120 = sbr.rel (%p118) target = $region16
      $region15: #{pilot_net_forward.6} parent=11 // pred_region
        _
      $region16: #{pilot_net_forward.6} parent=11 // pred_fallthru
        _
      // Predicated region
      $region17: #{pilot_net_forward.6} parent=11 // pred_check
        %p121 = pneg %p77
      $region18: #{pilot_net_forward.6} parent=11 // pred_check_branch
        %123 = sbr.rel (%p121) target = $region20
      $region19: #{pilot_net_forward.6} parent=11 // pred_region
        _
      $region20: #{pilot_net_forward.6} parent=11 // pred_fallthru
        _
    $region12: #{pilot_net_forward.6} parent=5 // pred_fallthru
      _
    %p124 = scmp.lt.s32.totalorder %s9, 6
    // Predicated region
    $region21: #{pilot_net_forward.6} parent=5 // pred_check
      %p125 = pneg %p124
    $region22: #{pilot_net_forward.6} parent=5 // pred_check_branch
      %127 = sbr.rel (%p125) target = $region24
    $region23: #{pilot_net_forward.6} parent=5 // pred_region
      // Predicated region
      $region25: #{pilot_net_forward.6} parent=23 // pred_check
        %p128 = pneg %p29
      $region26: #{pilot_net_forward.6} parent=23 // pred_check_branch
        %130 = sbr.rel (%p128) target = $region28
      $region27: #{pilot_net_forward.6} parent=23 // pred_region
        %s131 = smul.u32 128, %s9
        %p132 = scmp.lt.s32.totalorder %s131, 767
        %s133 = scalar_select %p132, %s131, 767
        %s134 = smul.addr %s133, 4
        %s135 = scalar_lea.vmem %s0, %s134
        %s136 = smul.u32 128, %s9
      $region28: #{pilot_net_forward.6} parent=23 // pred_fallthru
        _
    $region24: #{pilot_net_forward.6} parent=5 // pred_fallthru
      _
    %p137 = scmp.le.s32.totalorder 1, %s9
    %p138 = scmp.lt.s32.totalorder %s9, 7
    %p139 = pnand %p137, %p138
    %p140 = pneg %p139
    // Predicated region
    $region29: #{pilot_net_forward.6} parent=5 // pred_check
      _
    $region30: #{pilot_net_forward.6} parent=5 // pred_check_branch
      %142 = sbr.rel (%p139) target = $region32
    $region31: #{pilot_net_forward.6} parent=5 // pred_region
      %s143 = ssub.s32 %s9, 1
      %s144 = smul.u32 128, %s14
      %p145 = scmp.lt.s32.totalorder %s144, 767
      %s146 = scalar_select %p145, %s144, 767
      %s147 = smul.addr %s146, 4
      %s148 = scalar_lea.vmem %s0, %s147
      %p149 = pneg %p35
      %p150 = pneg %p32
      %p151 = pneg %p56
      %p152 = pneg %p53
      %p153 = pneg %p77
      %p154 = pneg %p74
      %p155 = pneg %p103
      %p156 = pneg %p100
      %s157 = smul.u32 128, %s14
      %p158 = scmp.lt.s32.totalorder %s157, 767
      %s159 = scalar_select %p158, %s157, 767
      %s160 = smul.addr %s159, 4
      %s161 = scalar_lea.vmem %s3, %s160
      %s162 = smul.u32 128, %s14
      %p163 = scmp.lt.s32.totalorder %s162, 767
      %s164 = scalar_select %p163, %s162, 767
      %s165 = smul.addr %s164, 4
      %s166 = scalar_lea.vmem %s0, %s165
      %s167 = smul.u32 128, %s14
      %s168 = smul.u32 128, %s14
      %p169 = scmp.lt.s32.totalorder %s168, 767
      %s170 = scalar_select %p169, %s168, 767
      %s171 = smul.addr %s170, 4
      %s172 = scalar_lea.vmem %s3, %s171
      %s173 = smul.u32 128, %s14
      %v174 = vld [vmem:[%s166] sm:$0xf]
      %v175 = vld [vmem:[%s166 + $0x4] sm:$0xf]
      %v176 = vld [vmem:[%s166 + $0x8] sm:$0xf]
      %v177 = vld [vmem:[%s166 + $0xc] sm:$0xf]
      %v178 = vld [vmem:[%s166 + $0x10] sm:$0xf]
      %v179 = vld [vmem:[%s166 + $0x14] sm:$0xf]
      %v180 = vld [vmem:[%s166 + $0x18] sm:$0xf]
      %v181 = vld [vmem:[%s166 + $0x1c] sm:$0xf]
      %v182 = vld [vmem:[%s166 + $0x20] sm:$0xf]
      %v183 = vld [vmem:[%s166 + $0x24] sm:$0xf]
      %v184 = vld [vmem:[%s166 + $0x28] sm:$0xf]
      %v185 = vld [vmem:[%s166 + $0x2c] sm:$0xf]
      %v186 = vld [vmem:[%s166 + $0x30] sm:$0xf]
      %v187 = vld [vmem:[%s166 + $0x34] sm:$0xf]
      %v188 = vld [vmem:[%s166 + $0x38] sm:$0xf]
      %v189 = vld [vmem:[%s166 + $0x3c] sm:$0xf]
      %v190 = vld [vmem:[%s166 + $0x40] sm:$0xf]
      %v191 = vld [vmem:[%s166 + $0x44] sm:$0xf]
      %v192 = vld [vmem:[%s166 + $0x48] sm:$0xf]
      %v193 = vld [vmem:[%s166 + $0x4c] sm:$0xf]
      %v194 = vld [vmem:[%s166 + $0x50] sm:$0xf]
      %v195 = vld [vmem:[%s166 + $0x54] sm:$0xf]
      %v196 = vld [vmem:[%s166 + $0x58] sm:$0xf]
      %v197 = vld [vmem:[%s166 + $0x5c] sm:$0xf]
      %v198 = vld [vmem:[%s166 + $0x60] sm:$0xf]
      %v199 = vld [vmem:[%s166 + $0x64] sm:$0xf]
      %v200 = vld [vmem:[%s166 + $0x68] sm:$0xf]
      %v201 = vld [vmem:[%s166 + $0x6c] sm:$0xf]
      %v202 = vld [vmem:[%s166 + $0x70] sm:$0xf]
      %v203 = vld [vmem:[%s166 + $0x74] sm:$0xf]
      %v204 = vld [vmem:[%s166 + $0x78] sm:$0xf]
      %v205 = vld [vmem:[%s166 + $0x7c] sm:$0xf]
      %v206 = vld [vmem:[%s166 + $0x80] sm:$0xf]
      %v207 = vld [vmem:[%s166 + $0x84] sm:$0xf]
      %v208 = vld [vmem:[%s166 + $0x88] sm:$0xf]
      %v209 = vld [vmem:[%s166 + $0x8c] sm:$0xf]
      %v210 = vld [vmem:[%s166 + $0x90] sm:$0xf]
      %v211 = vld [vmem:[%s166 + $0x94] sm:$0xf]
      %v212 = vld [vmem:[%s166 + $0x98] sm:$0xf]
      %v213 = vld [vmem:[%s166 + $0x9c] sm:$0xf]
      %v214 = vld [vmem:[%s166 + $0xa0] sm:$0xf]
      %v215 = vld [vmem:[%s166 + $0xa4] sm:$0xf]
      %v216 = vld [vmem:[%s166 + $0xa8] sm:$0xf]
      %v217 = vld [vmem:[%s166 + $0xac] sm:$0xf]
      %v218 = vld [vmem:[%s166 + $0xb0] sm:$0xf]
      %v219 = vld [vmem:[%s166 + $0xb4] sm:$0xf]
      %v220 = vld [vmem:[%s166 + $0xb8] sm:$0xf]
      %v221 = vld [vmem:[%s166 + $0xbc] sm:$0xf]
      %v222 = vld [vmem:[%s166 + $0xc0] sm:$0xf]
      %v223 = vld [vmem:[%s166 + $0xc4] sm:$0xf]
      %v224 = vld [vmem:[%s166 + $0xc8] sm:$0xf]
      %v225 = vld [vmem:[%s166 + $0xcc] sm:$0xf]
      %v226 = vld [vmem:[%s166 + $0xd0] sm:$0xf]
      %v227 = vld [vmem:[%s166 + $0xd4] sm:$0xf]
      %v228 = vld [vmem:[%s166 + $0xd8] sm:$0xf]
      %v229 = vld [vmem:[%s166 + $0xdc] sm:$0xf]
      %v230 = vld [vmem:[%s166 + $0xe0] sm:$0xf]
      %v231 = vld [vmem:[%s166 + $0xe4] sm:$0xf]
      %v232 = vld [vmem:[%s166 + $0xe8] sm:$0xf]
      %v233 = vld [vmem:[%s166 + $0xec] sm:$0xf]
      %v234 = vld [vmem:[%s166 + $0xf0] sm:$0xf]
      %v235 = vld [vmem:[%s166 + $0xf4] sm:$0xf]
      %v236 = vld [vmem:[%s166 + $0xf8] sm:$0xf]
      %v237 = vld [vmem:[%s166 + $0xfc] sm:$0xf]
      %v238 = vld [vmem:[%s166 + $0x100] sm:$0xf]
      %v239 = vld [vmem:[%s166 + $0x104] sm:$0xf]
      %v240 = vld [vmem:[%s166 + $0x108] sm:$0xf]
      %v241 = vld [vmem:[%s166 + $0x10c] sm:$0xf]
      %v242 = vld [vmem:[%s166 + $0x110] sm:$0xf]
      %v243 = vld [vmem:[%s166 + $0x114] sm:$0xf]
      %v244 = vld [vmem:[%s166 + $0x118] sm:$0xf]
      %v245 = vld [vmem:[%s166 + $0x11c] sm:$0xf]
      %v246 = vld [vmem:[%s166 + $0x120] sm:$0xf]
      %v247 = vld [vmem:[%s166 + $0x124] sm:$0xf]
      %v248 = vld [vmem:[%s166 + $0x128] sm:$0xf]
      %v249 = vld [vmem:[%s166 + $0x12c] sm:$0xf]
      %v250 = vld [vmem:[%s166 + $0x130] sm:$0xf]
      %v251 = vld [vmem:[%s166 + $0x134] sm:$0xf]
      %v252 = vld [vmem:[%s166 + $0x138] sm:$0xf]
      %v253 = vld [vmem:[%s166 + $0x13c] sm:$0xf]
      %v254 = vld [vmem:[%s166 + $0x140] sm:$0xf]
      %v255 = vld [vmem:[%s166 + $0x144] sm:$0xf]
      %v256 = vld [vmem:[%s166 + $0x148] sm:$0xf]
      %v257 = vld [vmem:[%s166 + $0x14c] sm:$0xf]
      %v258 = vld [vmem:[%s166 + $0x150] sm:$0xf]
      %v259 = vld [vmem:[%s166 + $0x154] sm:$0xf]
      %v260 = vld [vmem:[%s166 + $0x158] sm:$0xf]
      %v261 = vld [vmem:[%s166 + $0x15c] sm:$0xf]
      %v262 = vld [vmem:[%s166 + $0x160] sm:$0xf]
      %v263 = vld [vmem:[%s166 + $0x164] sm:$0xf]
      %v264 = vld [vmem:[%s166 + $0x168] sm:$0xf]
      %v265 = vld [vmem:[%s166 + $0x16c] sm:$0xf]
      %v266 = vld [vmem:[%s166 + $0x170] sm:$0xf]
      %v267 = vld [vmem:[%s166 + $0x174] sm:$0xf]
      %v268 = vld [vmem:[%s166 + $0x178] sm:$0xf]
      %v269 = vld [vmem:[%s166 + $0x17c] sm:$0xf]
      %v270 = vld [vmem:[%s166 + $0x180] sm:$0xf]
      %v271 = vld [vmem:[%s166 + $0x184] sm:$0xf]
      %v272 = vld [vmem:[%s166 + $0x188] sm:$0xf]
      %v273 = vld [vmem:[%s166 + $0x18c] sm:$0xf]
      %v274 = vld [vmem:[%s166 + $0x190] sm:$0xf]
      %v275 = vld [vmem:[%s166 + $0x194] sm:$0xf]
      %v276 = vld [vmem:[%s166 + $0x198] sm:$0xf]
      %v277 = vld [vmem:[%s166 + $0x19c] sm:$0xf]
      %v278 = vld [vmem:[%s166 + $0x1a0] sm:$0xf]
      %v279 = vld [vmem:[%s166 + $0x1a4] sm:$0xf]
      %v280 = vld [vmem:[%s166 + $0x1a8] sm:$0xf]
      %v281 = vld [vmem:[%s166 + $0x1ac] sm:$0xf]
      %v282 = vld [vmem:[%s166 + $0x1b0] sm:$0xf]
      %v283 = vld [vmem:[%s166 + $0x1b4] sm:$0xf]
      %v284 = vld [vmem:[%s166 + $0x1b8] sm:$0xf]
      %v285 = vld [vmem:[%s166 + $0x1bc] sm:$0xf]
      %v286 = vld [vmem:[%s166 + $0x1c0] sm:$0xf]
      %v287 = vld [vmem:[%s166 + $0x1c4] sm:$0xf]
      %v288 = vld [vmem:[%s166 + $0x1c8] sm:$0xf]
      %v289 = vld [vmem:[%s166 + $0x1cc] sm:$0xf]
      %v290 = vld [vmem:[%s166 + $0x1d0] sm:$0xf]
      %v291 = vld [vmem:[%s166 + $0x1d4] sm:$0xf]
      %v292 = vld [vmem:[%s166 + $0x1d8] sm:$0xf]
      %v293 = vld [vmem:[%s166 + $0x1dc] sm:$0xf]
      %v294 = vld [vmem:[%s166 + $0x1e0] sm:$0xf]
      %v295 = vld [vmem:[%s166 + $0x1e4] sm:$0xf]
      %v296 = vld [vmem:[%s166 + $0x1e8] sm:$0xf]
      %v297 = vld [vmem:[%s166 + $0x1ec] sm:$0xf]
      %v298 = vld [vmem:[%s166 + $0x1f0] sm:$0xf]
      %v299 = vld [vmem:[%s166 + $0x1f4] sm:$0xf]
      %v300 = vld [vmem:[%s166 + $0x1f8] sm:$0xf]
      %v301 = vld [vmem:[%s166 + $0x1fc] sm:$0xf]
      %v302 = vld [vmem:[%s1] sm:$0xf]
      %v303 = vld [vmem:[%s1 + $0x4] sm:$0xf]
      %v304 = vld [vmem:[%s1 + $0x8] sm:$0xf]
      %v305 = vld [vmem:[%s1 + $0xc] sm:$0xf]
      %v306 = vld [vmem:[%s1 + $0x10] sm:$0xf]
      %v307 = vld [vmem:[%s1 + $0x14] sm:$0xf]
      %v308 = vld [vmem:[%s1 + $0x18] sm:$0xf]
      %v309 = vld [vmem:[%s1 + $0x1c] sm:$0xf]
      %v310 = vld [vmem:[%s1 + $0x20] sm:$0xf]
      %v311 = vld [vmem:[%s1 + $0x24] sm:$0xf]
      %v312 = vld [vmem:[%s1 + $0x28] sm:$0xf]
      %v313 = vld [vmem:[%s1 + $0x2c] sm:$0xf]
      %v314 = vld [vmem:[%s1 + $0x30] sm:$0xf]
      %v315 = vld [vmem:[%s1 + $0x34] sm:$0xf]
      %v316 = vld [vmem:[%s1 + $0x38] sm:$0xf]
      %v317 = vld [vmem:[%s1 + $0x3c] sm:$0xf]
      %v318 = vld [vmem:[%s2] sm:$0x1]
      %v320 = vperm.slane %v318, 0
      %v450 = vunpack.c.l.b16 %v174
      %v451 = vunpack.c.l.b16 %v175
      %v452 = vunpack.c.l.b16 %v176
      %v453 = vunpack.c.l.b16 %v177
      %v454 = vunpack.c.l.b16 %v178
      %v455 = vunpack.c.l.b16 %v179
      %v456 = vunpack.c.l.b16 %v180
      %v457 = vunpack.c.l.b16 %v181
      %v458 = vunpack.c.l.b16 %v182
      %v459 = vunpack.c.l.b16 %v183
      %v460 = vunpack.c.l.b16 %v184
      %v461 = vunpack.c.l.b16 %v185
      %v462 = vunpack.c.l.b16 %v186
      %v463 = vunpack.c.l.b16 %v187
      %v464 = vunpack.c.l.b16 %v188
      %v465 = vunpack.c.l.b16 %v189
      %v466 = vunpack.c.l.b16 %v190
      %v467 = vunpack.c.l.b16 %v191
      %v468 = vunpack.c.l.b16 %v192
      %v469 = vunpack.c.l.b16 %v193
      %v470 = vunpack.c.l.b16 %v194
      %v471 = vunpack.c.l.b16 %v195
      %v472 = vunpack.c.l.b16 %v196
      %v473 = vunpack.c.l.b16 %v197
      %v474 = vunpack.c.l.b16 %v198
      %v475 = vunpack.c.l.b16 %v199
      %v476 = vunpack.c.l.b16 %v200
      %v477 = vunpack.c.l.b16 %v201
      %v478 = vunpack.c.l.b16 %v202
      %v479 = vunpack.c.l.b16 %v203
      %v480 = vunpack.c.l.b16 %v204
      %v481 = vunpack.c.l.b16 %v205
      %v482 = vunpack.c.l.b16 %v206
      %v483 = vunpack.c.l.b16 %v207
      %v484 = vunpack.c.l.b16 %v208
      %v485 = vunpack.c.l.b16 %v209
      %v486 = vunpack.c.l.b16 %v210
      %v487 = vunpack.c.l.b16 %v211
      %v488 = vunpack.c.l.b16 %v212
      %v489 = vunpack.c.l.b16 %v213
      %v490 = vunpack.c.l.b16 %v214
      %v491 = vunpack.c.l.b16 %v215
      %v492 = vunpack.c.l.b16 %v216
      %v493 = vunpack.c.l.b16 %v217
      %v494 = vunpack.c.l.b16 %v218
      %v495 = vunpack.c.l.b16 %v219
      %v496 = vunpack.c.l.b16 %v220
      %v497 = vunpack.c.l.b16 %v221
      %v498 = vunpack.c.l.b16 %v222
      %v499 = vunpack.c.l.b16 %v223
      %v500 = vunpack.c.l.b16 %v224
      %v501 = vunpack.c.l.b16 %v225
      %v502 = vunpack.c.l.b16 %v226
      %v503 = vunpack.c.l.b16 %v227
      %v504 = vunpack.c.l.b16 %v228
      %v505 = vunpack.c.l.b16 %v229
      %v506 = vunpack.c.l.b16 %v230
      %v507 = vunpack.c.l.b16 %v231
      %v508 = vunpack.c.l.b16 %v232
      %v509 = vunpack.c.l.b16 %v233
      %v510 = vunpack.c.l.b16 %v234
      %v511 = vunpack.c.l.b16 %v235
      %v512 = vunpack.c.l.b16 %v236
      %v513 = vunpack.c.l.b16 %v237
      %v514 = vunpack.c.l.b16 %v238
      %v515 = vunpack.c.l.b16 %v239
      %v516 = vunpack.c.l.b16 %v240
      %v517 = vunpack.c.l.b16 %v241
      %v518 = vunpack.c.l.b16 %v242
      %v519 = vunpack.c.l.b16 %v243
      %v520 = vunpack.c.l.b16 %v244
      %v521 = vunpack.c.l.b16 %v245
      %v522 = vunpack.c.l.b16 %v246
      %v523 = vunpack.c.l.b16 %v247
      %v524 = vunpack.c.l.b16 %v248
      %v525 = vunpack.c.l.b16 %v249
      %v526 = vunpack.c.l.b16 %v250
      %v527 = vunpack.c.l.b16 %v251
      %v528 = vunpack.c.l.b16 %v252
      %v529 = vunpack.c.l.b16 %v253
      %v530 = vunpack.c.l.b16 %v254
      %v531 = vunpack.c.l.b16 %v255
      %v532 = vunpack.c.l.b16 %v256
      %v533 = vunpack.c.l.b16 %v257
      %v534 = vunpack.c.l.b16 %v258
      %v535 = vunpack.c.l.b16 %v259
      %v536 = vunpack.c.l.b16 %v260
      %v537 = vunpack.c.l.b16 %v261
      %v538 = vunpack.c.l.b16 %v262
      %v539 = vunpack.c.l.b16 %v263
      %v540 = vunpack.c.l.b16 %v264
      %v541 = vunpack.c.l.b16 %v265
      %v542 = vunpack.c.l.b16 %v266
      %v543 = vunpack.c.l.b16 %v267
      %v544 = vunpack.c.l.b16 %v268
      %v545 = vunpack.c.l.b16 %v269
      %v546 = vunpack.c.l.b16 %v270
      %v547 = vunpack.c.l.b16 %v271
      %v548 = vunpack.c.l.b16 %v272
      %v549 = vunpack.c.l.b16 %v273
      %v550 = vunpack.c.l.b16 %v274
      %v551 = vunpack.c.l.b16 %v275
      %v552 = vunpack.c.l.b16 %v276
      %v553 = vunpack.c.l.b16 %v277
      %v554 = vunpack.c.l.b16 %v278
      %v555 = vunpack.c.l.b16 %v279
      %v556 = vunpack.c.l.b16 %v280
      %v557 = vunpack.c.l.b16 %v281
      %v558 = vunpack.c.l.b16 %v282
      %v559 = vunpack.c.l.b16 %v283
      %v560 = vunpack.c.l.b16 %v284
      %v561 = vunpack.c.l.b16 %v285
      %v562 = vunpack.c.l.b16 %v286
      %v563 = vunpack.c.l.b16 %v287
      %v564 = vunpack.c.l.b16 %v288
      %v565 = vunpack.c.l.b16 %v289
      %v566 = vunpack.c.l.b16 %v290
      %v567 = vunpack.c.l.b16 %v291
      %v568 = vunpack.c.l.b16 %v292
      %v569 = vunpack.c.l.b16 %v293
      %v570 = vunpack.c.l.b16 %v294
      %v571 = vunpack.c.l.b16 %v295
      %v572 = vunpack.c.l.b16 %v296
      %v573 = vunpack.c.l.b16 %v297
      %v574 = vunpack.c.l.b16 %v298
      %v575 = vunpack.c.l.b16 %v299
      %v576 = vunpack.c.l.b16 %v300
      %v577 = vunpack.c.l.b16 %v301
      %v578 = vpack.c.b16 %v451, %v450
      %v579 = vpack.c.b16 %v453, %v452
      %v580 = vpack.c.b16 %v455, %v454
      %v581 = vpack.c.b16 %v457, %v456
      %v582 = vpack.c.b16 %v459, %v458
      %v583 = vpack.c.b16 %v461, %v460
      %v584 = vpack.c.b16 %v463, %v462
      %v585 = vpack.c.b16 %v465, %v464
      %v586 = vpack.c.b16 %v467, %v466
      %v587 = vpack.c.b16 %v469, %v468
      %v588 = vpack.c.b16 %v471, %v470
      %v589 = vpack.c.b16 %v473, %v472
      %v590 = vpack.c.b16 %v475, %v474
      %v591 = vpack.c.b16 %v477, %v476
      %v592 = vpack.c.b16 %v479, %v478
      %v593 = vpack.c.b16 %v481, %v480
      %v594 = vpack.c.b16 %v483, %v482
      %v595 = vpack.c.b16 %v485, %v484
      %v596 = vpack.c.b16 %v487, %v486
      %v597 = vpack.c.b16 %v489, %v488
      %v598 = vpack.c.b16 %v491, %v490
      %v599 = vpack.c.b16 %v493, %v492
      %v600 = vpack.c.b16 %v495, %v494
      %v601 = vpack.c.b16 %v497, %v496
      %v602 = vpack.c.b16 %v499, %v498
      %v603 = vpack.c.b16 %v501, %v500
      %v604 = vpack.c.b16 %v503, %v502
      %v605 = vpack.c.b16 %v505, %v504
      %v606 = vpack.c.b16 %v507, %v506
      %v607 = vpack.c.b16 %v509, %v508
      %v608 = vpack.c.b16 %v511, %v510
      %v609 = vpack.c.b16 %v513, %v512
      %v610 = vpack.c.b16 %v515, %v514
      %v611 = vpack.c.b16 %v517, %v516
      %v612 = vpack.c.b16 %v519, %v518
      %v613 = vpack.c.b16 %v521, %v520
      %v614 = vpack.c.b16 %v523, %v522
      %v615 = vpack.c.b16 %v525, %v524
      %v616 = vpack.c.b16 %v527, %v526
      %v617 = vpack.c.b16 %v529, %v528
      %v618 = vpack.c.b16 %v531, %v530
      %v619 = vpack.c.b16 %v533, %v532
      %v620 = vpack.c.b16 %v535, %v534
      %v621 = vpack.c.b16 %v537, %v536
      %v622 = vpack.c.b16 %v539, %v538
      %v623 = vpack.c.b16 %v541, %v540
      %v624 = vpack.c.b16 %v543, %v542
      %v625 = vpack.c.b16 %v545, %v544
      %v626 = vpack.c.b16 %v547, %v546
      %v627 = vpack.c.b16 %v549, %v548
      %v628 = vpack.c.b16 %v551, %v550
      %v629 = vpack.c.b16 %v553, %v552
      %v630 = vpack.c.b16 %v555, %v554
      %v631 = vpack.c.b16 %v557, %v556
      %v632 = vpack.c.b16 %v559, %v558
      %v633 = vpack.c.b16 %v561, %v560
      %v634 = vpack.c.b16 %v563, %v562
      %v635 = vpack.c.b16 %v565, %v564
      %v636 = vpack.c.b16 %v567, %v566
      %v637 = vpack.c.b16 %v569, %v568
      %v638 = vpack.c.b16 %v571, %v570
      %v639 = vpack.c.b16 %v573, %v572
      %v640 = vpack.c.b16 %v575, %v574
      %v641 = vpack.c.b16 %v577, %v576
      %v722 = vunpack.c.l.b16 %v302
      %v723 = vunpack.c.l.b16 %v303
      %v724 = vunpack.c.l.b16 %v304
      %v725 = vunpack.c.l.b16 %v305
      %v726 = vunpack.c.l.b16 %v306
      %v727 = vunpack.c.l.b16 %v307
      %v728 = vunpack.c.l.b16 %v308
      %v729 = vunpack.c.l.b16 %v309
      %v730 = vunpack.c.l.b16 %v310
      %v731 = vunpack.c.l.b16 %v311
      %v732 = vunpack.c.l.b16 %v312
      %v733 = vunpack.c.l.b16 %v313
      %v734 = vunpack.c.l.b16 %v314
      %v735 = vunpack.c.l.b16 %v315
      %v736 = vunpack.c.l.b16 %v316
      %v737 = vunpack.c.l.b16 %v317
      %v738 = vpack.c.b16 %v723, %v722
      %v739 = vpack.c.b16 %v725, %v724
      %v740 = vpack.c.b16 %v727, %v726
      %v741 = vpack.c.b16 %v729, %v728
      %v742 = vpack.c.b16 %v731, %v730
      %v743 = vpack.c.b16 %v733, %v732
      %v744 = vpack.c.b16 %v735, %v734
      %v745 = vpack.c.b16 %v737, %v736
      %754 = vmatpush.bf16.msra.mxu0 %v745
      %755 = vmatpush.bf16.msra.mxu0 %v744
      %756 = vmatpush.bf16.msra.mxu0 %v743
      %757 = vmatpush.bf16.msra.mxu0 %v742
      %758 = vmatpush.bf16.msra.mxu0 %v741
      %759 = vmatpush.bf16.msra.mxu0 %v740
      %760 = vmatpush.bf16.msra.mxu0 %v739
      %761 = vmatpush.bf16.msra.mxu0 %v738
      %762 = vmatmul.bf16.gmra.mxu0 %v578
      %v763 = vpop.f32.mrf.mxu0
      %v764 = vadd.f32 %v320, %v763
      %v765 = vpop.f32.mrf.mxu0
      %v766 = vadd.f32 %v320, %v765
      %767 = vmatmul.bf16.gmra.mxu0 %v579
      %v768 = vpop.f32.mrf.mxu0
      %v769 = vadd.f32 %v320, %v768
      %v770 = vpop.f32.mrf.mxu0
      %v771 = vadd.f32 %v320, %v770
      %772 = vmatmul.bf16.gmra.mxu0 %v580
      %v773 = vpop.f32.mrf.mxu0
      %v774 = vadd.f32 %v320, %v773
      %v775 = vpop.f32.mrf.mxu0
      %v776 = vadd.f32 %v320, %v775
      %777 = vmatmul.bf16.gmra.mxu0 %v581
      %v778 = vpop.f32.mrf.mxu0
      %v779 = vadd.f32 %v320, %v778
      %v780 = vpop.f32.mrf.mxu0
      %v781 = vadd.f32 %v320, %v780
      %782 = vmatmul.bf16.gmra.mxu0 %v582
      %v783 = vpop.f32.mrf.mxu0
      %v784 = vadd.f32 %v320, %v783
      %v785 = vpop.f32.mrf.mxu0
      %v786 = vadd.f32 %v320, %v785
      %787 = vmatmul.bf16.gmra.mxu0 %v583
      %v788 = vpop.f32.mrf.mxu0
      %v789 = vadd.f32 %v320, %v788
      %v790 = vpop.f32.mrf.mxu0
      %v791 = vadd.f32 %v320, %v790
      %792 = vmatmul.bf16.gmra.mxu0 %v584
      %v793 = vpop.f32.mrf.mxu0
      %v794 = vadd.f32 %v320, %v793
      %v795 = vpop.f32.mrf.mxu0
      %v796 = vadd.f32 %v320, %v795
      %797 = vmatmul.bf16.gmra.mxu0 %v585
      %v798 = vpop.f32.mrf.mxu0
      %v799 = vadd.f32 %v320, %v798
      %v800 = vpop.f32.mrf.mxu0
      %v801 = vadd.f32 %v320, %v800
      %802 = vmatmul.bf16.gmra.mxu0 %v586
      %v803 = vpop.f32.mrf.mxu0
      %v804 = vadd.f32 %v320, %v803
      %v805 = vpop.f32.mrf.mxu0
      %v806 = vadd.f32 %v320, %v805
      %807 = vmatmul.bf16.gmra.mxu0 %v587
      %v808 = vpop.f32.mrf.mxu0
      %v809 = vadd.f32 %v320, %v808
      %v810 = vpop.f32.mrf.mxu0
      %v811 = vadd.f32 %v320, %v810
      %812 = vmatmul.bf16.gmra.mxu0 %v588
      %v813 = vpop.f32.mrf.mxu0
      %v814 = vadd.f32 %v320, %v813
      %v815 = vpop.f32.mrf.mxu0
      %v816 = vadd.f32 %v320, %v815
      %817 = vmatmul.bf16.gmra.mxu0 %v589
      %v818 = vpop.f32.mrf.mxu0
      %v819 = vadd.f32 %v320, %v818
      %v820 = vpop.f32.mrf.mxu0
      %v821 = vadd.f32 %v320, %v820
      %822 = vmatmul.bf16.gmra.mxu0 %v590
      %v823 = vpop.f32.mrf.mxu0
      %v824 = vadd.f32 %v320, %v823
      %v825 = vpop.f32.mrf.mxu0
      %v826 = vadd.f32 %v320, %v825
      %827 = vmatmul.bf16.gmra.mxu0 %v591
      %v828 = vpop.f32.mrf.mxu0
      %v829 = vadd.f32 %v320, %v828
      %v830 = vpop.f32.mrf.mxu0
      %v831 = vadd.f32 %v320, %v830
      %832 = vmatmul.bf16.gmra.mxu0 %v592
      %v833 = vpop.f32.mrf.mxu0
      %v834 = vadd.f32 %v320, %v833
      %v835 = vpop.f32.mrf.mxu0
      %v836 = vadd.f32 %v320, %v835
      %837 = vmatmul.bf16.gmra.mxu0 %v593
      %v838 = vpop.f32.mrf.mxu0
      %v839 = vadd.f32 %v320, %v838
      %v840 = vpop.f32.mrf.mxu0
      %v841 = vadd.f32 %v320, %v840
      %842 = vmatmul.bf16.gmra.mxu0 %v594
      %v843 = vpop.f32.mrf.mxu0
      %v844 = vadd.f32 %v320, %v843
      %v845 = vpop.f32.mrf.mxu0
      %v846 = vadd.f32 %v320, %v845
      %847 = vmatmul.bf16.gmra.mxu0 %v595
      %v848 = vpop.f32.mrf.mxu0
      %v849 = vadd.f32 %v320, %v848
      %v850 = vpop.f32.mrf.mxu0
      %v851 = vadd.f32 %v320, %v850
      %852 = vmatmul.bf16.gmra.mxu0 %v596
      %v853 = vpop.f32.mrf.mxu0
      %v854 = vadd.f32 %v320, %v853
      %v855 = vpop.f32.mrf.mxu0
      %v856 = vadd.f32 %v320, %v855
      %857 = vmatmul.bf16.gmra.mxu0 %v597
      %v858 = vpop.f32.mrf.mxu0
      %v859 = vadd.f32 %v320, %v858
      %v860 = vpop.f32.mrf.mxu0
      %v861 = vadd.f32 %v320, %v860
      %862 = vmatmul.bf16.gmra.mxu0 %v598
      %v863 = vpop.f32.mrf.mxu0
      %v864 = vadd.f32 %v320, %v863
      %v865 = vpop.f32.mrf.mxu0
      %v866 = vadd.f32 %v320, %v865
      %867 = vmatmul.bf16.gmra.mxu0 %v599
      %v868 = vpop.f32.mrf.mxu0
      %v869 = vadd.f32 %v320, %v868
      %v870 = vpop.f32.mrf.mxu0
      %v871 = vadd.f32 %v320, %v870
      %872 = vmatmul.bf16.gmra.mxu0 %v600
      %v873 = vpop.f32.mrf.mxu0
      %v874 = vadd.f32 %v320, %v873
      %v875 = vpop.f32.mrf.mxu0
      %v876 = vadd.f32 %v320, %v875
      %877 = vmatmul.bf16.gmra.mxu0 %v601
      %v878 = vpop.f32.mrf.mxu0
      %v879 = vadd.f32 %v320, %v878
      %v880 = vpop.f32.mrf.mxu0
      %v881 = vadd.f32 %v320, %v880
      %882 = vmatmul.bf16.gmra.mxu0 %v602
      %v883 = vpop.f32.mrf.mxu0
      %v884 = vadd.f32 %v320, %v883
      %v885 = vpop.f32.mrf.mxu0
      %v886 = vadd.f32 %v320, %v885
      %887 = vmatmul.bf16.gmra.mxu0 %v603
      %v888 = vpop.f32.mrf.mxu0
      %v889 = vadd.f32 %v320, %v888
      %v890 = vpop.f32.mrf.mxu0
      %v891 = vadd.f32 %v320, %v890
      %892 = vmatmul.bf16.gmra.mxu0 %v604
      %v893 = vpop.f32.mrf.mxu0
      %v894 = vadd.f32 %v320, %v893
      %v895 = vpop.f32.mrf.mxu0
      %v896 = vadd.f32 %v320, %v895
      %897 = vmatmul.bf16.gmra.mxu0 %v605
      %v898 = vpop.f32.mrf.mxu0
      %v899 = vadd.f32 %v320, %v898
      %v900 = vpop.f32.mrf.mxu0
      %v901 = vadd.f32 %v320, %v900
      %902 = vmatmul.bf16.gmra.mxu0 %v606
      %v903 = vpop.f32.mrf.mxu0
      %v904 = vadd.f32 %v320, %v903
      %v905 = vpop.f32.mrf.mxu0
      %v906 = vadd.f32 %v320, %v905
      %907 = vmatmul.bf16.gmra.mxu0 %v607
      %v908 = vpop.f32.mrf.mxu0
      %v909 = vadd.f32 %v320, %v908
      %v910 = vpop.f32.mrf.mxu0
      %v911 = vadd.f32 %v320, %v910
      %912 = vmatmul.bf16.gmra.mxu0 %v608
      %v913 = vpop.f32.mrf.mxu0
      %v914 = vadd.f32 %v320, %v913
      %v915 = vpop.f32.mrf.mxu0
      %v916 = vadd.f32 %v320, %v915
      %917 = vmatmul.bf16.gmra.mxu0 %v609
      %v918 = vpop.f32.mrf.mxu0
      %v919 = vadd.f32 %v320, %v918
      %v920 = vpop.f32.mrf.mxu0
      %v921 = vadd.f32 %v320, %v920
      %922 = vmatmul.bf16.gmra.mxu0 %v610
      %v923 = vpop.f32.mrf.mxu0
      %v924 = vadd.f32 %v320, %v923
      %v925 = vpop.f32.mrf.mxu0
      %v926 = vadd.f32 %v320, %v925
      %927 = vmatmul.bf16.gmra.mxu0 %v611
      %v928 = vpop.f32.mrf.mxu0
      %v929 = vadd.f32 %v320, %v928
      %v930 = vpop.f32.mrf.mxu0
      %v931 = vadd.f32 %v320, %v930
      %932 = vmatmul.bf16.gmra.mxu0 %v612
      %v933 = vpop.f32.mrf.mxu0
      %v934 = vadd.f32 %v320, %v933
      %v935 = vpop.f32.mrf.mxu0
      %v936 = vadd.f32 %v320, %v935
      %937 = vmatmul.bf16.gmra.mxu0 %v613
      %v938 = vpop.f32.mrf.mxu0
      %v939 = vadd.f32 %v320, %v938
      %v940 = vpop.f32.mrf.mxu0
      %v941 = vadd.f32 %v320, %v940
      %942 = vmatmul.bf16.gmra.mxu0 %v614
      %v943 = vpop.f32.mrf.mxu0
      %v944 = vadd.f32 %v320, %v943
      %v945 = vpop.f32.mrf.mxu0
      %v946 = vadd.f32 %v320, %v945
      %947 = vmatmul.bf16.gmra.mxu0 %v615
      %v948 = vpop.f32.mrf.mxu0
      %v949 = vadd.f32 %v320, %v948
      %v950 = vpop.f32.mrf.mxu0
      %v951 = vadd.f32 %v320, %v950
      %952 = vmatmul.bf16.gmra.mxu0 %v616
      %v953 = vpop.f32.mrf.mxu0
      %v954 = vadd.f32 %v320, %v953
      %v955 = vpop.f32.mrf.mxu0
      %v956 = vadd.f32 %v320, %v955
      %957 = vmatmul.bf16.gmra.mxu0 %v617
      %v958 = vpop.f32.mrf.mxu0
      %v959 = vadd.f32 %v320, %v958
      %v960 = vpop.f32.mrf.mxu0
      %v961 = vadd.f32 %v320, %v960
      %962 = vmatmul.bf16.gmra.mxu0 %v618
      %v963 = vpop.f32.mrf.mxu0
      %v964 = vadd.f32 %v320, %v963
      %v965 = vpop.f32.mrf.mxu0
      %v966 = vadd.f32 %v320, %v965
      %967 = vmatmul.bf16.gmra.mxu0 %v619
      %v968 = vpop.f32.mrf.mxu0
      %v969 = vadd.f32 %v320, %v968
      %v970 = vpop.f32.mrf.mxu0
      %v971 = vadd.f32 %v320, %v970
      %972 = vmatmul.bf16.gmra.mxu0 %v620
      %v973 = vpop.f32.mrf.mxu0
      %v974 = vadd.f32 %v320, %v973
      %v975 = vpop.f32.mrf.mxu0
      %v976 = vadd.f32 %v320, %v975
      %977 = vmatmul.bf16.gmra.mxu0 %v621
      %v978 = vpop.f32.mrf.mxu0
      %v979 = vadd.f32 %v320, %v978
      %v980 = vpop.f32.mrf.mxu0
      %v981 = vadd.f32 %v320, %v980
      %982 = vmatmul.bf16.gmra.mxu0 %v622
      %v983 = vpop.f32.mrf.mxu0
      %v984 = vadd.f32 %v320, %v983
      %v985 = vpop.f32.mrf.mxu0
      %v986 = vadd.f32 %v320, %v985
      %987 = vmatmul.bf16.gmra.mxu0 %v623
      %v988 = vpop.f32.mrf.mxu0
      %v989 = vadd.f32 %v320, %v988
      %v990 = vpop.f32.mrf.mxu0
      %v991 = vadd.f32 %v320, %v990
      %992 = vmatmul.bf16.gmra.mxu0 %v624
      %v993 = vpop.f32.mrf.mxu0
      %v994 = vadd.f32 %v320, %v993
      %v995 = vpop.f32.mrf.mxu0
      %v996 = vadd.f32 %v320, %v995
      %997 = vmatmul.bf16.gmra.mxu0 %v625
      %v998 = vpop.f32.mrf.mxu0
      %v999 = vadd.f32 %v320, %v998
      %v1000 = vpop.f32.mrf.mxu0
      %v1001 = vadd.f32 %v320, %v1000
      %1002 = vmatmul.bf16.gmra.mxu0 %v626
      %v1003 = vpop.f32.mrf.mxu0
      %v1004 = vadd.f32 %v320, %v1003
      %v1005 = vpop.f32.mrf.mxu0
      %v1006 = vadd.f32 %v320, %v1005
      %1007 = vmatmul.bf16.gmra.mxu0 %v627
      %v1008 = vpop.f32.mrf.mxu0
      %v1009 = vadd.f32 %v320, %v1008
      %v1010 = vpop.f32.mrf.mxu0
      %v1011 = vadd.f32 %v320, %v1010
      %1012 = vmatmul.bf16.gmra.mxu0 %v628
      %v1013 = vpop.f32.mrf.mxu0
      %v1014 = vadd.f32 %v320, %v1013
      %v1015 = vpop.f32.mrf.mxu0
      %v1016 = vadd.f32 %v320, %v1015
      %1017 = vmatmul.bf16.gmra.mxu0 %v629
      %v1018 = vpop.f32.mrf.mxu0
      %v1019 = vadd.f32 %v320, %v1018
      %v1020 = vpop.f32.mrf.mxu0
      %v1021 = vadd.f32 %v320, %v1020
      %1022 = vmatmul.bf16.gmra.mxu0 %v630
      %v1023 = vpop.f32.mrf.mxu0
      %v1024 = vadd.f32 %v320, %v1023
      %v1025 = vpop.f32.mrf.mxu0
      %v1026 = vadd.f32 %v320, %v1025
      %1027 = vmatmul.bf16.gmra.mxu0 %v631
      %v1028 = vpop.f32.mrf.mxu0
      %v1029 = vadd.f32 %v320, %v1028
      %v1030 = vpop.f32.mrf.mxu0
      %v1031 = vadd.f32 %v320, %v1030
      %1032 = vmatmul.bf16.gmra.mxu0 %v632
      %v1033 = vpop.f32.mrf.mxu0
      %v1034 = vadd.f32 %v320, %v1033
      %v1035 = vpop.f32.mrf.mxu0
      %v1036 = vadd.f32 %v320, %v1035
      %1037 = vmatmul.bf16.gmra.mxu0 %v633
      %v1038 = vpop.f32.mrf.mxu0
      %v1039 = vadd.f32 %v320, %v1038
      %v1040 = vpop.f32.mrf.mxu0
      %v1041 = vadd.f32 %v320, %v1040
      %1042 = vmatmul.bf16.gmra.mxu0 %v634
      %v1043 = vpop.f32.mrf.mxu0
      %v1044 = vadd.f32 %v320, %v1043
      %v1045 = vpop.f32.mrf.mxu0
      %v1046 = vadd.f32 %v320, %v1045
      %1047 = vmatmul.bf16.gmra.mxu0 %v635
      %v1048 = vpop.f32.mrf.mxu0
      %v1049 = vadd.f32 %v320, %v1048
      %v1050 = vpop.f32.mrf.mxu0
      %v1051 = vadd.f32 %v320, %v1050
      %1052 = vmatmul.bf16.gmra.mxu0 %v636
      %v1053 = vpop.f32.mrf.mxu0
      %v1054 = vadd.f32 %v320, %v1053
      %v1055 = vpop.f32.mrf.mxu0
      %v1056 = vadd.f32 %v320, %v1055
      %1057 = vmatmul.bf16.gmra.mxu0 %v637
      %v1058 = vpop.f32.mrf.mxu0
      %v1059 = vadd.f32 %v320, %v1058
      %v1060 = vpop.f32.mrf.mxu0
      %v1061 = vadd.f32 %v320, %v1060
      %1062 = vmatmul.bf16.gmra.mxu0 %v638
      %v1063 = vpop.f32.mrf.mxu0
      %v1064 = vadd.f32 %v320, %v1063
      %v1065 = vpop.f32.mrf.mxu0
      %v1066 = vadd.f32 %v320, %v1065
      %1067 = vmatmul.bf16.gmra.mxu0 %v639
      %v1068 = vpop.f32.mrf.mxu0
      %v1069 = vadd.f32 %v320, %v1068
      %v1070 = vpop.f32.mrf.mxu0
      %v1071 = vadd.f32 %v320, %v1070
      %1072 = vmatmul.bf16.gmra.mxu0 %v640
      %v1073 = vpop.f32.mrf.mxu0
      %v1074 = vadd.f32 %v320, %v1073
      %v1075 = vpop.f32.mrf.mxu0
      %v1076 = vadd.f32 %v320, %v1075
      %1077 = vmatmul.bf16.gmra.mxu0 %v641
      %v1078 = vpop.f32.mrf.mxu0
      %v1079 = vadd.f32 %v320, %v1078
      %v1080 = vpop.f32.mrf.mxu0
      %v1081 = vadd.f32 %v320, %v1080
      %1082 = vdwg.mxu0
      %v1083 = vmax.f32 %v764, 0.0
      %v1084 = vmax.f32 %v766, 0.0
      %v1085 = vmax.f32 %v769, 0.0
      %v1086 = vmax.f32 %v771, 0.0
      %v1087 = vmax.f32 %v774, 0.0
      %v1088 = vmax.f32 %v776, 0.0
      %v1089 = vmax.f32 %v779, 0.0
      %v1090 = vmax.f32 %v781, 0.0
      %v1091 = vmax.f32 %v784, 0.0
      %v1092 = vmax.f32 %v786, 0.0
      %v1093 = vmax.f32 %v789, 0.0
      %v1094 = vmax.f32 %v791, 0.0
      %v1095 = vmax.f32 %v794, 0.0
      %v1096 = vmax.f32 %v796, 0.0
      %v1097 = vmax.f32 %v799, 0.0
      %v1098 = vmax.f32 %v801, 0.0
      %v1099 = vmax.f32 %v804, 0.0
      %v1100 = vmax.f32 %v806, 0.0
      %v1101 = vmax.f32 %v809, 0.0
      %v1102 = vmax.f32 %v811, 0.0
      %v1103 = vmax.f32 %v814, 0.0
      %v1104 = vmax.f32 %v816, 0.0
      %v1105 = vmax.f32 %v819, 0.0
      %v1106 = vmax.f32 %v821, 0.0
      %v1107 = vmax.f32 %v824, 0.0
      %v1108 = vmax.f32 %v826, 0.0
      %v1109 = vmax.f32 %v829, 0.0
      %v1110 = vmax.f32 %v831, 0.0
      %v1111 = vmax.f32 %v834, 0.0
      %v1112 = vmax.f32 %v836, 0.0
      %v1113 = vmax.f32 %v839, 0.0
      %v1114 = vmax.f32 %v841, 0.0
      %v1115 = vmax.f32 %v844, 0.0
      %v1116 = vmax.f32 %v846, 0.0
      %v1117 = vmax.f32 %v849, 0.0
      %v1118 = vmax.f32 %v851, 0.0
      %v1119 = vmax.f32 %v854, 0.0
      %v1120 = vmax.f32 %v856, 0.0
      %v1121 = vmax.f32 %v859, 0.0
      %v1122 = vmax.f32 %v861, 0.0
      %v1123 = vmax.f32 %v864, 0.0
      %v1124 = vmax.f32 %v866, 0.0
      %v1125 = vmax.f32 %v869, 0.0
      %v1126 = vmax.f32 %v871, 0.0
      %v1127 = vmax.f32 %v874, 0.0
      %v1128 = vmax.f32 %v876, 0.0
      %v1129 = vmax.f32 %v879, 0.0
      %v1130 = vmax.f32 %v881, 0.0
      %v1131 = vmax.f32 %v884, 0.0
      %v1132 = vmax.f32 %v886, 0.0
      %v1133 = vmax.f32 %v889, 0.0
      %v1134 = vmax.f32 %v891, 0.0
      %v1135 = vmax.f32 %v894, 0.0
      %v1136 = vmax.f32 %v896, 0.0
      %v1137 = vmax.f32 %v899, 0.0
      %v1138 = vmax.f32 %v901, 0.0
      %v1139 = vmax.f32 %v904, 0.0
      %v1140 = vmax.f32 %v906, 0.0
      %v1141 = vmax.f32 %v909, 0.0
      %v1142 = vmax.f32 %v911, 0.0
      %v1143 = vmax.f32 %v914, 0.0
      %v1144 = vmax.f32 %v916, 0.0
      %v1145 = vmax.f32 %v919, 0.0
      %v1146 = vmax.f32 %v921, 0.0
      %v1147 = vmax.f32 %v924, 0.0
      %v1148 = vmax.f32 %v926, 0.0
      %v1149 = vmax.f32 %v929, 0.0
      %v1150 = vmax.f32 %v931, 0.0
      %v1151 = vmax.f32 %v934, 0.0
      %v1152 = vmax.f32 %v936, 0.0
      %v1153 = vmax.f32 %v939, 0.0
      %v1154 = vmax.f32 %v941, 0.0
      %v1155 = vmax.f32 %v944, 0.0
      %v1156 = vmax.f32 %v946, 0.0
      %v1157 = vmax.f32 %v949, 0.0
      %v1158 = vmax.f32 %v951, 0.0
      %v1159 = vmax.f32 %v954, 0.0
      %v1160 = vmax.f32 %v956, 0.0
      %v1161 = vmax.f32 %v959, 0.0
      %v1162 = vmax.f32 %v961, 0.0
      %v1163 = vmax.f32 %v964, 0.0
      %v1164 = vmax.f32 %v966, 0.0
      %v1165 = vmax.f32 %v969, 0.0
      %v1166 = vmax.f32 %v971, 0.0
      %v1167 = vmax.f32 %v974, 0.0
      %v1168 = vmax.f32 %v976, 0.0
      %v1169 = vmax.f32 %v979, 0.0
      %v1170 = vmax.f32 %v981, 0.0
      %v1171 = vmax.f32 %v984, 0.0
      %v1172 = vmax.f32 %v986, 0.0
      %v1173 = vmax.f32 %v989, 0.0
      %v1174 = vmax.f32 %v991, 0.0
      %v1175 = vmax.f32 %v994, 0.0
      %v1176 = vmax.f32 %v996, 0.0
      %v1177 = vmax.f32 %v999, 0.0
      %v1178 = vmax.f32 %v1001, 0.0
      %v1179 = vmax.f32 %v1004, 0.0
      %v1180 = vmax.f32 %v1006, 0.0
      %v1181 = vmax.f32 %v1009, 0.0
      %v1182 = vmax.f32 %v1011, 0.0
      %v1183 = vmax.f32 %v1014, 0.0
      %v1184 = vmax.f32 %v1016, 0.0
      %v1185 = vmax.f32 %v1019, 0.0
      %v1186 = vmax.f32 %v1021, 0.0
      %v1187 = vmax.f32 %v1024, 0.0
      %v1188 = vmax.f32 %v1026, 0.0
      %v1189 = vmax.f32 %v1029, 0.0
      %v1190 = vmax.f32 %v1031, 0.0
      %v1191 = vmax.f32 %v1034, 0.0
      %v1192 = vmax.f32 %v1036, 0.0
      %v1193 = vmax.f32 %v1039, 0.0
      %v1194 = vmax.f32 %v1041, 0.0
      %v1195 = vmax.f32 %v1044, 0.0
      %v1196 = vmax.f32 %v1046, 0.0
      %v1197 = vmax.f32 %v1049, 0.0
      %v1198 = vmax.f32 %v1051, 0.0
      %v1199 = vmax.f32 %v1054, 0.0
      %v1200 = vmax.f32 %v1056, 0.0
      %v1201 = vmax.f32 %v1059, 0.0
      %v1202 = vmax.f32 %v1061, 0.0
      %v1203 = vmax.f32 %v1064, 0.0
      %v1204 = vmax.f32 %v1066, 0.0
      %v1205 = vmax.f32 %v1069, 0.0
      %v1206 = vmax.f32 %v1071, 0.0
      %v1207 = vmax.f32 %v1074, 0.0
      %v1208 = vmax.f32 %v1076, 0.0
      %v1209 = vmax.f32 %v1079, 0.0
      %v1210 = vmax.f32 %v1081, 0.0
      %v1211 = vpack.c.bf16 %v1083, %v1083
      %v1212 = vpack.c.bf16 %v1084, %v1084
      %v1213 = vpack.c.bf16 %v1085, %v1085
      %v1214 = vpack.c.bf16 %v1086, %v1086
      %v1215 = vpack.c.bf16 %v1087, %v1087
      %v1216 = vpack.c.bf16 %v1088, %v1088
      %v1217 = vpack.c.bf16 %v1089, %v1089
      %v1218 = vpack.c.bf16 %v1090, %v1090
      %v1219 = vpack.c.bf16 %v1091, %v1091
      %v1220 = vpack.c.bf16 %v1092, %v1092
      %v1221 = vpack.c.bf16 %v1093, %v1093
      %v1222 = vpack.c.bf16 %v1094, %v1094
      %v1223 = vpack.c.bf16 %v1095, %v1095
      %v1224 = vpack.c.bf16 %v1096, %v1096
      %v1225 = vpack.c.bf16 %v1097, %v1097
      %v1226 = vpack.c.bf16 %v1098, %v1098
      %v1227 = vpack.c.bf16 %v1099, %v1099
      %v1228 = vpack.c.bf16 %v1100, %v1100
      %v1229 = vpack.c.bf16 %v1101, %v1101
      %v1230 = vpack.c.bf16 %v1102, %v1102
      %v1231 = vpack.c.bf16 %v1103, %v1103
      %v1232 = vpack.c.bf16 %v1104, %v1104
      %v1233 = vpack.c.bf16 %v1105, %v1105
      %v1234 = vpack.c.bf16 %v1106, %v1106
      %v1235 = vpack.c.bf16 %v1107, %v1107
      %v1236 = vpack.c.bf16 %v1108, %v1108
      %v1237 = vpack.c.bf16 %v1109, %v1109
      %v1238 = vpack.c.bf16 %v1110, %v1110
      %v1239 = vpack.c.bf16 %v1111, %v1111
      %v1240 = vpack.c.bf16 %v1112, %v1112
      %v1241 = vpack.c.bf16 %v1113, %v1113
      %v1242 = vpack.c.bf16 %v1114, %v1114
      %v1243 = vpack.c.bf16 %v1115, %v1115
      %v1244 = vpack.c.bf16 %v1116, %v1116
      %v1245 = vpack.c.bf16 %v1117, %v1117
      %v1246 = vpack.c.bf16 %v1118, %v1118
      %v1247 = vpack.c.bf16 %v1119, %v1119
      %v1248 = vpack.c.bf16 %v1120, %v1120
      %v1249 = vpack.c.bf16 %v1121, %v1121
      %v1250 = vpack.c.bf16 %v1122, %v1122
      %v1251 = vpack.c.bf16 %v1123, %v1123
      %v1252 = vpack.c.bf16 %v1124, %v1124
      %v1253 = vpack.c.bf16 %v1125, %v1125
      %v1254 = vpack.c.bf16 %v1126, %v1126
      %v1255 = vpack.c.bf16 %v1127, %v1127
      %v1256 = vpack.c.bf16 %v1128, %v1128
      %v1257 = vpack.c.bf16 %v1129, %v1129
      %v1258 = vpack.c.bf16 %v1130, %v1130
      %v1259 = vpack.c.bf16 %v1131, %v1131
      %v1260 = vpack.c.bf16 %v1132, %v1132
      %v1261 = vpack.c.bf16 %v1133, %v1133
      %v1262 = vpack.c.bf16 %v1134, %v1134
      %v1263 = vpack.c.bf16 %v1135, %v1135
      %v1264 = vpack.c.bf16 %v1136, %v1136
      %v1265 = vpack.c.bf16 %v1137, %v1137
      %v1266 = vpack.c.bf16 %v1138, %v1138
      %v1267 = vpack.c.bf16 %v1139, %v1139
      %v1268 = vpack.c.bf16 %v1140, %v1140
      %v1269 = vpack.c.bf16 %v1141, %v1141
      %v1270 = vpack.c.bf16 %v1142, %v1142
      %v1271 = vpack.c.bf16 %v1143, %v1143
      %v1272 = vpack.c.bf16 %v1144, %v1144
      %v1273 = vpack.c.bf16 %v1145, %v1145
      %v1274 = vpack.c.bf16 %v1146, %v1146
      %v1275 = vpack.c.bf16 %v1147, %v1147
      %v1276 = vpack.c.bf16 %v1148, %v1148
      %v1277 = vpack.c.bf16 %v1149, %v1149
      %v1278 = vpack.c.bf16 %v1150, %v1150
      %v1279 = vpack.c.bf16 %v1151, %v1151
      %v1280 = vpack.c.bf16 %v1152, %v1152
      %v1281 = vpack.c.bf16 %v1153, %v1153
      %v1282 = vpack.c.bf16 %v1154, %v1154
      %v1283 = vpack.c.bf16 %v1155, %v1155
      %v1284 = vpack.c.bf16 %v1156, %v1156
      %v1285 = vpack.c.bf16 %v1157, %v1157
      %v1286 = vpack.c.bf16 %v1158, %v1158
      %v1287 = vpack.c.bf16 %v1159, %v1159
      %v1288 = vpack.c.bf16 %v1160, %v1160
      %v1289 = vpack.c.bf16 %v1161, %v1161
      %v1290 = vpack.c.bf16 %v1162, %v1162
      %v1291 = vpack.c.bf16 %v1163, %v1163
      %v1292 = vpack.c.bf16 %v1164, %v1164
      %v1293 = vpack.c.bf16 %v1165, %v1165
      %v1294 = vpack.c.bf16 %v1166, %v1166
      %v1295 = vpack.c.bf16 %v1167, %v1167
      %v1296 = vpack.c.bf16 %v1168, %v1168
      %v1297 = vpack.c.bf16 %v1169, %v1169
      %v1298 = vpack.c.bf16 %v1170, %v1170
      %v1299 = vpack.c.bf16 %v1171, %v1171
      %v1300 = vpack.c.bf16 %v1172, %v1172
      %v1301 = vpack.c.bf16 %v1173, %v1173
      %v1302 = vpack.c.bf16 %v1174, %v1174
      %v1303 = vpack.c.bf16 %v1175, %v1175
      %v1304 = vpack.c.bf16 %v1176, %v1176
      %v1305 = vpack.c.bf16 %v1177, %v1177
      %v1306 = vpack.c.bf16 %v1178, %v1178
      %v1307 = vpack.c.bf16 %v1179, %v1179
      %v1308 = vpack.c.bf16 %v1180, %v1180
      %v1309 = vpack.c.bf16 %v1181, %v1181
      %v1310 = vpack.c.bf16 %v1182, %v1182
      %v1311 = vpack.c.bf16 %v1183, %v1183
      %v1312 = vpack.c.bf16 %v1184, %v1184
      %v1313 = vpack.c.bf16 %v1185, %v1185
      %v1314 = vpack.c.bf16 %v1186, %v1186
      %v1315 = vpack.c.bf16 %v1187, %v1187
      %v1316 = vpack.c.bf16 %v1188, %v1188
      %v1317 = vpack.c.bf16 %v1189, %v1189
      %v1318 = vpack.c.bf16 %v1190, %v1190
      %v1319 = vpack.c.bf16 %v1191, %v1191
      %v1320 = vpack.c.bf16 %v1192, %v1192
      %v1321 = vpack.c.bf16 %v1193, %v1193
      %v1322 = vpack.c.bf16 %v1194, %v1194
      %v1323 = vpack.c.bf16 %v1195, %v1195
      %v1324 = vpack.c.bf16 %v1196, %v1196
      %v1325 = vpack.c.bf16 %v1197, %v1197
      %v1326 = vpack.c.bf16 %v1198, %v1198
      %v1327 = vpack.c.bf16 %v1199, %v1199
      %v1328 = vpack.c.bf16 %v1200, %v1200
      %v1329 = vpack.c.bf16 %v1201, %v1201
      %v1330 = vpack.c.bf16 %v1202, %v1202
      %v1331 = vpack.c.bf16 %v1203, %v1203
      %v1332 = vpack.c.bf16 %v1204, %v1204
      %v1333 = vpack.c.bf16 %v1205, %v1205
      %v1334 = vpack.c.bf16 %v1206, %v1206
      %v1335 = vpack.c.bf16 %v1207, %v1207
      %v1336 = vpack.c.bf16 %v1208, %v1208
      %v1337 = vpack.c.bf16 %v1209, %v1209
      %v1338 = vpack.c.bf16 %v1210, %v1210
      %1339 = vst [vmem:[%s172] sm:$0xf] %v1211
      %1340 = vst [vmem:[%s172 + $0x4] sm:$0xf] %v1212
      %1341 = vst [vmem:[%s172 + $0x8] sm:$0xf] %v1213
      %1342 = vst [vmem:[%s172 + $0xc] sm:$0xf] %v1214
      %1343 = vst [vmem:[%s172 + $0x10] sm:$0xf] %v1215
      %1344 = vst [vmem:[%s172 + $0x14] sm:$0xf] %v1216
      %1345 = vst [vmem:[%s172 + $0x18] sm:$0xf] %v1217
      %1346 = vst [vmem:[%s172 + $0x1c] sm:$0xf] %v1218
      %1347 = vst [vmem:[%s172 + $0x20] sm:$0xf] %v1219
      %1348 = vst [vmem:[%s172 + $0x24] sm:$0xf] %v1220
      %1349 = vst [vmem:[%s172 + $0x28] sm:$0xf] %v1221
      %1350 = vst [vmem:[%s172 + $0x2c] sm:$0xf] %v1222
      %1351 = vst [vmem:[%s172 + $0x30] sm:$0xf] %v1223
      %1352 = vst [vmem:[%s172 + $0x34] sm:$0xf] %v1224
      %1353 = vst [vmem:[%s172 + $0x38] sm:$0xf] %v1225
      %1354 = vst [vmem:[%s172 + $0x3c] sm:$0xf] %v1226
      %1355 = vst [vmem:[%s172 + $0x40] sm:$0xf] %v1227
      %1356 = vst [vmem:[%s172 + $0x44] sm:$0xf] %v1228
      %1357 = vst [vmem:[%s172 + $0x48] sm:$0xf] %v1229
      %1358 = vst [vmem:[%s172 + $0x4c] sm:$0xf] %v1230
      %1359 = vst [vmem:[%s172 + $0x50] sm:$0xf] %v1231
      %1360 = vst [vmem:[%s172 + $0x54] sm:$0xf] %v1232
      %1361 = vst [vmem:[%s172 + $0x58] sm:$0xf] %v1233
      %1362 = vst [vmem:[%s172 + $0x5c] sm:$0xf] %v1234
      %1363 = vst [vmem:[%s172 + $0x60] sm:$0xf] %v1235
      %1364 = vst [vmem:[%s172 + $0x64] sm:$0xf] %v1236
      %1365 = vst [vmem:[%s172 + $0x68] sm:$0xf] %v1237
      %1366 = vst [vmem:[%s172 + $0x6c] sm:$0xf] %v1238
      %1367 = vst [vmem:[%s172 + $0x70] sm:$0xf] %v1239
      %1368 = vst [vmem:[%s172 + $0x74] sm:$0xf] %v1240
      %1369 = vst [vmem:[%s172 + $0x78] sm:$0xf] %v1241
      %1370 = vst [vmem:[%s172 + $0x7c] sm:$0xf] %v1242
      %1371 = vst [vmem:[%s172 + $0x80] sm:$0xf] %v1243
      %1372 = vst [vmem:[%s172 + $0x84] sm:$0xf] %v1244
      %1373 = vst [vmem:[%s172 + $0x88] sm:$0xf] %v1245
      %1374 = vst [vmem:[%s172 + $0x8c] sm:$0xf] %v1246
      %1375 = vst [vmem:[%s172 + $0x90] sm:$0xf] %v1247
      %1376 = vst [vmem:[%s172 + $0x94] sm:$0xf] %v1248
      %1377 = vst [vmem:[%s172 + $0x98] sm:$0xf] %v1249
      %1378 = vst [vmem:[%s172 + $0x9c] sm:$0xf] %v1250
      %1379 = vst [vmem:[%s172 + $0xa0] sm:$0xf] %v1251
      %1380 = vst [vmem:[%s172 + $0xa4] sm:$0xf] %v1252
      %1381 = vst [vmem:[%s172 + $0xa8] sm:$0xf] %v1253
      %1382 = vst [vmem:[%s172 + $0xac] sm:$0xf] %v1254
      %1383 = vst [vmem:[%s172 + $0xb0] sm:$0xf] %v1255
      %1384 = vst [vmem:[%s172 + $0xb4] sm:$0xf] %v1256
      %1385 = vst [vmem:[%s172 + $0xb8] sm:$0xf] %v1257
      %1386 = vst [vmem:[%s172 + $0xbc] sm:$0xf] %v1258
      %1387 = vst [vmem:[%s172 + $0xc0] sm:$0xf] %v1259
      %1388 = vst [vmem:[%s172 + $0xc4] sm:$0xf] %v1260
      %1389 = vst [vmem:[%s172 + $0xc8] sm:$0xf] %v1261
      %1390 = vst [vmem:[%s172 + $0xcc] sm:$0xf] %v1262
      %1391 = vst [vmem:[%s172 + $0xd0] sm:$0xf] %v1263
      %1392 = vst [vmem:[%s172 + $0xd4] sm:$0xf] %v1264
      %1393 = vst [vmem:[%s172 + $0xd8] sm:$0xf] %v1265
      %1394 = vst [vmem:[%s172 + $0xdc] sm:$0xf] %v1266
      %1395 = vst [vmem:[%s172 + $0xe0] sm:$0xf] %v1267
      %1396 = vst [vmem:[%s172 + $0xe4] sm:$0xf] %v1268
      %1397 = vst [vmem:[%s172 + $0xe8] sm:$0xf] %v1269
      %1398 = vst [vmem:[%s172 + $0xec] sm:$0xf] %v1270
      %1399 = vst [vmem:[%s172 + $0xf0] sm:$0xf] %v1271
      %1400 = vst [vmem:[%s172 + $0xf4] sm:$0xf] %v1272
      %1401 = vst [vmem:[%s172 + $0xf8] sm:$0xf] %v1273
      %1402 = vst [vmem:[%s172 + $0xfc] sm:$0xf] %v1274
      %1403 = vst [vmem:[%s172 + $0x100] sm:$0xf] %v1275
      %1404 = vst [vmem:[%s172 + $0x104] sm:$0xf] %v1276
      %1405 = vst [vmem:[%s172 + $0x108] sm:$0xf] %v1277
      %1406 = vst [vmem:[%s172 + $0x10c] sm:$0xf] %v1278
      %1407 = vst [vmem:[%s172 + $0x110] sm:$0xf] %v1279
      %1408 = vst [vmem:[%s172 + $0x114] sm:$0xf] %v1280
      %1409 = vst [vmem:[%s172 + $0x118] sm:$0xf] %v1281
      %1410 = vst [vmem:[%s172 + $0x11c] sm:$0xf] %v1282
      %1411 = vst [vmem:[%s172 + $0x120] sm:$0xf] %v1283
      %1412 = vst [vmem:[%s172 + $0x124] sm:$0xf] %v1284
      %1413 = vst [vmem:[%s172 + $0x128] sm:$0xf] %v1285
      %1414 = vst [vmem:[%s172 + $0x12c] sm:$0xf] %v1286
      %1415 = vst [vmem:[%s172 + $0x130] sm:$0xf] %v1287
      %1416 = vst [vmem:[%s172 + $0x134] sm:$0xf] %v1288
      %1417 = vst [vmem:[%s172 + $0x138] sm:$0xf] %v1289
      %1418 = vst [vmem:[%s172 + $0x13c] sm:$0xf] %v1290
      %1419 = vst [vmem:[%s172 + $0x140] sm:$0xf] %v1291
      %1420 = vst [vmem:[%s172 + $0x144] sm:$0xf] %v1292
      %1421 = vst [vmem:[%s172 + $0x148] sm:$0xf] %v1293
      %1422 = vst [vmem:[%s172 + $0x14c] sm:$0xf] %v1294
      %1423 = vst [vmem:[%s172 + $0x150] sm:$0xf] %v1295
      %1424 = vst [vmem:[%s172 + $0x154] sm:$0xf] %v1296
      %1425 = vst [vmem:[%s172 + $0x158] sm:$0xf] %v1297
      %1426 = vst [vmem:[%s172 + $0x15c] sm:$0xf] %v1298
      %1427 = vst [vmem:[%s172 + $0x160] sm:$0xf] %v1299
      %1428 = vst [vmem:[%s172 + $0x164] sm:$0xf] %v1300
      %1429 = vst [vmem:[%s172 + $0x168] sm:$0xf] %v1301
      %1430 = vst [vmem:[%s172 + $0x16c] sm:$0xf] %v1302
      %1431 = vst [vmem:[%s172 + $0x170] sm:$0xf] %v1303
      %1432 = vst [vmem:[%s172 + $0x174] sm:$0xf] %v1304
      %1433 = vst [vmem:[%s172 + $0x178] sm:$0xf] %v1305
      %1434 = vst [vmem:[%s172 + $0x17c] sm:$0xf] %v1306
      %1435 = vst [vmem:[%s172 + $0x180] sm:$0xf] %v1307
      %1436 = vst [vmem:[%s172 + $0x184] sm:$0xf] %v1308
      %1437 = vst [vmem:[%s172 + $0x188] sm:$0xf] %v1309
      %1438 = vst [vmem:[%s172 + $0x18c] sm:$0xf] %v1310
      %1439 = vst [vmem:[%s172 + $0x190] sm:$0xf] %v1311
      %1440 = vst [vmem:[%s172 + $0x194] sm:$0xf] %v1312
      %1441 = vst [vmem:[%s172 + $0x198] sm:$0xf] %v1313
      %1442 = vst [vmem:[%s172 + $0x19c] sm:$0xf] %v1314
      %1443 = vst [vmem:[%s172 + $0x1a0] sm:$0xf] %v1315
      %1444 = vst [vmem:[%s172 + $0x1a4] sm:$0xf] %v1316
      %1445 = vst [vmem:[%s172 + $0x1a8] sm:$0xf] %v1317
      %1446 = vst [vmem:[%s172 + $0x1ac] sm:$0xf] %v1318
      %1447 = vst [vmem:[%s172 + $0x1b0] sm:$0xf] %v1319
      %1448 = vst [vmem:[%s172 + $0x1b4] sm:$0xf] %v1320
      %1449 = vst [vmem:[%s172 + $0x1b8] sm:$0xf] %v1321
      %1450 = vst [vmem:[%s172 + $0x1bc] sm:$0xf] %v1322
      %1451 = vst [vmem:[%s172 + $0x1c0] sm:$0xf] %v1323
      %1452 = vst [vmem:[%s172 + $0x1c4] sm:$0xf] %v1324
      %1453 = vst [vmem:[%s172 + $0x1c8] sm:$0xf] %v1325
      %1454 = vst [vmem:[%s172 + $0x1cc] sm:$0xf] %v1326
      %1455 = vst [vmem:[%s172 + $0x1d0] sm:$0xf] %v1327
      %1456 = vst [vmem:[%s172 + $0x1d4] sm:$0xf] %v1328
      %1457 = vst [vmem:[%s172 + $0x1d8] sm:$0xf] %v1329
      %1458 = vst [vmem:[%s172 + $0x1dc] sm:$0xf] %v1330
      %1459 = vst [vmem:[%s172 + $0x1e0] sm:$0xf] %v1331
      %1460 = vst [vmem:[%s172 + $0x1e4] sm:$0xf] %v1332
      %1461 = vst [vmem:[%s172 + $0x1e8] sm:$0xf] %v1333
      %1462 = vst [vmem:[%s172 + $0x1ec] sm:$0xf] %v1334
      %1463 = vst [vmem:[%s172 + $0x1f0] sm:$0xf] %v1335
      %1464 = vst [vmem:[%s172 + $0x1f4] sm:$0xf] %v1336
      %1465 = vst [vmem:[%s172 + $0x1f8] sm:$0xf] %v1337
      %1466 = vst [vmem:[%s172 + $0x1fc] sm:$0xf] %v1338
      %s1467 = smul.u32 128, %s14
      %p1468 = scmp.lt.s32.totalorder %s1467, 767
      %s1469 = scalar_select %p1468, %s1467, 767
      %s1470 = smul.addr %s1469, 4
      %s1471 = scalar_lea.vmem %s3, %s1470
      // Predicated region
      $region33: #{pilot_net_forward.6} parent=31 // pred_check
        %p1472 = pneg %p100
      $region34: #{pilot_net_forward.6} parent=31 // pred_check_branch
        %1474 = sbr.rel (%p1472) target = $region36
      $region35: #{pilot_net_forward.6} parent=31 // pred_region
        %s1475 = smul.u32 128, %s14
      $region36: #{pilot_net_forward.6} parent=31 // pred_fallthru
        _
    $region32: #{pilot_net_forward.6} parent=5 // pred_fallthru
      _
    %p1476 = scmp.le.s32.totalorder 2, %s9
    // Predicated region
    $region37: #{pilot_net_forward.6} parent=5 // pred_check
      %p1477 = pneg %p1476
    $region38: #{pilot_net_forward.6} parent=5 // pred_check_branch
      %1479 = sbr.rel (%p1477) target = $region40
    $region39: #{pilot_net_forward.6} parent=5 // pred_region
      %s1480 = ssub.s32 %s9, 2
      // Predicated region
      $region41: #{pilot_net_forward.6} parent=39 // pred_check
        %p1481 = pneg %p106
      $region42: #{pilot_net_forward.6} parent=39 // pred_check_branch
        %1483 = sbr.rel (%p1481) target = $region44
      $region43: #{pilot_net_forward.6} parent=39 // pred_region
        %s1484 = smul.u32 128, %s15
        %p1485 = scmp.lt.s32.totalorder %s1484, 767
        %s1486 = scalar_select %p1485, %s1484, 767
        %s1487 = smul.addr %s1486, 4
        %s1488 = scalar_lea.vmem %s3, %s1487
      $region44: #{pilot_net_forward.6} parent=39 // pred_fallthru
        _
    $region40: #{pilot_net_forward.6} parent=5 // pred_fallthru
      _
  $region6: #{pilot_net_forward.6} parent=0 // loop_footer
    %s13 = sadd.s32 1, %s9
  $region7: #{pilot_net_forward.6} parent=0 // loop_footer_branch
    %8 = sbr.rel target = $region3
  $region8: #{pilot_net_forward.6} parent=0 // loop_exit
    _

// kernel: pilot_net_forward.7
$region0: #{pilot_net_forward.7}
  #allocation0 [shape = 'u32[]', space=smem, size = 0x4, offset = 0x4, fixed_abs, tag = 'smem constant byte address 0x4 - core index']
  #allocation1 [shape = 'u32[72,128]{1,0:T(1,128)}', space=vmem, size = 0x9000, scoped, tag = 'internal scratch']
  %s0 = inlined_call_operand.vmem [shape: bf16[1344,640], index: 0, kind: input, shape index: {}]
  %s1 = inlined_call_operand.vmem [shape: bf16[640,128], index: 1, kind: input, shape index: {}]
  %s2 = inlined_call_operand.vmem [shape: f32[1,128], index: 2, kind: input, shape index: {}]
  %s3 = inlined_call_operand.vmem [shape: bf16[1344,128], index: 3, kind: output, shape index: {}]
  %s4 = sld [smem:[#allocation0]]
  $region45: #{pilot_net_forward.7} parent=0
    _
  %s6 = ssub.s32 1, %s4
  %s7 = scalar_select 0, %s6, %s4
  loop: start=0, step=1, limit=4
  $region2: #{pilot_net_forward.7} parent=0 // loop_pre_header
    _
  $region3: #{pilot_net_forward.7} parent=0 // loop_header
    %s9 = sphi 0, %s13
    %p10 = scmp.ge.s32.totalorder %s9, 4
    %s19 = sphi 0, %s21
    %s22 = sphi 0, %s19
    %s23 = sphi 0, %s22
    %s39 = sphi 0, %s23
    %s43 = sphi 0, %s43
    %s45 = sphi 0, %s43
    %s46 = sphi 0, %s45
    %s60 = sphi 0, %s46
    %s64 = sphi 0, %s64
    %s66 = sphi 0, %s64
    %s67 = sphi 0, %s66
    %s81 = sphi 0, %s67
    %s87 = sphi 0, %s89
    %s90 = sphi 0, %s87
    %s91 = sphi 0, %s90
    %s107 = sphi 0, %s91
  $region4: #{pilot_net_forward.7} parent=0 // loop_header_branch
    %12 = sbr.rel (%p10) target = $region8
  $region5: #{pilot_net_forward.7} parent=0 // loop_body
    %s14 = ssub.s32 %s9, 1
    %s15 = ssub.s32 %s9, 2
    %s16 = sadd.s32 %s9, 1
    %s17 = ssub.s32 %s9, %s16
    %p18 = scmp.eq.s32.totalorder %s17, 0
    %s20 = sadd.s32 %s19, 1
    %s21 = scalar_select %p18, %s19, %s20
    %p24 = pneg %p18
    %p25 = scmp.eq.s32.totalorder %s9, 1
    %p26 = por %p24, %p25
    %p27 = scmp.ne.s32.totalorder %s19, %s22
    %p28 = scmp.eq.s32.totalorder %s9, 0
    %p29 = por %p27, %p28
    %p30 = scmp.ne.s32.totalorder %s19, %s22
    %p31 = scmp.eq.s32.totalorder %s14, 1
    %p32 = por %p30, %p31
    %p33 = scmp.ne.s32.totalorder %s22, %s23
    %p34 = scmp.eq.s32.totalorder %s14, 0
    %p35 = por %p33, %p34
    %p36 = scmp.ne.s32.totalorder %s22, %s23
    %p37 = scmp.eq.s32.totalorder %s15, 1
    %p38 = por %p36, %p37
    %p40 = scmp.ne.s32.totalorder %s23, %s39
    %p41 = scmp.eq.s32.totalorder %s15, 0
    %p42 = por %p40, %p41
    %s44 = sadd.s32 %s43, 1
    %p47 = scmp.eq.s32.totalorder %s9, 1
    %p48 = scmp.ne.s32.totalorder %s43, %s45
    %p49 = scmp.eq.s32.totalorder %s9, 0
    %p50 = por %p48, %p49
    %p51 = scmp.ne.s32.totalorder %s43, %s45
    %p52 = scmp.eq.s32.totalorder %s14, 1
    %p53 = por %p51, %p52
    %p54 = scmp.ne.s32.totalorder %s45, %s46
    %p55 = scmp.eq.s32.totalorder %s14, 0
    %p56 = por %p54, %p55
    %p57 = scmp.ne.s32.totalorder %s45, %s46
    %p58 = scmp.eq.s32.totalorder %s15, 1
    %p59 = por %p57, %p58
    %p61 = scmp.ne.s32.totalorder %s46, %s60
    %p62 = scmp.eq.s32.totalorder %s15, 0
    %p63 = por %p61, %p62
    %s65 = sadd.s32 %s64, 1
    %p68 = scmp.eq.s32.totalorder %s9, 1
    %p69 = scmp.ne.s32.totalorder %s64, %s66
    %p70 = scmp.eq.s32.totalorder %s9, 0
    %p71 = por %p69, %p70
    %p72 = scmp.ne.s32.totalorder %s64, %s66
    %p73 = scmp.eq.s32.totalorder %s14, 1
    %p74 = por %p72, %p73
    %p75 = scmp.ne.s32.totalorder %s66, %s67
    %p76 = scmp.eq.s32.totalorder %s14, 0
    %p77 = por %p75, %p76
    %p78 = scmp.ne.s32.totalorder %s66, %s67
    %p79 = scmp.eq.s32.totalorder %s15, 1
    %p80 = por %p78, %p79
    %p82 = scmp.ne.s32.totalorder %s67, %s81
    %p83 = scmp.eq.s32.totalorder %s15, 0
    %p84 = por %p82, %p83
    %s85 = ssub.s32 %s9, %s16
    %p86 = scmp.eq.s32.totalorder %s85, 0
    %s88 = sadd.s32 %s87, 1
    %s89 = scalar_select %p86, %s87, %s88
    %p92 = pneg %p86
    %p93 = scmp.eq.s32.totalorder %s9, 1
    %p94 = por %p92, %p93
    %p95 = scmp.ne.s32.totalorder %s87, %s90
    %p96 = scmp.eq.s32.totalorder %s9, 0
    %p97 = por %p95, %p96
    %p98 = scmp.ne.s32.totalorder %s87, %s90
    %p99 = scmp.eq.s32.totalorder %s14, 1
    %p100 = por %p98, %p99
    %p101 = scmp.ne.s32.totalorder %s90, %s91
    %p102 = scmp.eq.s32.totalorder %s14, 0
    %p103 = por %p101, %p102
    %p104 = scmp.ne.s32.totalorder %s90, %s91
    %p105 = scmp.eq.s32.totalorder %s15, 1
    %p106 = por %p104, %p105
    %p108 = scmp.ne.s32.totalorder %s91, %s107
    %p109 = scmp.eq.s32.totalorder %s15, 0
    %p110 = por %p108, %p109
    %p111 = scmp.le.s32.totalorder 1, %s9
    %p112 = scmp.lt.s32.totalorder %s9, 3
    %p113 = pnand %p111, %p112
    %p114 = pneg %p113
    // Predicated region
    $region9: #{pilot_net_forward.7} parent=5 // pred_check
      _
    $region10: #{pilot_net_forward.7} parent=5 // pred_check_branch
      %116 = sbr.rel (%p113) target = $region12
    $region11: #{pilot_net_forward.7} parent=5 // pred_region
      %s117 = ssub.s32 %s9, 1
      // Predicated region
      $region13: #{pilot_net_forward.7} parent=11 // pred_check
        %p118 = pneg %p56
      $region14: #{pilot_net_forward.7} parent=11 // pred_check_branch
        %120 = sbr.rel (%p118) target = $region16
      $region15: #{pilot_net_forward.7} parent=11 // pred_region
        _
      $region16: #{pilot_net_forward.7} parent=11 // pred_fallthru
        _
      // Predicated region
      $region17: #{pilot_net_forward.7} parent=11 // pred_check
        %p121 = pneg %p77
      $region18: #{pilot_net_forward.7} parent=11 // pred_check_branch
        %123 = sbr.rel (%p121) target = $region20
      $region19: #{pilot_net_forward.7} parent=11 // pred_region
        _
      $region20: #{pilot_net_forward.7} parent=11 // pred_fallthru
        _
    $region12: #{pilot_net_forward.7} parent=5 // pred_fallthru
      _
    %p124 = scmp.lt.s32.totalorder %s9, 2
    // Predicated region
    $region21: #{pilot_net_forward.7} parent=5 // pred_check
      %p125 = pneg %p124
    $region22: #{pilot_net_forward.7} parent=5 // pred_check_branch
      %127 = sbr.rel (%p125) target = $region24
    $region23: #{pilot_net_forward.7} parent=5 // pred_region
      // Predicated region
      $region25: #{pilot_net_forward.7} parent=23 // pred_check
        %p128 = pneg %p29
      $region26: #{pilot_net_forward.7} parent=23 // pred_check_branch
        %130 = sbr.rel (%p128) target = $region28
      $region27: #{pilot_net_forward.7} parent=23 // pred_region
        %s131 = smul.u32 84, %s9
        %p132 = scmp.lt.s32.totalorder %s131, 167
        %s133 = scalar_select %p132, %s131, 167
        %s134 = smul.addr %s133, 5
        %s135 = smul.addr %s134, 4
        %s136 = scalar_lea.vmem %s0, %s135
        %s137 = smul.u32 84, %s9
      $region28: #{pilot_net_forward.7} parent=23 // pred_fallthru
        _
    $region24: #{pilot_net_forward.7} parent=5 // pred_fallthru
      _
    %p138 = scmp.le.s32.totalorder 1, %s9
    %p139 = scmp.lt.s32.totalorder %s9, 3
    %p140 = pnand %p138, %p139
    %p141 = pneg %p140
    // Predicated region
    $region29: #{pilot_net_forward.7} parent=5 // pred_check
      _
    $region30: #{pilot_net_forward.7} parent=5 // pred_check_branch
      %143 = sbr.rel (%p140) target = $region32
    $region31: #{pilot_net_forward.7} parent=5 // pred_region
      %s144 = ssub.s32 %s9, 1
      %s145 = smul.u32 84, %s14
      %p146 = scmp.lt.s32.totalorder %s145, 167
      %s147 = scalar_select %p146, %s145, 167
      %s148 = smul.addr %s147, 5
      %s149 = smul.addr %s148, 4
      %s150 = scalar_lea.vmem %s0, %s149
      %p151 = pneg %p35
      %p152 = pneg %p32
      %p153 = pneg %p56
      %p154 = pneg %p53
      %p155 = pneg %p77
      %p156 = pneg %p74
      %p157 = pneg %p103
      %p158 = pneg %p100
      %s159 = smul.u32 84, %s14
      %p160 = scmp.lt.s32.totalorder %s159, 167
      %s161 = scalar_select %p160, %s159, 167
      %s162 = smul.addr %s161, 4
      %s163 = scalar_lea.vmem %s3, %s162
      %s164 = smul.u32 84, %s14
      %p165 = scmp.lt.s32.totalorder %s164, 167
      %s166 = scalar_select %p165, %s164, 167
      %s167 = smul.addr %s166, 5
      %s168 = smul.addr %s167, 4
      %s169 = scalar_lea.vmem %s0, %s168
      %s170 = smul.u32 84, %s14
      %s171 = smul.u32 84, %s14
      %p172 = scmp.lt.s32.totalorder %s171, 167
      %s173 = scalar_select %p172, %s171, 167
      %s174 = smul.addr %s173, 4
      %s175 = scalar_lea.vmem %s3, %s174
      %s176 = smul.u32 84, %s14
      %v177 = vld [vmem:[%s169] sm:$0xff]
      %v178 = vld [vmem:[%s169 + $0x8] sm:$0xff]
      %v179 = vld [vmem:[%s169 + $0x10] sm:$0xf]
      %v180 = vld [vmem:[%s169 + $0x14] sm:$0xff]
      %v181 = vld [vmem:[%s169 + $0x1c] sm:$0xff]
      %v182 = vld [vmem:[%s169 + $0x24] sm:$0xf]
      %v183 = vld [vmem:[%s169 + $0x28] sm:$0xff]
      %v184 = vld [vmem:[%s169 + $0x30] sm:$0xff]
      %v185 = vld [vmem:[%s169 + $0x38] sm:$0xf]
      %v186 = vld [vmem:[%s169 + $0x3c] sm:$0xff]
      %v187 = vld [vmem:[%s169 + $0x44] sm:$0xff]
      %v188 = vld [vmem:[%s169 + $0x4c] sm:$0xf]
      %v189 = vld [vmem:[%s169 + $0x50] sm:$0xff]
      %v190 = vld [vmem:[%s169 + $0x58] sm:$0xff]
      %v191 = vld [vmem:[%s169 + $0x60] sm:$0xf]
      %v192 = vld [vmem:[%s169 + $0x64] sm:$0xff]
      %v193 = vld [vmem:[%s169 + $0x6c] sm:$0xff]
      %v194 = vld [vmem:[%s169 + $0x74] sm:$0xf]
      %v195 = vld [vmem:[%s169 + $0x78] sm:$0xff]
      %v196 = vld [vmem:[%s169 + $0x80] sm:$0xff]
      %v197 = vld [vmem:[%s169 + $0x88] sm:$0xf]
      %v198 = vld [vmem:[%s169 + $0x8c] sm:$0xff]
      %v199 = vld [vmem:[%s169 + $0x94] sm:$0xff]
      %v200 = vld [vmem:[%s169 + $0x9c] sm:$0xf]
      %v201 = vld [vmem:[%s169 + $0xa0] sm:$0xff]
      %v202 = vld [vmem:[%s169 + $0xa8] sm:$0xff]
      %v203 = vld [vmem:[%s169 + $0xb0] sm:$0xf]
      %v204 = vld [vmem:[%s169 + $0xb4] sm:$0xff]
      %v205 = vld [vmem:[%s169 + $0xbc] sm:$0xff]
      %v206 = vld [vmem:[%s169 + $0xc4] sm:$0xf]
      %v207 = vld [vmem:[%s169 + $0xc8] sm:$0xff]
      %v208 = vld [vmem:[%s169 + $0xd0] sm:$0xff]
      %v209 = vld [vmem:[%s169 + $0xd8] sm:$0xf]
      %v210 = vld [vmem:[%s169 + $0xdc] sm:$0xff]
      %v211 = vld [vmem:[%s169 + $0xe4] sm:$0xff]
      %v212 = vld [vmem:[%s169 + $0xec] sm:$0xf]
      %v213 = vld [vmem:[%s169 + $0xf0] sm:$0xff]
      %v214 = vld [vmem:[%s169 + $0xf8] sm:$0xff]
      %v215 = vld [vmem:[%s169 + $0x100] sm:$0xf]
      %v216 = vld [vmem:[%s169 + $0x104] sm:$0xff]
      %v217 = vld [vmem:[%s169 + $0x10c] sm:$0xff]
      %v218 = vld [vmem:[%s169 + $0x114] sm:$0xf]
      %v219 = vld [vmem:[%s169 + $0x118] sm:$0xff]
      %v220 = vld [vmem:[%s169 + $0x120] sm:$0xff]
      %v221 = vld [vmem:[%s169 + $0x128] sm:$0xf]
      %v222 = vld [vmem:[%s169 + $0x12c] sm:$0xff]
      %v223 = vld [vmem:[%s169 + $0x134] sm:$0xff]
      %v224 = vld [vmem:[%s169 + $0x13c] sm:$0xf]
      %v225 = vld [vmem:[%s169 + $0x140] sm:$0xff]
      %v226 = vld [vmem:[%s169 + $0x148] sm:$0xff]
      %v227 = vld [vmem:[%s169 + $0x150] sm:$0xf]
      %v228 = vld [vmem:[%s169 + $0x154] sm:$0xff]
      %v229 = vld [vmem:[%s169 + $0x15c] sm:$0xff]
      %v230 = vld [vmem:[%s169 + $0x164] sm:$0xf]
      %v231 = vld [vmem:[%s169 + $0x168] sm:$0xff]
      %v232 = vld [vmem:[%s169 + $0x170] sm:$0xff]
      %v233 = vld [vmem:[%s169 + $0x178] sm:$0xf]
      %v234 = vld [vmem:[%s169 + $0x17c] sm:$0xff]
      %v235 = vld [vmem:[%s169 + $0x184] sm:$0xff]
      %v236 = vld [vmem:[%s169 + $0x18c] sm:$0xf]
      %v237 = vld [vmem:[%s169 + $0x190] sm:$0xff]
      %v238 = vld [vmem:[%s169 + $0x198] sm:$0xff]
      %v239 = vld [vmem:[%s169 + $0x1a0] sm:$0xf]
      %v240 = vld [vmem:[%s169 + $0x1a4] sm:$0xff]
      %v241 = vld [vmem:[%s169 + $0x1ac] sm:$0xff]
      %v242 = vld [vmem:[%s169 + $0x1b4] sm:$0xf]
      %v243 = vld [vmem:[%s169 + $0x1b8] sm:$0xff]
      %v244 = vld [vmem:[%s169 + $0x1c0] sm:$0xff]
      %v245 = vld [vmem:[%s169 + $0x1c8] sm:$0xf]
      %v246 = vld [vmem:[%s169 + $0x1cc] sm:$0xff]
      %v247 = vld [vmem:[%s169 + $0x1d4] sm:$0xff]
      %v248 = vld [vmem:[%s169 + $0x1dc] sm:$0xf]
      %v249 = vld [vmem:[%s169 + $0x1e0] sm:$0xff]
      %v250 = vld [vmem:[%s169 + $0x1e8] sm:$0xff]
      %v251 = vld [vmem:[%s169 + $0x1f0] sm:$0xf]
      %v252 = vld [vmem:[%s169 + $0x1f4] sm:$0xff]
      %v253 = vld [vmem:[%s169 + $0x1fc] sm:$0xff]
      %v254 = vld [vmem:[%s169 + $0x204] sm:$0xf]
      %v255 = vld [vmem:[%s169 + $0x208] sm:$0xff]
      %v256 = vld [vmem:[%s169 + $0x210] sm:$0xff]
      %v257 = vld [vmem:[%s169 + $0x218] sm:$0xf]
      %v258 = vld [vmem:[%s169 + $0x21c] sm:$0xff]
      %v259 = vld [vmem:[%s169 + $0x224] sm:$0xff]
      %v260 = vld [vmem:[%s169 + $0x22c] sm:$0xf]
      %v261 = vld [vmem:[%s169 + $0x230] sm:$0xff]
      %v262 = vld [vmem:[%s169 + $0x238] sm:$0xff]
      %v263 = vld [vmem:[%s169 + $0x240] sm:$0xf]
      %v264 = vld [vmem:[%s169 + $0x244] sm:$0xff]
      %v265 = vld [vmem:[%s169 + $0x24c] sm:$0xff]
      %v266 = vld [vmem:[%s169 + $0x254] sm:$0xf]
      %v267 = vld [vmem:[%s169 + $0x258] sm:$0xff]
      %v268 = vld [vmem:[%s169 + $0x260] sm:$0xff]
      %v269 = vld [vmem:[%s169 + $0x268] sm:$0xf]
      %v270 = vld [vmem:[%s169 + $0x26c] sm:$0xff]
      %v271 = vld [vmem:[%s169 + $0x274] sm:$0xff]
      %v272 = vld [vmem:[%s169 + $0x27c] sm:$0xf]
      %v273 = vld [vmem:[%s169 + $0x280] sm:$0xff]
      %v274 = vld [vmem:[%s169 + $0x288] sm:$0xff]
      %v275 = vld [vmem:[%s169 + $0x290] sm:$0xf]
      %v276 = vld [vmem:[%s169 + $0x294] sm:$0xff]
      %v277 = vld [vmem:[%s169 + $0x29c] sm:$0xff]
      %v278 = vld [vmem:[%s169 + $0x2a4] sm:$0xf]
      %v279 = vld [vmem:[%s169 + $0x2a8] sm:$0xff]
      %v280 = vld [vmem:[%s169 + $0x2b0] sm:$0xff]
      %v281 = vld [vmem:[%s169 + $0x2b8] sm:$0xf]
      %v282 = vld [vmem:[%s169 + $0x2bc] sm:$0xff]
      %v283 = vld [vmem:[%s169 + $0x2c4] sm:$0xff]
      %v284 = vld [vmem:[%s169 + $0x2cc] sm:$0xf]
      %v285 = vld [vmem:[%s169 + $0x2d0] sm:$0xff]
      %v286 = vld [vmem:[%s169 + $0x2d8] sm:$0xff]
      %v287 = vld [vmem:[%s169 + $0x2e0] sm:$0xf]
      %v288 = vld [vmem:[%s169 + $0x2e4] sm:$0xff]
      %v289 = vld [vmem:[%s169 + $0x2ec] sm:$0xff]
      %v290 = vld [vmem:[%s169 + $0x2f4] sm:$0xf]
      %v291 = vld [vmem:[%s169 + $0x2f8] sm:$0xff]
      %v292 = vld [vmem:[%s169 + $0x300] sm:$0xff]
      %v293 = vld [vmem:[%s169 + $0x308] sm:$0xf]
      %v294 = vld [vmem:[%s169 + $0x30c] sm:$0xff]
      %v295 = vld [vmem:[%s169 + $0x314] sm:$0xff]
      %v296 = vld [vmem:[%s169 + $0x31c] sm:$0xf]
      %v297 = vld [vmem:[%s169 + $0x320] sm:$0xff]
      %v298 = vld [vmem:[%s169 + $0x328] sm:$0xff]
      %v299 = vld [vmem:[%s169 + $0x330] sm:$0xf]
      %v300 = vld [vmem:[%s169 + $0x334] sm:$0xff]
      %v301 = vld [vmem:[%s169 + $0x33c] sm:$0xff]
      %v302 = vld [vmem:[%s169 + $0x344] sm:$0xf]
      %v303 = vld [vmem:[%s169 + $0x348] sm:$0xff]
      %v304 = vld [vmem:[%s169 + $0x350] sm:$0xff]
      %v305 = vld [vmem:[%s169 + $0x358] sm:$0xf]
      %v306 = vld [vmem:[%s169 + $0x35c] sm:$0xff]
      %v307 = vld [vmem:[%s169 + $0x364] sm:$0xff]
      %v308 = vld [vmem:[%s169 + $0x36c] sm:$0xf]
      %v309 = vld [vmem:[%s169 + $0x370] sm:$0xff]
      %v310 = vld [vmem:[%s169 + $0x378] sm:$0xff]
      %v311 = vld [vmem:[%s169 + $0x380] sm:$0xf]
      %v312 = vld [vmem:[%s169 + $0x384] sm:$0xff]
      %v313 = vld [vmem:[%s169 + $0x38c] sm:$0xff]
      %v314 = vld [vmem:[%s169 + $0x394] sm:$0xf]
      %v315 = vld [vmem:[%s169 + $0x398] sm:$0xff]
      %v316 = vld [vmem:[%s169 + $0x3a0] sm:$0xff]
      %v317 = vld [vmem:[%s169 + $0x3a8] sm:$0xf]
      %v318 = vld [vmem:[%s169 + $0x3ac] sm:$0xff]
      %v319 = vld [vmem:[%s169 + $0x3b4] sm:$0xff]
      %v320 = vld [vmem:[%s169 + $0x3bc] sm:$0xf]
      %v321 = vld [vmem:[%s169 + $0x3c0] sm:$0xff]
      %v322 = vld [vmem:[%s169 + $0x3c8] sm:$0xff]
      %v323 = vld [vmem:[%s169 + $0x3d0] sm:$0xf]
      %v324 = vld [vmem:[%s169 + $0x3d4] sm:$0xff]
      %v325 = vld [vmem:[%s169 + $0x3dc] sm:$0xff]
      %v326 = vld [vmem:[%s169 + $0x3e4] sm:$0xf]
      %v327 = vld [vmem:[%s169 + $0x3e8] sm:$0xff]
      %v328 = vld [vmem:[%s169 + $0x3f0] sm:$0xff]
      %v329 = vld [vmem:[%s169 + $0x3f8] sm:$0xf]
      %v330 = vld [vmem:[%s169 + $0x3fc] sm:$0xff]
      %v331 = vld [vmem:[%s169 + $0x404] sm:$0xff]
      %v332 = vld [vmem:[%s169 + $0x40c] sm:$0xf]
      %v333 = vld [vmem:[%s169 + $0x410] sm:$0xff]
      %v334 = vld [vmem:[%s169 + $0x418] sm:$0xff]
      %v335 = vld [vmem:[%s169 + $0x420] sm:$0xf]
      %v336 = vld [vmem:[%s169 + $0x424] sm:$0xff]
      %v337 = vld [vmem:[%s169 + $0x42c] sm:$0xff]
      %v338 = vld [vmem:[%s169 + $0x434] sm:$0xf]
      %v339 = vld [vmem:[%s169 + $0x438] sm:$0xff]
      %v340 = vld [vmem:[%s169 + $0x440] sm:$0xff]
      %v341 = vld [vmem:[%s169 + $0x448] sm:$0xf]
      %v342 = vld [vmem:[%s169 + $0x44c] sm:$0xff]
      %v343 = vld [vmem:[%s169 + $0x454] sm:$0xff]
      %v344 = vld [vmem:[%s169 + $0x45c] sm:$0xf]
      %v345 = vld [vmem:[%s169 + $0x460] sm:$0xff]
      %v346 = vld [vmem:[%s169 + $0x468] sm:$0xff]
      %v347 = vld [vmem:[%s169 + $0x470] sm:$0xf]
      %v348 = vld [vmem:[%s169 + $0x474] sm:$0xff]
      %v349 = vld [vmem:[%s169 + $0x47c] sm:$0xff]
      %v350 = vld [vmem:[%s169 + $0x484] sm:$0xf]
      %v351 = vld [vmem:[%s169 + $0x488] sm:$0xff]
      %v352 = vld [vmem:[%s169 + $0x490] sm:$0xff]
      %v353 = vld [vmem:[%s169 + $0x498] sm:$0xf]
      %v354 = vld [vmem:[%s169 + $0x49c] sm:$0xff]
      %v355 = vld [vmem:[%s169 + $0x4a4] sm:$0xff]
      %v356 = vld [vmem:[%s169 + $0x4ac] sm:$0xf]
      %v357 = vld [vmem:[%s169 + $0x4b0] sm:$0xff]
      %v358 = vld [vmem:[%s169 + $0x4b8] sm:$0xff]
      %v359 = vld [vmem:[%s169 + $0x4c0] sm:$0xf]
      %v360 = vld [vmem:[%s169 + $0x4c4] sm:$0xff]
      %v361 = vld [vmem:[%s169 + $0x4cc] sm:$0xff]
      %v362 = vld [vmem:[%s169 + $0x4d4] sm:$0xf]
      %v363 = vld [vmem:[%s169 + $0x4d8] sm:$0xff]
      %v364 = vld [vmem:[%s169 + $0x4e0] sm:$0xff]
      %v365 = vld [vmem:[%s169 + $0x4e8] sm:$0xf]
      %v366 = vld [vmem:[%s169 + $0x4ec] sm:$0xff]
      %v367 = vld [vmem:[%s169 + $0x4f4] sm:$0xff]
      %v368 = vld [vmem:[%s169 + $0x4fc] sm:$0xf]
      %v369 = vld [vmem:[%s169 + $0x500] sm:$0xff]
      %v370 = vld [vmem:[%s169 + $0x508] sm:$0xff]
      %v371 = vld [vmem:[%s169 + $0x510] sm:$0xf]
      %v372 = vld [vmem:[%s169 + $0x514] sm:$0xff]
      %v373 = vld [vmem:[%s169 + $0x51c] sm:$0xff]
      %v374 = vld [vmem:[%s169 + $0x524] sm:$0xf]
      %v375 = vld [vmem:[%s169 + $0x528] sm:$0xff]
      %v376 = vld [vmem:[%s169 + $0x530] sm:$0xff]
      %v377 = vld [vmem:[%s169 + $0x538] sm:$0xf]
      %v378 = vld [vmem:[%s169 + $0x53c] sm:$0xff]
      %v379 = vld [vmem:[%s169 + $0x544] sm:$0xff]
      %v380 = vld [vmem:[%s169 + $0x54c] sm:$0xf]
      %v381 = vld [vmem:[%s169 + $0x550] sm:$0xff]
      %v382 = vld [vmem:[%s169 + $0x558] sm:$0xff]
      %v383 = vld [vmem:[%s169 + $0x560] sm:$0xf]
      %v384 = vld [vmem:[%s169 + $0x564] sm:$0xff]
      %v385 = vld [vmem:[%s169 + $0x56c] sm:$0xff]
      %v386 = vld [vmem:[%s169 + $0x574] sm:$0xf]
      %v387 = vld [vmem:[%s169 + $0x578] sm:$0xff]
      %v388 = vld [vmem:[%s169 + $0x580] sm:$0xff]
      %v389 = vld [vmem:[%s169 + $0x588] sm:$0xf]
      %v390 = vld [vmem:[%s169 + $0x58c] sm:$0xff]
      %v391 = vld [vmem:[%s169 + $0x594] sm:$0xff]
      %v392 = vld [vmem:[%s169 + $0x59c] sm:$0xf]
      %v393 = vld [vmem:[%s169 + $0x5a0] sm:$0xff]
      %v394 = vld [vmem:[%s169 + $0x5a8] sm:$0xff]
      %v395 = vld [vmem:[%s169 + $0x5b0] sm:$0xf]
      %v396 = vld [vmem:[%s169 + $0x5b4] sm:$0xff]
      %v397 = vld [vmem:[%s169 + $0x5bc] sm:$0xff]
      %v398 = vld [vmem:[%s169 + $0x5c4] sm:$0xf]
      %v399 = vld [vmem:[%s169 + $0x5c8] sm:$0xff]
      %v400 = vld [vmem:[%s169 + $0x5d0] sm:$0xff]
      %v401 = vld [vmem:[%s169 + $0x5d8] sm:$0xf]
      %v402 = vld [vmem:[%s169 + $0x5dc] sm:$0xff]
      %v403 = vld [vmem:[%s169 + $0x5e4] sm:$0xff]
      %v404 = vld [vmem:[%s169 + $0x5ec] sm:$0xf]
      %v405 = vld [vmem:[%s169 + $0x5f0] sm:$0xff]
      %v406 = vld [vmem:[%s169 + $0x5f8] sm:$0xff]
      %v407 = vld [vmem:[%s169 + $0x600] sm:$0xf]
      %v408 = vld [vmem:[%s169 + $0x604] sm:$0xff]
      %v409 = vld [vmem:[%s169 + $0x60c] sm:$0xff]
      %v410 = vld [vmem:[%s169 + $0x614] sm:$0xf]
      %v411 = vld [vmem:[%s169 + $0x618] sm:$0xff]
      %v412 = vld [vmem:[%s169 + $0x620] sm:$0xff]
      %v413 = vld [vmem:[%s169 + $0x628] sm:$0xf]
      %v414 = vld [vmem:[%s169 + $0x62c] sm:$0xff]
      %v415 = vld [vmem:[%s169 + $0x634] sm:$0xff]
      %v416 = vld [vmem:[%s169 + $0x63c] sm:$0xf]
      %v417 = vld [vmem:[%s169 + $0x640] sm:$0xff]
      %v418 = vld [vmem:[%s169 + $0x648] sm:$0xff]
      %v419 = vld [vmem:[%s169 + $0x650] sm:$0xf]
      %v420 = vld [vmem:[%s169 + $0x654] sm:$0xff]
      %v421 = vld [vmem:[%s169 + $0x65c] sm:$0xff]
      %v422 = vld [vmem:[%s169 + $0x664] sm:$0xf]
      %v423 = vld [vmem:[%s169 + $0x668] sm:$0xff]
      %v424 = vld [vmem:[%s169 + $0x670] sm:$0xff]
      %v425 = vld [vmem:[%s169 + $0x678] sm:$0xf]
      %v426 = vld [vmem:[%s169 + $0x67c] sm:$0xff]
      %v427 = vld [vmem:[%s169 + $0x684] sm:$0xff]
      %v428 = vld [vmem:[%s169 + $0x68c] sm:$0xf]
      %v429 = vld [vmem:[%s1] sm:$0xf]
      %v430 = vld [vmem:[%s1 + $0x4] sm:$0xf]
      %v431 = vld [vmem:[%s1 + $0x8] sm:$0xf]
      %v432 = vld [vmem:[%s1 + $0xc] sm:$0xf]
      %v433 = vld [vmem:[%s1 + $0x10] sm:$0xf]
      %v434 = vld [vmem:[%s1 + $0x14] sm:$0xf]
      %v435 = vld [vmem:[%s1 + $0x18] sm:$0xf]
      %v436 = vld [vmem:[%s1 + $0x1c] sm:$0xf]
      %v437 = vld [vmem:[%s1 + $0x20] sm:$0xf]
      %v438 = vld [vmem:[%s1 + $0x24] sm:$0xf]
      %v439 = vld [vmem:[%s1 + $0x28] sm:$0xf]
      %v440 = vld [vmem:[%s1 + $0x2c] sm:$0xf]
      %v441 = vld [vmem:[%s1 + $0x30] sm:$0xf]
      %v442 = vld [vmem:[%s1 + $0x34] sm:$0xf]
      %v443 = vld [vmem:[%s1 + $0x38] sm:$0xf]
      %v444 = vld [vmem:[%s1 + $0x3c] sm:$0xf]
      %v445 = vld [vmem:[%s1 + $0x40] sm:$0xf]
      %v446 = vld [vmem:[%s1 + $0x44] sm:$0xf]
      %v447 = vld [vmem:[%s1 + $0x48] sm:$0xf]
      %v448 = vld [vmem:[%s1 + $0x4c] sm:$0xf]
      %v449 = vld [vmem:[%s1 + $0x50] sm:$0xf]
      %v450 = vld [vmem:[%s1 + $0x54] sm:$0xf]
      %v451 = vld [vmem:[%s1 + $0x58] sm:$0xf]
      %v452 = vld [vmem:[%s1 + $0x5c] sm:$0xf]
      %v453 = vld [vmem:[%s1 + $0x60] sm:$0xf]
      %v454 = vld [vmem:[%s1 + $0x64] sm:$0xf]
      %v455 = vld [vmem:[%s1 + $0x68] sm:$0xf]
      %v456 = vld [vmem:[%s1 + $0x6c] sm:$0xf]
      %v457 = vld [vmem:[%s1 + $0x70] sm:$0xf]
      %v458 = vld [vmem:[%s1 + $0x74] sm:$0xf]
      %v459 = vld [vmem:[%s1 + $0x78] sm:$0xf]
      %v460 = vld [vmem:[%s1 + $0x7c] sm:$0xf]
      %v461 = vld [vmem:[%s1 + $0x80] sm:$0xf]
      %v462 = vld [vmem:[%s1 + $0x84] sm:$0xf]
      %v463 = vld [vmem:[%s1 + $0x88] sm:$0xf]
      %v464 = vld [vmem:[%s1 + $0x8c] sm:$0xf]
      %v465 = vld [vmem:[%s1 + $0x90] sm:$0xf]
      %v466 = vld [vmem:[%s1 + $0x94] sm:$0xf]
      %v467 = vld [vmem:[%s1 + $0x98] sm:$0xf]
      %v468 = vld [vmem:[%s1 + $0x9c] sm:$0xf]
      %v469 = vld [vmem:[%s1 + $0xa0] sm:$0xf]
      %v470 = vld [vmem:[%s1 + $0xa4] sm:$0xf]
      %v471 = vld [vmem:[%s1 + $0xa8] sm:$0xf]
      %v472 = vld [vmem:[%s1 + $0xac] sm:$0xf]
      %v473 = vld [vmem:[%s1 + $0xb0] sm:$0xf]
      %v474 = vld [vmem:[%s1 + $0xb4] sm:$0xf]
      %v475 = vld [vmem:[%s1 + $0xb8] sm:$0xf]
      %v476 = vld [vmem:[%s1 + $0xbc] sm:$0xf]
      %v477 = vld [vmem:[%s1 + $0xc0] sm:$0xf]
      %v478 = vld [vmem:[%s1 + $0xc4] sm:$0xf]
      %v479 = vld [vmem:[%s1 + $0xc8] sm:$0xf]
      %v480 = vld [vmem:[%s1 + $0xcc] sm:$0xf]
      %v481 = vld [vmem:[%s1 + $0xd0] sm:$0xf]
      %v482 = vld [vmem:[%s1 + $0xd4] sm:$0xf]
      %v483 = vld [vmem:[%s1 + $0xd8] sm:$0xf]
      %v484 = vld [vmem:[%s1 + $0xdc] sm:$0xf]
      %v485 = vld [vmem:[%s1 + $0xe0] sm:$0xf]
      %v486 = vld [vmem:[%s1 + $0xe4] sm:$0xf]
      %v487 = vld [vmem:[%s1 + $0xe8] sm:$0xf]
      %v488 = vld [vmem:[%s1 + $0xec] sm:$0xf]
      %v489 = vld [vmem:[%s1 + $0xf0] sm:$0xf]
      %v490 = vld [vmem:[%s1 + $0xf4] sm:$0xf]
      %v491 = vld [vmem:[%s1 + $0xf8] sm:$0xf]
      %v492 = vld [vmem:[%s1 + $0xfc] sm:$0xf]
      %v493 = vld [vmem:[%s1 + $0x100] sm:$0xf]
      %v494 = vld [vmem:[%s1 + $0x104] sm:$0xf]
      %v495 = vld [vmem:[%s1 + $0x108] sm:$0xf]
      %v496 = vld [vmem:[%s1 + $0x10c] sm:$0xf]
      %v497 = vld [vmem:[%s1 + $0x110] sm:$0xf]
      %v498 = vld [vmem:[%s1 + $0x114] sm:$0xf]
      %v499 = vld [vmem:[%s1 + $0x118] sm:$0xf]
      %v500 = vld [vmem:[%s1 + $0x11c] sm:$0xf]
      %v501 = vld [vmem:[%s1 + $0x120] sm:$0xf]
      %v502 = vld [vmem:[%s1 + $0x124] sm:$0xf]
      %v503 = vld [vmem:[%s1 + $0x128] sm:$0xf]
      %v504 = vld [vmem:[%s1 + $0x12c] sm:$0xf]
      %v505 = vld [vmem:[%s1 + $0x130] sm:$0xf]
      %v506 = vld [vmem:[%s1 + $0x134] sm:$0xf]
      %v507 = vld [vmem:[%s1 + $0x138] sm:$0xf]
      %v508 = vld [vmem:[%s1 + $0x13c] sm:$0xf]
      %v509 = vld [vmem:[%s2] sm:$0x1]
      %v511 = vperm.slane %v509, 0
      %v765 = vunpack.c.l.b16 %v177
      %v766 = vunpack.c.h.b16 %v177
      %v767 = vunpack.c.l.b16 %v178
      %v768 = vunpack.c.h.b16 %v178
      %v769 = vunpack.c.l.b16 %v179
      %v770 = vunpack.c.l.b16 %v180
      %v771 = vunpack.c.h.b16 %v180
      %v772 = vunpack.c.l.b16 %v181
      %v773 = vunpack.c.h.b16 %v181
      %v774 = vunpack.c.l.b16 %v182
      %v775 = vunpack.c.l.b16 %v183
      %v776 = vunpack.c.h.b16 %v183
      %v777 = vunpack.c.l.b16 %v184
      %v778 = vunpack.c.h.b16 %v184
      %v779 = vunpack.c.l.b16 %v185
      %v780 = vunpack.c.l.b16 %v186
      %v781 = vunpack.c.h.b16 %v186
      %v782 = vunpack.c.l.b16 %v187
      %v783 = vunpack.c.h.b16 %v187
      %v784 = vunpack.c.l.b16 %v188
      %v785 = vunpack.c.l.b16 %v189
      %v786 = vunpack.c.h.b16 %v189
      %v787 = vunpack.c.l.b16 %v190
      %v788 = vunpack.c.h.b16 %v190
      %v789 = vunpack.c.l.b16 %v191
      %v790 = vunpack.c.l.b16 %v192
      %v791 = vunpack.c.h.b16 %v192
      %v792 = vunpack.c.l.b16 %v193
      %v793 = vunpack.c.h.b16 %v193
      %v794 = vunpack.c.l.b16 %v194
      %v795 = vunpack.c.l.b16 %v195
      %v796 = vunpack.c.h.b16 %v195
      %v797 = vunpack.c.l.b16 %v196
      %v798 = vunpack.c.h.b16 %v196
      %v799 = vunpack.c.l.b16 %v197
      %v800 = vunpack.c.l.b16 %v198
      %v801 = vunpack.c.h.b16 %v198
      %v802 = vunpack.c.l.b16 %v199
      %v803 = vunpack.c.h.b16 %v199
      %v804 = vunpack.c.l.b16 %v200
      %v805 = vunpack.c.l.b16 %v201
      %v806 = vunpack.c.h.b16 %v201
      %v807 = vunpack.c.l.b16 %v202
      %v808 = vunpack.c.h.b16 %v202
      %v809 = vunpack.c.l.b16 %v203
      %v810 = vunpack.c.l.b16 %v204
      %v811 = vunpack.c.h.b16 %v204
      %v812 = vunpack.c.l.b16 %v205
      %v813 = vunpack.c.h.b16 %v205
      %v814 = vunpack.c.l.b16 %v206
      %v815 = vunpack.c.l.b16 %v207
      %v816 = vunpack.c.h.b16 %v207
      %v817 = vunpack.c.l.b16 %v208
      %v818 = vunpack.c.h.b16 %v208
      %v819 = vunpack.c.l.b16 %v209
      %v820 = vunpack.c.l.b16 %v210
      %v821 = vunpack.c.h.b16 %v210
      %v822 = vunpack.c.l.b16 %v211
      %v823 = vunpack.c.h.b16 %v211
      %v824 = vunpack.c.l.b16 %v212
      %v825 = vunpack.c.l.b16 %v213
      %v826 = vunpack.c.h.b16 %v213
      %v827 = vunpack.c.l.b16 %v214
      %v828 = vunpack.c.h.b16 %v214
      %v829 = vunpack.c.l.b16 %v215
      %v830 = vunpack.c.l.b16 %v216
      %v831 = vunpack.c.h.b16 %v216
      %v832 = vunpack.c.l.b16 %v217
      %v833 = vunpack.c.h.b16 %v217
      %v834 = vunpack.c.l.b16 %v218
      %v835 = vunpack.c.l.b16 %v219
      %v836 = vunpack.c.h.b16 %v219
      %v837 = vunpack.c.l.b16 %v220
      %v838 = vunpack.c.h.b16 %v220
      %v839 = vunpack.c.l.b16 %v221
      %v840 = vunpack.c.l.b16 %v222
      %v841 = vunpack.c.h.b16 %v222
      %v842 = vunpack.c.l.b16 %v223
      %v843 = vunpack.c.h.b16 %v223
      %v844 = vunpack.c.l.b16 %v224
      %v845 = vunpack.c.l.b16 %v225
      %v846 = vunpack.c.h.b16 %v225
      %v847 = vunpack.c.l.b16 %v226
      %v848 = vunpack.c.h.b16 %v226
      %v849 = vunpack.c.l.b16 %v227
      %v850 = vunpack.c.l.b16 %v228
      %v851 = vunpack.c.h.b16 %v228
      %v852 = vunpack.c.l.b16 %v229
      %v853 = vunpack.c.h.b16 %v229
      %v854 = vunpack.c.l.b16 %v230
      %v855 = vunpack.c.l.b16 %v231
      %v856 = vunpack.c.h.b16 %v231
      %v857 = vunpack.c.l.b16 %v232
      %v858 = vunpack.c.h.b16 %v232
      %v859 = vunpack.c.l.b16 %v233
      %v860 = vunpack.c.l.b16 %v234
      %v861 = vunpack.c.h.b16 %v234
      %v862 = vunpack.c.l.b16 %v235
      %v863 = vunpack.c.h.b16 %v235
      %v864 = vunpack.c.l.b16 %v236
      %v865 = vunpack.c.l.b16 %v237
      %v866 = vunpack.c.h.b16 %v237
      %v867 = vunpack.c.l.b16 %v238
      %v868 = vunpack.c.h.b16 %v238
      %v869 = vunpack.c.l.b16 %v239
      %v870 = vunpack.c.l.b16 %v240
      %v871 = vunpack.c.h.b16 %v240
      %v872 = vunpack.c.l.b16 %v241
      %v873 = vunpack.c.h.b16 %v241
      %v874 = vunpack.c.l.b16 %v242
      %v875 = vunpack.c.l.b16 %v243
      %v876 = vunpack.c.h.b16 %v243
      %v877 = vunpack.c.l.b16 %v244
      %v878 = vunpack.c.h.b16 %v244
      %v879 = vunpack.c.l.b16 %v245
      %v880 = vunpack.c.l.b16 %v246
      %v881 = vunpack.c.h.b16 %v246
      %v882 = vunpack.c.l.b16 %v247
      %v883 = vunpack.c.h.b16 %v247
      %v884 = vunpack.c.l.b16 %v248
      %v885 = vunpack.c.l.b16 %v249
      %v886 = vunpack.c.h.b16 %v249
      %v887 = vunpack.c.l.b16 %v250
      %v888 = vunpack.c.h.b16 %v250
      %v889 = vunpack.c.l.b16 %v251
      %v890 = vunpack.c.l.b16 %v252
      %v891 = vunpack.c.h.b16 %v252
      %v892 = vunpack.c.l.b16 %v253
      %v893 = vunpack.c.h.b16 %v253
      %v894 = vunpack.c.l.b16 %v254
      %v895 = vunpack.c.l.b16 %v255
      %v896 = vunpack.c.h.b16 %v255
      %v897 = vunpack.c.l.b16 %v256
      %v898 = vunpack.c.h.b16 %v256
      %v899 = vunpack.c.l.b16 %v257
      %v900 = vunpack.c.l.b16 %v258
      %v901 = vunpack.c.h.b16 %v258
      %v902 = vunpack.c.l.b16 %v259
      %v903 = vunpack.c.h.b16 %v259
      %v904 = vunpack.c.l.b16 %v260
      %v905 = vunpack.c.l.b16 %v261
      %v906 = vunpack.c.h.b16 %v261
      %v907 = vunpack.c.l.b16 %v262
      %v908 = vunpack.c.h.b16 %v262
      %v909 = vunpack.c.l.b16 %v263
      %v910 = vunpack.c.l.b16 %v264
      %v911 = vunpack.c.h.b16 %v264
      %v912 = vunpack.c.l.b16 %v265
      %v913 = vunpack.c.h.b16 %v265
      %v914 = vunpack.c.l.b16 %v266
      %v915 = vunpack.c.l.b16 %v267
      %v916 = vunpack.c.h.b16 %v267
      %v917 = vunpack.c.l.b16 %v268
      %v918 = vunpack.c.h.b16 %v268
      %v919 = vunpack.c.l.b16 %v269
      %v920 = vunpack.c.l.b16 %v270
      %v921 = vunpack.c.h.b16 %v270
      %v922 = vunpack.c.l.b16 %v271
      %v923 = vunpack.c.h.b16 %v271
      %v924 = vunpack.c.l.b16 %v272
      %v925 = vunpack.c.l.b16 %v273
      %v926 = vunpack.c.h.b16 %v273
      %v927 = vunpack.c.l.b16 %v274
      %v928 = vunpack.c.h.b16 %v274
      %v929 = vunpack.c.l.b16 %v275
      %v930 = vunpack.c.l.b16 %v276
      %v931 = vunpack.c.h.b16 %v276
      %v932 = vunpack.c.l.b16 %v277
      %v933 = vunpack.c.h.b16 %v277
      %v934 = vunpack.c.l.b16 %v278
      %v935 = vunpack.c.l.b16 %v279
      %v936 = vunpack.c.h.b16 %v279
      %v937 = vunpack.c.l.b16 %v280
      %v938 = vunpack.c.h.b16 %v280
      %v939 = vunpack.c.l.b16 %v281
      %v940 = vunpack.c.l.b16 %v282
      %v941 = vunpack.c.h.b16 %v282
      %v942 = vunpack.c.l.b16 %v283
      %v943 = vunpack.c.h.b16 %v283
      %v944 = vunpack.c.l.b16 %v284
      %v945 = vunpack.c.l.b16 %v285
      %v946 = vunpack.c.h.b16 %v285
      %v947 = vunpack.c.l.b16 %v286
      %v948 = vunpack.c.h.b16 %v286
      %v949 = vunpack.c.l.b16 %v287
      %v950 = vunpack.c.l.b16 %v288
      %v951 = vunpack.c.h.b16 %v288
      %v952 = vunpack.c.l.b16 %v289
      %v953 = vunpack.c.h.b16 %v289
      %v954 = vunpack.c.l.b16 %v290
      %v955 = vunpack.c.l.b16 %v291
      %v956 = vunpack.c.h.b16 %v291
      %v957 = vunpack.c.l.b16 %v292
      %v958 = vunpack.c.h.b16 %v292
      %v959 = vunpack.c.l.b16 %v293
      %v960 = vunpack.c.l.b16 %v294
      %v961 = vunpack.c.h.b16 %v294
      %v962 = vunpack.c.l.b16 %v295
      %v963 = vunpack.c.h.b16 %v295
      %v964 = vunpack.c.l.b16 %v296
      %v965 = vunpack.c.l.b16 %v297
      %v966 = vunpack.c.h.b16 %v297
      %v967 = vunpack.c.l.b16 %v298
      %v968 = vunpack.c.h.b16 %v298
      %v969 = vunpack.c.l.b16 %v299
      %v970 = vunpack.c.l.b16 %v300
      %v971 = vunpack.c.h.b16 %v300
      %v972 = vunpack.c.l.b16 %v301
      %v973 = vunpack.c.h.b16 %v301
      %v974 = vunpack.c.l.b16 %v302
      %v975 = vunpack.c.l.b16 %v303
      %v976 = vunpack.c.h.b16 %v303
      %v977 = vunpack.c.l.b16 %v304
      %v978 = vunpack.c.h.b16 %v304
      %v979 = vunpack.c.l.b16 %v305
      %v980 = vunpack.c.l.b16 %v306
      %v981 = vunpack.c.h.b16 %v306
      %v982 = vunpack.c.l.b16 %v307
      %v983 = vunpack.c.h.b16 %v307
      %v984 = vunpack.c.l.b16 %v308
      %v985 = vunpack.c.l.b16 %v309
      %v986 = vunpack.c.h.b16 %v309
      %v987 = vunpack.c.l.b16 %v310
      %v988 = vunpack.c.h.b16 %v310
      %v989 = vunpack.c.l.b16 %v311
      %v990 = vunpack.c.l.b16 %v312
      %v991 = vunpack.c.h.b16 %v312
      %v992 = vunpack.c.l.b16 %v313
      %v993 = vunpack.c.h.b16 %v313
      %v994 = vunpack.c.l.b16 %v314
      %v995 = vunpack.c.l.b16 %v315
      %v996 = vunpack.c.h.b16 %v315
      %v997 = vunpack.c.l.b16 %v316
      %v998 = vunpack.c.h.b16 %v316
      %v999 = vunpack.c.l.b16 %v317
      %v1000 = vunpack.c.l.b16 %v318
      %v1001 = vunpack.c.h.b16 %v318
      %v1002 = vunpack.c.l.b16 %v319
      %v1003 = vunpack.c.h.b16 %v319
      %v1004 = vunpack.c.l.b16 %v320
      %v1005 = vunpack.c.l.b16 %v321
      %v1006 = vunpack.c.h.b16 %v321
      %v1007 = vunpack.c.l.b16 %v322
      %v1008 = vunpack.c.h.b16 %v322
      %v1009 = vunpack.c.l.b16 %v323
      %v1010 = vunpack.c.l.b16 %v324
      %v1011 = vunpack.c.h.b16 %v324
      %v1012 = vunpack.c.l.b16 %v325
      %v1013 = vunpack.c.h.b16 %v325
      %v1014 = vunpack.c.l.b16 %v326
      %v1015 = vunpack.c.l.b16 %v327
      %v1016 = vunpack.c.h.b16 %v327
      %v1017 = vunpack.c.l.b16 %v328
      %v1018 = vunpack.c.h.b16 %v328
      %v1019 = vunpack.c.l.b16 %v329
      %v1020 = vunpack.c.l.b16 %v330
      %v1021 = vunpack.c.h.b16 %v330
      %v1022 = vunpack.c.l.b16 %v331
      %v1023 = vunpack.c.h.b16 %v331
      %v1024 = vunpack.c.l.b16 %v332
      %v1025 = vunpack.c.l.b16 %v333
      %v1026 = vunpack.c.h.b16 %v333
      %v1027 = vunpack.c.l.b16 %v334
      %v1028 = vunpack.c.h.b16 %v334
      %v1029 = vunpack.c.l.b16 %v335
      %v1030 = vunpack.c.l.b16 %v336
      %v1031 = vunpack.c.h.b16 %v336
      %v1032 = vunpack.c.l.b16 %v337
      %v1033 = vunpack.c.h.b16 %v337
      %v1034 = vunpack.c.l.b16 %v338
      %v1035 = vunpack.c.l.b16 %v339
      %v1036 = vunpack.c.h.b16 %v339
      %v1037 = vunpack.c.l.b16 %v340
      %v1038 = vunpack.c.h.b16 %v340
      %v1039 = vunpack.c.l.b16 %v341
      %v1040 = vunpack.c.l.b16 %v342
      %v1041 = vunpack.c.h.b16 %v342
      %v1042 = vunpack.c.l.b16 %v343
      %v1043 = vunpack.c.h.b16 %v343
      %v1044 = vunpack.c.l.b16 %v344
      %v1045 = vunpack.c.l.b16 %v345
      %v1046 = vunpack.c.h.b16 %v345
      %v1047 = vunpack.c.l.b16 %v346
      %v1048 = vunpack.c.h.b16 %v346
      %v1049 = vunpack.c.l.b16 %v347
      %v1050 = vunpack.c.l.b16 %v348
      %v1051 = vunpack.c.h.b16 %v348
      %v1052 = vunpack.c.l.b16 %v349
      %v1053 = vunpack.c.h.b16 %v349
      %v1054 = vunpack.c.l.b16 %v350
      %v1055 = vunpack.c.l.b16 %v351
      %v1056 = vunpack.c.h.b16 %v351
      %v1057 = vunpack.c.l.b16 %v352
      %v1058 = vunpack.c.h.b16 %v352
      %v1059 = vunpack.c.l.b16 %v353
      %v1060 = vunpack.c.l.b16 %v354
      %v1061 = vunpack.c.h.b16 %v354
      %v1062 = vunpack.c.l.b16 %v355
      %v1063 = vunpack.c.h.b16 %v355
      %v1064 = vunpack.c.l.b16 %v356
      %v1065 = vunpack.c.l.b16 %v357
      %v1066 = vunpack.c.h.b16 %v357
      %v1067 = vunpack.c.l.b16 %v358
      %v1068 = vunpack.c.h.b16 %v358
      %v1069 = vunpack.c.l.b16 %v359
      %v1070 = vunpack.c.l.b16 %v360
      %v1071 = vunpack.c.h.b16 %v360
      %v1072 = vunpack.c.l.b16 %v361
      %v1073 = vunpack.c.h.b16 %v361
      %v1074 = vunpack.c.l.b16 %v362
      %v1075 = vunpack.c.l.b16 %v363
      %v1076 = vunpack.c.h.b16 %v363
      %v1077 = vunpack.c.l.b16 %v364
      %v1078 = vunpack.c.h.b16 %v364
      %v1079 = vunpack.c.l.b16 %v365
      %v1080 = vunpack.c.l.b16 %v366
      %v1081 = vunpack.c.h.b16 %v366
      %v1082 = vunpack.c.l.b16 %v367
      %v1083 = vunpack.c.h.b16 %v367
      %v1084 = vunpack.c.l.b16 %v368
      %v1085 = vunpack.c.l.b16 %v369
      %v1086 = vunpack.c.h.b16 %v369
      %v1087 = vunpack.c.l.b16 %v370
      %v1088 = vunpack.c.h.b16 %v370
      %v1089 = vunpack.c.l.b16 %v371
      %v1090 = vunpack.c.l.b16 %v372
      %v1091 = vunpack.c.h.b16 %v372
      %v1092 = vunpack.c.l.b16 %v373
      %v1093 = vunpack.c.h.b16 %v373
      %v1094 = vunpack.c.l.b16 %v374
      %v1095 = vunpack.c.l.b16 %v375
      %v1096 = vunpack.c.h.b16 %v375
      %v1097 = vunpack.c.l.b16 %v376
      %v1098 = vunpack.c.h.b16 %v376
      %v1099 = vunpack.c.l.b16 %v377
      %v1100 = vunpack.c.l.b16 %v378
      %v1101 = vunpack.c.h.b16 %v378
      %v1102 = vunpack.c.l.b16 %v379
      %v1103 = vunpack.c.h.b16 %v379
      %v1104 = vunpack.c.l.b16 %v380
      %v1105 = vunpack.c.l.b16 %v381
      %v1106 = vunpack.c.h.b16 %v381
      %v1107 = vunpack.c.l.b16 %v382
      %v1108 = vunpack.c.h.b16 %v382
      %v1109 = vunpack.c.l.b16 %v383
      %v1110 = vunpack.c.l.b16 %v384
      %v1111 = vunpack.c.h.b16 %v384
      %v1112 = vunpack.c.l.b16 %v385
      %v1113 = vunpack.c.h.b16 %v385
      %v1114 = vunpack.c.l.b16 %v386
      %v1115 = vunpack.c.l.b16 %v387
      %v1116 = vunpack.c.h.b16 %v387
      %v1117 = vunpack.c.l.b16 %v388
      %v1118 = vunpack.c.h.b16 %v388
      %v1119 = vunpack.c.l.b16 %v389
      %v1120 = vunpack.c.l.b16 %v390
      %v1121 = vunpack.c.h.b16 %v390
      %v1122 = vunpack.c.l.b16 %v391
      %v1123 = vunpack.c.h.b16 %v391
      %v1124 = vunpack.c.l.b16 %v392
      %v1125 = vunpack.c.l.b16 %v393
      %v1126 = vunpack.c.h.b16 %v393
      %v1127 = vunpack.c.l.b16 %v394
      %v1128 = vunpack.c.h.b16 %v394
      %v1129 = vunpack.c.l.b16 %v395
      %v1130 = vunpack.c.l.b16 %v396
      %v1131 = vunpack.c.h.b16 %v396
      %v1132 = vunpack.c.l.b16 %v397
      %v1133 = vunpack.c.h.b16 %v397
      %v1134 = vunpack.c.l.b16 %v398
      %v1135 = vunpack.c.l.b16 %v399
      %v1136 = vunpack.c.h.b16 %v399
      %v1137 = vunpack.c.l.b16 %v400
      %v1138 = vunpack.c.h.b16 %v400
      %v1139 = vunpack.c.l.b16 %v401
      %v1140 = vunpack.c.l.b16 %v402
      %v1141 = vunpack.c.h.b16 %v402
      %v1142 = vunpack.c.l.b16 %v403
      %v1143 = vunpack.c.h.b16 %v403
      %v1144 = vunpack.c.l.b16 %v404
      %v1145 = vunpack.c.l.b16 %v405
      %v1146 = vunpack.c.h.b16 %v405
      %v1147 = vunpack.c.l.b16 %v406
      %v1148 = vunpack.c.h.b16 %v406
      %v1149 = vunpack.c.l.b16 %v407
      %v1150 = vunpack.c.l.b16 %v408
      %v1151 = vunpack.c.h.b16 %v408
      %v1152 = vunpack.c.l.b16 %v409
      %v1153 = vunpack.c.h.b16 %v409
      %v1154 = vunpack.c.l.b16 %v410
      %v1155 = vunpack.c.l.b16 %v411
      %v1156 = vunpack.c.h.b16 %v411
      %v1157 = vunpack.c.l.b16 %v412
      %v1158 = vunpack.c.h.b16 %v412
      %v1159 = vunpack.c.l.b16 %v413
      %v1160 = vunpack.c.l.b16 %v414
      %v1161 = vunpack.c.h.b16 %v414
      %v1162 = vunpack.c.l.b16 %v415
      %v1163 = vunpack.c.h.b16 %v415
      %v1164 = vunpack.c.l.b16 %v416
      %v1165 = vunpack.c.l.b16 %v417
      %v1166 = vunpack.c.h.b16 %v417
      %v1167 = vunpack.c.l.b16 %v418
      %v1168 = vunpack.c.h.b16 %v418
      %v1169 = vunpack.c.l.b16 %v419
      %v1170 = vunpack.c.l.b16 %v420
      %v1171 = vunpack.c.h.b16 %v420
      %v1172 = vunpack.c.l.b16 %v421
      %v1173 = vunpack.c.h.b16 %v421
      %v1174 = vunpack.c.l.b16 %v422
      %v1175 = vunpack.c.l.b16 %v423
      %v1176 = vunpack.c.h.b16 %v423
      %v1177 = vunpack.c.l.b16 %v424
      %v1178 = vunpack.c.h.b16 %v424
      %v1179 = vunpack.c.l.b16 %v425
      %v1180 = vunpack.c.l.b16 %v426
      %v1181 = vunpack.c.h.b16 %v426
      %v1182 = vunpack.c.l.b16 %v427
      %v1183 = vunpack.c.h.b16 %v427
      %v1184 = vunpack.c.l.b16 %v428
      %v1185 = vpack.c.b16 %v770, %v765
      %v1186 = vpack.c.b16 %v771, %v766
      %v1187 = vpack.c.b16 %v772, %v767
      %v1188 = vpack.c.b16 %v773, %v768
      %v1189 = vpack.c.b16 %v774, %v769
      %v1190 = vpack.c.b16 %v780, %v775
      %v1191 = vpack.c.b16 %v781, %v776
      %v1192 = vpack.c.b16 %v782, %v777
      %v1193 = vpack.c.b16 %v783, %v778
      %v1194 = vpack.c.b16 %v784, %v779
      %v1195 = vpack.c.b16 %v790, %v785
      %v1196 = vpack.c.b16 %v791, %v786
      %v1197 = vpack.c.b16 %v792, %v787
      %v1198 = vpack.c.b16 %v793, %v788
      %v1199 = vpack.c.b16 %v794, %v789
      %v1200 = vpack.c.b16 %v800, %v795
      %v1201 = vpack.c.b16 %v801, %v796
      %v1202 = vpack.c.b16 %v802, %v797
      %v1203 = vpack.c.b16 %v803, %v798
      %v1204 = vpack.c.b16 %v804, %v799
      %v1205 = vpack.c.b16 %v810, %v805
      %v1206 = vpack.c.b16 %v811, %v806
      %v1207 = vpack.c.b16 %v812, %v807
      %v1208 = vpack.c.b16 %v813, %v808
      %v1209 = vpack.c.b16 %v814, %v809
      %v1210 = vpack.c.b16 %v820, %v815
      %v1211 = vpack.c.b16 %v821, %v816
      %v1212 = vpack.c.b16 %v822, %v817
      %v1213 = vpack.c.b16 %v823, %v818
      %v1214 = vpack.c.b16 %v824, %v819
      %v1215 = vpack.c.b16 %v830, %v825
      %v1216 = vpack.c.b16 %v831, %v826
      %v1217 = vpack.c.b16 %v832, %v827
      %v1218 = vpack.c.b16 %v833, %v828
      %v1219 = vpack.c.b16 %v834, %v829
      %v1220 = vpack.c.b16 %v840, %v835
      %v1221 = vpack.c.b16 %v841, %v836
      %v1222 = vpack.c.b16 %v842, %v837
      %v1223 = vpack.c.b16 %v843, %v838
      %v1224 = vpack.c.b16 %v844, %v839
      %v1225 = vpack.c.b16 %v850, %v845
      %v1226 = vpack.c.b16 %v851, %v846
      %v1227 = vpack.c.b16 %v852, %v847
      %v1228 = vpack.c.b16 %v853, %v848
      %v1229 = vpack.c.b16 %v854, %v849
      %v1230 = vpack.c.b16 %v860, %v855
      %v1231 = vpack.c.b16 %v861, %v856
      %v1232 = vpack.c.b16 %v862, %v857
      %v1233 = vpack.c.b16 %v863, %v858
      %v1234 = vpack.c.b16 %v864, %v859
      %v1235 = vpack.c.b16 %v870, %v865
      %v1236 = vpack.c.b16 %v871, %v866
      %v1237 = vpack.c.b16 %v872, %v867
      %v1238 = vpack.c.b16 %v873, %v868
      %v1239 = vpack.c.b16 %v874, %v869
      %v1240 = vpack.c.b16 %v880, %v875
      %v1241 = vpack.c.b16 %v881, %v876
      %v1242 = vpack.c.b16 %v882, %v877
      %v1243 = vpack.c.b16 %v883, %v878
      %v1244 = vpack.c.b16 %v884, %v879
      %v1245 = vpack.c.b16 %v890, %v885
      %v1246 = vpack.c.b16 %v891, %v886
      %v1247 = vpack.c.b16 %v892, %v887
      %v1248 = vpack.c.b16 %v893, %v888
      %v1249 = vpack.c.b16 %v894, %v889
      %v1250 = vpack.c.b16 %v900, %v895
      %v1251 = vpack.c.b16 %v901, %v896
      %v1252 = vpack.c.b16 %v902, %v897
      %v1253 = vpack.c.b16 %v903, %v898
      %v1254 = vpack.c.b16 %v904, %v899
      %v1255 = vpack.c.b16 %v910, %v905
      %v1256 = vpack.c.b16 %v911, %v906
      %v1257 = vpack.c.b16 %v912, %v907
      %v1258 = vpack.c.b16 %v913, %v908
      %v1259 = vpack.c.b16 %v914, %v909
      %v1260 = vpack.c.b16 %v920, %v915
      %v1261 = vpack.c.b16 %v921, %v916
      %v1262 = vpack.c.b16 %v922, %v917
      %v1263 = vpack.c.b16 %v923, %v918
      %v1264 = vpack.c.b16 %v924, %v919
      %v1265 = vpack.c.b16 %v930, %v925
      %v1266 = vpack.c.b16 %v931, %v926
      %v1267 = vpack.c.b16 %v932, %v927
      %v1268 = vpack.c.b16 %v933, %v928
      %v1269 = vpack.c.b16 %v934, %v929
      %v1270 = vpack.c.b16 %v940, %v935
      %v1271 = vpack.c.b16 %v941, %v936
      %v1272 = vpack.c.b16 %v942, %v937
      %v1273 = vpack.c.b16 %v943, %v938
      %v1274 = vpack.c.b16 %v944, %v939
      %v1275 = vpack.c.b16 %v950, %v945
      %v1276 = vpack.c.b16 %v951, %v946
      %v1277 = vpack.c.b16 %v952, %v947
      %v1278 = vpack.c.b16 %v953, %v948
      %v1279 = vpack.c.b16 %v954, %v949
      %v1280 = vpack.c.b16 %v960, %v955
      %v1281 = vpack.c.b16 %v961, %v956
      %v1282 = vpack.c.b16 %v962, %v957
      %v1283 = vpack.c.b16 %v963, %v958
      %v1284 = vpack.c.b16 %v964, %v959
      %v1285 = vpack.c.b16 %v970, %v965
      %v1286 = vpack.c.b16 %v971, %v966
      %v1287 = vpack.c.b16 %v972, %v967
      %v1288 = vpack.c.b16 %v973, %v968
      %v1289 = vpack.c.b16 %v974, %v969
      %v1290 = vpack.c.b16 %v980, %v975
      %v1291 = vpack.c.b16 %v981, %v976
      %v1292 = vpack.c.b16 %v982, %v977
      %v1293 = vpack.c.b16 %v983, %v978
      %v1294 = vpack.c.b16 %v984, %v979
      %v1295 = vpack.c.b16 %v990, %v985
      %v1296 = vpack.c.b16 %v991, %v986
      %v1297 = vpack.c.b16 %v992, %v987
      %v1298 = vpack.c.b16 %v993, %v988
      %v1299 = vpack.c.b16 %v994, %v989
      %v1300 = vpack.c.b16 %v1000, %v995
      %v1301 = vpack.c.b16 %v1001, %v996
      %v1302 = vpack.c.b16 %v1002, %v997
      %v1303 = vpack.c.b16 %v1003, %v998
      %v1304 = vpack.c.b16 %v1004, %v999
      %v1305 = vpack.c.b16 %v1010, %v1005
      %v1306 = vpack.c.b16 %v1011, %v1006
      %v1307 = vpack.c.b16 %v1012, %v1007
      %v1308 = vpack.c.b16 %v1013, %v1008
      %v1309 = vpack.c.b16 %v1014, %v1009
      %v1310 = vpack.c.b16 %v1020, %v1015
      %v1311 = vpack.c.b16 %v1021, %v1016
      %v1312 = vpack.c.b16 %v1022, %v1017
      %v1313 = vpack.c.b16 %v1023, %v1018
      %v1314 = vpack.c.b16 %v1024, %v1019
      %v1315 = vpack.c.b16 %v1030, %v1025
      %v1316 = vpack.c.b16 %v1031, %v1026
      %v1317 = vpack.c.b16 %v1032, %v1027
      %v1318 = vpack.c.b16 %v1033, %v1028
      %v1319 = vpack.c.b16 %v1034, %v1029
      %v1320 = vpack.c.b16 %v1040, %v1035
      %v1321 = vpack.c.b16 %v1041, %v1036
      %v1322 = vpack.c.b16 %v1042, %v1037
      %v1323 = vpack.c.b16 %v1043, %v1038
      %v1324 = vpack.c.b16 %v1044, %v1039
      %v1325 = vpack.c.b16 %v1050, %v1045
      %v1326 = vpack.c.b16 %v1051, %v1046
      %v1327 = vpack.c.b16 %v1052, %v1047
      %v1328 = vpack.c.b16 %v1053, %v1048
      %v1329 = vpack.c.b16 %v1054, %v1049
      %v1330 = vpack.c.b16 %v1060, %v1055
      %v1331 = vpack.c.b16 %v1061, %v1056
      %v1332 = vpack.c.b16 %v1062, %v1057
      %v1333 = vpack.c.b16 %v1063, %v1058
      %v1334 = vpack.c.b16 %v1064, %v1059
      %v1335 = vpack.c.b16 %v1070, %v1065
      %v1336 = vpack.c.b16 %v1071, %v1066
      %v1337 = vpack.c.b16 %v1072, %v1067
      %v1338 = vpack.c.b16 %v1073, %v1068
      %v1339 = vpack.c.b16 %v1074, %v1069
      %v1340 = vpack.c.b16 %v1080, %v1075
      %v1341 = vpack.c.b16 %v1081, %v1076
      %v1342 = vpack.c.b16 %v1082, %v1077
      %v1343 = vpack.c.b16 %v1083, %v1078
      %v1344 = vpack.c.b16 %v1084, %v1079
      %v1345 = vpack.c.b16 %v1090, %v1085
      %v1346 = vpack.c.b16 %v1091, %v1086
      %v1347 = vpack.c.b16 %v1092, %v1087
      %v1348 = vpack.c.b16 %v1093, %v1088
      %v1349 = vpack.c.b16 %v1094, %v1089
      %v1350 = vpack.c.b16 %v1100, %v1095
      %v1351 = vpack.c.b16 %v1101, %v1096
      %v1352 = vpack.c.b16 %v1102, %v1097
      %v1353 = vpack.c.b16 %v1103, %v1098
      %v1354 = vpack.c.b16 %v1104, %v1099
      %v1355 = vpack.c.b16 %v1110, %v1105
      %v1356 = vpack.c.b16 %v1111, %v1106
      %v1357 = vpack.c.b16 %v1112, %v1107
      %v1358 = vpack.c.b16 %v1113, %v1108
      %v1359 = vpack.c.b16 %v1114, %v1109
      %v1360 = vpack.c.b16 %v1120, %v1115
      %v1361 = vpack.c.b16 %v1121, %v1116
      %v1362 = vpack.c.b16 %v1122, %v1117
      %v1363 = vpack.c.b16 %v1123, %v1118
      %v1364 = vpack.c.b16 %v1124, %v1119
      %v1365 = vpack.c.b16 %v1130, %v1125
      %v1366 = vpack.c.b16 %v1131, %v1126
      %v1367 = vpack.c.b16 %v1132, %v1127
      %v1368 = vpack.c.b16 %v1133, %v1128
      %v1369 = vpack.c.b16 %v1134, %v1129
      %v1370 = vpack.c.b16 %v1140, %v1135
      %v1371 = vpack.c.b16 %v1141, %v1136
      %v1372 = vpack.c.b16 %v1142, %v1137
      %v1373 = vpack.c.b16 %v1143, %v1138
      %v1374 = vpack.c.b16 %v1144, %v1139
      %v1375 = vpack.c.b16 %v1150, %v1145
      %v1376 = vpack.c.b16 %v1151, %v1146
      %v1377 = vpack.c.b16 %v1152, %v1147
      %v1378 = vpack.c.b16 %v1153, %v1148
      %v1379 = vpack.c.b16 %v1154, %v1149
      %v1380 = vpack.c.b16 %v1160, %v1155
      %v1381 = vpack.c.b16 %v1161, %v1156
      %v1382 = vpack.c.b16 %v1162, %v1157
      %v1383 = vpack.c.b16 %v1163, %v1158
      %v1384 = vpack.c.b16 %v1164, %v1159
      %v1385 = vpack.c.b16 %v1170, %v1165
      %v1386 = vpack.c.b16 %v1171, %v1166
      %v1387 = vpack.c.b16 %v1172, %v1167
      %v1388 = vpack.c.b16 %v1173, %v1168
      %v1389 = vpack.c.b16 %v1174, %v1169
      %v1390 = vpack.c.b16 %v1180, %v1175
      %v1391 = vpack.c.b16 %v1181, %v1176
      %v1392 = vpack.c.b16 %v1182, %v1177
      %v1393 = vpack.c.b16 %v1183, %v1178
      %v1394 = vpack.c.b16 %v1184, %v1179
      %v1685 = vunpack.c.l.b16 %v429
      %v1686 = vunpack.c.l.b16 %v430
      %v1687 = vunpack.c.l.b16 %v431
      %v1688 = vunpack.c.l.b16 %v432
      %v1689 = vunpack.c.l.b16 %v433
      %v1690 = vunpack.c.l.b16 %v434
      %v1691 = vunpack.c.l.b16 %v435
      %v1692 = vunpack.c.l.b16 %v436
      %v1693 = vunpack.c.l.b16 %v437
      %v1694 = vunpack.c.l.b16 %v438
      %v1695 = vunpack.c.l.b16 %v439
      %v1696 = vunpack.c.l.b16 %v440
      %v1697 = vunpack.c.l.b16 %v441
      %v1698 = vunpack.c.l.b16 %v442
      %v1699 = vunpack.c.l.b16 %v443
      %v1700 = vunpack.c.l.b16 %v444
      %v1701 = vunpack.c.l.b16 %v445
      %v1702 = vunpack.c.l.b16 %v446
      %v1703 = vunpack.c.l.b16 %v447
      %v1704 = vunpack.c.l.b16 %v448
      %v1705 = vunpack.c.l.b16 %v449
      %v1706 = vunpack.c.l.b16 %v450
      %v1707 = vunpack.c.l.b16 %v451
      %v1708 = vunpack.c.l.b16 %v452
      %v1709 = vunpack.c.l.b16 %v453
      %v1710 = vunpack.c.l.b16 %v454
      %v1711 = vunpack.c.l.b16 %v455
      %v1712 = vunpack.c.l.b16 %v456
      %v1713 = vunpack.c.l.b16 %v457
      %v1714 = vunpack.c.l.b16 %v458
      %v1715 = vunpack.c.l.b16 %v459
      %v1716 = vunpack.c.l.b16 %v460
      %v1717 = vunpack.c.l.b16 %v461
      %v1718 = vunpack.c.l.b16 %v462
      %v1719 = vunpack.c.l.b16 %v463
      %v1720 = vunpack.c.l.b16 %v464
      %v1721 = vunpack.c.l.b16 %v465
      %v1722 = vunpack.c.l.b16 %v466
      %v1723 = vunpack.c.l.b16 %v467
      %v1724 = vunpack.c.l.b16 %v468
      %v1725 = vunpack.c.l.b16 %v469
      %v1726 = vunpack.c.l.b16 %v470
      %v1727 = vunpack.c.l.b16 %v471
      %v1728 = vunpack.c.l.b16 %v472
      %v1729 = vunpack.c.l.b16 %v473
      %v1730 = vunpack.c.l.b16 %v474
      %v1731 = vunpack.c.l.b16 %v475
      %v1732 = vunpack.c.l.b16 %v476
      %v1733 = vunpack.c.l.b16 %v477
      %v1734 = vunpack.c.l.b16 %v478
      %v1735 = vunpack.c.l.b16 %v479
      %v1736 = vunpack.c.l.b16 %v480
      %v1737 = vunpack.c.l.b16 %v481
      %v1738 = vunpack.c.l.b16 %v482
      %v1739 = vunpack.c.l.b16 %v483
      %v1740 = vunpack.c.l.b16 %v484
      %v1741 = vunpack.c.l.b16 %v485
      %v1742 = vunpack.c.l.b16 %v486
      %v1743 = vunpack.c.l.b16 %v487
      %v1744 = vunpack.c.l.b16 %v488
      %v1745 = vunpack.c.l.b16 %v489
      %v1746 = vunpack.c.l.b16 %v490
      %v1747 = vunpack.c.l.b16 %v491
      %v1748 = vunpack.c.l.b16 %v492
      %v1749 = vunpack.c.l.b16 %v493
      %v1750 = vunpack.c.l.b16 %v494
      %v1751 = vunpack.c.l.b16 %v495
      %v1752 = vunpack.c.l.b16 %v496
      %v1753 = vunpack.c.l.b16 %v497
      %v1754 = vunpack.c.l.b16 %v498
      %v1755 = vunpack.c.l.b16 %v499
      %v1756 = vunpack.c.l.b16 %v500
      %v1757 = vunpack.c.l.b16 %v501
      %v1758 = vunpack.c.l.b16 %v502
      %v1759 = vunpack.c.l.b16 %v503
      %v1760 = vunpack.c.l.b16 %v504
      %v1761 = vunpack.c.l.b16 %v505
      %v1762 = vunpack.c.l.b16 %v506
      %v1763 = vunpack.c.l.b16 %v507
      %v1764 = vunpack.c.l.b16 %v508
      %v1765 = vpack.c.b16 %v1686, %v1685
      %v1766 = vpack.c.b16 %v1688, %v1687
      %v1767 = vpack.c.b16 %v1690, %v1689
      %v1768 = vpack.c.b16 %v1692, %v1691
      %v1769 = vpack.c.b16 %v1694, %v1693
      %v1770 = vpack.c.b16 %v1696, %v1695
      %v1771 = vpack.c.b16 %v1698, %v1697
      %v1772 = vpack.c.b16 %v1700, %v1699
      %v1773 = vpack.c.b16 %v1702, %v1701
      %v1774 = vpack.c.b16 %v1704, %v1703
      %v1775 = vpack.c.b16 %v1706, %v1705
      %v1776 = vpack.c.b16 %v1708, %v1707
      %v1777 = vpack.c.b16 %v1710, %v1709
      %v1778 = vpack.c.b16 %v1712, %v1711
      %v1779 = vpack.c.b16 %v1714, %v1713
      %v1780 = vpack.c.b16 %v1716, %v1715
      %v1781 = vpack.c.b16 %v1718, %v1717
      %v1782 = vpack.c.b16 %v1720, %v1719
      %v1783 = vpack.c.b16 %v1722, %v1721
      %v1784 = vpack.c.b16 %v1724, %v1723
      %v1785 = vpack.c.b16 %v1726, %v1725
      %v1786 = vpack.c.b16 %v1728, %v1727
      %v1787 = vpack.c.b16 %v1730, %v1729
      %v1788 = vpack.c.b16 %v1732, %v1731
      %v1789 = vpack.c.b16 %v1734, %v1733
      %v1790 = vpack.c.b16 %v1736, %v1735
      %v1791 = vpack.c.b16 %v1738, %v1737
      %v1792 = vpack.c.b16 %v1740, %v1739
      %v1793 = vpack.c.b16 %v1742, %v1741
      %v1794 = vpack.c.b16 %v1744, %v1743
      %v1795 = vpack.c.b16 %v1746, %v1745
      %v1796 = vpack.c.b16 %v1748, %v1747
      %v1797 = vpack.c.b16 %v1750, %v1749
      %v1798 = vpack.c.b16 %v1752, %v1751
      %v1799 = vpack.c.b16 %v1754, %v1753
      %v1800 = vpack.c.b16 %v1756, %v1755
      %v1801 = vpack.c.b16 %v1758, %v1757
      %v1802 = vpack.c.b16 %v1760, %v1759
      %v1803 = vpack.c.b16 %v1762, %v1761
      %v1804 = vpack.c.b16 %v1764, %v1763
      %1845 = vmatpush.bf16.msra.mxu0 %v1772
      %1846 = vmatpush.bf16.msra.mxu0 %v1771
      %1847 = vmatpush.bf16.msra.mxu0 %v1770
      %1848 = vmatpush.bf16.msra.mxu0 %v1769
      %1849 = vmatpush.bf16.msra.mxu0 %v1768
      %1850 = vmatpush.bf16.msra.mxu0 %v1767
      %1851 = vmatpush.bf16.msra.mxu0 %v1766
      %1852 = vmatpush.bf16.msra.mxu0 %v1765
      %1853 = vmatmul.bf16.gmra.mxu0 %v1185
      %v1854 = vpop.f32.mrf.mxu0
      %v1855 = vadd.f32 %v511, %v1854
      %v1856 = vpop.f32.mrf.mxu0
      %v1857 = vadd.f32 %v511, %v1856
      %1858 = vmatmul.bf16.gmra.mxu0 %v1190
      %v1859 = vpop.f32.mrf.mxu0
      %v1860 = vadd.f32 %v511, %v1859
      %v1861 = vpop.f32.mrf.mxu0
      %v1862 = vadd.f32 %v511, %v1861
      %1863 = vmatmul.bf16.gmra.mxu0 %v1195
      %v1864 = vpop.f32.mrf.mxu0
      %v1865 = vadd.f32 %v511, %v1864
      %v1866 = vpop.f32.mrf.mxu0
      %v1867 = vadd.f32 %v511, %v1866
      %1868 = vmatmul.bf16.gmra.mxu0 %v1200
      %v1869 = vpop.f32.mrf.mxu0
      %v1870 = vadd.f32 %v511, %v1869
      %v1871 = vpop.f32.mrf.mxu0
      %v1872 = vadd.f32 %v511, %v1871
      %1873 = vmatmul.bf16.gmra.mxu0 %v1205
      %v1874 = vpop.f32.mrf.mxu0
      %v1875 = vadd.f32 %v511, %v1874
      %v1876 = vpop.f32.mrf.mxu0
      %v1877 = vadd.f32 %v511, %v1876
      %1878 = vmatmul.bf16.gmra.mxu0 %v1210
      %v1879 = vpop.f32.mrf.mxu0
      %v1880 = vadd.f32 %v511, %v1879
      %v1881 = vpop.f32.mrf.mxu0
      %v1882 = vadd.f32 %v511, %v1881
      %1883 = vmatmul.bf16.gmra.mxu0 %v1215
      %v1884 = vpop.f32.mrf.mxu0
      %v1885 = vadd.f32 %v511, %v1884
      %v1886 = vpop.f32.mrf.mxu0
      %v1887 = vadd.f32 %v511, %v1886
      %1888 = vmatmul.bf16.gmra.mxu0 %v1220
      %v1889 = vpop.f32.mrf.mxu0
      %v1890 = vadd.f32 %v511, %v1889
      %v1891 = vpop.f32.mrf.mxu0
      %v1892 = vadd.f32 %v511, %v1891
      %1893 = vmatmul.bf16.gmra.mxu0 %v1225
      %v1894 = vpop.f32.mrf.mxu0
      %v1895 = vadd.f32 %v511, %v1894
      %v1896 = vpop.f32.mrf.mxu0
      %v1897 = vadd.f32 %v511, %v1896
      %1898 = vmatmul.bf16.gmra.mxu0 %v1230
      %v1899 = vpop.f32.mrf.mxu0
      %v1900 = vadd.f32 %v511, %v1899
      %v1901 = vpop.f32.mrf.mxu0
      %v1902 = vadd.f32 %v511, %v1901
      %1903 = vmatmul.bf16.gmra.mxu0 %v1235
      %v1904 = vpop.f32.mrf.mxu0
      %v1905 = vadd.f32 %v511, %v1904
      %v1906 = vpop.f32.mrf.mxu0
      %v1907 = vadd.f32 %v511, %v1906
      %1908 = vmatmul.bf16.gmra.mxu0 %v1240
      %v1909 = vpop.f32.mrf.mxu0
      %v1910 = vadd.f32 %v511, %v1909
      %v1911 = vpop.f32.mrf.mxu0
      %v1912 = vadd.f32 %v511, %v1911
      %1913 = vmatmul.bf16.gmra.mxu0 %v1245
      %v1914 = vpop.f32.mrf.mxu0
      %v1915 = vadd.f32 %v511, %v1914
      %v1916 = vpop.f32.mrf.mxu0
      %v1917 = vadd.f32 %v511, %v1916
      %1918 = vmatmul.bf16.gmra.mxu0 %v1250
      %v1919 = vpop.f32.mrf.mxu0
      %v1920 = vadd.f32 %v511, %v1919
      %v1921 = vpop.f32.mrf.mxu0
      %v1922 = vadd.f32 %v511, %v1921
      %1923 = vmatmul.bf16.gmra.mxu0 %v1255
      %v1924 = vpop.f32.mrf.mxu0
      %v1925 = vadd.f32 %v511, %v1924
      %v1926 = vpop.f32.mrf.mxu0
      %v1927 = vadd.f32 %v511, %v1926
      %1928 = vmatmul.bf16.gmra.mxu0 %v1260
      %v1929 = vpop.f32.mrf.mxu0
      %v1930 = vadd.f32 %v511, %v1929
      %v1931 = vpop.f32.mrf.mxu0
      %v1932 = vadd.f32 %v511, %v1931
      %1933 = vmatmul.bf16.gmra.mxu0 %v1265
      %v1934 = vpop.f32.mrf.mxu0
      %v1935 = vadd.f32 %v511, %v1934
      %v1936 = vpop.f32.mrf.mxu0
      %v1937 = vadd.f32 %v511, %v1936
      %1938 = vmatmul.bf16.gmra.mxu0 %v1270
      %v1939 = vpop.f32.mrf.mxu0
      %v1940 = vadd.f32 %v511, %v1939
      %v1941 = vpop.f32.mrf.mxu0
      %v1942 = vadd.f32 %v511, %v1941
      %1943 = vmatmul.bf16.gmra.mxu0 %v1275
      %v1944 = vpop.f32.mrf.mxu0
      %v1945 = vadd.f32 %v511, %v1944
      %v1946 = vpop.f32.mrf.mxu0
      %v1947 = vadd.f32 %v511, %v1946
      %1948 = vmatmul.bf16.gmra.mxu0 %v1280
      %v1949 = vpop.f32.mrf.mxu0
      %v1950 = vadd.f32 %v511, %v1949
      %v1951 = vpop.f32.mrf.mxu0
      %v1952 = vadd.f32 %v511, %v1951
      %1953 = vmatmul.bf16.gmra.mxu0 %v1285
      %v1954 = vpop.f32.mrf.mxu0
      %v1955 = vadd.f32 %v511, %v1954
      %v1956 = vpop.f32.mrf.mxu0
      %v1957 = vadd.f32 %v511, %v1956
      %1958 = vmatmul.bf16.gmra.mxu0 %v1290
      %v1959 = vpop.f32.mrf.mxu0
      %v1960 = vadd.f32 %v511, %v1959
      %v1961 = vpop.f32.mrf.mxu0
      %v1962 = vadd.f32 %v511, %v1961
      %1963 = vmatmul.bf16.gmra.mxu0 %v1295
      %v1964 = vpop.f32.mrf.mxu0
      %v1965 = vadd.f32 %v511, %v1964
      %v1966 = vpop.f32.mrf.mxu0
      %v1967 = vadd.f32 %v511, %v1966
      %1968 = vmatmul.bf16.gmra.mxu0 %v1300
      %v1969 = vpop.f32.mrf.mxu0
      %v1970 = vadd.f32 %v511, %v1969
      %v1971 = vpop.f32.mrf.mxu0
      %v1972 = vadd.f32 %v511, %v1971
      %1973 = vmatmul.bf16.gmra.mxu0 %v1305
      %v1974 = vpop.f32.mrf.mxu0
      %v1975 = vadd.f32 %v511, %v1974
      %v1976 = vpop.f32.mrf.mxu0
      %v1977 = vadd.f32 %v511, %v1976
      %1978 = vmatmul.bf16.gmra.mxu0 %v1310
      %v1979 = vpop.f32.mrf.mxu0
      %v1980 = vadd.f32 %v511, %v1979
      %v1981 = vpop.f32.mrf.mxu0
      %v1982 = vadd.f32 %v511, %v1981
      %1983 = vmatmul.bf16.gmra.mxu0 %v1315
      %v1984 = vpop.f32.mrf.mxu0
      %v1985 = vadd.f32 %v511, %v1984
      %v1986 = vpop.f32.mrf.mxu0
      %v1987 = vadd.f32 %v511, %v1986
      %1988 = vmatmul.bf16.gmra.mxu0 %v1320
      %v1989 = vpop.f32.mrf.mxu0
      %v1990 = vadd.f32 %v511, %v1989
      %v1991 = vpop.f32.mrf.mxu0
      %v1992 = vadd.f32 %v511, %v1991
      %1993 = vmatmul.bf16.gmra.mxu0 %v1325
      %v1994 = vpop.f32.mrf.mxu0
      %v1995 = vadd.f32 %v511, %v1994
      %v1996 = vpop.f32.mrf.mxu0
      %v1997 = vadd.f32 %v511, %v1996
      %1998 = vmatmul.bf16.gmra.mxu0 %v1330
      %v1999 = vpop.f32.mrf.mxu0
      %v2000 = vadd.f32 %v511, %v1999
      %v2001 = vpop.f32.mrf.mxu0
      %v2002 = vadd.f32 %v511, %v2001
      %2003 = vmatmul.bf16.gmra.mxu0 %v1335
      %v2004 = vpop.f32.mrf.mxu0
      %v2005 = vadd.f32 %v511, %v2004
      %v2006 = vpop.f32.mrf.mxu0
      %v2007 = vadd.f32 %v511, %v2006
      %2008 = vmatmul.bf16.gmra.mxu0 %v1340
      %v2009 = vpop.f32.mrf.mxu0
      %v2010 = vadd.f32 %v511, %v2009
      %v2011 = vpop.f32.mrf.mxu0
      %v2012 = vadd.f32 %v511, %v2011
      %2013 = vmatmul.bf16.gmra.mxu0 %v1345
      %v2014 = vpop.f32.mrf.mxu0
      %v2015 = vadd.f32 %v511, %v2014
      %v2016 = vpop.f32.mrf.mxu0
      %v2017 = vadd.f32 %v511, %v2016
      %2018 = vmatmul.bf16.gmra.mxu0 %v1350
      %v2019 = vpop.f32.mrf.mxu0
      %v2020 = vadd.f32 %v511, %v2019
      %v2021 = vpop.f32.mrf.mxu0
      %v2022 = vadd.f32 %v511, %v2021
      %2023 = vmatmul.bf16.gmra.mxu0 %v1355
      %v2024 = vpop.f32.mrf.mxu0
      %v2025 = vadd.f32 %v511, %v2024
      %v2026 = vpop.f32.mrf.mxu0
      %v2027 = vadd.f32 %v511, %v2026
      %2028 = vmatmul.bf16.gmra.mxu0 %v1360
      %v2029 = vpop.f32.mrf.mxu0
      %v2030 = vadd.f32 %v511, %v2029
      %v2031 = vpop.f32.mrf.mxu0
      %v2032 = vadd.f32 %v511, %v2031
      %2033 = vmatmul.bf16.gmra.mxu0 %v1365
      %v2034 = vpop.f32.mrf.mxu0
      %v2035 = vadd.f32 %v511, %v2034
      %v2036 = vpop.f32.mrf.mxu0
      %v2037 = vadd.f32 %v511, %v2036
      %2038 = vmatmul.bf16.gmra.mxu0 %v1370
      %v2039 = vpop.f32.mrf.mxu0
      %v2040 = vadd.f32 %v511, %v2039
      %v2041 = vpop.f32.mrf.mxu0
      %v2042 = vadd.f32 %v511, %v2041
      %2043 = vmatmul.bf16.gmra.mxu0 %v1375
      %v2044 = vpop.f32.mrf.mxu0
      %v2045 = vadd.f32 %v511, %v2044
      %v2046 = vpop.f32.mrf.mxu0
      %v2047 = vadd.f32 %v511, %v2046
      %2048 = vmatmul.bf16.gmra.mxu0 %v1380
      %v2049 = vpop.f32.mrf.mxu0
      %v2050 = vadd.f32 %v511, %v2049
      %v2051 = vpop.f32.mrf.mxu0
      %v2052 = vadd.f32 %v511, %v2051
      %2053 = vmatmul.bf16.gmra.mxu0 %v1385
      %v2054 = vpop.f32.mrf.mxu0
      %v2055 = vadd.f32 %v511, %v2054
      %v2056 = vpop.f32.mrf.mxu0
      %v2057 = vadd.f32 %v511, %v2056
      %2058 = vmatmul.bf16.gmra.mxu0 %v1390
      %v2059 = vpop.f32.mrf.mxu0
      %v2060 = vadd.f32 %v511, %v2059
      %v2061 = vpop.f32.mrf.mxu0
      %v2062 = vadd.f32 %v511, %v2061
      %2063 = vdwg.mxu0
      %2064 = vmatpush.bf16.msra.mxu0 %v1780
      %2065 = vmatpush.bf16.msra.mxu0 %v1779
      %2066 = vmatpush.bf16.msra.mxu0 %v1778
      %2067 = vmatpush.bf16.msra.mxu0 %v1777
      %2068 = vmatpush.bf16.msra.mxu0 %v1776
      %2069 = vmatpush.bf16.msra.mxu0 %v1775
      %2070 = vmatpush.bf16.msra.mxu0 %v1774
      %2071 = vmatpush.bf16.msra.mxu0 %v1773
      %2072 = vmatmul.bf16.gmra.mxu0 %v1186
      %v2073 = vpop.f32.mrf.mxu0
      %v2074 = vadd.f32 %v1855, %v2073
      %v2075 = vpop.f32.mrf.mxu0
      %v2076 = vadd.f32 %v1857, %v2075
      %2077 = vmatmul.bf16.gmra.mxu0 %v1191
      %v2078 = vpop.f32.mrf.mxu0
      %v2079 = vadd.f32 %v1860, %v2078
      %v2080 = vpop.f32.mrf.mxu0
      %v2081 = vadd.f32 %v1862, %v2080
      %2082 = vmatmul.bf16.gmra.mxu0 %v1196
      %v2083 = vpop.f32.mrf.mxu0
      %v2084 = vadd.f32 %v1865, %v2083
      %v2085 = vpop.f32.mrf.mxu0
      %v2086 = vadd.f32 %v1867, %v2085
      %2087 = vmatmul.bf16.gmra.mxu0 %v1201
      %v2088 = vpop.f32.mrf.mxu0
      %v2089 = vadd.f32 %v1870, %v2088
      %v2090 = vpop.f32.mrf.mxu0
      %v2091 = vadd.f32 %v1872, %v2090
      %2092 = vmatmul.bf16.gmra.mxu0 %v1206
      %v2093 = vpop.f32.mrf.mxu0
      %v2094 = vadd.f32 %v1875, %v2093
      %v2095 = vpop.f32.mrf.mxu0
      %v2096 = vadd.f32 %v1877, %v2095
      %2097 = vmatmul.bf16.gmra.mxu0 %v1211
      %v2098 = vpop.f32.mrf.mxu0
      %v2099 = vadd.f32 %v1880, %v2098
      %v2100 = vpop.f32.mrf.mxu0
      %v2101 = vadd.f32 %v1882, %v2100
      %2102 = vmatmul.bf16.gmra.mxu0 %v1216
      %v2103 = vpop.f32.mrf.mxu0
      %v2104 = vadd.f32 %v1885, %v2103
      %v2105 = vpop.f32.mrf.mxu0
      %v2106 = vadd.f32 %v1887, %v2105
      %2107 = vmatmul.bf16.gmra.mxu0 %v1221
      %v2108 = vpop.f32.mrf.mxu0
      %v2109 = vadd.f32 %v1890, %v2108
      %v2110 = vpop.f32.mrf.mxu0
      %v2111 = vadd.f32 %v1892, %v2110
      %2112 = vmatmul.bf16.gmra.mxu0 %v1226
      %v2113 = vpop.f32.mrf.mxu0
      %v2114 = vadd.f32 %v1895, %v2113
      %v2115 = vpop.f32.mrf.mxu0
      %v2116 = vadd.f32 %v1897, %v2115
      %2117 = vmatmul.bf16.gmra.mxu0 %v1231
      %v2118 = vpop.f32.mrf.mxu0
      %v2119 = vadd.f32 %v1900, %v2118
      %v2120 = vpop.f32.mrf.mxu0
      %v2121 = vadd.f32 %v1902, %v2120
      %2122 = vmatmul.bf16.gmra.mxu0 %v1236
      %v2123 = vpop.f32.mrf.mxu0
      %v2124 = vadd.f32 %v1905, %v2123
      %v2125 = vpop.f32.mrf.mxu0
      %v2126 = vadd.f32 %v1907, %v2125
      %2127 = vmatmul.bf16.gmra.mxu0 %v1241
      %v2128 = vpop.f32.mrf.mxu0
      %v2129 = vadd.f32 %v1910, %v2128
      %v2130 = vpop.f32.mrf.mxu0
      %v2131 = vadd.f32 %v1912, %v2130
      %2132 = vmatmul.bf16.gmra.mxu0 %v1246
      %v2133 = vpop.f32.mrf.mxu0
      %v2134 = vadd.f32 %v1915, %v2133
      %v2135 = vpop.f32.mrf.mxu0
      %v2136 = vadd.f32 %v1917, %v2135
      %2137 = vmatmul.bf16.gmra.mxu0 %v1251
      %v2138 = vpop.f32.mrf.mxu0
      %v2139 = vadd.f32 %v1920, %v2138
      %v2140 = vpop.f32.mrf.mxu0
      %v2141 = vadd.f32 %v1922, %v2140
      %2142 = vmatmul.bf16.gmra.mxu0 %v1256
      %v2143 = vpop.f32.mrf.mxu0
      %v2144 = vadd.f32 %v1925, %v2143
      %v2145 = vpop.f32.mrf.mxu0
      %v2146 = vadd.f32 %v1927, %v2145
      %2147 = vmatmul.bf16.gmra.mxu0 %v1261
      %v2148 = vpop.f32.mrf.mxu0
      %v2149 = vadd.f32 %v1930, %v2148
      %v2150 = vpop.f32.mrf.mxu0
      %v2151 = vadd.f32 %v1932, %v2150
      %2152 = vmatmul.bf16.gmra.mxu0 %v1266
      %v2153 = vpop.f32.mrf.mxu0
      %v2154 = vadd.f32 %v1935, %v2153
      %v2155 = vpop.f32.mrf.mxu0
      %v2156 = vadd.f32 %v1937, %v2155
      %2157 = vmatmul.bf16.gmra.mxu0 %v1271
      %v2158 = vpop.f32.mrf.mxu0
      %v2159 = vadd.f32 %v1940, %v2158
      %v2160 = vpop.f32.mrf.mxu0
      %v2161 = vadd.f32 %v1942, %v2160
      %2162 = vmatmul.bf16.gmra.mxu0 %v1276
      %v2163 = vpop.f32.mrf.mxu0
      %v2164 = vadd.f32 %v1945, %v2163
      %v2165 = vpop.f32.mrf.mxu0
      %v2166 = vadd.f32 %v1947, %v2165
      %2167 = vmatmul.bf16.gmra.mxu0 %v1281
      %v2168 = vpop.f32.mrf.mxu0
      %v2169 = vadd.f32 %v1950, %v2168
      %v2170 = vpop.f32.mrf.mxu0
      %v2171 = vadd.f32 %v1952, %v2170
      %2172 = vmatmul.bf16.gmra.mxu0 %v1286
      %v2173 = vpop.f32.mrf.mxu0
      %v2174 = vadd.f32 %v1955, %v2173
      %v2175 = vpop.f32.mrf.mxu0
      %v2176 = vadd.f32 %v1957, %v2175
      %2177 = vmatmul.bf16.gmra.mxu0 %v1291
      %v2178 = vpop.f32.mrf.mxu0
      %v2179 = vadd.f32 %v1960, %v2178
      %v2180 = vpop.f32.mrf.mxu0
      %v2181 = vadd.f32 %v1962, %v2180
      %2182 = vmatmul.bf16.gmra.mxu0 %v1296
      %v2183 = vpop.f32.mrf.mxu0
      %v2184 = vadd.f32 %v1965, %v2183
      %v2185 = vpop.f32.mrf.mxu0
      %v2186 = vadd.f32 %v1967, %v2185
      %2187 = vmatmul.bf16.gmra.mxu0 %v1301
      %v2188 = vpop.f32.mrf.mxu0
      %v2189 = vadd.f32 %v1970, %v2188
      %v2190 = vpop.f32.mrf.mxu0
      %v2191 = vadd.f32 %v1972, %v2190
      %2192 = vmatmul.bf16.gmra.mxu0 %v1306
      %v2193 = vpop.f32.mrf.mxu0
      %v2194 = vadd.f32 %v1975, %v2193
      %v2195 = vpop.f32.mrf.mxu0
      %v2196 = vadd.f32 %v1977, %v2195
      %2197 = vmatmul.bf16.gmra.mxu0 %v1311
      %v2198 = vpop.f32.mrf.mxu0
      %v2199 = vadd.f32 %v1980, %v2198
      %v2200 = vpop.f32.mrf.mxu0
      %v2201 = vadd.f32 %v1982, %v2200
      %2202 = vmatmul.bf16.gmra.mxu0 %v1316
      %v2203 = vpop.f32.mrf.mxu0
      %v2204 = vadd.f32 %v1985, %v2203
      %v2205 = vpop.f32.mrf.mxu0
      %v2206 = vadd.f32 %v1987, %v2205
      %2207 = vmatmul.bf16.gmra.mxu0 %v1321
      %v2208 = vpop.f32.mrf.mxu0
      %v2209 = vadd.f32 %v1990, %v2208
      %v2210 = vpop.f32.mrf.mxu0
      %v2211 = vadd.f32 %v1992, %v2210
      %2212 = vmatmul.bf16.gmra.mxu0 %v1326
      %v2213 = vpop.f32.mrf.mxu0
      %v2214 = vadd.f32 %v1995, %v2213
      %v2215 = vpop.f32.mrf.mxu0
      %v2216 = vadd.f32 %v1997, %v2215
      %2217 = vmatmul.bf16.gmra.mxu0 %v1331
      %v2218 = vpop.f32.mrf.mxu0
      %v2219 = vadd.f32 %v2000, %v2218
      %v2220 = vpop.f32.mrf.mxu0
      %v2221 = vadd.f32 %v2002, %v2220
      %2222 = vmatmul.bf16.gmra.mxu0 %v1336
      %v2223 = vpop.f32.mrf.mxu0
      %v2224 = vadd.f32 %v2005, %v2223
      %v2225 = vpop.f32.mrf.mxu0
      %v2226 = vadd.f32 %v2007, %v2225
      %2227 = vmatmul.bf16.gmra.mxu0 %v1341
      %v2228 = vpop.f32.mrf.mxu0
      %v2229 = vadd.f32 %v2010, %v2228
      %v2230 = vpop.f32.mrf.mxu0
      %v2231 = vadd.f32 %v2012, %v2230
      %2232 = vmatmul.bf16.gmra.mxu0 %v1346
      %v2233 = vpop.f32.mrf.mxu0
      %v2234 = vadd.f32 %v2015, %v2233
      %v2235 = vpop.f32.mrf.mxu0
      %v2236 = vadd.f32 %v2017, %v2235
      %2237 = vmatmul.bf16.gmra.mxu0 %v1351
      %v2238 = vpop.f32.mrf.mxu0
      %v2239 = vadd.f32 %v2020, %v2238
      %v2240 = vpop.f32.mrf.mxu0
      %v2241 = vadd.f32 %v2022, %v2240
      %2242 = vmatmul.bf16.gmra.mxu0 %v1356
      %v2243 = vpop.f32.mrf.mxu0
      %v2244 = vadd.f32 %v2025, %v2243
      %v2245 = vpop.f32.mrf.mxu0
      %v2246 = vadd.f32 %v2027, %v2245
      %2247 = vmatmul.bf16.gmra.mxu0 %v1361
      %v2248 = vpop.f32.mrf.mxu0
      %v2249 = vadd.f32 %v2030, %v2248
      %v2250 = vpop.f32.mrf.mxu0
      %v2251 = vadd.f32 %v2032, %v2250
      %2252 = vmatmul.bf16.gmra.mxu0 %v1366
      %v2253 = vpop.f32.mrf.mxu0
      %v2254 = vadd.f32 %v2035, %v2253
      %v2255 = vpop.f32.mrf.mxu0
      %v2256 = vadd.f32 %v2037, %v2255
      %2257 = vmatmul.bf16.gmra.mxu0 %v1371
      %v2258 = vpop.f32.mrf.mxu0
      %v2259 = vadd.f32 %v2040, %v2258
      %v2260 = vpop.f32.mrf.mxu0
      %v2261 = vadd.f32 %v2042, %v2260
      %2262 = vmatmul.bf16.gmra.mxu0 %v1376
      %v2263 = vpop.f32.mrf.mxu0
      %v2264 = vadd.f32 %v2045, %v2263
      %v2265 = vpop.f32.mrf.mxu0
      %v2266 = vadd.f32 %v2047, %v2265
      %2267 = vmatmul.bf16.gmra.mxu0 %v1381
      %v2268 = vpop.f32.mrf.mxu0
      %v2269 = vadd.f32 %v2050, %v2268
      %v2270 = vpop.f32.mrf.mxu0
      %v2271 = vadd.f32 %v2052, %v2270
      %2272 = vmatmul.bf16.gmra.mxu0 %v1386
      %v2273 = vpop.f32.mrf.mxu0
      %v2274 = vadd.f32 %v2055, %v2273
      %v2275 = vpop.f32.mrf.mxu0
      %v2276 = vadd.f32 %v2057, %v2275
      %2277 = vmatmul.bf16.gmra.mxu0 %v1391
      %v2278 = vpop.f32.mrf.mxu0
      %v2279 = vadd.f32 %v2060, %v2278
      %v2280 = vpop.f32.mrf.mxu0
      %v2281 = vadd.f32 %v2062, %v2280
      %2282 = vdwg.mxu0
      %2283 = vmatpush.bf16.msra.mxu0 %v1788
      %2284 = vmatpush.bf16.msra.mxu0 %v1787
      %2285 = vmatpush.bf16.msra.mxu0 %v1786
      %2286 = vmatpush.bf16.msra.mxu0 %v1785
      %2287 = vmatpush.bf16.msra.mxu0 %v1784
      %2288 = vmatpush.bf16.msra.mxu0 %v1783
      %2289 = vmatpush.bf16.msra.mxu0 %v1782
      %2290 = vmatpush.bf16.msra.mxu0 %v1781
      %2291 = vmatmul.bf16.gmra.mxu0 %v1187
      %v2292 = vpop.f32.mrf.mxu0
      %v2293 = vadd.f32 %v2074, %v2292
      %v2294 = vpop.f32.mrf.mxu0
      %v2295 = vadd.f32 %v2076, %v2294
      %2296 = vmatmul.bf16.gmra.mxu0 %v1192
      %v2297 = vpop.f32.mrf.mxu0
      %v2298 = vadd.f32 %v2079, %v2297
      %v2299 = vpop.f32.mrf.mxu0
      %v2300 = vadd.f32 %v2081, %v2299
      %2301 = vmatmul.bf16.gmra.mxu0 %v1197
      %v2302 = vpop.f32.mrf.mxu0
      %v2303 = vadd.f32 %v2084, %v2302
      %v2304 = vpop.f32.mrf.mxu0
      %v2305 = vadd.f32 %v2086, %v2304
      %2306 = vmatmul.bf16.gmra.mxu0 %v1202
      %v2307 = vpop.f32.mrf.mxu0
      %v2308 = vadd.f32 %v2089, %v2307
      %v2309 = vpop.f32.mrf.mxu0
      %v2310 = vadd.f32 %v2091, %v2309
      %2311 = vmatmul.bf16.gmra.mxu0 %v1207
      %v2312 = vpop.f32.mrf.mxu0
      %v2313 = vadd.f32 %v2094, %v2312
      %v2314 = vpop.f32.mrf.mxu0
      %v2315 = vadd.f32 %v2096, %v2314
      %2316 = vmatmul.bf16.gmra.mxu0 %v1212
      %v2317 = vpop.f32.mrf.mxu0
      %v2318 = vadd.f32 %v2099, %v2317
      %v2319 = vpop.f32.mrf.mxu0
      %v2320 = vadd.f32 %v2101, %v2319
      %2321 = vmatmul.bf16.gmra.mxu0 %v1217
      %v2322 = vpop.f32.mrf.mxu0
      %v2323 = vadd.f32 %v2104, %v2322
      %v2324 = vpop.f32.mrf.mxu0
      %v2325 = vadd.f32 %v2106, %v2324
      %2326 = vmatmul.bf16.gmra.mxu0 %v1222
      %v2327 = vpop.f32.mrf.mxu0
      %v2328 = vadd.f32 %v2109, %v2327
      %v2329 = vpop.f32.mrf.mxu0
      %v2330 = vadd.f32 %v2111, %v2329
      %2331 = vmatmul.bf16.gmra.mxu0 %v1227
      %v2332 = vpop.f32.mrf.mxu0
      %v2333 = vadd.f32 %v2114, %v2332
      %v2334 = vpop.f32.mrf.mxu0
      %v2335 = vadd.f32 %v2116, %v2334
      %2336 = vmatmul.bf16.gmra.mxu0 %v1232
      %v2337 = vpop.f32.mrf.mxu0
      %v2338 = vadd.f32 %v2119, %v2337
      %v2339 = vpop.f32.mrf.mxu0
      %v2340 = vadd.f32 %v2121, %v2339
      %2341 = vmatmul.bf16.gmra.mxu0 %v1237
      %v2342 = vpop.f32.mrf.mxu0
      %v2343 = vadd.f32 %v2124, %v2342
      %v2344 = vpop.f32.mrf.mxu0
      %v2345 = vadd.f32 %v2126, %v2344
      %2346 = vmatmul.bf16.gmra.mxu0 %v1242
      %v2347 = vpop.f32.mrf.mxu0
      %v2348 = vadd.f32 %v2129, %v2347
      %v2349 = vpop.f32.mrf.mxu0
      %v2350 = vadd.f32 %v2131, %v2349
      %2351 = vmatmul.bf16.gmra.mxu0 %v1247
      %v2352 = vpop.f32.mrf.mxu0
      %v2353 = vadd.f32 %v2134, %v2352
      %v2354 = vpop.f32.mrf.mxu0
      %v2355 = vadd.f32 %v2136, %v2354
      %2356 = vmatmul.bf16.gmra.mxu0 %v1252
      %v2357 = vpop.f32.mrf.mxu0
      %v2358 = vadd.f32 %v2139, %v2357
      %v2359 = vpop.f32.mrf.mxu0
      %v2360 = vadd.f32 %v2141, %v2359
      %2361 = vmatmul.bf16.gmra.mxu0 %v1257
      %v2362 = vpop.f32.mrf.mxu0
      %v2363 = vadd.f32 %v2144, %v2362
      %v2364 = vpop.f32.mrf.mxu0
      %v2365 = vadd.f32 %v2146, %v2364
      %2366 = vmatmul.bf16.gmra.mxu0 %v1262
      %v2367 = vpop.f32.mrf.mxu0
      %v2368 = vadd.f32 %v2149, %v2367
      %v2369 = vpop.f32.mrf.mxu0
      %v2370 = vadd.f32 %v2151, %v2369
      %2371 = vmatmul.bf16.gmra.mxu0 %v1267
      %v2372 = vpop.f32.mrf.mxu0
      %v2373 = vadd.f32 %v2154, %v2372
      %v2374 = vpop.f32.mrf.mxu0
      %v2375 = vadd.f32 %v2156, %v2374
      %2376 = vmatmul.bf16.gmra.mxu0 %v1272
      %v2377 = vpop.f32.mrf.mxu0
      %v2378 = vadd.f32 %v2159, %v2377
      %v2379 = vpop.f32.mrf.mxu0
      %v2380 = vadd.f32 %v2161, %v2379
      %2381 = vmatmul.bf16.gmra.mxu0 %v1277
      %v2382 = vpop.f32.mrf.mxu0
      %v2383 = vadd.f32 %v2164, %v2382
      %v2384 = vpop.f32.mrf.mxu0
      %v2385 = vadd.f32 %v2166, %v2384
      %2386 = vmatmul.bf16.gmra.mxu0 %v1282
      %v2387 = vpop.f32.mrf.mxu0
      %v2388 = vadd.f32 %v2169, %v2387
      %v2389 = vpop.f32.mrf.mxu0
      %v2390 = vadd.f32 %v2171, %v2389
      %2391 = vmatmul.bf16.gmra.mxu0 %v1287
      %v2392 = vpop.f32.mrf.mxu0
      %v2393 = vadd.f32 %v2174, %v2392
      %v2394 = vpop.f32.mrf.mxu0
      %v2395 = vadd.f32 %v2176, %v2394
      %2396 = vmatmul.bf16.gmra.mxu0 %v1292
      %v2397 = vpop.f32.mrf.mxu0
      %v2398 = vadd.f32 %v2179, %v2397
      %v2399 = vpop.f32.mrf.mxu0
      %v2400 = vadd.f32 %v2181, %v2399
      %2401 = vmatmul.bf16.gmra.mxu0 %v1297
      %v2402 = vpop.f32.mrf.mxu0
      %v2403 = vadd.f32 %v2184, %v2402
      %v2404 = vpop.f32.mrf.mxu0
      %v2405 = vadd.f32 %v2186, %v2404
      %2406 = vmatmul.bf16.gmra.mxu0 %v1302
      %v2407 = vpop.f32.mrf.mxu0
      %v2408 = vadd.f32 %v2189, %v2407
      %v2409 = vpop.f32.mrf.mxu0
      %v2410 = vadd.f32 %v2191, %v2409
      %2411 = vmatmul.bf16.gmra.mxu0 %v1307
      %v2412 = vpop.f32.mrf.mxu0
      %v2413 = vadd.f32 %v2194, %v2412
      %v2414 = vpop.f32.mrf.mxu0
      %v2415 = vadd.f32 %v2196, %v2414
      %2416 = vmatmul.bf16.gmra.mxu0 %v1312
      %v2417 = vpop.f32.mrf.mxu0
      %v2418 = vadd.f32 %v2199, %v2417
      %v2419 = vpop.f32.mrf.mxu0
      %v2420 = vadd.f32 %v2201, %v2419
      %2421 = vmatmul.bf16.gmra.mxu0 %v1317
      %v2422 = vpop.f32.mrf.mxu0
      %v2423 = vadd.f32 %v2204, %v2422
      %v2424 = vpop.f32.mrf.mxu0
      %v2425 = vadd.f32 %v2206, %v2424
      %2426 = vmatmul.bf16.gmra.mxu0 %v1322
      %v2427 = vpop.f32.mrf.mxu0
      %v2428 = vadd.f32 %v2209, %v2427
      %v2429 = vpop.f32.mrf.mxu0
      %v2430 = vadd.f32 %v2211, %v2429
      %2431 = vmatmul.bf16.gmra.mxu0 %v1327
      %v2432 = vpop.f32.mrf.mxu0
      %v2433 = vadd.f32 %v2214, %v2432
      %v2434 = vpop.f32.mrf.mxu0
      %v2435 = vadd.f32 %v2216, %v2434
      %2436 = vmatmul.bf16.gmra.mxu0 %v1332
      %v2437 = vpop.f32.mrf.mxu0
      %v2438 = vadd.f32 %v2219, %v2437
      %v2439 = vpop.f32.mrf.mxu0
      %v2440 = vadd.f32 %v2221, %v2439
      %2441 = vmatmul.bf16.gmra.mxu0 %v1337
      %v2442 = vpop.f32.mrf.mxu0
      %v2443 = vadd.f32 %v2224, %v2442
      %v2444 = vpop.f32.mrf.mxu0
      %v2445 = vadd.f32 %v2226, %v2444
      %2446 = vmatmul.bf16.gmra.mxu0 %v1342
      %v2447 = vpop.f32.mrf.mxu0
      %v2448 = vadd.f32 %v2229, %v2447
      %v2449 = vpop.f32.mrf.mxu0
      %v2450 = vadd.f32 %v2231, %v2449
      %2451 = vmatmul.bf16.gmra.mxu0 %v1347
      %v2452 = vpop.f32.mrf.mxu0
      %v2453 = vadd.f32 %v2234, %v2452
      %v2454 = vpop.f32.mrf.mxu0
      %v2455 = vadd.f32 %v2236, %v2454
      %2456 = vmatmul.bf16.gmra.mxu0 %v1352
      %v2457 = vpop.f32.mrf.mxu0
      %v2458 = vadd.f32 %v2239, %v2457
      %v2459 = vpop.f32.mrf.mxu0
      %v2460 = vadd.f32 %v2241, %v2459
      %2461 = vmatmul.bf16.gmra.mxu0 %v1357
      %v2462 = vpop.f32.mrf.mxu0
      %v2463 = vadd.f32 %v2244, %v2462
      %v2464 = vpop.f32.mrf.mxu0
      %v2465 = vadd.f32 %v2246, %v2464
      %2466 = vmatmul.bf16.gmra.mxu0 %v1362
      %v2467 = vpop.f32.mrf.mxu0
      %v2468 = vadd.f32 %v2249, %v2467
      %v2469 = vpop.f32.mrf.mxu0
      %v2470 = vadd.f32 %v2251, %v2469
      %2471 = vmatmul.bf16.gmra.mxu0 %v1367
      %v2472 = vpop.f32.mrf.mxu0
      %v2473 = vadd.f32 %v2254, %v2472
      %v2474 = vpop.f32.mrf.mxu0
      %v2475 = vadd.f32 %v2256, %v2474
      %2476 = vmatmul.bf16.gmra.mxu0 %v1372
      %v2477 = vpop.f32.mrf.mxu0
      %v2478 = vadd.f32 %v2259, %v2477
      %v2479 = vpop.f32.mrf.mxu0
      %v2480 = vadd.f32 %v2261, %v2479
      %2481 = vmatmul.bf16.gmra.mxu0 %v1377
      %v2482 = vpop.f32.mrf.mxu0
      %v2483 = vadd.f32 %v2264, %v2482
      %v2484 = vpop.f32.mrf.mxu0
      %v2485 = vadd.f32 %v2266, %v2484
      %2486 = vmatmul.bf16.gmra.mxu0 %v1382
      %v2487 = vpop.f32.mrf.mxu0
      %v2488 = vadd.f32 %v2269, %v2487
      %v2489 = vpop.f32.mrf.mxu0
      %v2490 = vadd.f32 %v2271, %v2489
      %2491 = vmatmul.bf16.gmra.mxu0 %v1387
      %v2492 = vpop.f32.mrf.mxu0
      %v2493 = vadd.f32 %v2274, %v2492
      %v2494 = vpop.f32.mrf.mxu0
      %v2495 = vadd.f32 %v2276, %v2494
      %2496 = vmatmul.bf16.gmra.mxu0 %v1392
      %v2497 = vpop.f32.mrf.mxu0
      %v2498 = vadd.f32 %v2279, %v2497
      %v2499 = vpop.f32.mrf.mxu0
      %v2500 = vadd.f32 %v2281, %v2499
      %2501 = vdwg.mxu0
      %2502 = vmatpush.bf16.msra.mxu0 %v1796
      %2503 = vmatpush.bf16.msra.mxu0 %v1795
      %2504 = vmatpush.bf16.msra.mxu0 %v1794
      %2505 = vmatpush.bf16.msra.mxu0 %v1793
      %2506 = vmatpush.bf16.msra.mxu0 %v1792
      %2507 = vmatpush.bf16.msra.mxu0 %v1791
      %2508 = vmatpush.bf16.msra.mxu0 %v1790
      %2509 = vmatpush.bf16.msra.mxu0 %v1789
      %2510 = vmatmul.bf16.gmra.mxu0 %v1188
      %v2511 = vpop.f32.mrf.mxu0
      %v2512 = vadd.f32 %v2293, %v2511
      %v2513 = vpop.f32.mrf.mxu0
      %v2514 = vadd.f32 %v2295, %v2513
      %2515 = vmatmul.bf16.gmra.mxu0 %v1193
      %v2516 = vpop.f32.mrf.mxu0
      %v2517 = vadd.f32 %v2298, %v2516
      %v2518 = vpop.f32.mrf.mxu0
      %v2519 = vadd.f32 %v2300, %v2518
      %2520 = vmatmul.bf16.gmra.mxu0 %v1198
      %v2521 = vpop.f32.mrf.mxu0
      %v2522 = vadd.f32 %v2303, %v2521
      %v2523 = vpop.f32.mrf.mxu0
      %v2524 = vadd.f32 %v2305, %v2523
      %2525 = vmatmul.bf16.gmra.mxu0 %v1203
      %v2526 = vpop.f32.mrf.mxu0
      %v2527 = vadd.f32 %v2308, %v2526
      %v2528 = vpop.f32.mrf.mxu0
      %v2529 = vadd.f32 %v2310, %v2528
      %2530 = vmatmul.bf16.gmra.mxu0 %v1208
      %v2531 = vpop.f32.mrf.mxu0
      %v2532 = vadd.f32 %v2313, %v2531
      %v2533 = vpop.f32.mrf.mxu0
      %v2534 = vadd.f32 %v2315, %v2533
      %2535 = vmatmul.bf16.gmra.mxu0 %v1213
      %v2536 = vpop.f32.mrf.mxu0
      %v2537 = vadd.f32 %v2318, %v2536
      %v2538 = vpop.f32.mrf.mxu0
      %v2539 = vadd.f32 %v2320, %v2538
      %2540 = vmatmul.bf16.gmra.mxu0 %v1218
      %v2541 = vpop.f32.mrf.mxu0
      %v2542 = vadd.f32 %v2323, %v2541
      %v2543 = vpop.f32.mrf.mxu0
      %v2544 = vadd.f32 %v2325, %v2543
      %2545 = vmatmul.bf16.gmra.mxu0 %v1223
      %v2546 = vpop.f32.mrf.mxu0
      %v2547 = vadd.f32 %v2328, %v2546
      %v2548 = vpop.f32.mrf.mxu0
      %v2549 = vadd.f32 %v2330, %v2548
      %2550 = vmatmul.bf16.gmra.mxu0 %v1228
      %v2551 = vpop.f32.mrf.mxu0
      %v2552 = vadd.f32 %v2333, %v2551
      %v2553 = vpop.f32.mrf.mxu0
      %v2554 = vadd.f32 %v2335, %v2553
      %2555 = vmatmul.bf16.gmra.mxu0 %v1233
      %v2556 = vpop.f32.mrf.mxu0
      %v2557 = vadd.f32 %v2338, %v2556
      %v2558 = vpop.f32.mrf.mxu0
      %v2559 = vadd.f32 %v2340, %v2558
      %2560 = vmatmul.bf16.gmra.mxu0 %v1238
      %v2561 = vpop.f32.mrf.mxu0
      %v2562 = vadd.f32 %v2343, %v2561
      %v2563 = vpop.f32.mrf.mxu0
      %v2564 = vadd.f32 %v2345, %v2563
      %2565 = vmatmul.bf16.gmra.mxu0 %v1243
      %v2566 = vpop.f32.mrf.mxu0
      %v2567 = vadd.f32 %v2348, %v2566
      %v2568 = vpop.f32.mrf.mxu0
      %v2569 = vadd.f32 %v2350, %v2568
      %2570 = vmatmul.bf16.gmra.mxu0 %v1248
      %v2571 = vpop.f32.mrf.mxu0
      %v2572 = vadd.f32 %v2353, %v2571
      %v2573 = vpop.f32.mrf.mxu0
      %v2574 = vadd.f32 %v2355, %v2573
      %2575 = vmatmul.bf16.gmra.mxu0 %v1253
      %v2576 = vpop.f32.mrf.mxu0
      %v2577 = vadd.f32 %v2358, %v2576
      %v2578 = vpop.f32.mrf.mxu0
      %v2579 = vadd.f32 %v2360, %v2578
      %2580 = vmatmul.bf16.gmra.mxu0 %v1258
      %v2581 = vpop.f32.mrf.mxu0
      %v2582 = vadd.f32 %v2363, %v2581
      %v2583 = vpop.f32.mrf.mxu0
      %v2584 = vadd.f32 %v2365, %v2583
      %2585 = vmatmul.bf16.gmra.mxu0 %v1263
      %v2586 = vpop.f32.mrf.mxu0
      %v2587 = vadd.f32 %v2368, %v2586
      %v2588 = vpop.f32.mrf.mxu0
      %v2589 = vadd.f32 %v2370, %v2588
      %2590 = vmatmul.bf16.gmra.mxu0 %v1268
      %v2591 = vpop.f32.mrf.mxu0
      %v2592 = vadd.f32 %v2373, %v2591
      %v2593 = vpop.f32.mrf.mxu0
      %v2594 = vadd.f32 %v2375, %v2593
      %2595 = vmatmul.bf16.gmra.mxu0 %v1273
      %v2596 = vpop.f32.mrf.mxu0
      %v2597 = vadd.f32 %v2378, %v2596
      %v2598 = vpop.f32.mrf.mxu0
      %v2599 = vadd.f32 %v2380, %v2598
      %2600 = vmatmul.bf16.gmra.mxu0 %v1278
      %v2601 = vpop.f32.mrf.mxu0
      %v2602 = vadd.f32 %v2383, %v2601
      %v2603 = vpop.f32.mrf.mxu0
      %v2604 = vadd.f32 %v2385, %v2603
      %2605 = vmatmul.bf16.gmra.mxu0 %v1283
      %v2606 = vpop.f32.mrf.mxu0
      %v2607 = vadd.f32 %v2388, %v2606
      %v2608 = vpop.f32.mrf.mxu0
      %v2609 = vadd.f32 %v2390, %v2608
      %2610 = vmatmul.bf16.gmra.mxu0 %v1288
      %v2611 = vpop.f32.mrf.mxu0
      %v2612 = vadd.f32 %v2393, %v2611
      %v2613 = vpop.f32.mrf.mxu0
      %v2614 = vadd.f32 %v2395, %v2613
      %2615 = vmatmul.bf16.gmra.mxu0 %v1293
      %v2616 = vpop.f32.mrf.mxu0
      %v2617 = vadd.f32 %v2398, %v2616
      %v2618 = vpop.f32.mrf.mxu0
      %v2619 = vadd.f32 %v2400, %v2618
      %2620 = vmatmul.bf16.gmra.mxu0 %v1298
      %v2621 = vpop.f32.mrf.mxu0
      %v2622 = vadd.f32 %v2403, %v2621
      %v2623 = vpop.f32.mrf.mxu0
      %v2624 = vadd.f32 %v2405, %v2623
      %2625 = vmatmul.bf16.gmra.mxu0 %v1303
      %v2626 = vpop.f32.mrf.mxu0
      %v2627 = vadd.f32 %v2408, %v2626
      %v2628 = vpop.f32.mrf.mxu0
      %v2629 = vadd.f32 %v2410, %v2628
      %2630 = vmatmul.bf16.gmra.mxu0 %v1308
      %v2631 = vpop.f32.mrf.mxu0
      %v2632 = vadd.f32 %v2413, %v2631
      %v2633 = vpop.f32.mrf.mxu0
      %v2634 = vadd.f32 %v2415, %v2633
      %2635 = vmatmul.bf16.gmra.mxu0 %v1313
      %v2636 = vpop.f32.mrf.mxu0
      %v2637 = vadd.f32 %v2418, %v2636
      %v2638 = vpop.f32.mrf.mxu0
      %v2639 = vadd.f32 %v2420, %v2638
      %2640 = vmatmul.bf16.gmra.mxu0 %v1318
      %v2641 = vpop.f32.mrf.mxu0
      %v2642 = vadd.f32 %v2423, %v2641
      %v2643 = vpop.f32.mrf.mxu0
      %v2644 = vadd.f32 %v2425, %v2643
      %2645 = vmatmul.bf16.gmra.mxu0 %v1323
      %v2646 = vpop.f32.mrf.mxu0
      %v2647 = vadd.f32 %v2428, %v2646
      %v2648 = vpop.f32.mrf.mxu0
      %v2649 = vadd.f32 %v2430, %v2648
      %2650 = vmatmul.bf16.gmra.mxu0 %v1328
      %v2651 = vpop.f32.mrf.mxu0
      %v2652 = vadd.f32 %v2433, %v2651
      %v2653 = vpop.f32.mrf.mxu0
      %v2654 = vadd.f32 %v2435, %v2653
      %2655 = vmatmul.bf16.gmra.mxu0 %v1333
      %v2656 = vpop.f32.mrf.mxu0
      %v2657 = vadd.f32 %v2438, %v2656
      %v2658 = vpop.f32.mrf.mxu0
      %v2659 = vadd.f32 %v2440, %v2658
      %2660 = vmatmul.bf16.gmra.mxu0 %v1338
      %v2661 = vpop.f32.mrf.mxu0
      %v2662 = vadd.f32 %v2443, %v2661
      %v2663 = vpop.f32.mrf.mxu0
      %v2664 = vadd.f32 %v2445, %v2663
      %2665 = vmatmul.bf16.gmra.mxu0 %v1343
      %v2666 = vpop.f32.mrf.mxu0
      %v2667 = vadd.f32 %v2448, %v2666
      %v2668 = vpop.f32.mrf.mxu0
      %v2669 = vadd.f32 %v2450, %v2668
      %2670 = vmatmul.bf16.gmra.mxu0 %v1348
      %v2671 = vpop.f32.mrf.mxu0
      %v2672 = vadd.f32 %v2453, %v2671
      %v2673 = vpop.f32.mrf.mxu0
      %v2674 = vadd.f32 %v2455, %v2673
      %2675 = vmatmul.bf16.gmra.mxu0 %v1353
      %v2676 = vpop.f32.mrf.mxu0
      %v2677 = vadd.f32 %v2458, %v2676
      %v2678 = vpop.f32.mrf.mxu0
      %v2679 = vadd.f32 %v2460, %v2678
      %2680 = vmatmul.bf16.gmra.mxu0 %v1358
      %v2681 = vpop.f32.mrf.mxu0
      %v2682 = vadd.f32 %v2463, %v2681
      %v2683 = vpop.f32.mrf.mxu0
      %v2684 = vadd.f32 %v2465, %v2683
      %2685 = vmatmul.bf16.gmra.mxu0 %v1363
      %v2686 = vpop.f32.mrf.mxu0
      %v2687 = vadd.f32 %v2468, %v2686
      %v2688 = vpop.f32.mrf.mxu0
      %v2689 = vadd.f32 %v2470, %v2688
      %2690 = vmatmul.bf16.gmra.mxu0 %v1368
      %v2691 = vpop.f32.mrf.mxu0
      %v2692 = vadd.f32 %v2473, %v2691
      %v2693 = vpop.f32.mrf.mxu0
      %v2694 = vadd.f32 %v2475, %v2693
      %2695 = vmatmul.bf16.gmra.mxu0 %v1373
      %v2696 = vpop.f32.mrf.mxu0
      %v2697 = vadd.f32 %v2478, %v2696
      %v2698 = vpop.f32.mrf.mxu0
      %v2699 = vadd.f32 %v2480, %v2698
      %2700 = vmatmul.bf16.gmra.mxu0 %v1378
      %v2701 = vpop.f32.mrf.mxu0
      %v2702 = vadd.f32 %v2483, %v2701
      %v2703 = vpop.f32.mrf.mxu0
      %v2704 = vadd.f32 %v2485, %v2703
      %2705 = vmatmul.bf16.gmra.mxu0 %v1383
      %v2706 = vpop.f32.mrf.mxu0
      %v2707 = vadd.f32 %v2488, %v2706
      %v2708 = vpop.f32.mrf.mxu0
      %v2709 = vadd.f32 %v2490, %v2708
      %2710 = vmatmul.bf16.gmra.mxu0 %v1388
      %v2711 = vpop.f32.mrf.mxu0
      %v2712 = vadd.f32 %v2493, %v2711
      %v2713 = vpop.f32.mrf.mxu0
      %v2714 = vadd.f32 %v2495, %v2713
      %2715 = vmatmul.bf16.gmra.mxu0 %v1393
      %v2716 = vpop.f32.mrf.mxu0
      %v2717 = vadd.f32 %v2498, %v2716
      %v2718 = vpop.f32.mrf.mxu0
      %v2719 = vadd.f32 %v2500, %v2718
      %2720 = vdwg.mxu0
      %2721 = vmatpush.bf16.msra.mxu0 %v1804
      %2722 = vmatpush.bf16.msra.mxu0 %v1803
      %2723 = vmatpush.bf16.msra.mxu0 %v1802
      %2724 = vmatpush.bf16.msra.mxu0 %v1801
      %2725 = vmatpush.bf16.msra.mxu0 %v1800
      %2726 = vmatpush.bf16.msra.mxu0 %v1799
      %2727 = vmatpush.bf16.msra.mxu0 %v1798
      %2728 = vmatpush.bf16.msra.mxu0 %v1797
      %2729 = vmatmul.bf16.gmra.mxu0 %v1189
      %v2730 = vpop.f32.mrf.mxu0
      %v2731 = vadd.f32 %v2512, %v2730
      %v2732 = vpop.f32.mrf.mxu0
      %v2733 = vadd.f32 %v2514, %v2732
      %2734 = vmatmul.bf16.gmra.mxu0 %v1194
      %v2735 = vpop.f32.mrf.mxu0
      %v2736 = vadd.f32 %v2517, %v2735
      %v2737 = vpop.f32.mrf.mxu0
      %v2738 = vadd.f32 %v2519, %v2737
      %2739 = vmatmul.bf16.gmra.mxu0 %v1199
      %v2740 = vpop.f32.mrf.mxu0
      %v2741 = vadd.f32 %v2522, %v2740
      %v2742 = vpop.f32.mrf.mxu0
      %v2743 = vadd.f32 %v2524, %v2742
      %2744 = vmatmul.bf16.gmra.mxu0 %v1204
      %v2745 = vpop.f32.mrf.mxu0
      %v2746 = vadd.f32 %v2527, %v2745
      %v2747 = vpop.f32.mrf.mxu0
      %v2748 = vadd.f32 %v2529, %v2747
      %2749 = vmatmul.bf16.gmra.mxu0 %v1209
      %v2750 = vpop.f32.mrf.mxu0
      %v2751 = vadd.f32 %v2532, %v2750
      %v2752 = vpop.f32.mrf.mxu0
      %v2753 = vadd.f32 %v2534, %v2752
      %2754 = vmatmul.bf16.gmra.mxu0 %v1214
      %v2755 = vpop.f32.mrf.mxu0
      %v2756 = vadd.f32 %v2537, %v2755
      %v2757 = vpop.f32.mrf.mxu0
      %v2758 = vadd.f32 %v2539, %v2757
      %2759 = vmatmul.bf16.gmra.mxu0 %v1219
      %v2760 = vpop.f32.mrf.mxu0
      %v2761 = vadd.f32 %v2542, %v2760
      %v2762 = vpop.f32.mrf.mxu0
      %v2763 = vadd.f32 %v2544, %v2762
      %2764 = vmatmul.bf16.gmra.mxu0 %v1224
      %v2765 = vpop.f32.mrf.mxu0
      %v2766 = vadd.f32 %v2547, %v2765
      %v2767 = vpop.f32.mrf.mxu0
      %v2768 = vadd.f32 %v2549, %v2767
      %2769 = vmatmul.bf16.gmra.mxu0 %v1229
      %v2770 = vpop.f32.mrf.mxu0
      %v2771 = vadd.f32 %v2552, %v2770
      %v2772 = vpop.f32.mrf.mxu0
      %v2773 = vadd.f32 %v2554, %v2772
      %2774 = vmatmul.bf16.gmra.mxu0 %v1234
      %v2775 = vpop.f32.mrf.mxu0
      %v2776 = vadd.f32 %v2557, %v2775
      %v2777 = vpop.f32.mrf.mxu0
      %v2778 = vadd.f32 %v2559, %v2777
      %2779 = vmatmul.bf16.gmra.mxu0 %v1239
      %v2780 = vpop.f32.mrf.mxu0
      %v2781 = vadd.f32 %v2562, %v2780
      %v2782 = vpop.f32.mrf.mxu0
      %v2783 = vadd.f32 %v2564, %v2782
      %2784 = vmatmul.bf16.gmra.mxu0 %v1244
      %v2785 = vpop.f32.mrf.mxu0
      %v2786 = vadd.f32 %v2567, %v2785
      %v2787 = vpop.f32.mrf.mxu0
      %v2788 = vadd.f32 %v2569, %v2787
      %2789 = vmatmul.bf16.gmra.mxu0 %v1249
      %v2790 = vpop.f32.mrf.mxu0
      %v2791 = vadd.f32 %v2572, %v2790
      %v2792 = vpop.f32.mrf.mxu0
      %v2793 = vadd.f32 %v2574, %v2792
      %2794 = vmatmul.bf16.gmra.mxu0 %v1254
      %v2795 = vpop.f32.mrf.mxu0
      %v2796 = vadd.f32 %v2577, %v2795
      %v2797 = vpop.f32.mrf.mxu0
      %v2798 = vadd.f32 %v2579, %v2797
      %2799 = vmatmul.bf16.gmra.mxu0 %v1259
      %v2800 = vpop.f32.mrf.mxu0
      %v2801 = vadd.f32 %v2582, %v2800
      %v2802 = vpop.f32.mrf.mxu0
      %v2803 = vadd.f32 %v2584, %v2802
      %2804 = vmatmul.bf16.gmra.mxu0 %v1264
      %v2805 = vpop.f32.mrf.mxu0
      %v2806 = vadd.f32 %v2587, %v2805
      %v2807 = vpop.f32.mrf.mxu0
      %v2808 = vadd.f32 %v2589, %v2807
      %2809 = vmatmul.bf16.gmra.mxu0 %v1269
      %v2810 = vpop.f32.mrf.mxu0
      %v2811 = vadd.f32 %v2592, %v2810
      %v2812 = vpop.f32.mrf.mxu0
      %v2813 = vadd.f32 %v2594, %v2812
      %2814 = vmatmul.bf16.gmra.mxu0 %v1274
      %v2815 = vpop.f32.mrf.mxu0
      %v2816 = vadd.f32 %v2597, %v2815
      %v2817 = vpop.f32.mrf.mxu0
      %v2818 = vadd.f32 %v2599, %v2817
      %2819 = vmatmul.bf16.gmra.mxu0 %v1279
      %v2820 = vpop.f32.mrf.mxu0
      %v2821 = vadd.f32 %v2602, %v2820
      %v2822 = vpop.f32.mrf.mxu0
      %v2823 = vadd.f32 %v2604, %v2822
      %2824 = vmatmul.bf16.gmra.mxu0 %v1284
      %v2825 = vpop.f32.mrf.mxu0
      %v2826 = vadd.f32 %v2607, %v2825
      %v2827 = vpop.f32.mrf.mxu0
      %v2828 = vadd.f32 %v2609, %v2827
      %2829 = vmatmul.bf16.gmra.mxu0 %v1289
      %v2830 = vpop.f32.mrf.mxu0
      %v2831 = vadd.f32 %v2612, %v2830
      %v2832 = vpop.f32.mrf.mxu0
      %v2833 = vadd.f32 %v2614, %v2832
      %2834 = vmatmul.bf16.gmra.mxu0 %v1294
      %v2835 = vpop.f32.mrf.mxu0
      %v2836 = vadd.f32 %v2617, %v2835
      %v2837 = vpop.f32.mrf.mxu0
      %v2838 = vadd.f32 %v2619, %v2837
      %2839 = vmatmul.bf16.gmra.mxu0 %v1299
      %v2840 = vpop.f32.mrf.mxu0
      %v2841 = vadd.f32 %v2622, %v2840
      %v2842 = vpop.f32.mrf.mxu0
      %v2843 = vadd.f32 %v2624, %v2842
      %2844 = vmatmul.bf16.gmra.mxu0 %v1304
      %v2845 = vpop.f32.mrf.mxu0
      %v2846 = vadd.f32 %v2627, %v2845
      %v2847 = vpop.f32.mrf.mxu0
      %v2848 = vadd.f32 %v2629, %v2847
      %2849 = vmatmul.bf16.gmra.mxu0 %v1309
      %v2850 = vpop.f32.mrf.mxu0
      %v2851 = vadd.f32 %v2632, %v2850
      %v2852 = vpop.f32.mrf.mxu0
      %v2853 = vadd.f32 %v2634, %v2852
      %2854 = vmatmul.bf16.gmra.mxu0 %v1314
      %v2855 = vpop.f32.mrf.mxu0
      %v2856 = vadd.f32 %v2637, %v2855
      %v2857 = vpop.f32.mrf.mxu0
      %v2858 = vadd.f32 %v2639, %v2857
      %2859 = vmatmul.bf16.gmra.mxu0 %v1319
      %v2860 = vpop.f32.mrf.mxu0
      %v2861 = vadd.f32 %v2642, %v2860
      %v2862 = vpop.f32.mrf.mxu0
      %v2863 = vadd.f32 %v2644, %v2862
      %2864 = vmatmul.bf16.gmra.mxu0 %v1324
      %v2865 = vpop.f32.mrf.mxu0
      %v2866 = vadd.f32 %v2647, %v2865
      %v2867 = vpop.f32.mrf.mxu0
      %v2868 = vadd.f32 %v2649, %v2867
      %2869 = vmatmul.bf16.gmra.mxu0 %v1329
      %v2870 = vpop.f32.mrf.mxu0
      %v2871 = vadd.f32 %v2652, %v2870
      %v2872 = vpop.f32.mrf.mxu0
      %v2873 = vadd.f32 %v2654, %v2872
      %2874 = vmatmul.bf16.gmra.mxu0 %v1334
      %v2875 = vpop.f32.mrf.mxu0
      %v2876 = vadd.f32 %v2657, %v2875
      %v2877 = vpop.f32.mrf.mxu0
      %v2878 = vadd.f32 %v2659, %v2877
      %2879 = vmatmul.bf16.gmra.mxu0 %v1339
      %v2880 = vpop.f32.mrf.mxu0
      %v2881 = vadd.f32 %v2662, %v2880
      %v2882 = vpop.f32.mrf.mxu0
      %v2883 = vadd.f32 %v2664, %v2882
      %2884 = vmatmul.bf16.gmra.mxu0 %v1344
      %v2885 = vpop.f32.mrf.mxu0
      %v2886 = vadd.f32 %v2667, %v2885
      %v2887 = vpop.f32.mrf.mxu0
      %v2888 = vadd.f32 %v2669, %v2887
      %2889 = vmatmul.bf16.gmra.mxu0 %v1349
      %v2890 = vpop.f32.mrf.mxu0
      %v2891 = vadd.f32 %v2672, %v2890
      %v2892 = vpop.f32.mrf.mxu0
      %v2893 = vadd.f32 %v2674, %v2892
      %2894 = vmatmul.bf16.gmra.mxu0 %v1354
      %v2895 = vpop.f32.mrf.mxu0
      %v2896 = vadd.f32 %v2677, %v2895
      %v2897 = vpop.f32.mrf.mxu0
      %v2898 = vadd.f32 %v2679, %v2897
      %2899 = vmatmul.bf16.gmra.mxu0 %v1359
      %v2900 = vpop.f32.mrf.mxu0
      %v2901 = vadd.f32 %v2682, %v2900
      %v2902 = vpop.f32.mrf.mxu0
      %v2903 = vadd.f32 %v2684, %v2902
      %2904 = vmatmul.bf16.gmra.mxu0 %v1364
      %v2905 = vpop.f32.mrf.mxu0
      %v2906 = vadd.f32 %v2687, %v2905
      %v2907 = vpop.f32.mrf.mxu0
      %v2908 = vadd.f32 %v2689, %v2907
      %2909 = vmatmul.bf16.gmra.mxu0 %v1369
      %v2910 = vpop.f32.mrf.mxu0
      %v2911 = vadd.f32 %v2692, %v2910
      %v2912 = vpop.f32.mrf.mxu0
      %v2913 = vadd.f32 %v2694, %v2912
      %2914 = vmatmul.bf16.gmra.mxu0 %v1374
      %v2915 = vpop.f32.mrf.mxu0
      %v2916 = vadd.f32 %v2697, %v2915
      %v2917 = vpop.f32.mrf.mxu0
      %v2918 = vadd.f32 %v2699, %v2917
      %2919 = vmatmul.bf16.gmra.mxu0 %v1379
      %v2920 = vpop.f32.mrf.mxu0
      %v2921 = vadd.f32 %v2702, %v2920
      %v2922 = vpop.f32.mrf.mxu0
      %v2923 = vadd.f32 %v2704, %v2922
      %2924 = vmatmul.bf16.gmra.mxu0 %v1384
      %v2925 = vpop.f32.mrf.mxu0
      %v2926 = vadd.f32 %v2707, %v2925
      %v2927 = vpop.f32.mrf.mxu0
      %v2928 = vadd.f32 %v2709, %v2927
      %2929 = vmatmul.bf16.gmra.mxu0 %v1389
      %v2930 = vpop.f32.mrf.mxu0
      %v2931 = vadd.f32 %v2712, %v2930
      %v2932 = vpop.f32.mrf.mxu0
      %v2933 = vadd.f32 %v2714, %v2932
      %2934 = vmatmul.bf16.gmra.mxu0 %v1394
      %v2935 = vpop.f32.mrf.mxu0
      %v2936 = vadd.f32 %v2717, %v2935
      %v2937 = vpop.f32.mrf.mxu0
      %v2938 = vadd.f32 %v2719, %v2937
      %2939 = vdwg.mxu0
      %v2940 = vmax.f32 %v2731, 0.0
      %v2941 = vmax.f32 %v2733, 0.0
      %v2942 = vmax.f32 %v2736, 0.0
      %v2943 = vmax.f32 %v2738, 0.0
      %v2944 = vmax.f32 %v2741, 0.0
      %v2945 = vmax.f32 %v2743, 0.0
      %v2946 = vmax.f32 %v2746, 0.0
      %v2947 = vmax.f32 %v2748, 0.0
      %v2948 = vmax.f32 %v2751, 0.0
      %v2949 = vmax.f32 %v2753, 0.0
      %v2950 = vmax.f32 %v2756, 0.0
      %v2951 = vmax.f32 %v2758, 0.0
      %v2952 = vmax.f32 %v2761, 0.0
      %v2953 = vmax.f32 %v2763, 0.0
      %v2954 = vmax.f32 %v2766, 0.0
      %v2955 = vmax.f32 %v2768, 0.0
      %v2956 = vmax.f32 %v2771, 0.0
      %v2957 = vmax.f32 %v2773, 0.0
      %v2958 = vmax.f32 %v2776, 0.0
      %v2959 = vmax.f32 %v2778, 0.0
      %v2960 = vmax.f32 %v2781, 0.0
      %v2961 = vmax.f32 %v2783, 0.0
      %v2962 = vmax.f32 %v2786, 0.0
      %v2963 = vmax.f32 %v2788, 0.0
      %v2964 = vmax.f32 %v2791, 0.0
      %v2965 = vmax.f32 %v2793, 0.0
      %v2966 = vmax.f32 %v2796, 0.0
      %v2967 = vmax.f32 %v2798, 0.0
      %v2968 = vmax.f32 %v2801, 0.0
      %v2969 = vmax.f32 %v2803, 0.0
      %v2970 = vmax.f32 %v2806, 0.0
      %v2971 = vmax.f32 %v2808, 0.0
      %v2972 = vmax.f32 %v2811, 0.0
      %v2973 = vmax.f32 %v2813, 0.0
      %v2974 = vmax.f32 %v2816, 0.0
      %v2975 = vmax.f32 %v2818, 0.0
      %v2976 = vmax.f32 %v2821, 0.0
      %v2977 = vmax.f32 %v2823, 0.0
      %v2978 = vmax.f32 %v2826, 0.0
      %v2979 = vmax.f32 %v2828, 0.0
      %v2980 = vmax.f32 %v2831, 0.0
      %v2981 = vmax.f32 %v2833, 0.0
      %v2982 = vmax.f32 %v2836, 0.0
      %v2983 = vmax.f32 %v2838, 0.0
      %v2984 = vmax.f32 %v2841, 0.0
      %v2985 = vmax.f32 %v2843, 0.0
      %v2986 = vmax.f32 %v2846, 0.0
      %v2987 = vmax.f32 %v2848, 0.0
      %v2988 = vmax.f32 %v2851, 0.0
      %v2989 = vmax.f32 %v2853, 0.0
      %v2990 = vmax.f32 %v2856, 0.0
      %v2991 = vmax.f32 %v2858, 0.0
      %v2992 = vmax.f32 %v2861, 0.0
      %v2993 = vmax.f32 %v2863, 0.0
      %v2994 = vmax.f32 %v2866, 0.0
      %v2995 = vmax.f32 %v2868, 0.0
      %v2996 = vmax.f32 %v2871, 0.0
      %v2997 = vmax.f32 %v2873, 0.0
      %v2998 = vmax.f32 %v2876, 0.0
      %v2999 = vmax.f32 %v2878, 0.0
      %v3000 = vmax.f32 %v2881, 0.0
      %v3001 = vmax.f32 %v2883, 0.0
      %v3002 = vmax.f32 %v2886, 0.0
      %v3003 = vmax.f32 %v2888, 0.0
      %v3004 = vmax.f32 %v2891, 0.0
      %v3005 = vmax.f32 %v2893, 0.0
      %v3006 = vmax.f32 %v2896, 0.0
      %v3007 = vmax.f32 %v2898, 0.0
      %v3008 = vmax.f32 %v2901, 0.0
      %v3009 = vmax.f32 %v2903, 0.0
      %v3010 = vmax.f32 %v2906, 0.0
      %v3011 = vmax.f32 %v2908, 0.0
      %v3012 = vmax.f32 %v2911, 0.0
      %v3013 = vmax.f32 %v2913, 0.0
      %v3014 = vmax.f32 %v2916, 0.0
      %v3015 = vmax.f32 %v2918, 0.0
      %v3016 = vmax.f32 %v2921, 0.0
      %v3017 = vmax.f32 %v2923, 0.0
      %v3018 = vmax.f32 %v2926, 0.0
      %v3019 = vmax.f32 %v2928, 0.0
      %v3020 = vmax.f32 %v2931, 0.0
      %v3021 = vmax.f32 %v2933, 0.0
      %v3022 = vmax.f32 %v2936, 0.0
      %v3023 = vmax.f32 %v2938, 0.0
      %v3024 = vpack.c.bf16 %v2940, %v2940
      %v3025 = vpack.c.bf16 %v2941, %v2941
      %v3026 = vpack.c.bf16 %v2942, %v2942
      %v3027 = vpack.c.bf16 %v2943, %v2943
      %v3028 = vpack.c.bf16 %v2944, %v2944
      %v3029 = vpack.c.bf16 %v2945, %v2945
      %v3030 = vpack.c.bf16 %v2946, %v2946
      %v3031 = vpack.c.bf16 %v2947, %v2947
      %v3032 = vpack.c.bf16 %v2948, %v2948
      %v3033 = vpack.c.bf16 %v2949, %v2949
      %v3034 = vpack.c.bf16 %v2950, %v2950
      %v3035 = vpack.c.bf16 %v2951, %v2951
      %v3036 = vpack.c.bf16 %v2952, %v2952
      %v3037 = vpack.c.bf16 %v2953, %v2953
      %v3038 = vpack.c.bf16 %v2954, %v2954
      %v3039 = vpack.c.bf16 %v2955, %v2955
      %v3040 = vpack.c.bf16 %v2956, %v2956
      %v3041 = vpack.c.bf16 %v2957, %v2957
      %v3042 = vpack.c.bf16 %v2958, %v2958
      %v3043 = vpack.c.bf16 %v2959, %v2959
      %v3044 = vpack.c.bf16 %v2960, %v2960
      %v3045 = vpack.c.bf16 %v2961, %v2961
      %v3046 = vpack.c.bf16 %v2962, %v2962
      %v3047 = vpack.c.bf16 %v2963, %v2963
      %v3048 = vpack.c.bf16 %v2964, %v2964
      %v3049 = vpack.c.bf16 %v2965, %v2965
      %v3050 = vpack.c.bf16 %v2966, %v2966
      %v3051 = vpack.c.bf16 %v2967, %v2967
      %v3052 = vpack.c.bf16 %v2968, %v2968
      %v3053 = vpack.c.bf16 %v2969, %v2969
      %v3054 = vpack.c.bf16 %v2970, %v2970
      %v3055 = vpack.c.bf16 %v2971, %v2971
      %v3056 = vpack.c.bf16 %v2972, %v2972
      %v3057 = vpack.c.bf16 %v2973, %v2973
      %v3058 = vpack.c.bf16 %v2974, %v2974
      %v3059 = vpack.c.bf16 %v2975, %v2975
      %v3060 = vpack.c.bf16 %v2976, %v2976
      %v3061 = vpack.c.bf16 %v2977, %v2977
      %v3062 = vpack.c.bf16 %v2978, %v2978
      %v3063 = vpack.c.bf16 %v2979, %v2979
      %v3064 = vpack.c.bf16 %v2980, %v2980
      %v3065 = vpack.c.bf16 %v2981, %v2981
      %v3066 = vpack.c.bf16 %v2982, %v2982
      %v3067 = vpack.c.bf16 %v2983, %v2983
      %v3068 = vpack.c.bf16 %v2984, %v2984
      %v3069 = vpack.c.bf16 %v2985, %v2985
      %v3070 = vpack.c.bf16 %v2986, %v2986
      %v3071 = vpack.c.bf16 %v2987, %v2987
      %v3072 = vpack.c.bf16 %v2988, %v2988
      %v3073 = vpack.c.bf16 %v2989, %v2989
      %v3074 = vpack.c.bf16 %v2990, %v2990
      %v3075 = vpack.c.bf16 %v2991, %v2991
      %v3076 = vpack.c.bf16 %v2992, %v2992
      %v3077 = vpack.c.bf16 %v2993, %v2993
      %v3078 = vpack.c.bf16 %v2994, %v2994
      %v3079 = vpack.c.bf16 %v2995, %v2995
      %v3080 = vpack.c.bf16 %v2996, %v2996
      %v3081 = vpack.c.bf16 %v2997, %v2997
      %v3082 = vpack.c.bf16 %v2998, %v2998
      %v3083 = vpack.c.bf16 %v2999, %v2999
      %v3084 = vpack.c.bf16 %v3000, %v3000
      %v3085 = vpack.c.bf16 %v3001, %v3001
      %v3086 = vpack.c.bf16 %v3002, %v3002
      %v3087 = vpack.c.bf16 %v3003, %v3003
      %v3088 = vpack.c.bf16 %v3004, %v3004
      %v3089 = vpack.c.bf16 %v3005, %v3005
      %v3090 = vpack.c.bf16 %v3006, %v3006
      %v3091 = vpack.c.bf16 %v3007, %v3007
      %v3092 = vpack.c.bf16 %v3008, %v3008
      %v3093 = vpack.c.bf16 %v3009, %v3009
      %v3094 = vpack.c.bf16 %v3010, %v3010
      %v3095 = vpack.c.bf16 %v3011, %v3011
      %v3096 = vpack.c.bf16 %v3012, %v3012
      %v3097 = vpack.c.bf16 %v3013, %v3013
      %v3098 = vpack.c.bf16 %v3014, %v3014
      %v3099 = vpack.c.bf16 %v3015, %v3015
      %v3100 = vpack.c.bf16 %v3016, %v3016
      %v3101 = vpack.c.bf16 %v3017, %v3017
      %v3102 = vpack.c.bf16 %v3018, %v3018
      %v3103 = vpack.c.bf16 %v3019, %v3019
      %v3104 = vpack.c.bf16 %v3020, %v3020
      %v3105 = vpack.c.bf16 %v3021, %v3021
      %v3106 = vpack.c.bf16 %v3022, %v3022
      %v3107 = vpack.c.bf16 %v3023, %v3023
      %3108 = vst [vmem:[%s175] sm:$0xf] %v3024
      %3109 = vst [vmem:[%s175 + $0x4] sm:$0xf] %v3025
      %3110 = vst [vmem:[%s175 + $0x8] sm:$0xf] %v3026
      %3111 = vst [vmem:[%s175 + $0xc] sm:$0xf] %v3027
      %3112 = vst [vmem:[%s175 + $0x10] sm:$0xf] %v3028
      %3113 = vst [vmem:[%s175 + $0x14] sm:$0xf] %v3029
      %3114 = vst [vmem:[%s175 + $0x18] sm:$0xf] %v3030
      %3115 = vst [vmem:[%s175 + $0x1c] sm:$0xf] %v3031
      %3116 = vst [vmem:[%s175 + $0x20] sm:$0xf] %v3032
      %3117 = vst [vmem:[%s175 + $0x24] sm:$0xf] %v3033
      %3118 = vst [vmem:[%s175 + $0x28] sm:$0xf] %v3034
      %3119 = vst [vmem:[%s175 + $0x2c] sm:$0xf] %v3035
      %3120 = vst [vmem:[%s175 + $0x30] sm:$0xf] %v3036
      %3121 = vst [vmem:[%s175 + $0x34] sm:$0xf] %v3037
      %3122 = vst [vmem:[%s175 + $0x38] sm:$0xf] %v3038
      %3123 = vst [vmem:[%s175 + $0x3c] sm:$0xf] %v3039
      %3124 = vst [vmem:[%s175 + $0x40] sm:$0xf] %v3040
      %3125 = vst [vmem:[%s175 + $0x44] sm:$0xf] %v3041
      %3126 = vst [vmem:[%s175 + $0x48] sm:$0xf] %v3042
      %3127 = vst [vmem:[%s175 + $0x4c] sm:$0xf] %v3043
      %3128 = vst [vmem:[%s175 + $0x50] sm:$0xf] %v3044
      %3129 = vst [vmem:[%s175 + $0x54] sm:$0xf] %v3045
      %3130 = vst [vmem:[%s175 + $0x58] sm:$0xf] %v3046
      %3131 = vst [vmem:[%s175 + $0x5c] sm:$0xf] %v3047
      %3132 = vst [vmem:[%s175 + $0x60] sm:$0xf] %v3048
      %3133 = vst [vmem:[%s175 + $0x64] sm:$0xf] %v3049
      %3134 = vst [vmem:[%s175 + $0x68] sm:$0xf] %v3050
      %3135 = vst [vmem:[%s175 + $0x6c] sm:$0xf] %v3051
      %3136 = vst [vmem:[%s175 + $0x70] sm:$0xf] %v3052
      %3137 = vst [vmem:[%s175 + $0x74] sm:$0xf] %v3053
      %3138 = vst [vmem:[%s175 + $0x78] sm:$0xf] %v3054
      %3139 = vst [vmem:[%s175 + $0x7c] sm:$0xf] %v3055
      %3140 = vst [vmem:[%s175 + $0x80] sm:$0xf] %v3056
      %3141 = vst [vmem:[%s175 + $0x84] sm:$0xf] %v3057
      %3142 = vst [vmem:[%s175 + $0x88] sm:$0xf] %v3058
      %3143 = vst [vmem:[%s175 + $0x8c] sm:$0xf] %v3059
      %3144 = vst [vmem:[%s175 + $0x90] sm:$0xf] %v3060
      %3145 = vst [vmem:[%s175 + $0x94] sm:$0xf] %v3061
      %3146 = vst [vmem:[%s175 + $0x98] sm:$0xf] %v3062
      %3147 = vst [vmem:[%s175 + $0x9c] sm:$0xf] %v3063
      %3148 = vst [vmem:[%s175 + $0xa0] sm:$0xf] %v3064
      %3149 = vst [vmem:[%s175 + $0xa4] sm:$0xf] %v3065
      %3150 = vst [vmem:[%s175 + $0xa8] sm:$0xf] %v3066
      %3151 = vst [vmem:[%s175 + $0xac] sm:$0xf] %v3067
      %3152 = vst [vmem:[%s175 + $0xb0] sm:$0xf] %v3068
      %3153 = vst [vmem:[%s175 + $0xb4] sm:$0xf] %v3069
      %3154 = vst [vmem:[%s175 + $0xb8] sm:$0xf] %v3070
      %3155 = vst [vmem:[%s175 + $0xbc] sm:$0xf] %v3071
      %3156 = vst [vmem:[%s175 + $0xc0] sm:$0xf] %v3072
      %3157 = vst [vmem:[%s175 + $0xc4] sm:$0xf] %v3073
      %3158 = vst [vmem:[%s175 + $0xc8] sm:$0xf] %v3074
      %3159 = vst [vmem:[%s175 + $0xcc] sm:$0xf] %v3075
      %3160 = vst [vmem:[%s175 + $0xd0] sm:$0xf] %v3076
      %3161 = vst [vmem:[%s175 + $0xd4] sm:$0xf] %v3077
      %3162 = vst [vmem:[%s175 + $0xd8] sm:$0xf] %v3078
      %3163 = vst [vmem:[%s175 + $0xdc] sm:$0xf] %v3079
      %3164 = vst [vmem:[%s175 + $0xe0] sm:$0xf] %v3080
      %3165 = vst [vmem:[%s175 + $0xe4] sm:$0xf] %v3081
      %3166 = vst [vmem:[%s175 + $0xe8] sm:$0xf] %v3082
      %3167 = vst [vmem:[%s175 + $0xec] sm:$0xf] %v3083
      %3168 = vst [vmem:[%s175 + $0xf0] sm:$0xf] %v3084
      %3169 = vst [vmem:[%s175 + $0xf4] sm:$0xf] %v3085
      %3170 = vst [vmem:[%s175 + $0xf8] sm:$0xf] %v3086
      %3171 = vst [vmem:[%s175 + $0xfc] sm:$0xf] %v3087
      %3172 = vst [vmem:[%s175 + $0x100] sm:$0xf] %v3088
      %3173 = vst [vmem:[%s175 + $0x104] sm:$0xf] %v3089
      %3174 = vst [vmem:[%s175 + $0x108] sm:$0xf] %v3090
      %3175 = vst [vmem:[%s175 + $0x10c] sm:$0xf] %v3091
      %3176 = vst [vmem:[%s175 + $0x110] sm:$0xf] %v3092
      %3177 = vst [vmem:[%s175 + $0x114] sm:$0xf] %v3093
      %3178 = vst [vmem:[%s175 + $0x118] sm:$0xf] %v3094
      %3179 = vst [vmem:[%s175 + $0x11c] sm:$0xf] %v3095
      %3180 = vst [vmem:[%s175 + $0x120] sm:$0xf] %v3096
      %3181 = vst [vmem:[%s175 + $0x124] sm:$0xf] %v3097
      %3182 = vst [vmem:[%s175 + $0x128] sm:$0xf] %v3098
      %3183 = vst [vmem:[%s175 + $0x12c] sm:$0xf] %v3099
      %3184 = vst [vmem:[%s175 + $0x130] sm:$0xf] %v3100
      %3185 = vst [vmem:[%s175 + $0x134] sm:$0xf] %v3101
      %3186 = vst [vmem:[%s175 + $0x138] sm:$0xf] %v3102
      %3187 = vst [vmem:[%s175 + $0x13c] sm:$0xf] %v3103
      %3188 = vst [vmem:[%s175 + $0x140] sm:$0xf] %v3104
      %3189 = vst [vmem:[%s175 + $0x144] sm:$0xf] %v3105
      %3190 = vst [vmem:[%s175 + $0x148] sm:$0xf] %v3106
      %3191 = vst [vmem:[%s175 + $0x14c] sm:$0xf] %v3107
      %s3192 = smul.u32 84, %s14
      %p3193 = scmp.lt.s32.totalorder %s3192, 167
      %s3194 = scalar_select %p3193, %s3192, 167
      %s3195 = smul.addr %s3194, 4
      %s3196 = scalar_lea.vmem %s3, %s3195
      // Predicated region
      $region33: #{pilot_net_forward.7} parent=31 // pred_check
        %p3197 = pneg %p100
      $region34: #{pilot_net_forward.7} parent=31 // pred_check_branch
        %3199 = sbr.rel (%p3197) target = $region36
      $region35: #{pilot_net_forward.7} parent=31 // pred_region
        %s3200 = smul.u32 84, %s14
      $region36: #{pilot_net_forward.7} parent=31 // pred_fallthru
        _
    $region32: #{pilot_net_forward.7} parent=5 // pred_fallthru
      _
    %p3201 = scmp.le.s32.totalorder 2, %s9
    // Predicated region
    $region37: #{pilot_net_forward.7} parent=5 // pred_check
      %p3202 = pneg %p3201
    $region38: #{pilot_net_forward.7} parent=5 // pred_check_branch
      %3204 = sbr.rel (%p3202) target = $region40
    $region39: #{pilot_net_forward.7} parent=5 // pred_region
      %s3205 = ssub.s32 %s9, 2
      // Predicated region
      $region41: #{pilot_net_forward.7} parent=39 // pred_check
        %p3206 = pneg %p106
      $region42: #{pilot_net_forward.7} parent=39 // pred_check_branch
        %3208 = sbr.rel (%p3206) target = $region44
      $region43: #{pilot_net_forward.7} parent=39 // pred_region
        %s3209 = smul.u32 84, %s15
        %p3210 = scmp.lt.s32.totalorder %s3209, 167
        %s3211 = scalar_select %p3210, %s3209, 167
        %s3212 = smul.addr %s3211, 4
        %s3213 = scalar_lea.vmem %s3, %s3212
      $region44: #{pilot_net_forward.7} parent=39 // pred_fallthru
        _
    $region40: #{pilot_net_forward.7} parent=5 // pred_fallthru
      _
  $region6: #{pilot_net_forward.7} parent=0 // loop_footer
    %s13 = sadd.s32 1, %s9
  $region7: #{pilot_net_forward.7} parent=0 // loop_footer_branch
    %8 = sbr.rel target = $region3
  $region8: #{pilot_net_forward.7} parent=0 // loop_exit
    _

// kernel: pilot_net_forward.8
$region0: #{pilot_net_forward.8}
  #allocation0 [shape = 'u32[]', space=smem, size = 0x4, offset = 0x4, fixed_abs, tag = 'smem constant byte address 0x4 - core index']
  #allocation1 [shape = 'u32[72,128]{1,0:T(1,128)}', space=vmem, size = 0x9000, scoped, tag = 'internal scratch']
  %s0 = inlined_call_operand.vmem [shape: bf16[224,1024], index: 0, kind: input, shape index: {}]
  %s1 = inlined_call_operand.vmem [shape: bf16[1024,128], index: 1, kind: input, shape index: {}]
  %s2 = inlined_call_operand.vmem [shape: f32[1,128], index: 2, kind: input, shape index: {}]
  %s3 = inlined_call_operand.vmem [shape: bf16[224,128], index: 3, kind: output, shape index: {}]
  %s4 = sld [smem:[#allocation0]]
  $region22: #{pilot_net_forward.8} parent=0
    _
  %s6 = ssub.s32 1, %s4
  %s7 = scalar_select 0, %s6, %s4
  // Predicated region
  $region2: #{pilot_net_forward.8} parent=0 // pred_check
    _
  $region3: #{pilot_net_forward.8} parent=0 // pred_check_branch
    %9 = sbr.rel (0) target = $region5
  $region4: #{pilot_net_forward.8} parent=0 // pred_region
    _
  $region5: #{pilot_net_forward.8} parent=0 // pred_fallthru
    _
  // Predicated region
  $region6: #{pilot_net_forward.8} parent=0 // pred_check
    _
  $region7: #{pilot_net_forward.8} parent=0 // pred_check_branch
    %11 = sbr.rel (0) target = $region9
  $region8: #{pilot_net_forward.8} parent=0 // pred_region
    _
  $region9: #{pilot_net_forward.8} parent=0 // pred_fallthru
    _
  // Predicated region
  $region10: #{pilot_net_forward.8} parent=0 // pred_check
    _
  $region11: #{pilot_net_forward.8} parent=0 // pred_check_branch
    %13 = sbr.rel (0) target = $region13
  $region12: #{pilot_net_forward.8} parent=0 // pred_region
    _
  $region13: #{pilot_net_forward.8} parent=0 // pred_fallthru
    _
  %v14 = vld [vmem:[%s0] sm:$0xff]
  %v15 = vld [vmem:[%s0 + $0x8] sm:$0xff]
  %v16 = vld [vmem:[%s0 + $0x10] sm:$0xff]
  %v17 = vld [vmem:[%s0 + $0x18] sm:$0xff]
  %v18 = vld [vmem:[%s0 + $0x20] sm:$0xff]
  %v19 = vld [vmem:[%s0 + $0x28] sm:$0xff]
  %v20 = vld [vmem:[%s0 + $0x30] sm:$0xff]
  %v21 = vld [vmem:[%s0 + $0x38] sm:$0xff]
  %v22 = vld [vmem:[%s0 + $0x40] sm:$0xff]
  %v23 = vld [vmem:[%s0 + $0x48] sm:$0xff]
  %v24 = vld [vmem:[%s0 + $0x50] sm:$0xff]
  %v25 = vld [vmem:[%s0 + $0x58] sm:$0xff]
  %v26 = vld [vmem:[%s0 + $0x60] sm:$0xff]
  %v27 = vld [vmem:[%s0 + $0x68] sm:$0xff]
  %v28 = vld [vmem:[%s0 + $0x70] sm:$0xff]
  %v29 = vld [vmem:[%s0 + $0x78] sm:$0xff]
  %v30 = vld [vmem:[%s0 + $0x80] sm:$0xff]
  %v31 = vld [vmem:[%s0 + $0x88] sm:$0xff]
  %v32 = vld [vmem:[%s0 + $0x90] sm:$0xff]
  %v33 = vld [vmem:[%s0 + $0x98] sm:$0xff]
  %v34 = vld [vmem:[%s0 + $0xa0] sm:$0xff]
  %v35 = vld [vmem:[%s0 + $0xa8] sm:$0xff]
  %v36 = vld [vmem:[%s0 + $0xb0] sm:$0xff]
  %v37 = vld [vmem:[%s0 + $0xb8] sm:$0xff]
  %v38 = vld [vmem:[%s0 + $0xc0] sm:$0xff]
  %v39 = vld [vmem:[%s0 + $0xc8] sm:$0xff]
  %v40 = vld [vmem:[%s0 + $0xd0] sm:$0xff]
  %v41 = vld [vmem:[%s0 + $0xd8] sm:$0xff]
  %v42 = vld [vmem:[%s0 + $0xe0] sm:$0xff]
  %v43 = vld [vmem:[%s0 + $0xe8] sm:$0xff]
  %v44 = vld [vmem:[%s0 + $0xf0] sm:$0xff]
  %v45 = vld [vmem:[%s0 + $0xf8] sm:$0xff]
  %v46 = vld [vmem:[%s0 + $0x100] sm:$0xff]
  %v47 = vld [vmem:[%s0 + $0x108] sm:$0xff]
  %v48 = vld [vmem:[%s0 + $0x110] sm:$0xff]
  %v49 = vld [vmem:[%s0 + $0x118] sm:$0xff]
  %v50 = vld [vmem:[%s0 + $0x120] sm:$0xff]
  %v51 = vld [vmem:[%s0 + $0x128] sm:$0xff]
  %v52 = vld [vmem:[%s0 + $0x130] sm:$0xff]
  %v53 = vld [vmem:[%s0 + $0x138] sm:$0xff]
  %v54 = vld [vmem:[%s0 + $0x140] sm:$0xff]
  %v55 = vld [vmem:[%s0 + $0x148] sm:$0xff]
  %v56 = vld [vmem:[%s0 + $0x150] sm:$0xff]
  %v57 = vld [vmem:[%s0 + $0x158] sm:$0xff]
  %v58 = vld [vmem:[%s0 + $0x160] sm:$0xff]
  %v59 = vld [vmem:[%s0 + $0x168] sm:$0xff]
  %v60 = vld [vmem:[%s0 + $0x170] sm:$0xff]
  %v61 = vld [vmem:[%s0 + $0x178] sm:$0xff]
  %v62 = vld [vmem:[%s0 + $0x180] sm:$0xff]
  %v63 = vld [vmem:[%s0 + $0x188] sm:$0xff]
  %v64 = vld [vmem:[%s0 + $0x190] sm:$0xff]
  %v65 = vld [vmem:[%s0 + $0x198] sm:$0xff]
  %v66 = vld [vmem:[%s0 + $0x1a0] sm:$0xff]
  %v67 = vld [vmem:[%s0 + $0x1a8] sm:$0xff]
  %v68 = vld [vmem:[%s0 + $0x1b0] sm:$0xff]
  %v69 = vld [vmem:[%s0 + $0x1b8] sm:$0xff]
  %v70 = vld [vmem:[%s0 + $0x1c0] sm:$0xff]
  %v71 = vld [vmem:[%s0 + $0x1c8] sm:$0xff]
  %v72 = vld [vmem:[%s0 + $0x1d0] sm:$0xff]
  %v73 = vld [vmem:[%s0 + $0x1d8] sm:$0xff]
  %v74 = vld [vmem:[%s0 + $0x1e0] sm:$0xff]
  %v75 = vld [vmem:[%s0 + $0x1e8] sm:$0xff]
  %v76 = vld [vmem:[%s0 + $0x1f0] sm:$0xff]
  %v77 = vld [vmem:[%s0 + $0x1f8] sm:$0xff]
  %v78 = vld [vmem:[%s0 + $0x200] sm:$0xff]
  %v79 = vld [vmem:[%s0 + $0x208] sm:$0xff]
  %v80 = vld [vmem:[%s0 + $0x210] sm:$0xff]
  %v81 = vld [vmem:[%s0 + $0x218] sm:$0xff]
  %v82 = vld [vmem:[%s0 + $0x220] sm:$0xff]
  %v83 = vld [vmem:[%s0 + $0x228] sm:$0xff]
  %v84 = vld [vmem:[%s0 + $0x230] sm:$0xff]
  %v85 = vld [vmem:[%s0 + $0x238] sm:$0xff]
  %v86 = vld [vmem:[%s0 + $0x240] sm:$0xff]
  %v87 = vld [vmem:[%s0 + $0x248] sm:$0xff]
  %v88 = vld [vmem:[%s0 + $0x250] sm:$0xff]
  %v89 = vld [vmem:[%s0 + $0x258] sm:$0xff]
  %v90 = vld [vmem:[%s0 + $0x260] sm:$0xff]
  %v91 = vld [vmem:[%s0 + $0x268] sm:$0xff]
  %v92 = vld [vmem:[%s0 + $0x270] sm:$0xff]
  %v93 = vld [vmem:[%s0 + $0x278] sm:$0xff]
  %v94 = vld [vmem:[%s0 + $0x280] sm:$0xff]
  %v95 = vld [vmem:[%s0 + $0x288] sm:$0xff]
  %v96 = vld [vmem:[%s0 + $0x290] sm:$0xff]
  %v97 = vld [vmem:[%s0 + $0x298] sm:$0xff]
  %v98 = vld [vmem:[%s0 + $0x2a0] sm:$0xff]
  %v99 = vld [vmem:[%s0 + $0x2a8] sm:$0xff]
  %v100 = vld [vmem:[%s0 + $0x2b0] sm:$0xff]
  %v101 = vld [vmem:[%s0 + $0x2b8] sm:$0xff]
  %v102 = vld [vmem:[%s0 + $0x2c0] sm:$0xff]
  %v103 = vld [vmem:[%s0 + $0x2c8] sm:$0xff]
  %v104 = vld [vmem:[%s0 + $0x2d0] sm:$0xff]
  %v105 = vld [vmem:[%s0 + $0x2d8] sm:$0xff]
  %v106 = vld [vmem:[%s0 + $0x2e0] sm:$0xff]
  %v107 = vld [vmem:[%s0 + $0x2e8] sm:$0xff]
  %v108 = vld [vmem:[%s0 + $0x2f0] sm:$0xff]
  %v109 = vld [vmem:[%s0 + $0x2f8] sm:$0xff]
  %v110 = vld [vmem:[%s0 + $0x300] sm:$0xff]
  %v111 = vld [vmem:[%s0 + $0x308] sm:$0xff]
  %v112 = vld [vmem:[%s0 + $0x310] sm:$0xff]
  %v113 = vld [vmem:[%s0 + $0x318] sm:$0xff]
  %v114 = vld [vmem:[%s0 + $0x320] sm:$0xff]
  %v115 = vld [vmem:[%s0 + $0x328] sm:$0xff]
  %v116 = vld [vmem:[%s0 + $0x330] sm:$0xff]
  %v117 = vld [vmem:[%s0 + $0x338] sm:$0xff]
  %v118 = vld [vmem:[%s0 + $0x340] sm:$0xff]
  %v119 = vld [vmem:[%s0 + $0x348] sm:$0xff]
  %v120 = vld [vmem:[%s0 + $0x350] sm:$0xff]
  %v121 = vld [vmem:[%s0 + $0x358] sm:$0xff]
  %v122 = vld [vmem:[%s0 + $0x360] sm:$0xff]
  %v123 = vld [vmem:[%s0 + $0x368] sm:$0xff]
  %v124 = vld [vmem:[%s0 + $0x370] sm:$0xff]
  %v125 = vld [vmem:[%s0 + $0x378] sm:$0xff]
  %v126 = vld [vmem:[%s1] sm:$0xf]
  %v127 = vld [vmem:[%s1 + $0x4] sm:$0xf]
  %v128 = vld [vmem:[%s1 + $0x8] sm:$0xf]
  %v129 = vld [vmem:[%s1 + $0xc] sm:$0xf]
  %v130 = vld [vmem:[%s1 + $0x10] sm:$0xf]
  %v131 = vld [vmem:[%s1 + $0x14] sm:$0xf]
  %v132 = vld [vmem:[%s1 + $0x18] sm:$0xf]
  %v133 = vld [vmem:[%s1 + $0x1c] sm:$0xf]
  %v134 = vld [vmem:[%s1 + $0x20] sm:$0xf]
  %v135 = vld [vmem:[%s1 + $0x24] sm:$0xf]
  %v136 = vld [vmem:[%s1 + $0x28] sm:$0xf]
  %v137 = vld [vmem:[%s1 + $0x2c] sm:$0xf]
  %v138 = vld [vmem:[%s1 + $0x30] sm:$0xf]
  %v139 = vld [vmem:[%s1 + $0x34] sm:$0xf]
  %v140 = vld [vmem:[%s1 + $0x38] sm:$0xf]
  %v141 = vld [vmem:[%s1 + $0x3c] sm:$0xf]
  %v142 = vld [vmem:[%s1 + $0x40] sm:$0xf]
  %v143 = vld [vmem:[%s1 + $0x44] sm:$0xf]
  %v144 = vld [vmem:[%s1 + $0x48] sm:$0xf]
  %v145 = vld [vmem:[%s1 + $0x4c] sm:$0xf]
  %v146 = vld [vmem:[%s1 + $0x50] sm:$0xf]
  %v147 = vld [vmem:[%s1 + $0x54] sm:$0xf]
  %v148 = vld [vmem:[%s1 + $0x58] sm:$0xf]
  %v149 = vld [vmem:[%s1 + $0x5c] sm:$0xf]
  %v150 = vld [vmem:[%s1 + $0x60] sm:$0xf]
  %v151 = vld [vmem:[%s1 + $0x64] sm:$0xf]
  %v152 = vld [vmem:[%s1 + $0x68] sm:$0xf]
  %v153 = vld [vmem:[%s1 + $0x6c] sm:$0xf]
  %v154 = vld [vmem:[%s1 + $0x70] sm:$0xf]
  %v155 = vld [vmem:[%s1 + $0x74] sm:$0xf]
  %v156 = vld [vmem:[%s1 + $0x78] sm:$0xf]
  %v157 = vld [vmem:[%s1 + $0x7c] sm:$0xf]
  %v158 = vld [vmem:[%s1 + $0x80] sm:$0xf]
  %v159 = vld [vmem:[%s1 + $0x84] sm:$0xf]
  %v160 = vld [vmem:[%s1 + $0x88] sm:$0xf]
  %v161 = vld [vmem:[%s1 + $0x8c] sm:$0xf]
  %v162 = vld [vmem:[%s1 + $0x90] sm:$0xf]
  %v163 = vld [vmem:[%s1 + $0x94] sm:$0xf]
  %v164 = vld [vmem:[%s1 + $0x98] sm:$0xf]
  %v165 = vld [vmem:[%s1 + $0x9c] sm:$0xf]
  %v166 = vld [vmem:[%s1 + $0xa0] sm:$0xf]
  %v167 = vld [vmem:[%s1 + $0xa4] sm:$0xf]
  %v168 = vld [vmem:[%s1 + $0xa8] sm:$0xf]
  %v169 = vld [vmem:[%s1 + $0xac] sm:$0xf]
  %v170 = vld [vmem:[%s1 + $0xb0] sm:$0xf]
  %v171 = vld [vmem:[%s1 + $0xb4] sm:$0xf]
  %v172 = vld [vmem:[%s1 + $0xb8] sm:$0xf]
  %v173 = vld [vmem:[%s1 + $0xbc] sm:$0xf]
  %v174 = vld [vmem:[%s1 + $0xc0] sm:$0xf]
  %v175 = vld [vmem:[%s1 + $0xc4] sm:$0xf]
  %v176 = vld [vmem:[%s1 + $0xc8] sm:$0xf]
  %v177 = vld [vmem:[%s1 + $0xcc] sm:$0xf]
  %v178 = vld [vmem:[%s1 + $0xd0] sm:$0xf]
  %v179 = vld [vmem:[%s1 + $0xd4] sm:$0xf]
  %v180 = vld [vmem:[%s1 + $0xd8] sm:$0xf]
  %v181 = vld [vmem:[%s1 + $0xdc] sm:$0xf]
  %v182 = vld [vmem:[%s1 + $0xe0] sm:$0xf]
  %v183 = vld [vmem:[%s1 + $0xe4] sm:$0xf]
  %v184 = vld [vmem:[%s1 + $0xe8] sm:$0xf]
  %v185 = vld [vmem:[%s1 + $0xec] sm:$0xf]
  %v186 = vld [vmem:[%s1 + $0xf0] sm:$0xf]
  %v187 = vld [vmem:[%s1 + $0xf4] sm:$0xf]
  %v188 = vld [vmem:[%s1 + $0xf8] sm:$0xf]
  %v189 = vld [vmem:[%s1 + $0xfc] sm:$0xf]
  %v190 = vld [vmem:[%s1 + $0x100] sm:$0xf]
  %v191 = vld [vmem:[%s1 + $0x104] sm:$0xf]
  %v192 = vld [vmem:[%s1 + $0x108] sm:$0xf]
  %v193 = vld [vmem:[%s1 + $0x10c] sm:$0xf]
  %v194 = vld [vmem:[%s1 + $0x110] sm:$0xf]
  %v195 = vld [vmem:[%s1 + $0x114] sm:$0xf]
  %v196 = vld [vmem:[%s1 + $0x118] sm:$0xf]
  %v197 = vld [vmem:[%s1 + $0x11c] sm:$0xf]
  %v198 = vld [vmem:[%s1 + $0x120] sm:$0xf]
  %v199 = vld [vmem:[%s1 + $0x124] sm:$0xf]
  %v200 = vld [vmem:[%s1 + $0x128] sm:$0xf]
  %v201 = vld [vmem:[%s1 + $0x12c] sm:$0xf]
  %v202 = vld [vmem:[%s1 + $0x130] sm:$0xf]
  %v203 = vld [vmem:[%s1 + $0x134] sm:$0xf]
  %v204 = vld [vmem:[%s1 + $0x138] sm:$0xf]
  %v205 = vld [vmem:[%s1 + $0x13c] sm:$0xf]
  %v206 = vld [vmem:[%s1 + $0x140] sm:$0xf]
  %v207 = vld [vmem:[%s1 + $0x144] sm:$0xf]
  %v208 = vld [vmem:[%s1 + $0x148] sm:$0xf]
  %v209 = vld [vmem:[%s1 + $0x14c] sm:$0xf]
  %v210 = vld [vmem:[%s1 + $0x150] sm:$0xf]
  %v211 = vld [vmem:[%s1 + $0x154] sm:$0xf]
  %v212 = vld [vmem:[%s1 + $0x158] sm:$0xf]
  %v213 = vld [vmem:[%s1 + $0x15c] sm:$0xf]
  %v214 = vld [vmem:[%s1 + $0x160] sm:$0xf]
  %v215 = vld [vmem:[%s1 + $0x164] sm:$0xf]
  %v216 = vld [vmem:[%s1 + $0x168] sm:$0xf]
  %v217 = vld [vmem:[%s1 + $0x16c] sm:$0xf]
  %v218 = vld [vmem:[%s1 + $0x170] sm:$0xf]
  %v219 = vld [vmem:[%s1 + $0x174] sm:$0xf]
  %v220 = vld [vmem:[%s1 + $0x178] sm:$0xf]
  %v221 = vld [vmem:[%s1 + $0x17c] sm:$0xf]
  %v222 = vld [vmem:[%s1 + $0x180] sm:$0xf]
  %v223 = vld [vmem:[%s1 + $0x184] sm:$0xf]
  %v224 = vld [vmem:[%s1 + $0x188] sm:$0xf]
  %v225 = vld [vmem:[%s1 + $0x18c] sm:$0xf]
  %v226 = vld [vmem:[%s1 + $0x190] sm:$0xf]
  %v227 = vld [vmem:[%s1 + $0x194] sm:$0xf]
  %v228 = vld [vmem:[%s1 + $0x198] sm:$0xf]
  %v229 = vld [vmem:[%s1 + $0x19c] sm:$0xf]
  %v230 = vld [vmem:[%s1 + $0x1a0] sm:$0xf]
  %v231 = vld [vmem:[%s1 + $0x1a4] sm:$0xf]
  %v232 = vld [vmem:[%s1 + $0x1a8] sm:$0xf]
  %v233 = vld [vmem:[%s1 + $0x1ac] sm:$0xf]
  %v234 = vld [vmem:[%s1 + $0x1b0] sm:$0xf]
  %v235 = vld [vmem:[%s1 + $0x1b4] sm:$0xf]
  %v236 = vld [vmem:[%s1 + $0x1b8] sm:$0xf]
  %v237 = vld [vmem:[%s1 + $0x1bc] sm:$0xf]
  %v238 = vld [vmem:[%s1 + $0x1c0] sm:$0xf]
  %v239 = vld [vmem:[%s1 + $0x1c4] sm:$0xf]
  %v240 = vld [vmem:[%s1 + $0x1c8] sm:$0xf]
  %v241 = vld [vmem:[%s1 + $0x1cc] sm:$0xf]
  %v242 = vld [vmem:[%s1 + $0x1d0] sm:$0xf]
  %v243 = vld [vmem:[%s1 + $0x1d4] sm:$0xf]
  %v244 = vld [vmem:[%s1 + $0x1d8] sm:$0xf]
  %v245 = vld [vmem:[%s1 + $0x1dc] sm:$0xf]
  %v246 = vld [vmem:[%s1 + $0x1e0] sm:$0xf]
  %v247 = vld [vmem:[%s1 + $0x1e4] sm:$0xf]
  %v248 = vld [vmem:[%s1 + $0x1e8] sm:$0xf]
  %v249 = vld [vmem:[%s1 + $0x1ec] sm:$0xf]
  %v250 = vld [vmem:[%s1 + $0x1f0] sm:$0xf]
  %v251 = vld [vmem:[%s1 + $0x1f4] sm:$0xf]
  %v252 = vld [vmem:[%s1 + $0x1f8] sm:$0xf]
  %v253 = vld [vmem:[%s1 + $0x1fc] sm:$0xf]
  %v254 = vld [vmem:[%s2] sm:$0x1]
  %v256 = vperm.slane %v254, 0
  %v370 = vunpack.c.l.b16 %v14
  %v371 = vunpack.c.h.b16 %v14
  %v372 = vunpack.c.l.b16 %v15
  %v373 = vunpack.c.h.b16 %v15
  %v374 = vunpack.c.l.b16 %v16
  %v375 = vunpack.c.h.b16 %v16
  %v376 = vunpack.c.l.b16 %v17
  %v377 = vunpack.c.h.b16 %v17
  %v378 = vunpack.c.l.b16 %v18
  %v379 = vunpack.c.h.b16 %v18
  %v380 = vunpack.c.l.b16 %v19
  %v381 = vunpack.c.h.b16 %v19
  %v382 = vunpack.c.l.b16 %v20
  %v383 = vunpack.c.h.b16 %v20
  %v384 = vunpack.c.l.b16 %v21
  %v385 = vunpack.c.h.b16 %v21
  %v386 = vunpack.c.l.b16 %v22
  %v387 = vunpack.c.h.b16 %v22
  %v388 = vunpack.c.l.b16 %v23
  %v389 = vunpack.c.h.b16 %v23
  %v390 = vunpack.c.l.b16 %v24
  %v391 = vunpack.c.h.b16 %v24
  %v392 = vunpack.c.l.b16 %v25
  %v393 = vunpack.c.h.b16 %v25
  %v394 = vunpack.c.l.b16 %v26
  %v395 = vunpack.c.h.b16 %v26
  %v396 = vunpack.c.l.b16 %v27
  %v397 = vunpack.c.h.b16 %v27
  %v398 = vunpack.c.l.b16 %v28
  %v399 = vunpack.c.h.b16 %v28
  %v400 = vunpack.c.l.b16 %v29
  %v401 = vunpack.c.h.b16 %v29
  %v402 = vunpack.c.l.b16 %v30
  %v403 = vunpack.c.h.b16 %v30
  %v404 = vunpack.c.l.b16 %v31
  %v405 = vunpack.c.h.b16 %v31
  %v406 = vunpack.c.l.b16 %v32
  %v407 = vunpack.c.h.b16 %v32
  %v408 = vunpack.c.l.b16 %v33
  %v409 = vunpack.c.h.b16 %v33
  %v410 = vunpack.c.l.b16 %v34
  %v411 = vunpack.c.h.b16 %v34
  %v412 = vunpack.c.l.b16 %v35
  %v413 = vunpack.c.h.b16 %v35
  %v414 = vunpack.c.l.b16 %v36
  %v415 = vunpack.c.h.b16 %v36
  %v416 = vunpack.c.l.b16 %v37
  %v417 = vunpack.c.h.b16 %v37
  %v418 = vunpack.c.l.b16 %v38
  %v419 = vunpack.c.h.b16 %v38
  %v420 = vunpack.c.l.b16 %v39
  %v421 = vunpack.c.h.b16 %v39
  %v422 = vunpack.c.l.b16 %v40
  %v423 = vunpack.c.h.b16 %v40
  %v424 = vunpack.c.l.b16 %v41
  %v425 = vunpack.c.h.b16 %v41
  %v426 = vunpack.c.l.b16 %v42
  %v427 = vunpack.c.h.b16 %v42
  %v428 = vunpack.c.l.b16 %v43
  %v429 = vunpack.c.h.b16 %v43
  %v430 = vunpack.c.l.b16 %v44
  %v431 = vunpack.c.h.b16 %v44
  %v432 = vunpack.c.l.b16 %v45
  %v433 = vunpack.c.h.b16 %v45
  %v434 = vunpack.c.l.b16 %v46
  %v435 = vunpack.c.h.b16 %v46
  %v436 = vunpack.c.l.b16 %v47
  %v437 = vunpack.c.h.b16 %v47
  %v438 = vunpack.c.l.b16 %v48
  %v439 = vunpack.c.h.b16 %v48
  %v440 = vunpack.c.l.b16 %v49
  %v441 = vunpack.c.h.b16 %v49
  %v442 = vunpack.c.l.b16 %v50
  %v443 = vunpack.c.h.b16 %v50
  %v444 = vunpack.c.l.b16 %v51
  %v445 = vunpack.c.h.b16 %v51
  %v446 = vunpack.c.l.b16 %v52
  %v447 = vunpack.c.h.b16 %v52
  %v448 = vunpack.c.l.b16 %v53
  %v449 = vunpack.c.h.b16 %v53
  %v450 = vunpack.c.l.b16 %v54
  %v451 = vunpack.c.h.b16 %v54
  %v452 = vunpack.c.l.b16 %v55
  %v453 = vunpack.c.h.b16 %v55
  %v454 = vunpack.c.l.b16 %v56
  %v455 = vunpack.c.h.b16 %v56
  %v456 = vunpack.c.l.b16 %v57
  %v457 = vunpack.c.h.b16 %v57
  %v458 = vunpack.c.l.b16 %v58
  %v459 = vunpack.c.h.b16 %v58
  %v460 = vunpack.c.l.b16 %v59
  %v461 = vunpack.c.h.b16 %v59
  %v462 = vunpack.c.l.b16 %v60
  %v463 = vunpack.c.h.b16 %v60
  %v464 = vunpack.c.l.b16 %v61
  %v465 = vunpack.c.h.b16 %v61
  %v466 = vunpack.c.l.b16 %v62
  %v467 = vunpack.c.h.b16 %v62
  %v468 = vunpack.c.l.b16 %v63
  %v469 = vunpack.c.h.b16 %v63
  %v470 = vunpack.c.l.b16 %v64
  %v471 = vunpack.c.h.b16 %v64
  %v472 = vunpack.c.l.b16 %v65
  %v473 = vunpack.c.h.b16 %v65
  %v474 = vunpack.c.l.b16 %v66
  %v475 = vunpack.c.h.b16 %v66
  %v476 = vunpack.c.l.b16 %v67
  %v477 = vunpack.c.h.b16 %v67
  %v478 = vunpack.c.l.b16 %v68
  %v479 = vunpack.c.h.b16 %v68
  %v480 = vunpack.c.l.b16 %v69
  %v481 = vunpack.c.h.b16 %v69
  %v482 = vunpack.c.l.b16 %v70
  %v483 = vunpack.c.h.b16 %v70
  %v484 = vunpack.c.l.b16 %v71
  %v485 = vunpack.c.h.b16 %v71
  %v486 = vunpack.c.l.b16 %v72
  %v487 = vunpack.c.h.b16 %v72
  %v488 = vunpack.c.l.b16 %v73
  %v489 = vunpack.c.h.b16 %v73
  %v490 = vunpack.c.l.b16 %v74
  %v491 = vunpack.c.h.b16 %v74
  %v492 = vunpack.c.l.b16 %v75
  %v493 = vunpack.c.h.b16 %v75
  %v494 = vunpack.c.l.b16 %v76
  %v495 = vunpack.c.h.b16 %v76
  %v496 = vunpack.c.l.b16 %v77
  %v497 = vunpack.c.h.b16 %v77
  %v498 = vunpack.c.l.b16 %v78
  %v499 = vunpack.c.h.b16 %v78
  %v500 = vunpack.c.l.b16 %v79
  %v501 = vunpack.c.h.b16 %v79
  %v502 = vunpack.c.l.b16 %v80
  %v503 = vunpack.c.h.b16 %v80
  %v504 = vunpack.c.l.b16 %v81
  %v505 = vunpack.c.h.b16 %v81
  %v506 = vunpack.c.l.b16 %v82
  %v507 = vunpack.c.h.b16 %v82
  %v508 = vunpack.c.l.b16 %v83
  %v509 = vunpack.c.h.b16 %v83
  %v510 = vunpack.c.l.b16 %v84
  %v511 = vunpack.c.h.b16 %v84
  %v512 = vunpack.c.l.b16 %v85
  %v513 = vunpack.c.h.b16 %v85
  %v514 = vunpack.c.l.b16 %v86
  %v515 = vunpack.c.h.b16 %v86
  %v516 = vunpack.c.l.b16 %v87
  %v517 = vunpack.c.h.b16 %v87
  %v518 = vunpack.c.l.b16 %v88
  %v519 = vunpack.c.h.b16 %v88
  %v520 = vunpack.c.l.b16 %v89
  %v521 = vunpack.c.h.b16 %v89
  %v522 = vunpack.c.l.b16 %v90
  %v523 = vunpack.c.h.b16 %v90
  %v524 = vunpack.c.l.b16 %v91
  %v525 = vunpack.c.h.b16 %v91
  %v526 = vunpack.c.l.b16 %v92
  %v527 = vunpack.c.h.b16 %v92
  %v528 = vunpack.c.l.b16 %v93
  %v529 = vunpack.c.h.b16 %v93
  %v530 = vunpack.c.l.b16 %v94
  %v531 = vunpack.c.h.b16 %v94
  %v532 = vunpack.c.l.b16 %v95
  %v533 = vunpack.c.h.b16 %v95
  %v534 = vunpack.c.l.b16 %v96
  %v535 = vunpack.c.h.b16 %v96
  %v536 = vunpack.c.l.b16 %v97
  %v537 = vunpack.c.h.b16 %v97
  %v538 = vunpack.c.l.b16 %v98
  %v539 = vunpack.c.h.b16 %v98
  %v540 = vunpack.c.l.b16 %v99
  %v541 = vunpack.c.h.b16 %v99
  %v542 = vunpack.c.l.b16 %v100
  %v543 = vunpack.c.h.b16 %v100
  %v544 = vunpack.c.l.b16 %v101
  %v545 = vunpack.c.h.b16 %v101
  %v546 = vunpack.c.l.b16 %v102
  %v547 = vunpack.c.h.b16 %v102
  %v548 = vunpack.c.l.b16 %v103
  %v549 = vunpack.c.h.b16 %v103
  %v550 = vunpack.c.l.b16 %v104
  %v551 = vunpack.c.h.b16 %v104
  %v552 = vunpack.c.l.b16 %v105
  %v553 = vunpack.c.h.b16 %v105
  %v554 = vunpack.c.l.b16 %v106
  %v555 = vunpack.c.h.b16 %v106
  %v556 = vunpack.c.l.b16 %v107
  %v557 = vunpack.c.h.b16 %v107
  %v558 = vunpack.c.l.b16 %v108
  %v559 = vunpack.c.h.b16 %v108
  %v560 = vunpack.c.l.b16 %v109
  %v561 = vunpack.c.h.b16 %v109
  %v562 = vunpack.c.l.b16 %v110
  %v563 = vunpack.c.h.b16 %v110
  %v564 = vunpack.c.l.b16 %v111
  %v565 = vunpack.c.h.b16 %v111
  %v566 = vunpack.c.l.b16 %v112
  %v567 = vunpack.c.h.b16 %v112
  %v568 = vunpack.c.l.b16 %v113
  %v569 = vunpack.c.h.b16 %v113
  %v570 = vunpack.c.l.b16 %v114
  %v571 = vunpack.c.h.b16 %v114
  %v572 = vunpack.c.l.b16 %v115
  %v573 = vunpack.c.h.b16 %v115
  %v574 = vunpack.c.l.b16 %v116
  %v575 = vunpack.c.h.b16 %v116
  %v576 = vunpack.c.l.b16 %v117
  %v577 = vunpack.c.h.b16 %v117
  %v578 = vunpack.c.l.b16 %v118
  %v579 = vunpack.c.h.b16 %v118
  %v580 = vunpack.c.l.b16 %v119
  %v581 = vunpack.c.h.b16 %v119
  %v582 = vunpack.c.l.b16 %v120
  %v583 = vunpack.c.h.b16 %v120
  %v584 = vunpack.c.l.b16 %v121
  %v585 = vunpack.c.h.b16 %v121
  %v586 = vunpack.c.l.b16 %v122
  %v587 = vunpack.c.h.b16 %v122
  %v588 = vunpack.c.l.b16 %v123
  %v589 = vunpack.c.h.b16 %v123
  %v590 = vunpack.c.l.b16 %v124
  %v591 = vunpack.c.h.b16 %v124
  %v592 = vunpack.c.l.b16 %v125
  %v593 = vunpack.c.h.b16 %v125
  %v594 = vpack.c.b16 %v378, %v370
  %v595 = vpack.c.b16 %v379, %v371
  %v596 = vpack.c.b16 %v380, %v372
  %v597 = vpack.c.b16 %v381, %v373
  %v598 = vpack.c.b16 %v382, %v374
  %v599 = vpack.c.b16 %v383, %v375
  %v600 = vpack.c.b16 %v384, %v376
  %v601 = vpack.c.b16 %v385, %v377
  %v602 = vpack.c.b16 %v394, %v386
  %v603 = vpack.c.b16 %v395, %v387
  %v604 = vpack.c.b16 %v396, %v388
  %v605 = vpack.c.b16 %v397, %v389
  %v606 = vpack.c.b16 %v398, %v390
  %v607 = vpack.c.b16 %v399, %v391
  %v608 = vpack.c.b16 %v400, %v392
  %v609 = vpack.c.b16 %v401, %v393
  %v610 = vpack.c.b16 %v410, %v402
  %v611 = vpack.c.b16 %v411, %v403
  %v612 = vpack.c.b16 %v412, %v404
  %v613 = vpack.c.b16 %v413, %v405
  %v614 = vpack.c.b16 %v414, %v406
  %v615 = vpack.c.b16 %v415, %v407
  %v616 = vpack.c.b16 %v416, %v408
  %v617 = vpack.c.b16 %v417, %v409
  %v618 = vpack.c.b16 %v426, %v418
  %v619 = vpack.c.b16 %v427, %v419
  %v620 = vpack.c.b16 %v428, %v420
  %v621 = vpack.c.b16 %v429, %v421
  %v622 = vpack.c.b16 %v430, %v422
  %v623 = vpack.c.b16 %v431, %v423
  %v624 = vpack.c.b16 %v432, %v424
  %v625 = vpack.c.b16 %v433, %v425
  %v626 = vpack.c.b16 %v442, %v434
  %v627 = vpack.c.b16 %v443, %v435
  %v628 = vpack.c.b16 %v444, %v436
  %v629 = vpack.c.b16 %v445, %v437
  %v630 = vpack.c.b16 %v446, %v438
  %v631 = vpack.c.b16 %v447, %v439
  %v632 = vpack.c.b16 %v448, %v440
  %v633 = vpack.c.b16 %v449, %v441
  %v634 = vpack.c.b16 %v458, %v450
  %v635 = vpack.c.b16 %v459, %v451
  %v636 = vpack.c.b16 %v460, %v452
  %v637 = vpack.c.b16 %v461, %v453
  %v638 = vpack.c.b16 %v462, %v454
  %v639 = vpack.c.b16 %v463, %v455
  %v640 = vpack.c.b16 %v464, %v456
  %v641 = vpack.c.b16 %v465, %v457
  %v642 = vpack.c.b16 %v474, %v466
  %v643 = vpack.c.b16 %v475, %v467
  %v644 = vpack.c.b16 %v476, %v468
  %v645 = vpack.c.b16 %v477, %v469
  %v646 = vpack.c.b16 %v478, %v470
  %v647 = vpack.c.b16 %v479, %v471
  %v648 = vpack.c.b16 %v480, %v472
  %v649 = vpack.c.b16 %v481, %v473
  %v650 = vpack.c.b16 %v490, %v482
  %v651 = vpack.c.b16 %v491, %v483
  %v652 = vpack.c.b16 %v492, %v484
  %v653 = vpack.c.b16 %v493, %v485
  %v654 = vpack.c.b16 %v494, %v486
  %v655 = vpack.c.b16 %v495, %v487
  %v656 = vpack.c.b16 %v496, %v488
  %v657 = vpack.c.b16 %v497, %v489
  %v658 = vpack.c.b16 %v506, %v498
  %v659 = vpack.c.b16 %v507, %v499
  %v660 = vpack.c.b16 %v508, %v500
  %v661 = vpack.c.b16 %v509, %v501
  %v662 = vpack.c.b16 %v510, %v502
  %v663 = vpack.c.b16 %v511, %v503
  %v664 = vpack.c.b16 %v512, %v504
  %v665 = vpack.c.b16 %v513, %v505
  %v666 = vpack.c.b16 %v522, %v514
  %v667 = vpack.c.b16 %v523, %v515
  %v668 = vpack.c.b16 %v524, %v516
  %v669 = vpack.c.b16 %v525, %v517
  %v670 = vpack.c.b16 %v526, %v518
  %v671 = vpack.c.b16 %v527, %v519
  %v672 = vpack.c.b16 %v528, %v520
  %v673 = vpack.c.b16 %v529, %v521
  %v674 = vpack.c.b16 %v538, %v530
  %v675 = vpack.c.b16 %v539, %v531
  %v676 = vpack.c.b16 %v540, %v532
  %v677 = vpack.c.b16 %v541, %v533
  %v678 = vpack.c.b16 %v542, %v534
  %v679 = vpack.c.b16 %v543, %v535
  %v680 = vpack.c.b16 %v544, %v536
  %v681 = vpack.c.b16 %v545, %v537
  %v682 = vpack.c.b16 %v554, %v546
  %v683 = vpack.c.b16 %v555, %v547
  %v684 = vpack.c.b16 %v556, %v548
  %v685 = vpack.c.b16 %v557, %v549
  %v686 = vpack.c.b16 %v558, %v550
  %v687 = vpack.c.b16 %v559, %v551
  %v688 = vpack.c.b16 %v560, %v552
  %v689 = vpack.c.b16 %v561, %v553
  %v690 = vpack.c.b16 %v570, %v562
  %v691 = vpack.c.b16 %v571, %v563
  %v692 = vpack.c.b16 %v572, %v564
  %v693 = vpack.c.b16 %v573, %v565
  %v694 = vpack.c.b16 %v574, %v566
  %v695 = vpack.c.b16 %v575, %v567
  %v696 = vpack.c.b16 %v576, %v568
  %v697 = vpack.c.b16 %v577, %v569
  %v698 = vpack.c.b16 %v586, %v578
  %v699 = vpack.c.b16 %v587, %v579
  %v700 = vpack.c.b16 %v588, %v580
  %v701 = vpack.c.b16 %v589, %v581
  %v702 = vpack.c.b16 %v590, %v582
  %v703 = vpack.c.b16 %v591, %v583
  %v704 = vpack.c.b16 %v592, %v584
  %v705 = vpack.c.b16 %v593, %v585
  %v946 = vunpack.c.l.b16 %v126
  %v947 = vunpack.c.l.b16 %v127
  %v948 = vunpack.c.l.b16 %v128
  %v949 = vunpack.c.l.b16 %v129
  %v950 = vunpack.c.l.b16 %v130
  %v951 = vunpack.c.l.b16 %v131
  %v952 = vunpack.c.l.b16 %v132
  %v953 = vunpack.c.l.b16 %v133
  %v954 = vunpack.c.l.b16 %v134
  %v955 = vunpack.c.l.b16 %v135
  %v956 = vunpack.c.l.b16 %v136
  %v957 = vunpack.c.l.b16 %v137
  %v958 = vunpack.c.l.b16 %v138
  %v959 = vunpack.c.l.b16 %v139
  %v960 = vunpack.c.l.b16 %v140
  %v961 = vunpack.c.l.b16 %v141
  %v962 = vunpack.c.l.b16 %v142
  %v963 = vunpack.c.l.b16 %v143
  %v964 = vunpack.c.l.b16 %v144
  %v965 = vunpack.c.l.b16 %v145
  %v966 = vunpack.c.l.b16 %v146
  %v967 = vunpack.c.l.b16 %v147
  %v968 = vunpack.c.l.b16 %v148
  %v969 = vunpack.c.l.b16 %v149
  %v970 = vunpack.c.l.b16 %v150
  %v971 = vunpack.c.l.b16 %v151
  %v972 = vunpack.c.l.b16 %v152
  %v973 = vunpack.c.l.b16 %v153
  %v974 = vunpack.c.l.b16 %v154
  %v975 = vunpack.c.l.b16 %v155
  %v976 = vunpack.c.l.b16 %v156
  %v977 = vunpack.c.l.b16 %v157
  %v978 = vunpack.c.l.b16 %v158
  %v979 = vunpack.c.l.b16 %v159
  %v980 = vunpack.c.l.b16 %v160
  %v981 = vunpack.c.l.b16 %v161
  %v982 = vunpack.c.l.b16 %v162
  %v983 = vunpack.c.l.b16 %v163
  %v984 = vunpack.c.l.b16 %v164
  %v985 = vunpack.c.l.b16 %v165
  %v986 = vunpack.c.l.b16 %v166
  %v987 = vunpack.c.l.b16 %v167
  %v988 = vunpack.c.l.b16 %v168
  %v989 = vunpack.c.l.b16 %v169
  %v990 = vunpack.c.l.b16 %v170
  %v991 = vunpack.c.l.b16 %v171
  %v992 = vunpack.c.l.b16 %v172
  %v993 = vunpack.c.l.b16 %v173
  %v994 = vunpack.c.l.b16 %v174
  %v995 = vunpack.c.l.b16 %v175
  %v996 = vunpack.c.l.b16 %v176
  %v997 = vunpack.c.l.b16 %v177
  %v998 = vunpack.c.l.b16 %v178
  %v999 = vunpack.c.l.b16 %v179
  %v1000 = vunpack.c.l.b16 %v180
  %v1001 = vunpack.c.l.b16 %v181
  %v1002 = vunpack.c.l.b16 %v182
  %v1003 = vunpack.c.l.b16 %v183
  %v1004 = vunpack.c.l.b16 %v184
  %v1005 = vunpack.c.l.b16 %v185
  %v1006 = vunpack.c.l.b16 %v186
  %v1007 = vunpack.c.l.b16 %v187
  %v1008 = vunpack.c.l.b16 %v188
  %v1009 = vunpack.c.l.b16 %v189
  %v1010 = vunpack.c.l.b16 %v190
  %v1011 = vunpack.c.l.b16 %v191
  %v1012 = vunpack.c.l.b16 %v192
  %v1013 = vunpack.c.l.b16 %v193
  %v1014 = vunpack.c.l.b16 %v194
  %v1015 = vunpack.c.l.b16 %v195
  %v1016 = vunpack.c.l.b16 %v196
  %v1017 = vunpack.c.l.b16 %v197
  %v1018 = vunpack.c.l.b16 %v198
  %v1019 = vunpack.c.l.b16 %v199
  %v1020 = vunpack.c.l.b16 %v200
  %v1021 = vunpack.c.l.b16 %v201
  %v1022 = vunpack.c.l.b16 %v202
  %v1023 = vunpack.c.l.b16 %v203
  %v1024 = vunpack.c.l.b16 %v204
  %v1025 = vunpack.c.l.b16 %v205
  %v1026 = vunpack.c.l.b16 %v206
  %v1027 = vunpack.c.l.b16 %v207
  %v1028 = vunpack.c.l.b16 %v208
  %v1029 = vunpack.c.l.b16 %v209
  %v1030 = vunpack.c.l.b16 %v210
  %v1031 = vunpack.c.l.b16 %v211
  %v1032 = vunpack.c.l.b16 %v212
  %v1033 = vunpack.c.l.b16 %v213
  %v1034 = vunpack.c.l.b16 %v214
  %v1035 = vunpack.c.l.b16 %v215
  %v1036 = vunpack.c.l.b16 %v216
  %v1037 = vunpack.c.l.b16 %v217
  %v1038 = vunpack.c.l.b16 %v218
  %v1039 = vunpack.c.l.b16 %v219
  %v1040 = vunpack.c.l.b16 %v220
  %v1041 = vunpack.c.l.b16 %v221
  %v1042 = vunpack.c.l.b16 %v222
  %v1043 = vunpack.c.l.b16 %v223
  %v1044 = vunpack.c.l.b16 %v224
  %v1045 = vunpack.c.l.b16 %v225
  %v1046 = vunpack.c.l.b16 %v226
  %v1047 = vunpack.c.l.b16 %v227
  %v1048 = vunpack.c.l.b16 %v228
  %v1049 = vunpack.c.l.b16 %v229
  %v1050 = vunpack.c.l.b16 %v230
  %v1051 = vunpack.c.l.b16 %v231
  %v1052 = vunpack.c.l.b16 %v232
  %v1053 = vunpack.c.l.b16 %v233
  %v1054 = vunpack.c.l.b16 %v234
  %v1055 = vunpack.c.l.b16 %v235
  %v1056 = vunpack.c.l.b16 %v236
  %v1057 = vunpack.c.l.b16 %v237
  %v1058 = vunpack.c.l.b16 %v238
  %v1059 = vunpack.c.l.b16 %v239
  %v1060 = vunpack.c.l.b16 %v240
  %v1061 = vunpack.c.l.b16 %v241
  %v1062 = vunpack.c.l.b16 %v242
  %v1063 = vunpack.c.l.b16 %v243
  %v1064 = vunpack.c.l.b16 %v244
  %v1065 = vunpack.c.l.b16 %v245
  %v1066 = vunpack.c.l.b16 %v246
  %v1067 = vunpack.c.l.b16 %v247
  %v1068 = vunpack.c.l.b16 %v248
  %v1069 = vunpack.c.l.b16 %v249
  %v1070 = vunpack.c.l.b16 %v250
  %v1071 = vunpack.c.l.b16 %v251
  %v1072 = vunpack.c.l.b16 %v252
  %v1073 = vunpack.c.l.b16 %v253
  %v1074 = vpack.c.b16 %v947, %v946
  %v1075 = vpack.c.b16 %v949, %v948
  %v1076 = vpack.c.b16 %v951, %v950
  %v1077 = vpack.c.b16 %v953, %v952
  %v1078 = vpack.c.b16 %v955, %v954
  %v1079 = vpack.c.b16 %v957, %v956
  %v1080 = vpack.c.b16 %v959, %v958
  %v1081 = vpack.c.b16 %v961, %v960
  %v1082 = vpack.c.b16 %v963, %v962
  %v1083 = vpack.c.b16 %v965, %v964
  %v1084 = vpack.c.b16 %v967, %v966
  %v1085 = vpack.c.b16 %v969, %v968
  %v1086 = vpack.c.b16 %v971, %v970
  %v1087 = vpack.c.b16 %v973, %v972
  %v1088 = vpack.c.b16 %v975, %v974
  %v1089 = vpack.c.b16 %v977, %v976
  %v1090 = vpack.c.b16 %v979, %v978
  %v1091 = vpack.c.b16 %v981, %v980
  %v1092 = vpack.c.b16 %v983, %v982
  %v1093 = vpack.c.b16 %v985, %v984
  %v1094 = vpack.c.b16 %v987, %v986
  %v1095 = vpack.c.b16 %v989, %v988
  %v1096 = vpack.c.b16 %v991, %v990
  %v1097 = vpack.c.b16 %v993, %v992
  %v1098 = vpack.c.b16 %v995, %v994
  %v1099 = vpack.c.b16 %v997, %v996
  %v1100 = vpack.c.b16 %v999, %v998
  %v1101 = vpack.c.b16 %v1001, %v1000
  %v1102 = vpack.c.b16 %v1003, %v1002
  %v1103 = vpack.c.b16 %v1005, %v1004
  %v1104 = vpack.c.b16 %v1007, %v1006
  %v1105 = vpack.c.b16 %v1009, %v1008
  %v1106 = vpack.c.b16 %v1011, %v1010
  %v1107 = vpack.c.b16 %v1013, %v1012
  %v1108 = vpack.c.b16 %v1015, %v1014
  %v1109 = vpack.c.b16 %v1017, %v1016
  %v1110 = vpack.c.b16 %v1019, %v1018
  %v1111 = vpack.c.b16 %v1021, %v1020
  %v1112 = vpack.c.b16 %v1023, %v1022
  %v1113 = vpack.c.b16 %v1025, %v1024
  %v1114 = vpack.c.b16 %v1027, %v1026
  %v1115 = vpack.c.b16 %v1029, %v1028
  %v1116 = vpack.c.b16 %v1031, %v1030
  %v1117 = vpack.c.b16 %v1033, %v1032
  %v1118 = vpack.c.b16 %v1035, %v1034
  %v1119 = vpack.c.b16 %v1037, %v1036
  %v1120 = vpack.c.b16 %v1039, %v1038
  %v1121 = vpack.c.b16 %v1041, %v1040
  %v1122 = vpack.c.b16 %v1043, %v1042
  %v1123 = vpack.c.b16 %v1045, %v1044
  %v1124 = vpack.c.b16 %v1047, %v1046
  %v1125 = vpack.c.b16 %v1049, %v1048
  %v1126 = vpack.c.b16 %v1051, %v1050
  %v1127 = vpack.c.b16 %v1053, %v1052
  %v1128 = vpack.c.b16 %v1055, %v1054
  %v1129 = vpack.c.b16 %v1057, %v1056
  %v1130 = vpack.c.b16 %v1059, %v1058
  %v1131 = vpack.c.b16 %v1061, %v1060
  %v1132 = vpack.c.b16 %v1063, %v1062
  %v1133 = vpack.c.b16 %v1065, %v1064
  %v1134 = vpack.c.b16 %v1067, %v1066
  %v1135 = vpack.c.b16 %v1069, %v1068
  %v1136 = vpack.c.b16 %v1071, %v1070
  %v1137 = vpack.c.b16 %v1073, %v1072
  %1202 = vmatpush.bf16.msra.mxu0 %v1081
  %1203 = vmatpush.bf16.msra.mxu0 %v1080
  %1204 = vmatpush.bf16.msra.mxu0 %v1079
  %1205 = vmatpush.bf16.msra.mxu0 %v1078
  %1206 = vmatpush.bf16.msra.mxu0 %v1077
  %1207 = vmatpush.bf16.msra.mxu0 %v1076
  %1208 = vmatpush.bf16.msra.mxu0 %v1075
  %1209 = vmatpush.bf16.msra.mxu0 %v1074
  %1210 = vmatmul.bf16.gmra.mxu0 %v594
  %v1211 = vpop.f32.mrf.mxu0
  %v1212 = vadd.f32 %v256, %v1211
  %v1213 = vpop.f32.mrf.mxu0
  %v1214 = vadd.f32 %v256, %v1213
  %1215 = vmatmul.bf16.gmra.mxu0 %v602
  %v1216 = vpop.f32.mrf.mxu0
  %v1217 = vadd.f32 %v256, %v1216
  %v1218 = vpop.f32.mrf.mxu0
  %v1219 = vadd.f32 %v256, %v1218
  %1220 = vmatmul.bf16.gmra.mxu0 %v610
  %v1221 = vpop.f32.mrf.mxu0
  %v1222 = vadd.f32 %v256, %v1221
  %v1223 = vpop.f32.mrf.mxu0
  %v1224 = vadd.f32 %v256, %v1223
  %1225 = vmatmul.bf16.gmra.mxu0 %v618
  %v1226 = vpop.f32.mrf.mxu0
  %v1227 = vadd.f32 %v256, %v1226
  %v1228 = vpop.f32.mrf.mxu0
  %v1229 = vadd.f32 %v256, %v1228
  %1230 = vmatmul.bf16.gmra.mxu0 %v626
  %v1231 = vpop.f32.mrf.mxu0
  %v1232 = vadd.f32 %v256, %v1231
  %v1233 = vpop.f32.mrf.mxu0
  %v1234 = vadd.f32 %v256, %v1233
  %1235 = vmatmul.bf16.gmra.mxu0 %v634
  %v1236 = vpop.f32.mrf.mxu0
  %v1237 = vadd.f32 %v256, %v1236
  %v1238 = vpop.f32.mrf.mxu0
  %v1239 = vadd.f32 %v256, %v1238
  %1240 = vmatmul.bf16.gmra.mxu0 %v642
  %v1241 = vpop.f32.mrf.mxu0
  %v1242 = vadd.f32 %v256, %v1241
  %v1243 = vpop.f32.mrf.mxu0
  %v1244 = vadd.f32 %v256, %v1243
  %1245 = vmatmul.bf16.gmra.mxu0 %v650
  %v1246 = vpop.f32.mrf.mxu0
  %v1247 = vadd.f32 %v256, %v1246
  %v1248 = vpop.f32.mrf.mxu0
  %v1249 = vadd.f32 %v256, %v1248
  %1250 = vmatmul.bf16.gmra.mxu0 %v658
  %v1251 = vpop.f32.mrf.mxu0
  %v1252 = vadd.f32 %v256, %v1251
  %v1253 = vpop.f32.mrf.mxu0
  %v1254 = vadd.f32 %v256, %v1253
  %1255 = vmatmul.bf16.gmra.mxu0 %v666
  %v1256 = vpop.f32.mrf.mxu0
  %v1257 = vadd.f32 %v256, %v1256
  %v1258 = vpop.f32.mrf.mxu0
  %v1259 = vadd.f32 %v256, %v1258
  %1260 = vmatmul.bf16.gmra.mxu0 %v674
  %v1261 = vpop.f32.mrf.mxu0
  %v1262 = vadd.f32 %v256, %v1261
  %v1263 = vpop.f32.mrf.mxu0
  %v1264 = vadd.f32 %v256, %v1263
  %1265 = vmatmul.bf16.gmra.mxu0 %v682
  %v1266 = vpop.f32.mrf.mxu0
  %v1267 = vadd.f32 %v256, %v1266
  %v1268 = vpop.f32.mrf.mxu0
  %v1269 = vadd.f32 %v256, %v1268
  %1270 = vmatmul.bf16.gmra.mxu0 %v690
  %v1271 = vpop.f32.mrf.mxu0
  %v1272 = vadd.f32 %v256, %v1271
  %v1273 = vpop.f32.mrf.mxu0
  %v1274 = vadd.f32 %v256, %v1273
  %1275 = vmatmul.bf16.gmra.mxu0 %v698
  %v1276 = vpop.f32.mrf.mxu0
  %v1277 = vadd.f32 %v256, %v1276
  %v1278 = vpop.f32.mrf.mxu0
  %v1279 = vadd.f32 %v256, %v1278
  %1280 = vdwg.mxu0
  %1281 = vmatpush.bf16.msra.mxu0 %v1089
  %1282 = vmatpush.bf16.msra.mxu0 %v1088
  %1283 = vmatpush.bf16.msra.mxu0 %v1087
  %1284 = vmatpush.bf16.msra.mxu0 %v1086
  %1285 = vmatpush.bf16.msra.mxu0 %v1085
  %1286 = vmatpush.bf16.msra.mxu0 %v1084
  %1287 = vmatpush.bf16.msra.mxu0 %v1083
  %1288 = vmatpush.bf16.msra.mxu0 %v1082
  %1289 = vmatmul.bf16.gmra.mxu0 %v595
  %v1290 = vpop.f32.mrf.mxu0
  %v1291 = vadd.f32 %v1212, %v1290
  %v1292 = vpop.f32.mrf.mxu0
  %v1293 = vadd.f32 %v1214, %v1292
  %1294 = vmatmul.bf16.gmra.mxu0 %v603
  %v1295 = vpop.f32.mrf.mxu0
  %v1296 = vadd.f32 %v1217, %v1295
  %v1297 = vpop.f32.mrf.mxu0
  %v1298 = vadd.f32 %v1219, %v1297
  %1299 = vmatmul.bf16.gmra.mxu0 %v611
  %v1300 = vpop.f32.mrf.mxu0
  %v1301 = vadd.f32 %v1222, %v1300
  %v1302 = vpop.f32.mrf.mxu0
  %v1303 = vadd.f32 %v1224, %v1302
  %1304 = vmatmul.bf16.gmra.mxu0 %v619
  %v1305 = vpop.f32.mrf.mxu0
  %v1306 = vadd.f32 %v1227, %v1305
  %v1307 = vpop.f32.mrf.mxu0
  %v1308 = vadd.f32 %v1229, %v1307
  %1309 = vmatmul.bf16.gmra.mxu0 %v627
  %v1310 = vpop.f32.mrf.mxu0
  %v1311 = vadd.f32 %v1232, %v1310
  %v1312 = vpop.f32.mrf.mxu0
  %v1313 = vadd.f32 %v1234, %v1312
  %1314 = vmatmul.bf16.gmra.mxu0 %v635
  %v1315 = vpop.f32.mrf.mxu0
  %v1316 = vadd.f32 %v1237, %v1315
  %v1317 = vpop.f32.mrf.mxu0
  %v1318 = vadd.f32 %v1239, %v1317
  %1319 = vmatmul.bf16.gmra.mxu0 %v643
  %v1320 = vpop.f32.mrf.mxu0
  %v1321 = vadd.f32 %v1242, %v1320
  %v1322 = vpop.f32.mrf.mxu0
  %v1323 = vadd.f32 %v1244, %v1322
  %1324 = vmatmul.bf16.gmra.mxu0 %v651
  %v1325 = vpop.f32.mrf.mxu0
  %v1326 = vadd.f32 %v1247, %v1325
  %v1327 = vpop.f32.mrf.mxu0
  %v1328 = vadd.f32 %v1249, %v1327
  %1329 = vmatmul.bf16.gmra.mxu0 %v659
  %v1330 = vpop.f32.mrf.mxu0
  %v1331 = vadd.f32 %v1252, %v1330
  %v1332 = vpop.f32.mrf.mxu0
  %v1333 = vadd.f32 %v1254, %v1332
  %1334 = vmatmul.bf16.gmra.mxu0 %v667
  %v1335 = vpop.f32.mrf.mxu0
  %v1336 = vadd.f32 %v1257, %v1335
  %v1337 = vpop.f32.mrf.mxu0
  %v1338 = vadd.f32 %v1259, %v1337
  %1339 = vmatmul.bf16.gmra.mxu0 %v675
  %v1340 = vpop.f32.mrf.mxu0
  %v1341 = vadd.f32 %v1262, %v1340
  %v1342 = vpop.f32.mrf.mxu0
  %v1343 = vadd.f32 %v1264, %v1342
  %1344 = vmatmul.bf16.gmra.mxu0 %v683
  %v1345 = vpop.f32.mrf.mxu0
  %v1346 = vadd.f32 %v1267, %v1345
  %v1347 = vpop.f32.mrf.mxu0
  %v1348 = vadd.f32 %v1269, %v1347
  %1349 = vmatmul.bf16.gmra.mxu0 %v691
  %v1350 = vpop.f32.mrf.mxu0
  %v1351 = vadd.f32 %v1272, %v1350
  %v1352 = vpop.f32.mrf.mxu0
  %v1353 = vadd.f32 %v1274, %v1352
  %1354 = vmatmul.bf16.gmra.mxu0 %v699
  %v1355 = vpop.f32.mrf.mxu0
  %v1356 = vadd.f32 %v1277, %v1355
  %v1357 = vpop.f32.mrf.mxu0
  %v1358 = vadd.f32 %v1279, %v1357
  %1359 = vdwg.mxu0
  %1360 = vmatpush.bf16.msra.mxu0 %v1097
  %1361 = vmatpush.bf16.msra.mxu0 %v1096
  %1362 = vmatpush.bf16.msra.mxu0 %v1095
  %1363 = vmatpush.bf16.msra.mxu0 %v1094
  %1364 = vmatpush.bf16.msra.mxu0 %v1093
  %1365 = vmatpush.bf16.msra.mxu0 %v1092
  %1366 = vmatpush.bf16.msra.mxu0 %v1091
  %1367 = vmatpush.bf16.msra.mxu0 %v1090
  %1368 = vmatmul.bf16.gmra.mxu0 %v596
  %v1369 = vpop.f32.mrf.mxu0
  %v1370 = vadd.f32 %v1291, %v1369
  %v1371 = vpop.f32.mrf.mxu0
  %v1372 = vadd.f32 %v1293, %v1371
  %1373 = vmatmul.bf16.gmra.mxu0 %v604
  %v1374 = vpop.f32.mrf.mxu0
  %v1375 = vadd.f32 %v1296, %v1374
  %v1376 = vpop.f32.mrf.mxu0
  %v1377 = vadd.f32 %v1298, %v1376
  %1378 = vmatmul.bf16.gmra.mxu0 %v612
  %v1379 = vpop.f32.mrf.mxu0
  %v1380 = vadd.f32 %v1301, %v1379
  %v1381 = vpop.f32.mrf.mxu0
  %v1382 = vadd.f32 %v1303, %v1381
  %1383 = vmatmul.bf16.gmra.mxu0 %v620
  %v1384 = vpop.f32.mrf.mxu0
  %v1385 = vadd.f32 %v1306, %v1384
  %v1386 = vpop.f32.mrf.mxu0
  %v1387 = vadd.f32 %v1308, %v1386
  %1388 = vmatmul.bf16.gmra.mxu0 %v628
  %v1389 = vpop.f32.mrf.mxu0
  %v1390 = vadd.f32 %v1311, %v1389
  %v1391 = vpop.f32.mrf.mxu0
  %v1392 = vadd.f32 %v1313, %v1391
  %1393 = vmatmul.bf16.gmra.mxu0 %v636
  %v1394 = vpop.f32.mrf.mxu0
  %v1395 = vadd.f32 %v1316, %v1394
  %v1396 = vpop.f32.mrf.mxu0
  %v1397 = vadd.f32 %v1318, %v1396
  %1398 = vmatmul.bf16.gmra.mxu0 %v644
  %v1399 = vpop.f32.mrf.mxu0
  %v1400 = vadd.f32 %v1321, %v1399
  %v1401 = vpop.f32.mrf.mxu0
  %v1402 = vadd.f32 %v1323, %v1401
  %1403 = vmatmul.bf16.gmra.mxu0 %v652
  %v1404 = vpop.f32.mrf.mxu0
  %v1405 = vadd.f32 %v1326, %v1404
  %v1406 = vpop.f32.mrf.mxu0
  %v1407 = vadd.f32 %v1328, %v1406
  %1408 = vmatmul.bf16.gmra.mxu0 %v660
  %v1409 = vpop.f32.mrf.mxu0
  %v1410 = vadd.f32 %v1331, %v1409
  %v1411 = vpop.f32.mrf.mxu0
  %v1412 = vadd.f32 %v1333, %v1411
  %1413 = vmatmul.bf16.gmra.mxu0 %v668
  %v1414 = vpop.f32.mrf.mxu0
  %v1415 = vadd.f32 %v1336, %v1414
  %v1416 = vpop.f32.mrf.mxu0
  %v1417 = vadd.f32 %v1338, %v1416
  %1418 = vmatmul.bf16.gmra.mxu0 %v676
  %v1419 = vpop.f32.mrf.mxu0
  %v1420 = vadd.f32 %v1341, %v1419
  %v1421 = vpop.f32.mrf.mxu0
  %v1422 = vadd.f32 %v1343, %v1421
  %1423 = vmatmul.bf16.gmra.mxu0 %v684
  %v1424 = vpop.f32.mrf.mxu0
  %v1425 = vadd.f32 %v1346, %v1424
  %v1426 = vpop.f32.mrf.mxu0
  %v1427 = vadd.f32 %v1348, %v1426
  %1428 = vmatmul.bf16.gmra.mxu0 %v692
  %v1429 = vpop.f32.mrf.mxu0
  %v1430 = vadd.f32 %v1351, %v1429
  %v1431 = vpop.f32.mrf.mxu0
  %v1432 = vadd.f32 %v1353, %v1431
  %1433 = vmatmul.bf16.gmra.mxu0 %v700
  %v1434 = vpop.f32.mrf.mxu0
  %v1435 = vadd.f32 %v1356, %v1434
  %v1436 = vpop.f32.mrf.mxu0
  %v1437 = vadd.f32 %v1358, %v1436
  %1438 = vdwg.mxu0
  %1439 = vmatpush.bf16.msra.mxu0 %v1105
  %1440 = vmatpush.bf16.msra.mxu0 %v1104
  %1441 = vmatpush.bf16.msra.mxu0 %v1103
  %1442 = vmatpush.bf16.msra.mxu0 %v1102
  %1443 = vmatpush.bf16.msra.mxu0 %v1101
  %1444 = vmatpush.bf16.msra.mxu0 %v1100
  %1445 = vmatpush.bf16.msra.mxu0 %v1099
  %1446 = vmatpush.bf16.msra.mxu0 %v1098
  %1447 = vmatmul.bf16.gmra.mxu0 %v597
  %v1448 = vpop.f32.mrf.mxu0
  %v1449 = vadd.f32 %v1370, %v1448
  %v1450 = vpop.f32.mrf.mxu0
  %v1451 = vadd.f32 %v1372, %v1450
  %1452 = vmatmul.bf16.gmra.mxu0 %v605
  %v1453 = vpop.f32.mrf.mxu0
  %v1454 = vadd.f32 %v1375, %v1453
  %v1455 = vpop.f32.mrf.mxu0
  %v1456 = vadd.f32 %v1377, %v1455
  %1457 = vmatmul.bf16.gmra.mxu0 %v613
  %v1458 = vpop.f32.mrf.mxu0
  %v1459 = vadd.f32 %v1380, %v1458
  %v1460 = vpop.f32.mrf.mxu0
  %v1461 = vadd.f32 %v1382, %v1460
  %1462 = vmatmul.bf16.gmra.mxu0 %v621
  %v1463 = vpop.f32.mrf.mxu0
  %v1464 = vadd.f32 %v1385, %v1463
  %v1465 = vpop.f32.mrf.mxu0
  %v1466 = vadd.f32 %v1387, %v1465
  %1467 = vmatmul.bf16.gmra.mxu0 %v629
  %v1468 = vpop.f32.mrf.mxu0
  %v1469 = vadd.f32 %v1390, %v1468
  %v1470 = vpop.f32.mrf.mxu0
  %v1471 = vadd.f32 %v1392, %v1470
  %1472 = vmatmul.bf16.gmra.mxu0 %v637
  %v1473 = vpop.f32.mrf.mxu0
  %v1474 = vadd.f32 %v1395, %v1473
  %v1475 = vpop.f32.mrf.mxu0
  %v1476 = vadd.f32 %v1397, %v1475
  %1477 = vmatmul.bf16.gmra.mxu0 %v645
  %v1478 = vpop.f32.mrf.mxu0
  %v1479 = vadd.f32 %v1400, %v1478
  %v1480 = vpop.f32.mrf.mxu0
  %v1481 = vadd.f32 %v1402, %v1480
  %1482 = vmatmul.bf16.gmra.mxu0 %v653
  %v1483 = vpop.f32.mrf.mxu0
  %v1484 = vadd.f32 %v1405, %v1483
  %v1485 = vpop.f32.mrf.mxu0
  %v1486 = vadd.f32 %v1407, %v1485
  %1487 = vmatmul.bf16.gmra.mxu0 %v661
  %v1488 = vpop.f32.mrf.mxu0
  %v1489 = vadd.f32 %v1410, %v1488
  %v1490 = vpop.f32.mrf.mxu0
  %v1491 = vadd.f32 %v1412, %v1490
  %1492 = vmatmul.bf16.gmra.mxu0 %v669
  %v1493 = vpop.f32.mrf.mxu0
  %v1494 = vadd.f32 %v1415, %v1493
  %v1495 = vpop.f32.mrf.mxu0
  %v1496 = vadd.f32 %v1417, %v1495
  %1497 = vmatmul.bf16.gmra.mxu0 %v677
  %v1498 = vpop.f32.mrf.mxu0
  %v1499 = vadd.f32 %v1420, %v1498
  %v1500 = vpop.f32.mrf.mxu0
  %v1501 = vadd.f32 %v1422, %v1500
  %1502 = vmatmul.bf16.gmra.mxu0 %v685
  %v1503 = vpop.f32.mrf.mxu0
  %v1504 = vadd.f32 %v1425, %v1503
  %v1505 = vpop.f32.mrf.mxu0
  %v1506 = vadd.f32 %v1427, %v1505
  %1507 = vmatmul.bf16.gmra.mxu0 %v693
  %v1508 = vpop.f32.mrf.mxu0
  %v1509 = vadd.f32 %v1430, %v1508
  %v1510 = vpop.f32.mrf.mxu0
  %v1511 = vadd.f32 %v1432, %v1510
  %1512 = vmatmul.bf16.gmra.mxu0 %v701
  %v1513 = vpop.f32.mrf.mxu0
  %v1514 = vadd.f32 %v1435, %v1513
  %v1515 = vpop.f32.mrf.mxu0
  %v1516 = vadd.f32 %v1437, %v1515
  %1517 = vdwg.mxu0
  %1518 = vmatpush.bf16.msra.mxu0 %v1113
  %1519 = vmatpush.bf16.msra.mxu0 %v1112
  %1520 = vmatpush.bf16.msra.mxu0 %v1111
  %1521 = vmatpush.bf16.msra.mxu0 %v1110
  %1522 = vmatpush.bf16.msra.mxu0 %v1109
  %1523 = vmatpush.bf16.msra.mxu0 %v1108
  %1524 = vmatpush.bf16.msra.mxu0 %v1107
  %1525 = vmatpush.bf16.msra.mxu0 %v1106
  %1526 = vmatmul.bf16.gmra.mxu0 %v598
  %v1527 = vpop.f32.mrf.mxu0
  %v1528 = vadd.f32 %v1449, %v1527
  %v1529 = vpop.f32.mrf.mxu0
  %v1530 = vadd.f32 %v1451, %v1529
  %1531 = vmatmul.bf16.gmra.mxu0 %v606
  %v1532 = vpop.f32.mrf.mxu0
  %v1533 = vadd.f32 %v1454, %v1532
  %v1534 = vpop.f32.mrf.mxu0
  %v1535 = vadd.f32 %v1456, %v1534
  %1536 = vmatmul.bf16.gmra.mxu0 %v614
  %v1537 = vpop.f32.mrf.mxu0
  %v1538 = vadd.f32 %v1459, %v1537
  %v1539 = vpop.f32.mrf.mxu0
  %v1540 = vadd.f32 %v1461, %v1539
  %1541 = vmatmul.bf16.gmra.mxu0 %v622
  %v1542 = vpop.f32.mrf.mxu0
  %v1543 = vadd.f32 %v1464, %v1542
  %v1544 = vpop.f32.mrf.mxu0
  %v1545 = vadd.f32 %v1466, %v1544
  %1546 = vmatmul.bf16.gmra.mxu0 %v630
  %v1547 = vpop.f32.mrf.mxu0
  %v1548 = vadd.f32 %v1469, %v1547
  %v1549 = vpop.f32.mrf.mxu0
  %v1550 = vadd.f32 %v1471, %v1549
  %1551 = vmatmul.bf16.gmra.mxu0 %v638
  %v1552 = vpop.f32.mrf.mxu0
  %v1553 = vadd.f32 %v1474, %v1552
  %v1554 = vpop.f32.mrf.mxu0
  %v1555 = vadd.f32 %v1476, %v1554
  %1556 = vmatmul.bf16.gmra.mxu0 %v646
  %v1557 = vpop.f32.mrf.mxu0
  %v1558 = vadd.f32 %v1479, %v1557
  %v1559 = vpop.f32.mrf.mxu0
  %v1560 = vadd.f32 %v1481, %v1559
  %1561 = vmatmul.bf16.gmra.mxu0 %v654
  %v1562 = vpop.f32.mrf.mxu0
  %v1563 = vadd.f32 %v1484, %v1562
  %v1564 = vpop.f32.mrf.mxu0
  %v1565 = vadd.f32 %v1486, %v1564
  %1566 = vmatmul.bf16.gmra.mxu0 %v662
  %v1567 = vpop.f32.mrf.mxu0
  %v1568 = vadd.f32 %v1489, %v1567
  %v1569 = vpop.f32.mrf.mxu0
  %v1570 = vadd.f32 %v1491, %v1569
  %1571 = vmatmul.bf16.gmra.mxu0 %v670
  %v1572 = vpop.f32.mrf.mxu0
  %v1573 = vadd.f32 %v1494, %v1572
  %v1574 = vpop.f32.mrf.mxu0
  %v1575 = vadd.f32 %v1496, %v1574
  %1576 = vmatmul.bf16.gmra.mxu0 %v678
  %v1577 = vpop.f32.mrf.mxu0
  %v1578 = vadd.f32 %v1499, %v1577
  %v1579 = vpop.f32.mrf.mxu0
  %v1580 = vadd.f32 %v1501, %v1579
  %1581 = vmatmul.bf16.gmra.mxu0 %v686
  %v1582 = vpop.f32.mrf.mxu0
  %v1583 = vadd.f32 %v1504, %v1582
  %v1584 = vpop.f32.mrf.mxu0
  %v1585 = vadd.f32 %v1506, %v1584
  %1586 = vmatmul.bf16.gmra.mxu0 %v694
  %v1587 = vpop.f32.mrf.mxu0
  %v1588 = vadd.f32 %v1509, %v1587
  %v1589 = vpop.f32.mrf.mxu0
  %v1590 = vadd.f32 %v1511, %v1589
  %1591 = vmatmul.bf16.gmra.mxu0 %v702
  %v1592 = vpop.f32.mrf.mxu0
  %v1593 = vadd.f32 %v1514, %v1592
  %v1594 = vpop.f32.mrf.mxu0
  %v1595 = vadd.f32 %v1516, %v1594
  %1596 = vdwg.mxu0
  %1597 = vmatpush.bf16.msra.mxu0 %v1121
  %1598 = vmatpush.bf16.msra.mxu0 %v1120
  %1599 = vmatpush.bf16.msra.mxu0 %v1119
  %1600 = vmatpush.bf16.msra.mxu0 %v1118
  %1601 = vmatpush.bf16.msra.mxu0 %v1117
  %1602 = vmatpush.bf16.msra.mxu0 %v1116
  %1603 = vmatpush.bf16.msra.mxu0 %v1115
  %1604 = vmatpush.bf16.msra.mxu0 %v1114
  %1605 = vmatmul.bf16.gmra.mxu0 %v599
  %v1606 = vpop.f32.mrf.mxu0
  %v1607 = vadd.f32 %v1528, %v1606
  %v1608 = vpop.f32.mrf.mxu0
  %v1609 = vadd.f32 %v1530, %v1608
  %1610 = vmatmul.bf16.gmra.mxu0 %v607
  %v1611 = vpop.f32.mrf.mxu0
  %v1612 = vadd.f32 %v1533, %v1611
  %v1613 = vpop.f32.mrf.mxu0
  %v1614 = vadd.f32 %v1535, %v1613
  %1615 = vmatmul.bf16.gmra.mxu0 %v615
  %v1616 = vpop.f32.mrf.mxu0
  %v1617 = vadd.f32 %v1538, %v1616
  %v1618 = vpop.f32.mrf.mxu0
  %v1619 = vadd.f32 %v1540, %v1618
  %1620 = vmatmul.bf16.gmra.mxu0 %v623
  %v1621 = vpop.f32.mrf.mxu0
  %v1622 = vadd.f32 %v1543, %v1621
  %v1623 = vpop.f32.mrf.mxu0
  %v1624 = vadd.f32 %v1545, %v1623
  %1625 = vmatmul.bf16.gmra.mxu0 %v631
  %v1626 = vpop.f32.mrf.mxu0
  %v1627 = vadd.f32 %v1548, %v1626
  %v1628 = vpop.f32.mrf.mxu0
  %v1629 = vadd.f32 %v1550, %v1628
  %1630 = vmatmul.bf16.gmra.mxu0 %v639
  %v1631 = vpop.f32.mrf.mxu0
  %v1632 = vadd.f32 %v1553, %v1631
  %v1633 = vpop.f32.mrf.mxu0
  %v1634 = vadd.f32 %v1555, %v1633
  %1635 = vmatmul.bf16.gmra.mxu0 %v647
  %v1636 = vpop.f32.mrf.mxu0
  %v1637 = vadd.f32 %v1558, %v1636
  %v1638 = vpop.f32.mrf.mxu0
  %v1639 = vadd.f32 %v1560, %v1638
  %1640 = vmatmul.bf16.gmra.mxu0 %v655
  %v1641 = vpop.f32.mrf.mxu0
  %v1642 = vadd.f32 %v1563, %v1641
  %v1643 = vpop.f32.mrf.mxu0
  %v1644 = vadd.f32 %v1565, %v1643
  %1645 = vmatmul.bf16.gmra.mxu0 %v663
  %v1646 = vpop.f32.mrf.mxu0
  %v1647 = vadd.f32 %v1568, %v1646
  %v1648 = vpop.f32.mrf.mxu0
  %v1649 = vadd.f32 %v1570, %v1648
  %1650 = vmatmul.bf16.gmra.mxu0 %v671
  %v1651 = vpop.f32.mrf.mxu0
  %v1652 = vadd.f32 %v1573, %v1651
  %v1653 = vpop.f32.mrf.mxu0
  %v1654 = vadd.f32 %v1575, %v1653
  %1655 = vmatmul.bf16.gmra.mxu0 %v679
  %v1656 = vpop.f32.mrf.mxu0
  %v1657 = vadd.f32 %v1578, %v1656
  %v1658 = vpop.f32.mrf.mxu0
  %v1659 = vadd.f32 %v1580, %v1658
  %1660 = vmatmul.bf16.gmra.mxu0 %v687
  %v1661 = vpop.f32.mrf.mxu0
  %v1662 = vadd.f32 %v1583, %v1661
  %v1663 = vpop.f32.mrf.mxu0
  %v1664 = vadd.f32 %v1585, %v1663
  %1665 = vmatmul.bf16.gmra.mxu0 %v695
  %v1666 = vpop.f32.mrf.mxu0
  %v1667 = vadd.f32 %v1588, %v1666
  %v1668 = vpop.f32.mrf.mxu0
  %v1669 = vadd.f32 %v1590, %v1668
  %1670 = vmatmul.bf16.gmra.mxu0 %v703
  %v1671 = vpop.f32.mrf.mxu0
  %v1672 = vadd.f32 %v1593, %v1671
  %v1673 = vpop.f32.mrf.mxu0
  %v1674 = vadd.f32 %v1595, %v1673
  %1675 = vdwg.mxu0
  %1676 = vmatpush.bf16.msra.mxu0 %v1129
  %1677 = vmatpush.bf16.msra.mxu0 %v1128
  %1678 = vmatpush.bf16.msra.mxu0 %v1127
  %1679 = vmatpush.bf16.msra.mxu0 %v1126
  %1680 = vmatpush.bf16.msra.mxu0 %v1125
  %1681 = vmatpush.bf16.msra.mxu0 %v1124
  %1682 = vmatpush.bf16.msra.mxu0 %v1123
  %1683 = vmatpush.bf16.msra.mxu0 %v1122
  %1684 = vmatmul.bf16.gmra.mxu0 %v600
  %v1685 = vpop.f32.mrf.mxu0
  %v1686 = vadd.f32 %v1607, %v1685
  %v1687 = vpop.f32.mrf.mxu0
  %v1688 = vadd.f32 %v1609, %v1687
  %1689 = vmatmul.bf16.gmra.mxu0 %v608
  %v1690 = vpop.f32.mrf.mxu0
  %v1691 = vadd.f32 %v1612, %v1690
  %v1692 = vpop.f32.mrf.mxu0
  %v1693 = vadd.f32 %v1614, %v1692
  %1694 = vmatmul.bf16.gmra.mxu0 %v616
  %v1695 = vpop.f32.mrf.mxu0
  %v1696 = vadd.f32 %v1617, %v1695
  %v1697 = vpop.f32.mrf.mxu0
  %v1698 = vadd.f32 %v1619, %v1697
  %1699 = vmatmul.bf16.gmra.mxu0 %v624
  %v1700 = vpop.f32.mrf.mxu0
  %v1701 = vadd.f32 %v1622, %v1700
  %v1702 = vpop.f32.mrf.mxu0
  %v1703 = vadd.f32 %v1624, %v1702
  %1704 = vmatmul.bf16.gmra.mxu0 %v632
  %v1705 = vpop.f32.mrf.mxu0
  %v1706 = vadd.f32 %v1627, %v1705
  %v1707 = vpop.f32.mrf.mxu0
  %v1708 = vadd.f32 %v1629, %v1707
  %1709 = vmatmul.bf16.gmra.mxu0 %v640
  %v1710 = vpop.f32.mrf.mxu0
  %v1711 = vadd.f32 %v1632, %v1710
  %v1712 = vpop.f32.mrf.mxu0
  %v1713 = vadd.f32 %v1634, %v1712
  %1714 = vmatmul.bf16.gmra.mxu0 %v648
  %v1715 = vpop.f32.mrf.mxu0
  %v1716 = vadd.f32 %v1637, %v1715
  %v1717 = vpop.f32.mrf.mxu0
  %v1718 = vadd.f32 %v1639, %v1717
  %1719 = vmatmul.bf16.gmra.mxu0 %v656
  %v1720 = vpop.f32.mrf.mxu0
  %v1721 = vadd.f32 %v1642, %v1720
  %v1722 = vpop.f32.mrf.mxu0
  %v1723 = vadd.f32 %v1644, %v1722
  %1724 = vmatmul.bf16.gmra.mxu0 %v664
  %v1725 = vpop.f32.mrf.mxu0
  %v1726 = vadd.f32 %v1647, %v1725
  %v1727 = vpop.f32.mrf.mxu0
  %v1728 = vadd.f32 %v1649, %v1727
  %1729 = vmatmul.bf16.gmra.mxu0 %v672
  %v1730 = vpop.f32.mrf.mxu0
  %v1731 = vadd.f32 %v1652, %v1730
  %v1732 = vpop.f32.mrf.mxu0
  %v1733 = vadd.f32 %v1654, %v1732
  %1734 = vmatmul.bf16.gmra.mxu0 %v680
  %v1735 = vpop.f32.mrf.mxu0
  %v1736 = vadd.f32 %v1657, %v1735
  %v1737 = vpop.f32.mrf.mxu0
  %v1738 = vadd.f32 %v1659, %v1737
  %1739 = vmatmul.bf16.gmra.mxu0 %v688
  %v1740 = vpop.f32.mrf.mxu0
  %v1741 = vadd.f32 %v1662, %v1740
  %v1742 = vpop.f32.mrf.mxu0
  %v1743 = vadd.f32 %v1664, %v1742
  %1744 = vmatmul.bf16.gmra.mxu0 %v696
  %v1745 = vpop.f32.mrf.mxu0
  %v1746 = vadd.f32 %v1667, %v1745
  %v1747 = vpop.f32.mrf.mxu0
  %v1748 = vadd.f32 %v1669, %v1747
  %1749 = vmatmul.bf16.gmra.mxu0 %v704
  %v1750 = vpop.f32.mrf.mxu0
  %v1751 = vadd.f32 %v1672, %v1750
  %v1752 = vpop.f32.mrf.mxu0
  %v1753 = vadd.f32 %v1674, %v1752
  %1754 = vdwg.mxu0
  %1755 = vmatpush.bf16.msra.mxu0 %v1137
  %1756 = vmatpush.bf16.msra.mxu0 %v1136
  %1757 = vmatpush.bf16.msra.mxu0 %v1135
  %1758 = vmatpush.bf16.msra.mxu0 %v1134
  %1759 = vmatpush.bf16.msra.mxu0 %v1133
  %1760 = vmatpush.bf16.msra.mxu0 %v1132
  %1761 = vmatpush.bf16.msra.mxu0 %v1131
  %1762 = vmatpush.bf16.msra.mxu0 %v1130
  %1763 = vmatmul.bf16.gmra.mxu0 %v601
  %v1764 = vpop.f32.mrf.mxu0
  %v1765 = vadd.f32 %v1686, %v1764
  %v1766 = vpop.f32.mrf.mxu0
  %v1767 = vadd.f32 %v1688, %v1766
  %1768 = vmatmul.bf16.gmra.mxu0 %v609
  %v1769 = vpop.f32.mrf.mxu0
  %v1770 = vadd.f32 %v1691, %v1769
  %v1771 = vpop.f32.mrf.mxu0
  %v1772 = vadd.f32 %v1693, %v1771
  %1773 = vmatmul.bf16.gmra.mxu0 %v617
  %v1774 = vpop.f32.mrf.mxu0
  %v1775 = vadd.f32 %v1696, %v1774
  %v1776 = vpop.f32.mrf.mxu0
  %v1777 = vadd.f32 %v1698, %v1776
  %1778 = vmatmul.bf16.gmra.mxu0 %v625
  %v1779 = vpop.f32.mrf.mxu0
  %v1780 = vadd.f32 %v1701, %v1779
  %v1781 = vpop.f32.mrf.mxu0
  %v1782 = vadd.f32 %v1703, %v1781
  %1783 = vmatmul.bf16.gmra.mxu0 %v633
  %v1784 = vpop.f32.mrf.mxu0
  %v1785 = vadd.f32 %v1706, %v1784
  %v1786 = vpop.f32.mrf.mxu0
  %v1787 = vadd.f32 %v1708, %v1786
  %1788 = vmatmul.bf16.gmra.mxu0 %v641
  %v1789 = vpop.f32.mrf.mxu0
  %v1790 = vadd.f32 %v1711, %v1789
  %v1791 = vpop.f32.mrf.mxu0
  %v1792 = vadd.f32 %v1713, %v1791
  %1793 = vmatmul.bf16.gmra.mxu0 %v649
  %v1794 = vpop.f32.mrf.mxu0
  %v1795 = vadd.f32 %v1716, %v1794
  %v1796 = vpop.f32.mrf.mxu0
  %v1797 = vadd.f32 %v1718, %v1796
  %1798 = vmatmul.bf16.gmra.mxu0 %v657
  %v1799 = vpop.f32.mrf.mxu0
  %v1800 = vadd.f32 %v1721, %v1799
  %v1801 = vpop.f32.mrf.mxu0
  %v1802 = vadd.f32 %v1723, %v1801
  %1803 = vmatmul.bf16.gmra.mxu0 %v665
  %v1804 = vpop.f32.mrf.mxu0
  %v1805 = vadd.f32 %v1726, %v1804
  %v1806 = vpop.f32.mrf.mxu0
  %v1807 = vadd.f32 %v1728, %v1806
  %1808 = vmatmul.bf16.gmra.mxu0 %v673
  %v1809 = vpop.f32.mrf.mxu0
  %v1810 = vadd.f32 %v1731, %v1809
  %v1811 = vpop.f32.mrf.mxu0
  %v1812 = vadd.f32 %v1733, %v1811
  %1813 = vmatmul.bf16.gmra.mxu0 %v681
  %v1814 = vpop.f32.mrf.mxu0
  %v1815 = vadd.f32 %v1736, %v1814
  %v1816 = vpop.f32.mrf.mxu0
  %v1817 = vadd.f32 %v1738, %v1816
  %1818 = vmatmul.bf16.gmra.mxu0 %v689
  %v1819 = vpop.f32.mrf.mxu0
  %v1820 = vadd.f32 %v1741, %v1819
  %v1821 = vpop.f32.mrf.mxu0
  %v1822 = vadd.f32 %v1743, %v1821
  %1823 = vmatmul.bf16.gmra.mxu0 %v697
  %v1824 = vpop.f32.mrf.mxu0
  %v1825 = vadd.f32 %v1746, %v1824
  %v1826 = vpop.f32.mrf.mxu0
  %v1827 = vadd.f32 %v1748, %v1826
  %1828 = vmatmul.bf16.gmra.mxu0 %v705
  %v1829 = vpop.f32.mrf.mxu0
  %v1830 = vadd.f32 %v1751, %v1829
  %v1831 = vpop.f32.mrf.mxu0
  %v1832 = vadd.f32 %v1753, %v1831
  %1833 = vdwg.mxu0
  %v1834 = vmax.f32 %v1765, 0.0
  %v1835 = vmax.f32 %v1767, 0.0
  %v1836 = vmax.f32 %v1770, 0.0
  %v1837 = vmax.f32 %v1772, 0.0
  %v1838 = vmax.f32 %v1775, 0.0
  %v1839 = vmax.f32 %v1777, 0.0
  %v1840 = vmax.f32 %v1780, 0.0
  %v1841 = vmax.f32 %v1782, 0.0
  %v1842 = vmax.f32 %v1785, 0.0
  %v1843 = vmax.f32 %v1787, 0.0
  %v1844 = vmax.f32 %v1790, 0.0
  %v1845 = vmax.f32 %v1792, 0.0
  %v1846 = vmax.f32 %v1795, 0.0
  %v1847 = vmax.f32 %v1797, 0.0
  %v1848 = vmax.f32 %v1800, 0.0
  %v1849 = vmax.f32 %v1802, 0.0
  %v1850 = vmax.f32 %v1805, 0.0
  %v1851 = vmax.f32 %v1807, 0.0
  %v1852 = vmax.f32 %v1810, 0.0
  %v1853 = vmax.f32 %v1812, 0.0
  %v1854 = vmax.f32 %v1815, 0.0
  %v1855 = vmax.f32 %v1817, 0.0
  %v1856 = vmax.f32 %v1820, 0.0
  %v1857 = vmax.f32 %v1822, 0.0
  %v1858 = vmax.f32 %v1825, 0.0
  %v1859 = vmax.f32 %v1827, 0.0
  %v1860 = vmax.f32 %v1830, 0.0
  %v1861 = vmax.f32 %v1832, 0.0
  %v1862 = vpack.c.bf16 %v1834, %v1834
  %v1863 = vpack.c.bf16 %v1835, %v1835
  %v1864 = vpack.c.bf16 %v1836, %v1836
  %v1865 = vpack.c.bf16 %v1837, %v1837
  %v1866 = vpack.c.bf16 %v1838, %v1838
  %v1867 = vpack.c.bf16 %v1839, %v1839
  %v1868 = vpack.c.bf16 %v1840, %v1840
  %v1869 = vpack.c.bf16 %v1841, %v1841
  %v1870 = vpack.c.bf16 %v1842, %v1842
  %v1871 = vpack.c.bf16 %v1843, %v1843
  %v1872 = vpack.c.bf16 %v1844, %v1844
  %v1873 = vpack.c.bf16 %v1845, %v1845
  %v1874 = vpack.c.bf16 %v1846, %v1846
  %v1875 = vpack.c.bf16 %v1847, %v1847
  %v1876 = vpack.c.bf16 %v1848, %v1848
  %v1877 = vpack.c.bf16 %v1849, %v1849
  %v1878 = vpack.c.bf16 %v1850, %v1850
  %v1879 = vpack.c.bf16 %v1851, %v1851
  %v1880 = vpack.c.bf16 %v1852, %v1852
  %v1881 = vpack.c.bf16 %v1853, %v1853
  %v1882 = vpack.c.bf16 %v1854, %v1854
  %v1883 = vpack.c.bf16 %v1855, %v1855
  %v1884 = vpack.c.bf16 %v1856, %v1856
  %v1885 = vpack.c.bf16 %v1857, %v1857
  %v1886 = vpack.c.bf16 %v1858, %v1858
  %v1887 = vpack.c.bf16 %v1859, %v1859
  %v1888 = vpack.c.bf16 %v1860, %v1860
  %v1889 = vpack.c.bf16 %v1861, %v1861
  %1890 = vst [vmem:[%s3] sm:$0xf] %v1862
  %1891 = vst [vmem:[%s3 + $0x4] sm:$0xf] %v1863
  %1892 = vst [vmem:[%s3 + $0x8] sm:$0xf] %v1864
  %1893 = vst [vmem:[%s3 + $0xc] sm:$0xf] %v1865
  %1894 = vst [vmem:[%s3 + $0x10] sm:$0xf] %v1866
  %1895 = vst [vmem:[%s3 + $0x14] sm:$0xf] %v1867
  %1896 = vst [vmem:[%s3 + $0x18] sm:$0xf] %v1868
  %1897 = vst [vmem:[%s3 + $0x1c] sm:$0xf] %v1869
  %1898 = vst [vmem:[%s3 + $0x20] sm:$0xf] %v1870
  %1899 = vst [vmem:[%s3 + $0x24] sm:$0xf] %v1871
  %1900 = vst [vmem:[%s3 + $0x28] sm:$0xf] %v1872
  %1901 = vst [vmem:[%s3 + $0x2c] sm:$0xf] %v1873
  %1902 = vst [vmem:[%s3 + $0x30] sm:$0xf] %v1874
  %1903 = vst [vmem:[%s3 + $0x34] sm:$0xf] %v1875
  %1904 = vst [vmem:[%s3 + $0x38] sm:$0xf] %v1876
  %1905 = vst [vmem:[%s3 + $0x3c] sm:$0xf] %v1877
  %1906 = vst [vmem:[%s3 + $0x40] sm:$0xf] %v1878
  %1907 = vst [vmem:[%s3 + $0x44] sm:$0xf] %v1879
  %1908 = vst [vmem:[%s3 + $0x48] sm:$0xf] %v1880
  %1909 = vst [vmem:[%s3 + $0x4c] sm:$0xf] %v1881
  %1910 = vst [vmem:[%s3 + $0x50] sm:$0xf] %v1882
  %1911 = vst [vmem:[%s3 + $0x54] sm:$0xf] %v1883
  %1912 = vst [vmem:[%s3 + $0x58] sm:$0xf] %v1884
  %1913 = vst [vmem:[%s3 + $0x5c] sm:$0xf] %v1885
  %1914 = vst [vmem:[%s3 + $0x60] sm:$0xf] %v1886
  %1915 = vst [vmem:[%s3 + $0x64] sm:$0xf] %v1887
  %1916 = vst [vmem:[%s3 + $0x68] sm:$0xf] %v1888
  %1917 = vst [vmem:[%s3 + $0x6c] sm:$0xf] %v1889
  // Predicated region
  $region14: #{pilot_net_forward.8} parent=0 // pred_check
    _
  $region15: #{pilot_net_forward.8} parent=0 // pred_check_branch
    %1919 = sbr.rel (0) target = $region17
  $region16: #{pilot_net_forward.8} parent=0 // pred_region
    _
  $region17: #{pilot_net_forward.8} parent=0 // pred_fallthru
    _
  // Predicated region
  $region18: #{pilot_net_forward.8} parent=0 // pred_check
    _
  $region19: #{pilot_net_forward.8} parent=0 // pred_check_branch
    %1921 = sbr.rel (0) target = $region21
  $region20: #{pilot_net_forward.8} parent=0 // pred_region
    _
  $region21: #{pilot_net_forward.8} parent=0 // pred_fallthru
    _

// kernel: pilot_net_forward.9
$region0: #{pilot_net_forward.9}
  #allocation0 [shape = 'u32[]', space=smem, size = 0x4, offset = 0x4, fixed_abs, tag = 'smem constant byte address 0x4 - core index']
  #allocation1 [shape = 'u32[72,128]{1,0:T(1,128)}', space=vmem, size = 0x9000, scoped, tag = 'internal scratch']
  %s0 = inlined_call_operand.vmem [shape: bf16[128,512], index: 0, kind: input, shape index: {}]
  %s1 = inlined_call_operand.vmem [shape: bf16[512,128], index: 1, kind: input, shape index: {}]
  %s2 = inlined_call_operand.vmem [shape: f32[1,128], index: 2, kind: input, shape index: {}]
  %s3 = inlined_call_operand.vmem [shape: bf16[128,128], index: 3, kind: output, shape index: {}]
  %s4 = sld [smem:[#allocation0]]
  $region22: #{pilot_net_forward.9} parent=0
    _
  %s6 = ssub.s32 1, %s4
  %s7 = scalar_select 0, %s6, %s4
  // Predicated region
  $region2: #{pilot_net_forward.9} parent=0 // pred_check
    _
  $region3: #{pilot_net_forward.9} parent=0 // pred_check_branch
    %9 = sbr.rel (0) target = $region5
  $region4: #{pilot_net_forward.9} parent=0 // pred_region
    _
  $region5: #{pilot_net_forward.9} parent=0 // pred_fallthru
    _
  // Predicated region
  $region6: #{pilot_net_forward.9} parent=0 // pred_check
    _
  $region7: #{pilot_net_forward.9} parent=0 // pred_check_branch
    %11 = sbr.rel (0) target = $region9
  $region8: #{pilot_net_forward.9} parent=0 // pred_region
    _
  $region9: #{pilot_net_forward.9} parent=0 // pred_fallthru
    _
  // Predicated region
  $region10: #{pilot_net_forward.9} parent=0 // pred_check
    _
  $region11: #{pilot_net_forward.9} parent=0 // pred_check_branch
    %13 = sbr.rel (0) target = $region13
  $region12: #{pilot_net_forward.9} parent=0 // pred_region
    _
  $region13: #{pilot_net_forward.9} parent=0 // pred_fallthru
    _
  %v14 = vld [vmem:[%s0] sm:$0xff]
  %v15 = vld [vmem:[%s0 + $0x8] sm:$0xff]
  %v16 = vld [vmem:[%s0 + $0x10] sm:$0xff]
  %v17 = vld [vmem:[%s0 + $0x18] sm:$0xff]
  %v18 = vld [vmem:[%s0 + $0x20] sm:$0xff]
  %v19 = vld [vmem:[%s0 + $0x28] sm:$0xff]
  %v20 = vld [vmem:[%s0 + $0x30] sm:$0xff]
  %v21 = vld [vmem:[%s0 + $0x38] sm:$0xff]
  %v22 = vld [vmem:[%s0 + $0x40] sm:$0xff]
  %v23 = vld [vmem:[%s0 + $0x48] sm:$0xff]
  %v24 = vld [vmem:[%s0 + $0x50] sm:$0xff]
  %v25 = vld [vmem:[%s0 + $0x58] sm:$0xff]
  %v26 = vld [vmem:[%s0 + $0x60] sm:$0xff]
  %v27 = vld [vmem:[%s0 + $0x68] sm:$0xff]
  %v28 = vld [vmem:[%s0 + $0x70] sm:$0xff]
  %v29 = vld [vmem:[%s0 + $0x78] sm:$0xff]
  %v30 = vld [vmem:[%s0 + $0x80] sm:$0xff]
  %v31 = vld [vmem:[%s0 + $0x88] sm:$0xff]
  %v32 = vld [vmem:[%s0 + $0x90] sm:$0xff]
  %v33 = vld [vmem:[%s0 + $0x98] sm:$0xff]
  %v34 = vld [vmem:[%s0 + $0xa0] sm:$0xff]
  %v35 = vld [vmem:[%s0 + $0xa8] sm:$0xff]
  %v36 = vld [vmem:[%s0 + $0xb0] sm:$0xff]
  %v37 = vld [vmem:[%s0 + $0xb8] sm:$0xff]
  %v38 = vld [vmem:[%s0 + $0xc0] sm:$0xff]
  %v39 = vld [vmem:[%s0 + $0xc8] sm:$0xff]
  %v40 = vld [vmem:[%s0 + $0xd0] sm:$0xff]
  %v41 = vld [vmem:[%s0 + $0xd8] sm:$0xff]
  %v42 = vld [vmem:[%s0 + $0xe0] sm:$0xff]
  %v43 = vld [vmem:[%s0 + $0xe8] sm:$0xff]
  %v44 = vld [vmem:[%s0 + $0xf0] sm:$0xff]
  %v45 = vld [vmem:[%s0 + $0xf8] sm:$0xff]
  %v46 = vld [vmem:[%s1] sm:$0xf]
  %v47 = vld [vmem:[%s1 + $0x4] sm:$0xf]
  %v48 = vld [vmem:[%s1 + $0x8] sm:$0xf]
  %v49 = vld [vmem:[%s1 + $0xc] sm:$0xf]
  %v50 = vld [vmem:[%s1 + $0x10] sm:$0xf]
  %v51 = vld [vmem:[%s1 + $0x14] sm:$0xf]
  %v52 = vld [vmem:[%s1 + $0x18] sm:$0xf]
  %v53 = vld [vmem:[%s1 + $0x1c] sm:$0xf]
  %v54 = vld [vmem:[%s1 + $0x20] sm:$0xf]
  %v55 = vld [vmem:[%s1 + $0x24] sm:$0xf]
  %v56 = vld [vmem:[%s1 + $0x28] sm:$0xf]
  %v57 = vld [vmem:[%s1 + $0x2c] sm:$0xf]
  %v58 = vld [vmem:[%s1 + $0x30] sm:$0xf]
  %v59 = vld [vmem:[%s1 + $0x34] sm:$0xf]
  %v60 = vld [vmem:[%s1 + $0x38] sm:$0xf]
  %v61 = vld [vmem:[%s1 + $0x3c] sm:$0xf]
  %v62 = vld [vmem:[%s1 + $0x40] sm:$0xf]
  %v63 = vld [vmem:[%s1 + $0x44] sm:$0xf]
  %v64 = vld [vmem:[%s1 + $0x48] sm:$0xf]
  %v65 = vld [vmem:[%s1 + $0x4c] sm:$0xf]
  %v66 = vld [vmem:[%s1 + $0x50] sm:$0xf]
  %v67 = vld [vmem:[%s1 + $0x54] sm:$0xf]
  %v68 = vld [vmem:[%s1 + $0x58] sm:$0xf]
  %v69 = vld [vmem:[%s1 + $0x5c] sm:$0xf]
  %v70 = vld [vmem:[%s1 + $0x60] sm:$0xf]
  %v71 = vld [vmem:[%s1 + $0x64] sm:$0xf]
  %v72 = vld [vmem:[%s1 + $0x68] sm:$0xf]
  %v73 = vld [vmem:[%s1 + $0x6c] sm:$0xf]
  %v74 = vld [vmem:[%s1 + $0x70] sm:$0xf]
  %v75 = vld [vmem:[%s1 + $0x74] sm:$0xf]
  %v76 = vld [vmem:[%s1 + $0x78] sm:$0xf]
  %v77 = vld [vmem:[%s1 + $0x7c] sm:$0xf]
  %v78 = vld [vmem:[%s1 + $0x80] sm:$0xf]
  %v79 = vld [vmem:[%s1 + $0x84] sm:$0xf]
  %v80 = vld [vmem:[%s1 + $0x88] sm:$0xf]
  %v81 = vld [vmem:[%s1 + $0x8c] sm:$0xf]
  %v82 = vld [vmem:[%s1 + $0x90] sm:$0xf]
  %v83 = vld [vmem:[%s1 + $0x94] sm:$0xf]
  %v84 = vld [vmem:[%s1 + $0x98] sm:$0xf]
  %v85 = vld [vmem:[%s1 + $0x9c] sm:$0xf]
  %v86 = vld [vmem:[%s1 + $0xa0] sm:$0xf]
  %v87 = vld [vmem:[%s1 + $0xa4] sm:$0xf]
  %v88 = vld [vmem:[%s1 + $0xa8] sm:$0xf]
  %v89 = vld [vmem:[%s1 + $0xac] sm:$0xf]
  %v90 = vld [vmem:[%s1 + $0xb0] sm:$0xf]
  %v91 = vld [vmem:[%s1 + $0xb4] sm:$0xf]
  %v92 = vld [vmem:[%s1 + $0xb8] sm:$0xf]
  %v93 = vld [vmem:[%s1 + $0xbc] sm:$0xf]
  %v94 = vld [vmem:[%s1 + $0xc0] sm:$0xf]
  %v95 = vld [vmem:[%s1 + $0xc4] sm:$0xf]
  %v96 = vld [vmem:[%s1 + $0xc8] sm:$0xf]
  %v97 = vld [vmem:[%s1 + $0xcc] sm:$0xf]
  %v98 = vld [vmem:[%s1 + $0xd0] sm:$0xf]
  %v99 = vld [vmem:[%s1 + $0xd4] sm:$0xf]
  %v100 = vld [vmem:[%s1 + $0xd8] sm:$0xf]
  %v101 = vld [vmem:[%s1 + $0xdc] sm:$0xf]
  %v102 = vld [vmem:[%s1 + $0xe0] sm:$0xf]
  %v103 = vld [vmem:[%s1 + $0xe4] sm:$0xf]
  %v104 = vld [vmem:[%s1 + $0xe8] sm:$0xf]
  %v105 = vld [vmem:[%s1 + $0xec] sm:$0xf]
  %v106 = vld [vmem:[%s1 + $0xf0] sm:$0xf]
  %v107 = vld [vmem:[%s1 + $0xf4] sm:$0xf]
  %v108 = vld [vmem:[%s1 + $0xf8] sm:$0xf]
  %v109 = vld [vmem:[%s1 + $0xfc] sm:$0xf]
  %v110 = vld [vmem:[%s2] sm:$0x1]
  %v112 = vperm.slane %v110, 0
  %v146 = vunpack.c.l.b16 %v14
  %v147 = vunpack.c.h.b16 %v14
  %v148 = vunpack.c.l.b16 %v15
  %v149 = vunpack.c.h.b16 %v15
  %v150 = vunpack.c.l.b16 %v16
  %v151 = vunpack.c.h.b16 %v16
  %v152 = vunpack.c.l.b16 %v17
  %v153 = vunpack.c.h.b16 %v17
  %v154 = vunpack.c.l.b16 %v18
  %v155 = vunpack.c.h.b16 %v18
  %v156 = vunpack.c.l.b16 %v19
  %v157 = vunpack.c.h.b16 %v19
  %v158 = vunpack.c.l.b16 %v20
  %v159 = vunpack.c.h.b16 %v20
  %v160 = vunpack.c.l.b16 %v21
  %v161 = vunpack.c.h.b16 %v21
  %v162 = vunpack.c.l.b16 %v22
  %v163 = vunpack.c.h.b16 %v22
  %v164 = vunpack.c.l.b16 %v23
  %v165 = vunpack.c.h.b16 %v23
  %v166 = vunpack.c.l.b16 %v24
  %v167 = vunpack.c.h.b16 %v24
  %v168 = vunpack.c.l.b16 %v25
  %v169 = vunpack.c.h.b16 %v25
  %v170 = vunpack.c.l.b16 %v26
  %v171 = vunpack.c.h.b16 %v26
  %v172 = vunpack.c.l.b16 %v27
  %v173 = vunpack.c.h.b16 %v27
  %v174 = vunpack.c.l.b16 %v28
  %v175 = vunpack.c.h.b16 %v28
  %v176 = vunpack.c.l.b16 %v29
  %v177 = vunpack.c.h.b16 %v29
  %v178 = vunpack.c.l.b16 %v30
  %v179 = vunpack.c.h.b16 %v30
  %v180 = vunpack.c.l.b16 %v31
  %v181 = vunpack.c.h.b16 %v31
  %v182 = vunpack.c.l.b16 %v32
  %v183 = vunpack.c.h.b16 %v32
  %v184 = vunpack.c.l.b16 %v33
  %v185 = vunpack.c.h.b16 %v33
  %v186 = vunpack.c.l.b16 %v34
  %v187 = vunpack.c.h.b16 %v34
  %v188 = vunpack.c.l.b16 %v35
  %v189 = vunpack.c.h.b16 %v35
  %v190 = vunpack.c.l.b16 %v36
  %v191 = vunpack.c.h.b16 %v36
  %v192 = vunpack.c.l.b16 %v37
  %v193 = vunpack.c.h.b16 %v37
  %v194 = vunpack.c.l.b16 %v38
  %v195 = vunpack.c.h.b16 %v38
  %v196 = vunpack.c.l.b16 %v39
  %v197 = vunpack.c.h.b16 %v39
  %v198 = vunpack.c.l.b16 %v40
  %v199 = vunpack.c.h.b16 %v40
  %v200 = vunpack.c.l.b16 %v41
  %v201 = vunpack.c.h.b16 %v41
  %v202 = vunpack.c.l.b16 %v42
  %v203 = vunpack.c.h.b16 %v42
  %v204 = vunpack.c.l.b16 %v43
  %v205 = vunpack.c.h.b16 %v43
  %v206 = vunpack.c.l.b16 %v44
  %v207 = vunpack.c.h.b16 %v44
  %v208 = vunpack.c.l.b16 %v45
  %v209 = vunpack.c.h.b16 %v45
  %v210 = vpack.c.b16 %v150, %v146
  %v211 = vpack.c.b16 %v151, %v147
  %v212 = vpack.c.b16 %v152, %v148
  %v213 = vpack.c.b16 %v153, %v149
  %v214 = vpack.c.b16 %v158, %v154
  %v215 = vpack.c.b16 %v159, %v155
  %v216 = vpack.c.b16 %v160, %v156
  %v217 = vpack.c.b16 %v161, %v157
  %v218 = vpack.c.b16 %v166, %v162
  %v219 = vpack.c.b16 %v167, %v163
  %v220 = vpack.c.b16 %v168, %v164
  %v221 = vpack.c.b16 %v169, %v165
  %v222 = vpack.c.b16 %v174, %v170
  %v223 = vpack.c.b16 %v175, %v171
  %v224 = vpack.c.b16 %v176, %v172
  %v225 = vpack.c.b16 %v177, %v173
  %v226 = vpack.c.b16 %v182, %v178
  %v227 = vpack.c.b16 %v183, %v179
  %v228 = vpack.c.b16 %v184, %v180
  %v229 = vpack.c.b16 %v185, %v181
  %v230 = vpack.c.b16 %v190, %v186
  %v231 = vpack.c.b16 %v191, %v187
  %v232 = vpack.c.b16 %v192, %v188
  %v233 = vpack.c.b16 %v193, %v189
  %v234 = vpack.c.b16 %v198, %v194
  %v235 = vpack.c.b16 %v199, %v195
  %v236 = vpack.c.b16 %v200, %v196
  %v237 = vpack.c.b16 %v201, %v197
  %v238 = vpack.c.b16 %v206, %v202
  %v239 = vpack.c.b16 %v207, %v203
  %v240 = vpack.c.b16 %v208, %v204
  %v241 = vpack.c.b16 %v209, %v205
  %v338 = vunpack.c.l.b16 %v46
  %v339 = vunpack.c.l.b16 %v47
  %v340 = vunpack.c.l.b16 %v48
  %v341 = vunpack.c.l.b16 %v49
  %v342 = vunpack.c.l.b16 %v50
  %v343 = vunpack.c.l.b16 %v51
  %v344 = vunpack.c.l.b16 %v52
  %v345 = vunpack.c.l.b16 %v53
  %v346 = vunpack.c.l.b16 %v54
  %v347 = vunpack.c.l.b16 %v55
  %v348 = vunpack.c.l.b16 %v56
  %v349 = vunpack.c.l.b16 %v57
  %v350 = vunpack.c.l.b16 %v58
  %v351 = vunpack.c.l.b16 %v59
  %v352 = vunpack.c.l.b16 %v60
  %v353 = vunpack.c.l.b16 %v61
  %v354 = vunpack.c.l.b16 %v62
  %v355 = vunpack.c.l.b16 %v63
  %v356 = vunpack.c.l.b16 %v64
  %v357 = vunpack.c.l.b16 %v65
  %v358 = vunpack.c.l.b16 %v66
  %v359 = vunpack.c.l.b16 %v67
  %v360 = vunpack.c.l.b16 %v68
  %v361 = vunpack.c.l.b16 %v69
  %v362 = vunpack.c.l.b16 %v70
  %v363 = vunpack.c.l.b16 %v71
  %v364 = vunpack.c.l.b16 %v72
  %v365 = vunpack.c.l.b16 %v73
  %v366 = vunpack.c.l.b16 %v74
  %v367 = vunpack.c.l.b16 %v75
  %v368 = vunpack.c.l.b16 %v76
  %v369 = vunpack.c.l.b16 %v77
  %v370 = vunpack.c.l.b16 %v78
  %v371 = vunpack.c.l.b16 %v79
  %v372 = vunpack.c.l.b16 %v80
  %v373 = vunpack.c.l.b16 %v81
  %v374 = vunpack.c.l.b16 %v82
  %v375 = vunpack.c.l.b16 %v83
  %v376 = vunpack.c.l.b16 %v84
  %v377 = vunpack.c.l.b16 %v85
  %v378 = vunpack.c.l.b16 %v86
  %v379 = vunpack.c.l.b16 %v87
  %v380 = vunpack.c.l.b16 %v88
  %v381 = vunpack.c.l.b16 %v89
  %v382 = vunpack.c.l.b16 %v90
  %v383 = vunpack.c.l.b16 %v91
  %v384 = vunpack.c.l.b16 %v92
  %v385 = vunpack.c.l.b16 %v93
  %v386 = vunpack.c.l.b16 %v94
  %v387 = vunpack.c.l.b16 %v95
  %v388 = vunpack.c.l.b16 %v96
  %v389 = vunpack.c.l.b16 %v97
  %v390 = vunpack.c.l.b16 %v98
  %v391 = vunpack.c.l.b16 %v99
  %v392 = vunpack.c.l.b16 %v100
  %v393 = vunpack.c.l.b16 %v101
  %v394 = vunpack.c.l.b16 %v102
  %v395 = vunpack.c.l.b16 %v103
  %v396 = vunpack.c.l.b16 %v104
  %v397 = vunpack.c.l.b16 %v105
  %v398 = vunpack.c.l.b16 %v106
  %v399 = vunpack.c.l.b16 %v107
  %v400 = vunpack.c.l.b16 %v108
  %v401 = vunpack.c.l.b16 %v109
  %v402 = vpack.c.b16 %v339, %v338
  %v403 = vpack.c.b16 %v341, %v340
  %v404 = vpack.c.b16 %v343, %v342
  %v405 = vpack.c.b16 %v345, %v344
  %v406 = vpack.c.b16 %v347, %v346
  %v407 = vpack.c.b16 %v349, %v348
  %v408 = vpack.c.b16 %v351, %v350
  %v409 = vpack.c.b16 %v353, %v352
  %v410 = vpack.c.b16 %v355, %v354
  %v411 = vpack.c.b16 %v357, %v356
  %v412 = vpack.c.b16 %v359, %v358
  %v413 = vpack.c.b16 %v361, %v360
  %v414 = vpack.c.b16 %v363, %v362
  %v415 = vpack.c.b16 %v365, %v364
  %v416 = vpack.c.b16 %v367, %v366
  %v417 = vpack.c.b16 %v369, %v368
  %v418 = vpack.c.b16 %v371, %v370
  %v419 = vpack.c.b16 %v373, %v372
  %v420 = vpack.c.b16 %v375, %v374
  %v421 = vpack.c.b16 %v377, %v376
  %v422 = vpack.c.b16 %v379, %v378
  %v423 = vpack.c.b16 %v381, %v380
  %v424 = vpack.c.b16 %v383, %v382
  %v425 = vpack.c.b16 %v385, %v384
  %v426 = vpack.c.b16 %v387, %v386
  %v427 = vpack.c.b16 %v389, %v388
  %v428 = vpack.c.b16 %v391, %v390
  %v429 = vpack.c.b16 %v393, %v392
  %v430 = vpack.c.b16 %v395, %v394
  %v431 = vpack.c.b16 %v397, %v396
  %v432 = vpack.c.b16 %v399, %v398
  %v433 = vpack.c.b16 %v401, %v400
  %466 = vmatpush.bf16.msra.mxu0 %v409
  %467 = vmatpush.bf16.msra.mxu0 %v408
  %468 = vmatpush.bf16.msra.mxu0 %v407
  %469 = vmatpush.bf16.msra.mxu0 %v406
  %470 = vmatpush.bf16.msra.mxu0 %v405
  %471 = vmatpush.bf16.msra.mxu0 %v404
  %472 = vmatpush.bf16.msra.mxu0 %v403
  %473 = vmatpush.bf16.msra.mxu0 %v402
  %474 = vmatmul.bf16.gmra.mxu0 %v210
  %v475 = vpop.f32.mrf.mxu0
  %v476 = vadd.f32 %v112, %v475
  %v477 = vpop.f32.mrf.mxu0
  %v478 = vadd.f32 %v112, %v477
  %479 = vmatmul.bf16.gmra.mxu0 %v214
  %v480 = vpop.f32.mrf.mxu0
  %v481 = vadd.f32 %v112, %v480
  %v482 = vpop.f32.mrf.mxu0
  %v483 = vadd.f32 %v112, %v482
  %484 = vmatmul.bf16.gmra.mxu0 %v218
  %v485 = vpop.f32.mrf.mxu0
  %v486 = vadd.f32 %v112, %v485
  %v487 = vpop.f32.mrf.mxu0
  %v488 = vadd.f32 %v112, %v487
  %489 = vmatmul.bf16.gmra.mxu0 %v222
  %v490 = vpop.f32.mrf.mxu0
  %v491 = vadd.f32 %v112, %v490
  %v492 = vpop.f32.mrf.mxu0
  %v493 = vadd.f32 %v112, %v492
  %494 = vmatmul.bf16.gmra.mxu0 %v226
  %v495 = vpop.f32.mrf.mxu0
  %v496 = vadd.f32 %v112, %v495
  %v497 = vpop.f32.mrf.mxu0
  %v498 = vadd.f32 %v112, %v497
  %499 = vmatmul.bf16.gmra.mxu0 %v230
  %v500 = vpop.f32.mrf.mxu0
  %v501 = vadd.f32 %v112, %v500
  %v502 = vpop.f32.mrf.mxu0
  %v503 = vadd.f32 %v112, %v502
  %504 = vmatmul.bf16.gmra.mxu0 %v234
  %v505 = vpop.f32.mrf.mxu0
  %v506 = vadd.f32 %v112, %v505
  %v507 = vpop.f32.mrf.mxu0
  %v508 = vadd.f32 %v112, %v507
  %509 = vmatmul.bf16.gmra.mxu0 %v238
  %v510 = vpop.f32.mrf.mxu0
  %v511 = vadd.f32 %v112, %v510
  %v512 = vpop.f32.mrf.mxu0
  %v513 = vadd.f32 %v112, %v512
  %514 = vdwg.mxu0
  %515 = vmatpush.bf16.msra.mxu0 %v417
  %516 = vmatpush.bf16.msra.mxu0 %v416
  %517 = vmatpush.bf16.msra.mxu0 %v415
  %518 = vmatpush.bf16.msra.mxu0 %v414
  %519 = vmatpush.bf16.msra.mxu0 %v413
  %520 = vmatpush.bf16.msra.mxu0 %v412
  %521 = vmatpush.bf16.msra.mxu0 %v411
  %522 = vmatpush.bf16.msra.mxu0 %v410
  %523 = vmatmul.bf16.gmra.mxu0 %v211
  %v524 = vpop.f32.mrf.mxu0
  %v525 = vadd.f32 %v476, %v524
  %v526 = vpop.f32.mrf.mxu0
  %v527 = vadd.f32 %v478, %v526
  %528 = vmatmul.bf16.gmra.mxu0 %v215
  %v529 = vpop.f32.mrf.mxu0
  %v530 = vadd.f32 %v481, %v529
  %v531 = vpop.f32.mrf.mxu0
  %v532 = vadd.f32 %v483, %v531
  %533 = vmatmul.bf16.gmra.mxu0 %v219
  %v534 = vpop.f32.mrf.mxu0
  %v535 = vadd.f32 %v486, %v534
  %v536 = vpop.f32.mrf.mxu0
  %v537 = vadd.f32 %v488, %v536
  %538 = vmatmul.bf16.gmra.mxu0 %v223
  %v539 = vpop.f32.mrf.mxu0
  %v540 = vadd.f32 %v491, %v539
  %v541 = vpop.f32.mrf.mxu0
  %v542 = vadd.f32 %v493, %v541
  %543 = vmatmul.bf16.gmra.mxu0 %v227
  %v544 = vpop.f32.mrf.mxu0
  %v545 = vadd.f32 %v496, %v544
  %v546 = vpop.f32.mrf.mxu0
  %v547 = vadd.f32 %v498, %v546
  %548 = vmatmul.bf16.gmra.mxu0 %v231
  %v549 = vpop.f32.mrf.mxu0
  %v550 = vadd.f32 %v501, %v549
  %v551 = vpop.f32.mrf.mxu0
  %v552 = vadd.f32 %v503, %v551
  %553 = vmatmul.bf16.gmra.mxu0 %v235
  %v554 = vpop.f32.mrf.mxu0
  %v555 = vadd.f32 %v506, %v554
  %v556 = vpop.f32.mrf.mxu0
  %v557 = vadd.f32 %v508, %v556
  %558 = vmatmul.bf16.gmra.mxu0 %v239
  %v559 = vpop.f32.mrf.mxu0
  %v560 = vadd.f32 %v511, %v559
  %v561 = vpop.f32.mrf.mxu0
  %v562 = vadd.f32 %v513, %v561
  %563 = vdwg.mxu0
  %564 = vmatpush.bf16.msra.mxu0 %v425
  %565 = vmatpush.bf16.msra.mxu0 %v424
  %566 = vmatpush.bf16.msra.mxu0 %v423
  %567 = vmatpush.bf16.msra.mxu0 %v422
  %568 = vmatpush.bf16.msra.mxu0 %v421
  %569 = vmatpush.bf16.msra.mxu0 %v420
  %570 = vmatpush.bf16.msra.mxu0 %v419
  %571 = vmatpush.bf16.msra.mxu0 %v418
  %572 = vmatmul.bf16.gmra.mxu0 %v212
  %v573 = vpop.f32.mrf.mxu0
  %v574 = vadd.f32 %v525, %v573
  %v575 = vpop.f32.mrf.mxu0
  %v576 = vadd.f32 %v527, %v575
  %577 = vmatmul.bf16.gmra.mxu0 %v216
  %v578 = vpop.f32.mrf.mxu0
  %v579 = vadd.f32 %v530, %v578
  %v580 = vpop.f32.mrf.mxu0
  %v581 = vadd.f32 %v532, %v580
  %582 = vmatmul.bf16.gmra.mxu0 %v220
  %v583 = vpop.f32.mrf.mxu0
  %v584 = vadd.f32 %v535, %v583
  %v585 = vpop.f32.mrf.mxu0
  %v586 = vadd.f32 %v537, %v585
  %587 = vmatmul.bf16.gmra.mxu0 %v224
  %v588 = vpop.f32.mrf.mxu0
  %v589 = vadd.f32 %v540, %v588
  %v590 = vpop.f32.mrf.mxu0
  %v591 = vadd.f32 %v542, %v590
  %592 = vmatmul.bf16.gmra.mxu0 %v228
  %v593 = vpop.f32.mrf.mxu0
  %v594 = vadd.f32 %v545, %v593
  %v595 = vpop.f32.mrf.mxu0
  %v596 = vadd.f32 %v547, %v595
  %597 = vmatmul.bf16.gmra.mxu0 %v232
  %v598 = vpop.f32.mrf.mxu0
  %v599 = vadd.f32 %v550, %v598
  %v600 = vpop.f32.mrf.mxu0
  %v601 = vadd.f32 %v552, %v600
  %602 = vmatmul.bf16.gmra.mxu0 %v236
  %v603 = vpop.f32.mrf.mxu0
  %v604 = vadd.f32 %v555, %v603
  %v605 = vpop.f32.mrf.mxu0
  %v606 = vadd.f32 %v557, %v605
  %607 = vmatmul.bf16.gmra.mxu0 %v240
  %v608 = vpop.f32.mrf.mxu0
  %v609 = vadd.f32 %v560, %v608
  %v610 = vpop.f32.mrf.mxu0
  %v611 = vadd.f32 %v562, %v610
  %612 = vdwg.mxu0
  %613 = vmatpush.bf16.msra.mxu0 %v433
  %614 = vmatpush.bf16.msra.mxu0 %v432
  %615 = vmatpush.bf16.msra.mxu0 %v431
  %616 = vmatpush.bf16.msra.mxu0 %v430
  %617 = vmatpush.bf16.msra.mxu0 %v429
  %618 = vmatpush.bf16.msra.mxu0 %v428
  %619 = vmatpush.bf16.msra.mxu0 %v427
  %620 = vmatpush.bf16.msra.mxu0 %v426
  %621 = vmatmul.bf16.gmra.mxu0 %v213
  %v622 = vpop.f32.mrf.mxu0
  %v623 = vadd.f32 %v574, %v622
  %v624 = vpop.f32.mrf.mxu0
  %v625 = vadd.f32 %v576, %v624
  %626 = vmatmul.bf16.gmra.mxu0 %v217
  %v627 = vpop.f32.mrf.mxu0
  %v628 = vadd.f32 %v579, %v627
  %v629 = vpop.f32.mrf.mxu0
  %v630 = vadd.f32 %v581, %v629
  %631 = vmatmul.bf16.gmra.mxu0 %v221
  %v632 = vpop.f32.mrf.mxu0
  %v633 = vadd.f32 %v584, %v632
  %v634 = vpop.f32.mrf.mxu0
  %v635 = vadd.f32 %v586, %v634
  %636 = vmatmul.bf16.gmra.mxu0 %v225
  %v637 = vpop.f32.mrf.mxu0
  %v638 = vadd.f32 %v589, %v637
  %v639 = vpop.f32.mrf.mxu0
  %v640 = vadd.f32 %v591, %v639
  %641 = vmatmul.bf16.gmra.mxu0 %v229
  %v642 = vpop.f32.mrf.mxu0
  %v643 = vadd.f32 %v594, %v642
  %v644 = vpop.f32.mrf.mxu0
  %v645 = vadd.f32 %v596, %v644
  %646 = vmatmul.bf16.gmra.mxu0 %v233
  %v647 = vpop.f32.mrf.mxu0
  %v648 = vadd.f32 %v599, %v647
  %v649 = vpop.f32.mrf.mxu0
  %v650 = vadd.f32 %v601, %v649
  %651 = vmatmul.bf16.gmra.mxu0 %v237
  %v652 = vpop.f32.mrf.mxu0
  %v653 = vadd.f32 %v604, %v652
  %v654 = vpop.f32.mrf.mxu0
  %v655 = vadd.f32 %v606, %v654
  %656 = vmatmul.bf16.gmra.mxu0 %v241
  %v657 = vpop.f32.mrf.mxu0
  %v658 = vadd.f32 %v609, %v657
  %v659 = vpop.f32.mrf.mxu0
  %v660 = vadd.f32 %v611, %v659
  %661 = vdwg.mxu0
  %v662 = vmax.f32 %v623, 0.0
  %v663 = vmax.f32 %v625, 0.0
  %v664 = vmax.f32 %v628, 0.0
  %v665 = vmax.f32 %v630, 0.0
  %v666 = vmax.f32 %v633, 0.0
  %v667 = vmax.f32 %v635, 0.0
  %v668 = vmax.f32 %v638, 0.0
  %v669 = vmax.f32 %v640, 0.0
  %v670 = vmax.f32 %v643, 0.0
  %v671 = vmax.f32 %v645, 0.0
  %v672 = vmax.f32 %v648, 0.0
  %v673 = vmax.f32 %v650, 0.0
  %v674 = vmax.f32 %v653, 0.0
  %v675 = vmax.f32 %v655, 0.0
  %v676 = vmax.f32 %v658, 0.0
  %v677 = vmax.f32 %v660, 0.0
  %v678 = vpack.c.bf16 %v662, %v662
  %v679 = vpack.c.bf16 %v663, %v663
  %v680 = vpack.c.bf16 %v664, %v664
  %v681 = vpack.c.bf16 %v665, %v665
  %v682 = vpack.c.bf16 %v666, %v666
  %v683 = vpack.c.bf16 %v667, %v667
  %v684 = vpack.c.bf16 %v668, %v668
  %v685 = vpack.c.bf16 %v669, %v669
  %v686 = vpack.c.bf16 %v670, %v670
  %v687 = vpack.c.bf16 %v671, %v671
  %v688 = vpack.c.bf16 %v672, %v672
  %v689 = vpack.c.bf16 %v673, %v673
  %v690 = vpack.c.bf16 %v674, %v674
  %v691 = vpack.c.bf16 %v675, %v675
  %v692 = vpack.c.bf16 %v676, %v676
  %v693 = vpack.c.bf16 %v677, %v677
  %694 = vst [vmem:[%s3] sm:$0xf] %v678
  %695 = vst [vmem:[%s3 + $0x4] sm:$0xf] %v679
  %696 = vst [vmem:[%s3 + $0x8] sm:$0xf] %v680
  %697 = vst [vmem:[%s3 + $0xc] sm:$0xf] %v681
  %698 = vst [vmem:[%s3 + $0x10] sm:$0xf] %v682
  %699 = vst [vmem:[%s3 + $0x14] sm:$0xf] %v683
  %700 = vst [vmem:[%s3 + $0x18] sm:$0xf] %v684
  %701 = vst [vmem:[%s3 + $0x1c] sm:$0xf] %v685
  %702 = vst [vmem:[%s3 + $0x20] sm:$0xf] %v686
  %703 = vst [vmem:[%s3 + $0x24] sm:$0xf] %v687
  %704 = vst [vmem:[%s3 + $0x28] sm:$0xf] %v688
  %705 = vst [vmem:[%s3 + $0x2c] sm:$0xf] %v689
  %706 = vst [vmem:[%s3 + $0x30] sm:$0xf] %v690
  %707 = vst [vmem:[%s3 + $0x34] sm:$0xf] %v691
  %708 = vst [vmem:[%s3 + $0x38] sm:$0xf] %v692
  %709 = vst [vmem:[%s3 + $0x3c] sm:$0xf] %v693
  // Predicated region
  $region14: #{pilot_net_forward.9} parent=0 // pred_check
    _
  $region15: #{pilot_net_forward.9} parent=0 // pred_check_branch
    %711 = sbr.rel (0) target = $region17
  $region16: #{pilot_net_forward.9} parent=0 // pred_region
    _
  $region17: #{pilot_net_forward.9} parent=0 // pred_fallthru
    _
  // Predicated region
  $region18: #{pilot_net_forward.9} parent=0 // pred_check
    _
  $region19: #{pilot_net_forward.9} parent=0 // pred_check_branch
    %713 = sbr.rel (0) target = $region21
  $region20: #{pilot_net_forward.9} parent=0 // pred_region
    _
  $region21: #{pilot_net_forward.9} parent=0 // pred_fallthru
    _

// kernel: pilot_net_forward.10
$region0: #{pilot_net_forward.10}
  #allocation0 [shape = 'u32[]', space=smem, size = 0x4, offset = 0x4, fixed_abs, tag = 'smem constant byte address 0x4 - core index']
  #allocation1 [shape = 'u32[72,128]{1,0:T(1,128)}', space=vmem, size = 0x9000, scoped, tag = 'internal scratch']
  %s0 = inlined_call_operand.vmem [shape: bf16[48,640], index: 0, kind: input, shape index: {}]
  %s1 = inlined_call_operand.vmem [shape: bf16[640,128], index: 1, kind: input, shape index: {}]
  %s2 = inlined_call_operand.vmem [shape: f32[1,128], index: 2, kind: input, shape index: {}]
  %s3 = inlined_call_operand.vmem [shape: bf16[48,128], index: 3, kind: output, shape index: {}]
  %s4 = sld [smem:[#allocation0]]
  $region22: #{pilot_net_forward.10} parent=0
    _
  %s6 = ssub.s32 1, %s4
  %s7 = scalar_select 0, %s6, %s4
  // Predicated region
  $region2: #{pilot_net_forward.10} parent=0 // pred_check
    _
  $region3: #{pilot_net_forward.10} parent=0 // pred_check_branch
    %9 = sbr.rel (0) target = $region5
  $region4: #{pilot_net_forward.10} parent=0 // pred_region
    _
  $region5: #{pilot_net_forward.10} parent=0 // pred_fallthru
    _
  // Predicated region
  $region6: #{pilot_net_forward.10} parent=0 // pred_check
    _
  $region7: #{pilot_net_forward.10} parent=0 // pred_check_branch
    %11 = sbr.rel (0) target = $region9
  $region8: #{pilot_net_forward.10} parent=0 // pred_region
    _
  $region9: #{pilot_net_forward.10} parent=0 // pred_fallthru
    _
  // Predicated region
  $region10: #{pilot_net_forward.10} parent=0 // pred_check
    _
  $region11: #{pilot_net_forward.10} parent=0 // pred_check_branch
    %13 = sbr.rel (0) target = $region13
  $region12: #{pilot_net_forward.10} parent=0 // pred_region
    _
  $region13: #{pilot_net_forward.10} parent=0 // pred_fallthru
    _
  %v14 = vld [vmem:[%s0] sm:$0xff]
  %v15 = vld [vmem:[%s0 + $0x8] sm:$0xff]
  %v16 = vld [vmem:[%s0 + $0x10] sm:$0xf]
  %v17 = vld [vmem:[%s0 + $0x14] sm:$0xff]
  %v18 = vld [vmem:[%s0 + $0x1c] sm:$0xff]
  %v19 = vld [vmem:[%s0 + $0x24] sm:$0xf]
  %v20 = vld [vmem:[%s0 + $0x28] sm:$0xff]
  %v21 = vld [vmem:[%s0 + $0x30] sm:$0xff]
  %v22 = vld [vmem:[%s0 + $0x38] sm:$0xf]
  %v23 = vld [vmem:[%s0 + $0x3c] sm:$0xff]
  %v24 = vld [vmem:[%s0 + $0x44] sm:$0xff]
  %v25 = vld [vmem:[%s0 + $0x4c] sm:$0xf]
  %v26 = vld [vmem:[%s0 + $0x50] sm:$0xff]
  %v27 = vld [vmem:[%s0 + $0x58] sm:$0xff]
  %v28 = vld [vmem:[%s0 + $0x60] sm:$0xf]
  %v29 = vld [vmem:[%s0 + $0x64] sm:$0xff]
  %v30 = vld [vmem:[%s0 + $0x6c] sm:$0xff]
  %v31 = vld [vmem:[%s0 + $0x74] sm:$0xf]
  %v32 = vld [vmem:[%s1] sm:$0xf]
  %v33 = vld [vmem:[%s1 + $0x4] sm:$0xf]
  %v34 = vld [vmem:[%s1 + $0x8] sm:$0xf]
  %v35 = vld [vmem:[%s1 + $0xc] sm:$0xf]
  %v36 = vld [vmem:[%s1 + $0x10] sm:$0xf]
  %v37 = vld [vmem:[%s1 + $0x14] sm:$0xf]
  %v38 = vld [vmem:[%s1 + $0x18] sm:$0xf]
  %v39 = vld [vmem:[%s1 + $0x1c] sm:$0xf]
  %v40 = vld [vmem:[%s1 + $0x20] sm:$0xf]
  %v41 = vld [vmem:[%s1 + $0x24] sm:$0xf]
  %v42 = vld [vmem:[%s1 + $0x28] sm:$0xf]
  %v43 = vld [vmem:[%s1 + $0x2c] sm:$0xf]
  %v44 = vld [vmem:[%s1 + $0x30] sm:$0xf]
  %v45 = vld [vmem:[%s1 + $0x34] sm:$0xf]
  %v46 = vld [vmem:[%s1 + $0x38] sm:$0xf]
  %v47 = vld [vmem:[%s1 + $0x3c] sm:$0xf]
  %v48 = vld [vmem:[%s1 + $0x40] sm:$0xf]
  %v49 = vld [vmem:[%s1 + $0x44] sm:$0xf]
  %v50 = vld [vmem:[%s1 + $0x48] sm:$0xf]
  %v51 = vld [vmem:[%s1 + $0x4c] sm:$0xf]
  %v52 = vld [vmem:[%s1 + $0x50] sm:$0xf]
  %v53 = vld [vmem:[%s1 + $0x54] sm:$0xf]
  %v54 = vld [vmem:[%s1 + $0x58] sm:$0xf]
  %v55 = vld [vmem:[%s1 + $0x5c] sm:$0xf]
  %v56 = vld [vmem:[%s1 + $0x60] sm:$0xf]
  %v57 = vld [vmem:[%s1 + $0x64] sm:$0xf]
  %v58 = vld [vmem:[%s1 + $0x68] sm:$0xf]
  %v59 = vld [vmem:[%s1 + $0x6c] sm:$0xf]
  %v60 = vld [vmem:[%s1 + $0x70] sm:$0xf]
  %v61 = vld [vmem:[%s1 + $0x74] sm:$0xf]
  %v62 = vld [vmem:[%s1 + $0x78] sm:$0xf]
  %v63 = vld [vmem:[%s1 + $0x7c] sm:$0xf]
  %v64 = vld [vmem:[%s1 + $0x80] sm:$0xf]
  %v65 = vld [vmem:[%s1 + $0x84] sm:$0xf]
  %v66 = vld [vmem:[%s1 + $0x88] sm:$0xf]
  %v67 = vld [vmem:[%s1 + $0x8c] sm:$0xf]
  %v68 = vld [vmem:[%s1 + $0x90] sm:$0xf]
  %v69 = vld [vmem:[%s1 + $0x94] sm:$0xf]
  %v70 = vld [vmem:[%s1 + $0x98] sm:$0xf]
  %v71 = vld [vmem:[%s1 + $0x9c] sm:$0xf]
  %v72 = vld [vmem:[%s1 + $0xa0] sm:$0xf]
  %v73 = vld [vmem:[%s1 + $0xa4] sm:$0xf]
  %v74 = vld [vmem:[%s1 + $0xa8] sm:$0xf]
  %v75 = vld [vmem:[%s1 + $0xac] sm:$0xf]
  %v76 = vld [vmem:[%s1 + $0xb0] sm:$0xf]
  %v77 = vld [vmem:[%s1 + $0xb4] sm:$0xf]
  %v78 = vld [vmem:[%s1 + $0xb8] sm:$0xf]
  %v79 = vld [vmem:[%s1 + $0xbc] sm:$0xf]
  %v80 = vld [vmem:[%s1 + $0xc0] sm:$0xf]
  %v81 = vld [vmem:[%s1 + $0xc4] sm:$0xf]
  %v82 = vld [vmem:[%s1 + $0xc8] sm:$0xf]
  %v83 = vld [vmem:[%s1 + $0xcc] sm:$0xf]
  %v84 = vld [vmem:[%s1 + $0xd0] sm:$0xf]
  %v85 = vld [vmem:[%s1 + $0xd4] sm:$0xf]
  %v86 = vld [vmem:[%s1 + $0xd8] sm:$0xf]
  %v87 = vld [vmem:[%s1 + $0xdc] sm:$0xf]
  %v88 = vld [vmem:[%s1 + $0xe0] sm:$0xf]
  %v89 = vld [vmem:[%s1 + $0xe4] sm:$0xf]
  %v90 = vld [vmem:[%s1 + $0xe8] sm:$0xf]
  %v91 = vld [vmem:[%s1 + $0xec] sm:$0xf]
  %v92 = vld [vmem:[%s1 + $0xf0] sm:$0xf]
  %v93 = vld [vmem:[%s1 + $0xf4] sm:$0xf]
  %v94 = vld [vmem:[%s1 + $0xf8] sm:$0xf]
  %v95 = vld [vmem:[%s1 + $0xfc] sm:$0xf]
  %v96 = vld [vmem:[%s1 + $0x100] sm:$0xf]
  %v97 = vld [vmem:[%s1 + $0x104] sm:$0xf]
  %v98 = vld [vmem:[%s1 + $0x108] sm:$0xf]
  %v99 = vld [vmem:[%s1 + $0x10c] sm:$0xf]
  %v100 = vld [vmem:[%s1 + $0x110] sm:$0xf]
  %v101 = vld [vmem:[%s1 + $0x114] sm:$0xf]
  %v102 = vld [vmem:[%s1 + $0x118] sm:$0xf]
  %v103 = vld [vmem:[%s1 + $0x11c] sm:$0xf]
  %v104 = vld [vmem:[%s1 + $0x120] sm:$0xf]
  %v105 = vld [vmem:[%s1 + $0x124] sm:$0xf]
  %v106 = vld [vmem:[%s1 + $0x128] sm:$0xf]
  %v107 = vld [vmem:[%s1 + $0x12c] sm:$0xf]
  %v108 = vld [vmem:[%s1 + $0x130] sm:$0xf]
  %v109 = vld [vmem:[%s1 + $0x134] sm:$0xf]
  %v110 = vld [vmem:[%s1 + $0x138] sm:$0xf]
  %v111 = vld [vmem:[%s1 + $0x13c] sm:$0xf]
  %v112 = vld [vmem:[%s2] sm:$0x1]
  %v114 = vperm.slane %v112, 0
  %v134 = vunpack.c.l.b16 %v14
  %v135 = vunpack.c.h.b16 %v14
  %v136 = vunpack.c.l.b16 %v15
  %v137 = vunpack.c.h.b16 %v15
  %v138 = vunpack.c.l.b16 %v16
  %v139 = vunpack.c.l.b16 %v17
  %v140 = vunpack.c.h.b16 %v17
  %v141 = vunpack.c.l.b16 %v18
  %v142 = vunpack.c.h.b16 %v18
  %v143 = vunpack.c.l.b16 %v19
  %v144 = vunpack.c.l.b16 %v20
  %v145 = vunpack.c.h.b16 %v20
  %v146 = vunpack.c.l.b16 %v21
  %v147 = vunpack.c.h.b16 %v21
  %v148 = vunpack.c.l.b16 %v22
  %v149 = vunpack.c.l.b16 %v23
  %v150 = vunpack.c.h.b16 %v23
  %v151 = vunpack.c.l.b16 %v24
  %v152 = vunpack.c.h.b16 %v24
  %v153 = vunpack.c.l.b16 %v25
  %v154 = vunpack.c.l.b16 %v26
  %v155 = vunpack.c.h.b16 %v26
  %v156 = vunpack.c.l.b16 %v27
  %v157 = vunpack.c.h.b16 %v27
  %v158 = vunpack.c.l.b16 %v28
  %v159 = vunpack.c.l.b16 %v29
  %v160 = vunpack.c.h.b16 %v29
  %v161 = vunpack.c.l.b16 %v30
  %v162 = vunpack.c.h.b16 %v30
  %v163 = vunpack.c.l.b16 %v31
  %v164 = vpack.c.b16 %v139, %v134
  %v165 = vpack.c.b16 %v140, %v135
  %v166 = vpack.c.b16 %v141, %v136
  %v167 = vpack.c.b16 %v142, %v137
  %v168 = vpack.c.b16 %v143, %v138
  %v169 = vpack.c.b16 %v149, %v144
  %v170 = vpack.c.b16 %v150, %v145
  %v171 = vpack.c.b16 %v151, %v146
  %v172 = vpack.c.b16 %v152, %v147
  %v173 = vpack.c.b16 %v153, %v148
  %v174 = vpack.c.b16 %v159, %v154
  %v175 = vpack.c.b16 %v160, %v155
  %v176 = vpack.c.b16 %v161, %v156
  %v177 = vpack.c.b16 %v162, %v157
  %v178 = vpack.c.b16 %v163, %v158
  %v274 = vunpack.c.l.b16 %v32
  %v275 = vunpack.c.l.b16 %v33
  %v276 = vunpack.c.l.b16 %v34
  %v277 = vunpack.c.l.b16 %v35
  %v278 = vunpack.c.l.b16 %v36
  %v279 = vunpack.c.l.b16 %v37
  %v280 = vunpack.c.l.b16 %v38
  %v281 = vunpack.c.l.b16 %v39
  %v282 = vunpack.c.l.b16 %v40
  %v283 = vunpack.c.l.b16 %v41
  %v284 = vunpack.c.l.b16 %v42
  %v285 = vunpack.c.l.b16 %v43
  %v286 = vunpack.c.l.b16 %v44
  %v287 = vunpack.c.l.b16 %v45
  %v288 = vunpack.c.l.b16 %v46
  %v289 = vunpack.c.l.b16 %v47
  %v290 = vunpack.c.l.b16 %v48
  %v291 = vunpack.c.l.b16 %v49
  %v292 = vunpack.c.l.b16 %v50
  %v293 = vunpack.c.l.b16 %v51
  %v294 = vunpack.c.l.b16 %v52
  %v295 = vunpack.c.l.b16 %v53
  %v296 = vunpack.c.l.b16 %v54
  %v297 = vunpack.c.l.b16 %v55
  %v298 = vunpack.c.l.b16 %v56
  %v299 = vunpack.c.l.b16 %v57
  %v300 = vunpack.c.l.b16 %v58
  %v301 = vunpack.c.l.b16 %v59
  %v302 = vunpack.c.l.b16 %v60
  %v303 = vunpack.c.l.b16 %v61
  %v304 = vunpack.c.l.b16 %v62
  %v305 = vunpack.c.l.b16 %v63
  %v306 = vunpack.c.l.b16 %v64
  %v307 = vunpack.c.l.b16 %v65
  %v308 = vunpack.c.l.b16 %v66
  %v309 = vunpack.c.l.b16 %v67
  %v310 = vunpack.c.l.b16 %v68
  %v311 = vunpack.c.l.b16 %v69
  %v312 = vunpack.c.l.b16 %v70
  %v313 = vunpack.c.l.b16 %v71
  %v314 = vunpack.c.l.b16 %v72
  %v315 = vunpack.c.l.b16 %v73
  %v316 = vunpack.c.l.b16 %v74
  %v317 = vunpack.c.l.b16 %v75
  %v318 = vunpack.c.l.b16 %v76
  %v319 = vunpack.c.l.b16 %v77
  %v320 = vunpack.c.l.b16 %v78
  %v321 = vunpack.c.l.b16 %v79
  %v322 = vunpack.c.l.b16 %v80
  %v323 = vunpack.c.l.b16 %v81
  %v324 = vunpack.c.l.b16 %v82
  %v325 = vunpack.c.l.b16 %v83
  %v326 = vunpack.c.l.b16 %v84
  %v327 = vunpack.c.l.b16 %v85
  %v328 = vunpack.c.l.b16 %v86
  %v329 = vunpack.c.l.b16 %v87
  %v330 = vunpack.c.l.b16 %v88
  %v331 = vunpack.c.l.b16 %v89
  %v332 = vunpack.c.l.b16 %v90
  %v333 = vunpack.c.l.b16 %v91
  %v334 = vunpack.c.l.b16 %v92
  %v335 = vunpack.c.l.b16 %v93
  %v336 = vunpack.c.l.b16 %v94
  %v337 = vunpack.c.l.b16 %v95
  %v338 = vunpack.c.l.b16 %v96
  %v339 = vunpack.c.l.b16 %v97
  %v340 = vunpack.c.l.b16 %v98
  %v341 = vunpack.c.l.b16 %v99
  %v342 = vunpack.c.l.b16 %v100
  %v343 = vunpack.c.l.b16 %v101
  %v344 = vunpack.c.l.b16 %v102
  %v345 = vunpack.c.l.b16 %v103
  %v346 = vunpack.c.l.b16 %v104
  %v347 = vunpack.c.l.b16 %v105
  %v348 = vunpack.c.l.b16 %v106
  %v349 = vunpack.c.l.b16 %v107
  %v350 = vunpack.c.l.b16 %v108
  %v351 = vunpack.c.l.b16 %v109
  %v352 = vunpack.c.l.b16 %v110
  %v353 = vunpack.c.l.b16 %v111
  %v354 = vpack.c.b16 %v275, %v274
  %v355 = vpack.c.b16 %v277, %v276
  %v356 = vpack.c.b16 %v279, %v278
  %v357 = vpack.c.b16 %v281, %v280
  %v358 = vpack.c.b16 %v283, %v282
  %v359 = vpack.c.b16 %v285, %v284
  %v360 = vpack.c.b16 %v287, %v286
  %v361 = vpack.c.b16 %v289, %v288
  %v362 = vpack.c.b16 %v291, %v290
  %v363 = vpack.c.b16 %v293, %v292
  %v364 = vpack.c.b16 %v295, %v294
  %v365 = vpack.c.b16 %v297, %v296
  %v366 = vpack.c.b16 %v299, %v298
  %v367 = vpack.c.b16 %v301, %v300
  %v368 = vpack.c.b16 %v303, %v302
  %v369 = vpack.c.b16 %v305, %v304
  %v370 = vpack.c.b16 %v307, %v306
  %v371 = vpack.c.b16 %v309, %v308
  %v372 = vpack.c.b16 %v311, %v310
  %v373 = vpack.c.b16 %v313, %v312
  %v374 = vpack.c.b16 %v315, %v314
  %v375 = vpack.c.b16 %v317, %v316
  %v376 = vpack.c.b16 %v319, %v318
  %v377 = vpack.c.b16 %v321, %v320
  %v378 = vpack.c.b16 %v323, %v322
  %v379 = vpack.c.b16 %v325, %v324
  %v380 = vpack.c.b16 %v327, %v326
  %v381 = vpack.c.b16 %v329, %v328
  %v382 = vpack.c.b16 %v331, %v330
  %v383 = vpack.c.b16 %v333, %v332
  %v384 = vpack.c.b16 %v335, %v334
  %v385 = vpack.c.b16 %v337, %v336
  %v386 = vpack.c.b16 %v339, %v338
  %v387 = vpack.c.b16 %v341, %v340
  %v388 = vpack.c.b16 %v343, %v342
  %v389 = vpack.c.b16 %v345, %v344
  %v390 = vpack.c.b16 %v347, %v346
  %v391 = vpack.c.b16 %v349, %v348
  %v392 = vpack.c.b16 %v351, %v350
  %v393 = vpack.c.b16 %v353, %v352
  %434 = vmatpush.bf16.msra.mxu0 %v361
  %435 = vmatpush.bf16.msra.mxu0 %v360
  %436 = vmatpush.bf16.msra.mxu0 %v359
  %437 = vmatpush.bf16.msra.mxu0 %v358
  %438 = vmatpush.bf16.msra.mxu0 %v357
  %439 = vmatpush.bf16.msra.mxu0 %v356
  %440 = vmatpush.bf16.msra.mxu0 %v355
  %441 = vmatpush.bf16.msra.mxu0 %v354
  %442 = vmatmul.bf16.gmra.mxu0 %v164
  %v443 = vpop.f32.mrf.mxu0
  %v444 = vadd.f32 %v114, %v443
  %v445 = vpop.f32.mrf.mxu0
  %v446 = vadd.f32 %v114, %v445
  %447 = vmatmul.bf16.gmra.mxu0 %v169
  %v448 = vpop.f32.mrf.mxu0
  %v449 = vadd.f32 %v114, %v448
  %v450 = vpop.f32.mrf.mxu0
  %v451 = vadd.f32 %v114, %v450
  %452 = vmatmul.bf16.gmra.mxu0 %v174
  %v453 = vpop.f32.mrf.mxu0
  %v454 = vadd.f32 %v114, %v453
  %v455 = vpop.f32.mrf.mxu0
  %v456 = vadd.f32 %v114, %v455
  %457 = vdwg.mxu0
  %458 = vmatpush.bf16.msra.mxu0 %v369
  %459 = vmatpush.bf16.msra.mxu0 %v368
  %460 = vmatpush.bf16.msra.mxu0 %v367
  %461 = vmatpush.bf16.msra.mxu0 %v366
  %462 = vmatpush.bf16.msra.mxu0 %v365
  %463 = vmatpush.bf16.msra.mxu0 %v364
  %464 = vmatpush.bf16.msra.mxu0 %v363
  %465 = vmatpush.bf16.msra.mxu0 %v362
  %466 = vmatmul.bf16.gmra.mxu0 %v165
  %v467 = vpop.f32.mrf.mxu0
  %v468 = vadd.f32 %v444, %v467
  %v469 = vpop.f32.mrf.mxu0
  %v470 = vadd.f32 %v446, %v469
  %471 = vmatmul.bf16.gmra.mxu0 %v170
  %v472 = vpop.f32.mrf.mxu0
  %v473 = vadd.f32 %v449, %v472
  %v474 = vpop.f32.mrf.mxu0
  %v475 = vadd.f32 %v451, %v474
  %476 = vmatmul.bf16.gmra.mxu0 %v175
  %v477 = vpop.f32.mrf.mxu0
  %v478 = vadd.f32 %v454, %v477
  %v479 = vpop.f32.mrf.mxu0
  %v480 = vadd.f32 %v456, %v479
  %481 = vdwg.mxu0
  %482 = vmatpush.bf16.msra.mxu0 %v377
  %483 = vmatpush.bf16.msra.mxu0 %v376
  %484 = vmatpush.bf16.msra.mxu0 %v375
  %485 = vmatpush.bf16.msra.mxu0 %v374
  %486 = vmatpush.bf16.msra.mxu0 %v373
  %487 = vmatpush.bf16.msra.mxu0 %v372
  %488 = vmatpush.bf16.msra.mxu0 %v371
  %489 = vmatpush.bf16.msra.mxu0 %v370
  %490 = vmatmul.bf16.gmra.mxu0 %v166
  %v491 = vpop.f32.mrf.mxu0
  %v492 = vadd.f32 %v468, %v491
  %v493 = vpop.f32.mrf.mxu0
  %v494 = vadd.f32 %v470, %v493
  %495 = vmatmul.bf16.gmra.mxu0 %v171
  %v496 = vpop.f32.mrf.mxu0
  %v497 = vadd.f32 %v473, %v496
  %v498 = vpop.f32.mrf.mxu0
  %v499 = vadd.f32 %v475, %v498
  %500 = vmatmul.bf16.gmra.mxu0 %v176
  %v501 = vpop.f32.mrf.mxu0
  %v502 = vadd.f32 %v478, %v501
  %v503 = vpop.f32.mrf.mxu0
  %v504 = vadd.f32 %v480, %v503
  %505 = vdwg.mxu0
  %506 = vmatpush.bf16.msra.mxu0 %v385
  %507 = vmatpush.bf16.msra.mxu0 %v384
  %508 = vmatpush.bf16.msra.mxu0 %v383
  %509 = vmatpush.bf16.msra.mxu0 %v382
  %510 = vmatpush.bf16.msra.mxu0 %v381
  %511 = vmatpush.bf16.msra.mxu0 %v380
  %512 = vmatpush.bf16.msra.mxu0 %v379
  %513 = vmatpush.bf16.msra.mxu0 %v378
  %514 = vmatmul.bf16.gmra.mxu0 %v167
  %v515 = vpop.f32.mrf.mxu0
  %v516 = vadd.f32 %v492, %v515
  %v517 = vpop.f32.mrf.mxu0
  %v518 = vadd.f32 %v494, %v517
  %519 = vmatmul.bf16.gmra.mxu0 %v172
  %v520 = vpop.f32.mrf.mxu0
  %v521 = vadd.f32 %v497, %v520
  %v522 = vpop.f32.mrf.mxu0
  %v523 = vadd.f32 %v499, %v522
  %524 = vmatmul.bf16.gmra.mxu0 %v177
  %v525 = vpop.f32.mrf.mxu0
  %v526 = vadd.f32 %v502, %v525
  %v527 = vpop.f32.mrf.mxu0
  %v528 = vadd.f32 %v504, %v527
  %529 = vdwg.mxu0
  %530 = vmatpush.bf16.msra.mxu0 %v393
  %531 = vmatpush.bf16.msra.mxu0 %v392
  %532 = vmatpush.bf16.msra.mxu0 %v391
  %533 = vmatpush.bf16.msra.mxu0 %v390
  %534 = vmatpush.bf16.msra.mxu0 %v389
  %535 = vmatpush.bf16.msra.mxu0 %v388
  %536 = vmatpush.bf16.msra.mxu0 %v387
  %537 = vmatpush.bf16.msra.mxu0 %v386
  %538 = vmatmul.bf16.gmra.mxu0 %v168
  %v539 = vpop.f32.mrf.mxu0
  %v540 = vadd.f32 %v516, %v539
  %v541 = vpop.f32.mrf.mxu0
  %v542 = vadd.f32 %v518, %v541
  %543 = vmatmul.bf16.gmra.mxu0 %v173
  %v544 = vpop.f32.mrf.mxu0
  %v545 = vadd.f32 %v521, %v544
  %v546 = vpop.f32.mrf.mxu0
  %v547 = vadd.f32 %v523, %v546
  %548 = vmatmul.bf16.gmra.mxu0 %v178
  %v549 = vpop.f32.mrf.mxu0
  %v550 = vadd.f32 %v526, %v549
  %v551 = vpop.f32.mrf.mxu0
  %v552 = vadd.f32 %v528, %v551
  %553 = vdwg.mxu0
  %v554 = vmax.f32 %v540, 0.0
  %v555 = vmax.f32 %v542, 0.0
  %v556 = vmax.f32 %v545, 0.0
  %v557 = vmax.f32 %v547, 0.0
  %v558 = vmax.f32 %v550, 0.0
  %v559 = vmax.f32 %v552, 0.0
  %v560 = vpack.c.bf16 %v554, %v554
  %v561 = vpack.c.bf16 %v555, %v555
  %v562 = vpack.c.bf16 %v556, %v556
  %v563 = vpack.c.bf16 %v557, %v557
  %v564 = vpack.c.bf16 %v558, %v558
  %v565 = vpack.c.bf16 %v559, %v559
  %566 = vst [vmem:[%s3] sm:$0xf] %v560
  %567 = vst [vmem:[%s3 + $0x4] sm:$0xf] %v561
  %568 = vst [vmem:[%s3 + $0x8] sm:$0xf] %v562
  %569 = vst [vmem:[%s3 + $0xc] sm:$0xf] %v563
  %570 = vst [vmem:[%s3 + $0x10] sm:$0xf] %v564
  %571 = vst [vmem:[%s3 + $0x14] sm:$0xf] %v565
  // Predicated region
  $region14: #{pilot_net_forward.10} parent=0 // pred_check
    _
  $region15: #{pilot_net_forward.10} parent=0 // pred_check_branch
    %573 = sbr.rel (0) target = $region17
  $region16: #{pilot_net_forward.10} parent=0 // pred_region
    _
  $region17: #{pilot_net_forward.10} parent=0 // pred_fallthru
    _
  // Predicated region
  $region18: #{pilot_net_forward.10} parent=0 // pred_check
    _
  $region19: #{pilot_net_forward.10} parent=0 // pred_check_branch
    %575 = sbr.rel (0) target = $region21
  $region20: #{pilot_net_forward.10} parent=0 // pred_region
    _
  $region21: #{pilot_net_forward.10} parent=0 // pred_fallthru
    _

// kernel: pilot_net_forward.11
$region0: #{pilot_net_forward.11}
  #allocation0 [shape = 'u32[]', space=smem, size = 0x4, offset = 0x4, fixed_abs, tag = 'smem constant byte address 0x4 - core index']
  #allocation1 [shape = 'u32[72,128]{1,0:T(1,128)}', space=vmem, size = 0x9000, scoped, tag = 'internal scratch']
  %s0 = inlined_call_operand.vmem [shape: bf16[8,1152], index: 0, kind: input, shape index: {}]
  %s1 = inlined_call_operand.vmem [shape: bf16[1152,128], index: 1, kind: input, shape index: {}]
  %s2 = inlined_call_operand.vmem [shape: f32[1,128], index: 2, kind: input, shape index: {}]
  %s3 = inlined_call_operand.vmem [shape: bf16[128,128], index: 3, kind: input, shape index: {}]
  %s4 = inlined_call_operand.vmem [shape: f32[1,128], index: 4, kind: input, shape index: {}]
  %s5 = inlined_call_operand.vmem [shape: bf16[128,128], index: 5, kind: input, shape index: {}]
  %s6 = inlined_call_operand.vmem [shape: f32[1,128], index: 6, kind: input, shape index: {}]
  %s7 = inlined_call_operand.vmem [shape: bf16[128,128], index: 7, kind: input, shape index: {}]
  %s8 = inlined_call_operand.vmem [shape: f32[1,128], index: 8, kind: input, shape index: {}]
  %s9 = inlined_call_operand.vmem [shape: f32[8,128], index: 9, kind: output, shape index: {}]
  %s10 = sld [smem:[#allocation0]]
  $region46: #{pilot_net_forward.11} parent=0
    _
  %s12 = ssub.s32 1, %s10
  %s13 = scalar_select 0, %s12, %s10
  // Predicated region
  $region2: #{pilot_net_forward.11} parent=0 // pred_check
    _
  $region3: #{pilot_net_forward.11} parent=0 // pred_check_branch
    %15 = sbr.rel (0) target = $region5
  $region4: #{pilot_net_forward.11} parent=0 // pred_region
    _
  $region5: #{pilot_net_forward.11} parent=0 // pred_fallthru
    _
  // Predicated region
  $region6: #{pilot_net_forward.11} parent=0 // pred_check
    _
  $region7: #{pilot_net_forward.11} parent=0 // pred_check_branch
    %17 = sbr.rel (0) target = $region9
  $region8: #{pilot_net_forward.11} parent=0 // pred_region
    _
  $region9: #{pilot_net_forward.11} parent=0 // pred_fallthru
    _
  // Predicated region
  $region10: #{pilot_net_forward.11} parent=0 // pred_check
    _
  $region11: #{pilot_net_forward.11} parent=0 // pred_check_branch
    %19 = sbr.rel (0) target = $region13
  $region12: #{pilot_net_forward.11} parent=0 // pred_region
    _
  $region13: #{pilot_net_forward.11} parent=0 // pred_fallthru
    _
  // Predicated region
  $region14: #{pilot_net_forward.11} parent=0 // pred_check
    _
  $region15: #{pilot_net_forward.11} parent=0 // pred_check_branch
    %21 = sbr.rel (0) target = $region17
  $region16: #{pilot_net_forward.11} parent=0 // pred_region
    _
  $region17: #{pilot_net_forward.11} parent=0 // pred_fallthru
    _
  // Predicated region
  $region18: #{pilot_net_forward.11} parent=0 // pred_check
    _
  $region19: #{pilot_net_forward.11} parent=0 // pred_check_branch
    %23 = sbr.rel (0) target = $region21
  $region20: #{pilot_net_forward.11} parent=0 // pred_region
    _
  $region21: #{pilot_net_forward.11} parent=0 // pred_fallthru
    _
  // Predicated region
  $region22: #{pilot_net_forward.11} parent=0 // pred_check
    _
  $region23: #{pilot_net_forward.11} parent=0 // pred_check_branch
    %25 = sbr.rel (0) target = $region25
  $region24: #{pilot_net_forward.11} parent=0 // pred_region
    _
  $region25: #{pilot_net_forward.11} parent=0 // pred_fallthru
    _
  // Predicated region
  $region26: #{pilot_net_forward.11} parent=0 // pred_check
    _
  $region27: #{pilot_net_forward.11} parent=0 // pred_check_branch
    %27 = sbr.rel (0) target = $region29
  $region28: #{pilot_net_forward.11} parent=0 // pred_region
    _
  $region29: #{pilot_net_forward.11} parent=0 // pred_fallthru
    _
  // Predicated region
  $region30: #{pilot_net_forward.11} parent=0 // pred_check
    _
  $region31: #{pilot_net_forward.11} parent=0 // pred_check_branch
    %29 = sbr.rel (0) target = $region33
  $region32: #{pilot_net_forward.11} parent=0 // pred_region
    _
  $region33: #{pilot_net_forward.11} parent=0 // pred_fallthru
    _
  // Predicated region
  $region34: #{pilot_net_forward.11} parent=0 // pred_check
    _
  $region35: #{pilot_net_forward.11} parent=0 // pred_check_branch
    %31 = sbr.rel (0) target = $region37
  $region36: #{pilot_net_forward.11} parent=0 // pred_region
    _
  $region37: #{pilot_net_forward.11} parent=0 // pred_fallthru
    _
  %v32 = vld [vmem:[%s0] sm:$0xff]
  %v33 = vld [vmem:[%s0 + $0x8] sm:$0xff]
  %v34 = vld [vmem:[%s0 + $0x10] sm:$0xff]
  %v35 = vld [vmem:[%s0 + $0x18] sm:$0xff]
  %v36 = vld [vmem:[%s0 + $0x20] sm:$0xf]
  %v37 = vld [vmem:[%s1] sm:$0xf]
  %v38 = vld [vmem:[%s1 + $0x4] sm:$0xf]
  %v39 = vld [vmem:[%s1 + $0x8] sm:$0xf]
  %v40 = vld [vmem:[%s1 + $0xc] sm:$0xf]
  %v41 = vld [vmem:[%s1 + $0x10] sm:$0xf]
  %v42 = vld [vmem:[%s1 + $0x14] sm:$0xf]
  %v43 = vld [vmem:[%s1 + $0x18] sm:$0xf]
  %v44 = vld [vmem:[%s1 + $0x1c] sm:$0xf]
  %v45 = vld [vmem:[%s1 + $0x20] sm:$0xf]
  %v46 = vld [vmem:[%s1 + $0x24] sm:$0xf]
  %v47 = vld [vmem:[%s1 + $0x28] sm:$0xf]
  %v48 = vld [vmem:[%s1 + $0x2c] sm:$0xf]
  %v49 = vld [vmem:[%s1 + $0x30] sm:$0xf]
  %v50 = vld [vmem:[%s1 + $0x34] sm:$0xf]
  %v51 = vld [vmem:[%s1 + $0x38] sm:$0xf]
  %v52 = vld [vmem:[%s1 + $0x3c] sm:$0xf]
  %v53 = vld [vmem:[%s1 + $0x40] sm:$0xf]
  %v54 = vld [vmem:[%s1 + $0x44] sm:$0xf]
  %v55 = vld [vmem:[%s1 + $0x48] sm:$0xf]
  %v56 = vld [vmem:[%s1 + $0x4c] sm:$0xf]
  %v57 = vld [vmem:[%s1 + $0x50] sm:$0xf]
  %v58 = vld [vmem:[%s1 + $0x54] sm:$0xf]
  %v59 = vld [vmem:[%s1 + $0x58] sm:$0xf]
  %v60 = vld [vmem:[%s1 + $0x5c] sm:$0xf]
  %v61 = vld [vmem:[%s1 + $0x60] sm:$0xf]
  %v62 = vld [vmem:[%s1 + $0x64] sm:$0xf]
  %v63 = vld [vmem:[%s1 + $0x68] sm:$0xf]
  %v64 = vld [vmem:[%s1 + $0x6c] sm:$0xf]
  %v65 = vld [vmem:[%s1 + $0x70] sm:$0xf]
  %v66 = vld [vmem:[%s1 + $0x74] sm:$0xf]
  %v67 = vld [vmem:[%s1 + $0x78] sm:$0xf]
  %v68 = vld [vmem:[%s1 + $0x7c] sm:$0xf]
  %v69 = vld [vmem:[%s1 + $0x80] sm:$0xf]
  %v70 = vld [vmem:[%s1 + $0x84] sm:$0xf]
  %v71 = vld [vmem:[%s1 + $0x88] sm:$0xf]
  %v72 = vld [vmem:[%s1 + $0x8c] sm:$0xf]
  %v73 = vld [vmem:[%s1 + $0x90] sm:$0xf]
  %v74 = vld [vmem:[%s1 + $0x94] sm:$0xf]
  %v75 = vld [vmem:[%s1 + $0x98] sm:$0xf]
  %v76 = vld [vmem:[%s1 + $0x9c] sm:$0xf]
  %v77 = vld [vmem:[%s1 + $0xa0] sm:$0xf]
  %v78 = vld [vmem:[%s1 + $0xa4] sm:$0xf]
  %v79 = vld [vmem:[%s1 + $0xa8] sm:$0xf]
  %v80 = vld [vmem:[%s1 + $0xac] sm:$0xf]
  %v81 = vld [vmem:[%s1 + $0xb0] sm:$0xf]
  %v82 = vld [vmem:[%s1 + $0xb4] sm:$0xf]
  %v83 = vld [vmem:[%s1 + $0xb8] sm:$0xf]
  %v84 = vld [vmem:[%s1 + $0xbc] sm:$0xf]
  %v85 = vld [vmem:[%s1 + $0xc0] sm:$0xf]
  %v86 = vld [vmem:[%s1 + $0xc4] sm:$0xf]
  %v87 = vld [vmem:[%s1 + $0xc8] sm:$0xf]
  %v88 = vld [vmem:[%s1 + $0xcc] sm:$0xf]
  %v89 = vld [vmem:[%s1 + $0xd0] sm:$0xf]
  %v90 = vld [vmem:[%s1 + $0xd4] sm:$0xf]
  %v91 = vld [vmem:[%s1 + $0xd8] sm:$0xf]
  %v92 = vld [vmem:[%s1 + $0xdc] sm:$0xf]
  %v93 = vld [vmem:[%s1 + $0xe0] sm:$0xf]
  %v94 = vld [vmem:[%s1 + $0xe4] sm:$0xf]
  %v95 = vld [vmem:[%s1 + $0xe8] sm:$0xf]
  %v96 = vld [vmem:[%s1 + $0xec] sm:$0xf]
  %v97 = vld [vmem:[%s1 + $0xf0] sm:$0xf]
  %v98 = vld [vmem:[%s1 + $0xf4] sm:$0xf]
  %v99 = vld [vmem:[%s1 + $0xf8] sm:$0xf]
  %v100 = vld [vmem:[%s1 + $0xfc] sm:$0xf]
  %v101 = vld [vmem:[%s1 + $0x100] sm:$0xf]
  %v102 = vld [vmem:[%s1 + $0x104] sm:$0xf]
  %v103 = vld [vmem:[%s1 + $0x108] sm:$0xf]
  %v104 = vld [vmem:[%s1 + $0x10c] sm:$0xf]
  %v105 = vld [vmem:[%s1 + $0x110] sm:$0xf]
  %v106 = vld [vmem:[%s1 + $0x114] sm:$0xf]
  %v107 = vld [vmem:[%s1 + $0x118] sm:$0xf]
  %v108 = vld [vmem:[%s1 + $0x11c] sm:$0xf]
  %v109 = vld [vmem:[%s1 + $0x120] sm:$0xf]
  %v110 = vld [vmem:[%s1 + $0x124] sm:$0xf]
  %v111 = vld [vmem:[%s1 + $0x128] sm:$0xf]
  %v112 = vld [vmem:[%s1 + $0x12c] sm:$0xf]
  %v113 = vld [vmem:[%s1 + $0x130] sm:$0xf]
  %v114 = vld [vmem:[%s1 + $0x134] sm:$0xf]
  %v115 = vld [vmem:[%s1 + $0x138] sm:$0xf]
  %v116 = vld [vmem:[%s1 + $0x13c] sm:$0xf]
  %v117 = vld [vmem:[%s1 + $0x140] sm:$0xf]
  %v118 = vld [vmem:[%s1 + $0x144] sm:$0xf]
  %v119 = vld [vmem:[%s1 + $0x148] sm:$0xf]
  %v120 = vld [vmem:[%s1 + $0x14c] sm:$0xf]
  %v121 = vld [vmem:[%s1 + $0x150] sm:$0xf]
  %v122 = vld [vmem:[%s1 + $0x154] sm:$0xf]
  %v123 = vld [vmem:[%s1 + $0x158] sm:$0xf]
  %v124 = vld [vmem:[%s1 + $0x15c] sm:$0xf]
  %v125 = vld [vmem:[%s1 + $0x160] sm:$0xf]
  %v126 = vld [vmem:[%s1 + $0x164] sm:$0xf]
  %v127 = vld [vmem:[%s1 + $0x168] sm:$0xf]
  %v128 = vld [vmem:[%s1 + $0x16c] sm:$0xf]
  %v129 = vld [vmem:[%s1 + $0x170] sm:$0xf]
  %v130 = vld [vmem:[%s1 + $0x174] sm:$0xf]
  %v131 = vld [vmem:[%s1 + $0x178] sm:$0xf]
  %v132 = vld [vmem:[%s1 + $0x17c] sm:$0xf]
  %v133 = vld [vmem:[%s1 + $0x180] sm:$0xf]
  %v134 = vld [vmem:[%s1 + $0x184] sm:$0xf]
  %v135 = vld [vmem:[%s1 + $0x188] sm:$0xf]
  %v136 = vld [vmem:[%s1 + $0x18c] sm:$0xf]
  %v137 = vld [vmem:[%s1 + $0x190] sm:$0xf]
  %v138 = vld [vmem:[%s1 + $0x194] sm:$0xf]
  %v139 = vld [vmem:[%s1 + $0x198] sm:$0xf]
  %v140 = vld [vmem:[%s1 + $0x19c] sm:$0xf]
  %v141 = vld [vmem:[%s1 + $0x1a0] sm:$0xf]
  %v142 = vld [vmem:[%s1 + $0x1a4] sm:$0xf]
  %v143 = vld [vmem:[%s1 + $0x1a8] sm:$0xf]
  %v144 = vld [vmem:[%s1 + $0x1ac] sm:$0xf]
  %v145 = vld [vmem:[%s1 + $0x1b0] sm:$0xf]
  %v146 = vld [vmem:[%s1 + $0x1b4] sm:$0xf]
  %v147 = vld [vmem:[%s1 + $0x1b8] sm:$0xf]
  %v148 = vld [vmem:[%s1 + $0x1bc] sm:$0xf]
  %v149 = vld [vmem:[%s1 + $0x1c0] sm:$0xf]
  %v150 = vld [vmem:[%s1 + $0x1c4] sm:$0xf]
  %v151 = vld [vmem:[%s1 + $0x1c8] sm:$0xf]
  %v152 = vld [vmem:[%s1 + $0x1cc] sm:$0xf]
  %v153 = vld [vmem:[%s1 + $0x1d0] sm:$0xf]
  %v154 = vld [vmem:[%s1 + $0x1d4] sm:$0xf]
  %v155 = vld [vmem:[%s1 + $0x1d8] sm:$0xf]
  %v156 = vld [vmem:[%s1 + $0x1dc] sm:$0xf]
  %v157 = vld [vmem:[%s1 + $0x1e0] sm:$0xf]
  %v158 = vld [vmem:[%s1 + $0x1e4] sm:$0xf]
  %v159 = vld [vmem:[%s1 + $0x1e8] sm:$0xf]
  %v160 = vld [vmem:[%s1 + $0x1ec] sm:$0xf]
  %v161 = vld [vmem:[%s1 + $0x1f0] sm:$0xf]
  %v162 = vld [vmem:[%s1 + $0x1f4] sm:$0xf]
  %v163 = vld [vmem:[%s1 + $0x1f8] sm:$0xf]
  %v164 = vld [vmem:[%s1 + $0x1fc] sm:$0xf]
  %v165 = vld [vmem:[%s1 + $0x200] sm:$0xf]
  %v166 = vld [vmem:[%s1 + $0x204] sm:$0xf]
  %v167 = vld [vmem:[%s1 + $0x208] sm:$0xf]
  %v168 = vld [vmem:[%s1 + $0x20c] sm:$0xf]
  %v169 = vld [vmem:[%s1 + $0x210] sm:$0xf]
  %v170 = vld [vmem:[%s1 + $0x214] sm:$0xf]
  %v171 = vld [vmem:[%s1 + $0x218] sm:$0xf]
  %v172 = vld [vmem:[%s1 + $0x21c] sm:$0xf]
  %v173 = vld [vmem:[%s1 + $0x220] sm:$0xf]
  %v174 = vld [vmem:[%s1 + $0x224] sm:$0xf]
  %v175 = vld [vmem:[%s1 + $0x228] sm:$0xf]
  %v176 = vld [vmem:[%s1 + $0x22c] sm:$0xf]
  %v177 = vld [vmem:[%s1 + $0x230] sm:$0xf]
  %v178 = vld [vmem:[%s1 + $0x234] sm:$0xf]
  %v179 = vld [vmem:[%s1 + $0x238] sm:$0xf]
  %v180 = vld [vmem:[%s1 + $0x23c] sm:$0xf]
  %v181 = vld [vmem:[%s2] sm:$0x1]
  %v183 = vperm.slane %v181, 0
  %v190 = vunpack.c.l.b16 %v32
  %v191 = vunpack.c.h.b16 %v32
  %v192 = vunpack.c.l.b16 %v33
  %v193 = vunpack.c.h.b16 %v33
  %v194 = vunpack.c.l.b16 %v34
  %v195 = vunpack.c.h.b16 %v34
  %v196 = vunpack.c.l.b16 %v35
  %v197 = vunpack.c.h.b16 %v35
  %v198 = vunpack.c.l.b16 %v36
  %v199 = vpack.c.b16 %v190, %v190
  %v200 = vpack.c.b16 %v191, %v191
  %v201 = vpack.c.b16 %v192, %v192
  %v202 = vpack.c.b16 %v193, %v193
  %v203 = vpack.c.b16 %v194, %v194
  %v204 = vpack.c.b16 %v195, %v195
  %v205 = vpack.c.b16 %v196, %v196
  %v206 = vpack.c.b16 %v197, %v197
  %v207 = vpack.c.b16 %v198, %v198
  %v361 = vunpack.c.l.b16 %v37
  %v362 = vunpack.c.l.b16 %v38
  %v363 = vunpack.c.l.b16 %v39
  %v364 = vunpack.c.l.b16 %v40
  %v365 = vunpack.c.l.b16 %v41
  %v366 = vunpack.c.l.b16 %v42
  %v367 = vunpack.c.l.b16 %v43
  %v368 = vunpack.c.l.b16 %v44
  %v369 = vunpack.c.l.b16 %v45
  %v370 = vunpack.c.l.b16 %v46
  %v371 = vunpack.c.l.b16 %v47
  %v372 = vunpack.c.l.b16 %v48
  %v373 = vunpack.c.l.b16 %v49
  %v374 = vunpack.c.l.b16 %v50
  %v375 = vunpack.c.l.b16 %v51
  %v376 = vunpack.c.l.b16 %v52
  %v377 = vunpack.c.l.b16 %v53
  %v378 = vunpack.c.l.b16 %v54
  %v379 = vunpack.c.l.b16 %v55
  %v380 = vunpack.c.l.b16 %v56
  %v381 = vunpack.c.l.b16 %v57
  %v382 = vunpack.c.l.b16 %v58
  %v383 = vunpack.c.l.b16 %v59
  %v384 = vunpack.c.l.b16 %v60
  %v385 = vunpack.c.l.b16 %v61
  %v386 = vunpack.c.l.b16 %v62
  %v387 = vunpack.c.l.b16 %v63
  %v388 = vunpack.c.l.b16 %v64
  %v389 = vunpack.c.l.b16 %v65
  %v390 = vunpack.c.l.b16 %v66
  %v391 = vunpack.c.l.b16 %v67
  %v392 = vunpack.c.l.b16 %v68
  %v393 = vunpack.c.l.b16 %v69
  %v394 = vunpack.c.l.b16 %v70
  %v395 = vunpack.c.l.b16 %v71
  %v396 = vunpack.c.l.b16 %v72
  %v397 = vunpack.c.l.b16 %v73
  %v398 = vunpack.c.l.b16 %v74
  %v399 = vunpack.c.l.b16 %v75
  %v400 = vunpack.c.l.b16 %v76
  %v401 = vunpack.c.l.b16 %v77
  %v402 = vunpack.c.l.b16 %v78
  %v403 = vunpack.c.l.b16 %v79
  %v404 = vunpack.c.l.b16 %v80
  %v405 = vunpack.c.l.b16 %v81
  %v406 = vunpack.c.l.b16 %v82
  %v407 = vunpack.c.l.b16 %v83
  %v408 = vunpack.c.l.b16 %v84
  %v409 = vunpack.c.l.b16 %v85
  %v410 = vunpack.c.l.b16 %v86
  %v411 = vunpack.c.l.b16 %v87
  %v412 = vunpack.c.l.b16 %v88
  %v413 = vunpack.c.l.b16 %v89
  %v414 = vunpack.c.l.b16 %v90
  %v415 = vunpack.c.l.b16 %v91
  %v416 = vunpack.c.l.b16 %v92
  %v417 = vunpack.c.l.b16 %v93
  %v418 = vunpack.c.l.b16 %v94
  %v419 = vunpack.c.l.b16 %v95
  %v420 = vunpack.c.l.b16 %v96
  %v421 = vunpack.c.l.b16 %v97
  %v422 = vunpack.c.l.b16 %v98
  %v423 = vunpack.c.l.b16 %v99
  %v424 = vunpack.c.l.b16 %v100
  %v425 = vunpack.c.l.b16 %v101
  %v426 = vunpack.c.l.b16 %v102
  %v427 = vunpack.c.l.b16 %v103
  %v428 = vunpack.c.l.b16 %v104
  %v429 = vunpack.c.l.b16 %v105
  %v430 = vunpack.c.l.b16 %v106
  %v431 = vunpack.c.l.b16 %v107
  %v432 = vunpack.c.l.b16 %v108
  %v433 = vunpack.c.l.b16 %v109
  %v434 = vunpack.c.l.b16 %v110
  %v435 = vunpack.c.l.b16 %v111
  %v436 = vunpack.c.l.b16 %v112
  %v437 = vunpack.c.l.b16 %v113
  %v438 = vunpack.c.l.b16 %v114
  %v439 = vunpack.c.l.b16 %v115
  %v440 = vunpack.c.l.b16 %v116
  %v441 = vunpack.c.l.b16 %v117
  %v442 = vunpack.c.l.b16 %v118
  %v443 = vunpack.c.l.b16 %v119
  %v444 = vunpack.c.l.b16 %v120
  %v445 = vunpack.c.l.b16 %v121
  %v446 = vunpack.c.l.b16 %v122
  %v447 = vunpack.c.l.b16 %v123
  %v448 = vunpack.c.l.b16 %v124
  %v449 = vunpack.c.l.b16 %v125
  %v450 = vunpack.c.l.b16 %v126
  %v451 = vunpack.c.l.b16 %v127
  %v452 = vunpack.c.l.b16 %v128
  %v453 = vunpack.c.l.b16 %v129
  %v454 = vunpack.c.l.b16 %v130
  %v455 = vunpack.c.l.b16 %v131
  %v456 = vunpack.c.l.b16 %v132
  %v457 = vunpack.c.l.b16 %v133
  %v458 = vunpack.c.l.b16 %v134
  %v459 = vunpack.c.l.b16 %v135
  %v460 = vunpack.c.l.b16 %v136
  %v461 = vunpack.c.l.b16 %v137
  %v462 = vunpack.c.l.b16 %v138
  %v463 = vunpack.c.l.b16 %v139
  %v464 = vunpack.c.l.b16 %v140
  %v465 = vunpack.c.l.b16 %v141
  %v466 = vunpack.c.l.b16 %v142
  %v467 = vunpack.c.l.b16 %v143
  %v468 = vunpack.c.l.b16 %v144
  %v469 = vunpack.c.l.b16 %v145
  %v470 = vunpack.c.l.b16 %v146
  %v471 = vunpack.c.l.b16 %v147
  %v472 = vunpack.c.l.b16 %v148
  %v473 = vunpack.c.l.b16 %v149
  %v474 = vunpack.c.l.b16 %v150
  %v475 = vunpack.c.l.b16 %v151
  %v476 = vunpack.c.l.b16 %v152
  %v477 = vunpack.c.l.b16 %v153
  %v478 = vunpack.c.l.b16 %v154
  %v479 = vunpack.c.l.b16 %v155
  %v480 = vunpack.c.l.b16 %v156
  %v481 = vunpack.c.l.b16 %v157
  %v482 = vunpack.c.l.b16 %v158
  %v483 = vunpack.c.l.b16 %v159
  %v484 = vunpack.c.l.b16 %v160
  %v485 = vunpack.c.l.b16 %v161
  %v486 = vunpack.c.l.b16 %v162
  %v487 = vunpack.c.l.b16 %v163
  %v488 = vunpack.c.l.b16 %v164
  %v489 = vunpack.c.l.b16 %v165
  %v490 = vunpack.c.l.b16 %v166
  %v491 = vunpack.c.l.b16 %v167
  %v492 = vunpack.c.l.b16 %v168
  %v493 = vunpack.c.l.b16 %v169
  %v494 = vunpack.c.l.b16 %v170
  %v495 = vunpack.c.l.b16 %v171
  %v496 = vunpack.c.l.b16 %v172
  %v497 = vunpack.c.l.b16 %v173
  %v498 = vunpack.c.l.b16 %v174
  %v499 = vunpack.c.l.b16 %v175
  %v500 = vunpack.c.l.b16 %v176
  %v501 = vunpack.c.l.b16 %v177
  %v502 = vunpack.c.l.b16 %v178
  %v503 = vunpack.c.l.b16 %v179
  %v504 = vunpack.c.l.b16 %v180
  %v505 = vpack.c.b16 %v362, %v361
  %v506 = vpack.c.b16 %v364, %v363
  %v507 = vpack.c.b16 %v366, %v365
  %v508 = vpack.c.b16 %v368, %v367
  %v509 = vpack.c.b16 %v370, %v369
  %v510 = vpack.c.b16 %v372, %v371
  %v511 = vpack.c.b16 %v374, %v373
  %v512 = vpack.c.b16 %v376, %v375
  %v513 = vpack.c.b16 %v378, %v377
  %v514 = vpack.c.b16 %v380, %v379
  %v515 = vpack.c.b16 %v382, %v381
  %v516 = vpack.c.b16 %v384, %v383
  %v517 = vpack.c.b16 %v386, %v385
  %v518 = vpack.c.b16 %v388, %v387
  %v519 = vpack.c.b16 %v390, %v389
  %v520 = vpack.c.b16 %v392, %v391
  %v521 = vpack.c.b16 %v394, %v393
  %v522 = vpack.c.b16 %v396, %v395
  %v523 = vpack.c.b16 %v398, %v397
  %v524 = vpack.c.b16 %v400, %v399
  %v525 = vpack.c.b16 %v402, %v401
  %v526 = vpack.c.b16 %v404, %v403
  %v527 = vpack.c.b16 %v406, %v405
  %v528 = vpack.c.b16 %v408, %v407
  %v529 = vpack.c.b16 %v410, %v409
  %v530 = vpack.c.b16 %v412, %v411
  %v531 = vpack.c.b16 %v414, %v413
  %v532 = vpack.c.b16 %v416, %v415
  %v533 = vpack.c.b16 %v418, %v417
  %v534 = vpack.c.b16 %v420, %v419
  %v535 = vpack.c.b16 %v422, %v421
  %v536 = vpack.c.b16 %v424, %v423
  %v537 = vpack.c.b16 %v426, %v425
  %v538 = vpack.c.b16 %v428, %v427
  %v539 = vpack.c.b16 %v430, %v429
  %v540 = vpack.c.b16 %v432, %v431
  %v541 = vpack.c.b16 %v434, %v433
  %v542 = vpack.c.b16 %v436, %v435
  %v543 = vpack.c.b16 %v438, %v437
  %v544 = vpack.c.b16 %v440, %v439
  %v545 = vpack.c.b16 %v442, %v441
  %v546 = vpack.c.b16 %v444, %v443
  %v547 = vpack.c.b16 %v446, %v445
  %v548 = vpack.c.b16 %v448, %v447
  %v549 = vpack.c.b16 %v450, %v449
  %v550 = vpack.c.b16 %v452, %v451
  %v551 = vpack.c.b16 %v454, %v453
  %v552 = vpack.c.b16 %v456, %v455
  %v553 = vpack.c.b16 %v458, %v457
  %v554 = vpack.c.b16 %v460, %v459
  %v555 = vpack.c.b16 %v462, %v461
  %v556 = vpack.c.b16 %v464, %v463
  %v557 = vpack.c.b16 %v466, %v465
  %v558 = vpack.c.b16 %v468, %v467
  %v559 = vpack.c.b16 %v470, %v469
  %v560 = vpack.c.b16 %v472, %v471
  %v561 = vpack.c.b16 %v474, %v473
  %v562 = vpack.c.b16 %v476, %v475
  %v563 = vpack.c.b16 %v478, %v477
  %v564 = vpack.c.b16 %v480, %v479
  %v565 = vpack.c.b16 %v482, %v481
  %v566 = vpack.c.b16 %v484, %v483
  %v567 = vpack.c.b16 %v486, %v485
  %v568 = vpack.c.b16 %v488, %v487
  %v569 = vpack.c.b16 %v490, %v489
  %v570 = vpack.c.b16 %v492, %v491
  %v571 = vpack.c.b16 %v494, %v493
  %v572 = vpack.c.b16 %v496, %v495
  %v573 = vpack.c.b16 %v498, %v497
  %v574 = vpack.c.b16 %v500, %v499
  %v575 = vpack.c.b16 %v502, %v501
  %v576 = vpack.c.b16 %v504, %v503
  %649 = vmatpush.bf16.msra.mxu0 %v512
  %650 = vmatpush.bf16.msra.mxu0 %v511
  %651 = vmatpush.bf16.msra.mxu0 %v510
  %652 = vmatpush.bf16.msra.mxu0 %v509
  %653 = vmatpush.bf16.msra.mxu0 %v508
  %654 = vmatpush.bf16.msra.mxu0 %v507
  %655 = vmatpush.bf16.msra.mxu0 %v506
  %656 = vmatpush.bf16.msra.mxu0 %v505
  %657 = vmatmul.bf16.gmra.mxu0 %v199
  %v658 = vpop.f32.mrf.mxu0
  %v659 = vadd.f32 %v183, %v658
  %v660 = vpop.f32.mrf.mxu0
  %661 = vdwg.mxu0
  %662 = vmatpush.bf16.msra.mxu0 %v520
  %663 = vmatpush.bf16.msra.mxu0 %v519
  %664 = vmatpush.bf16.msra.mxu0 %v518
  %665 = vmatpush.bf16.msra.mxu0 %v517
  %666 = vmatpush.bf16.msra.mxu0 %v516
  %667 = vmatpush.bf16.msra.mxu0 %v515
  %668 = vmatpush.bf16.msra.mxu0 %v514
  %669 = vmatpush.bf16.msra.mxu0 %v513
  %670 = vmatmul.bf16.gmra.mxu0 %v200
  %v671 = vpop.f32.mrf.mxu0
  %v672 = vadd.f32 %v659, %v671
  %v673 = vpop.f32.mrf.mxu0
  %674 = vdwg.mxu0
  %675 = vmatpush.bf16.msra.mxu0 %v528
  %676 = vmatpush.bf16.msra.mxu0 %v527
  %677 = vmatpush.bf16.msra.mxu0 %v526
  %678 = vmatpush.bf16.msra.mxu0 %v525
  %679 = vmatpush.bf16.msra.mxu0 %v524
  %680 = vmatpush.bf16.msra.mxu0 %v523
  %681 = vmatpush.bf16.msra.mxu0 %v522
  %682 = vmatpush.bf16.msra.mxu0 %v521
  %683 = vmatmul.bf16.gmra.mxu0 %v201
  %v684 = vpop.f32.mrf.mxu0
  %v685 = vadd.f32 %v672, %v684
  %v686 = vpop.f32.mrf.mxu0
  %687 = vdwg.mxu0
  %688 = vmatpush.bf16.msra.mxu0 %v536
  %689 = vmatpush.bf16.msra.mxu0 %v535
  %690 = vmatpush.bf16.msra.mxu0 %v534
  %691 = vmatpush.bf16.msra.mxu0 %v533
  %692 = vmatpush.bf16.msra.mxu0 %v532
  %693 = vmatpush.bf16.msra.mxu0 %v531
  %694 = vmatpush.bf16.msra.mxu0 %v530
  %695 = vmatpush.bf16.msra.mxu0 %v529
  %696 = vmatmul.bf16.gmra.mxu0 %v202
  %v697 = vpop.f32.mrf.mxu0
  %v698 = vadd.f32 %v685, %v697
  %v699 = vpop.f32.mrf.mxu0
  %700 = vdwg.mxu0
  %701 = vmatpush.bf16.msra.mxu0 %v544
  %702 = vmatpush.bf16.msra.mxu0 %v543
  %703 = vmatpush.bf16.msra.mxu0 %v542
  %704 = vmatpush.bf16.msra.mxu0 %v541
  %705 = vmatpush.bf16.msra.mxu0 %v540
  %706 = vmatpush.bf16.msra.mxu0 %v539
  %707 = vmatpush.bf16.msra.mxu0 %v538
  %708 = vmatpush.bf16.msra.mxu0 %v537
  %709 = vmatmul.bf16.gmra.mxu0 %v203
  %v710 = vpop.f32.mrf.mxu0
  %v711 = vadd.f32 %v698, %v710
  %v712 = vpop.f32.mrf.mxu0
  %713 = vdwg.mxu0
  %714 = vmatpush.bf16.msra.mxu0 %v552
  %715 = vmatpush.bf16.msra.mxu0 %v551
  %716 = vmatpush.bf16.msra.mxu0 %v550
  %717 = vmatpush.bf16.msra.mxu0 %v549
  %718 = vmatpush.bf16.msra.mxu0 %v548
  %719 = vmatpush.bf16.msra.mxu0 %v547
  %720 = vmatpush.bf16.msra.mxu0 %v546
  %721 = vmatpush.bf16.msra.mxu0 %v545
  %722 = vmatmul.bf16.gmra.mxu0 %v204
  %v723 = vpop.f32.mrf.mxu0
  %v724 = vadd.f32 %v711, %v723
  %v725 = vpop.f32.mrf.mxu0
  %726 = vdwg.mxu0
  %727 = vmatpush.bf16.msra.mxu0 %v560
  %728 = vmatpush.bf16.msra.mxu0 %v559
  %729 = vmatpush.bf16.msra.mxu0 %v558
  %730 = vmatpush.bf16.msra.mxu0 %v557
  %731 = vmatpush.bf16.msra.mxu0 %v556
  %732 = vmatpush.bf16.msra.mxu0 %v555
  %733 = vmatpush.bf16.msra.mxu0 %v554
  %734 = vmatpush.bf16.msra.mxu0 %v553
  %735 = vmatmul.bf16.gmra.mxu0 %v205
  %v736 = vpop.f32.mrf.mxu0
  %v737 = vadd.f32 %v724, %v736
  %v738 = vpop.f32.mrf.mxu0
  %739 = vdwg.mxu0
  %740 = vmatpush.bf16.msra.mxu0 %v568
  %741 = vmatpush.bf16.msra.mxu0 %v567
  %742 = vmatpush.bf16.msra.mxu0 %v566
  %743 = vmatpush.bf16.msra.mxu0 %v565
  %744 = vmatpush.bf16.msra.mxu0 %v564
  %745 = vmatpush.bf16.msra.mxu0 %v563
  %746 = vmatpush.bf16.msra.mxu0 %v562
  %747 = vmatpush.bf16.msra.mxu0 %v561
  %748 = vmatmul.bf16.gmra.mxu0 %v206
  %v749 = vpop.f32.mrf.mxu0
  %v750 = vadd.f32 %v737, %v749
  %v751 = vpop.f32.mrf.mxu0
  %752 = vdwg.mxu0
  %753 = vmatpush.bf16.msra.mxu0 %v576
  %754 = vmatpush.bf16.msra.mxu0 %v575
  %755 = vmatpush.bf16.msra.mxu0 %v574
  %756 = vmatpush.bf16.msra.mxu0 %v573
  %757 = vmatpush.bf16.msra.mxu0 %v572
  %758 = vmatpush.bf16.msra.mxu0 %v571
  %759 = vmatpush.bf16.msra.mxu0 %v570
  %760 = vmatpush.bf16.msra.mxu0 %v569
  %761 = vmatmul.bf16.gmra.mxu0 %v207
  %v762 = vpop.f32.mrf.mxu0
  %v763 = vadd.f32 %v750, %v762
  %v764 = vpop.f32.mrf.mxu0
  %765 = vdwg.mxu0
  %v766 = vmax.f32 %v763, 0.0
  %v767 = vpack.c.bf16 %v766, %v766
  %v768 = vld [vmem:[%s3] sm:$0xf]
  %v769 = vld [vmem:[%s3 + $0x4] sm:$0xf]
  %v770 = vld [vmem:[%s3 + $0x8] sm:$0xf]
  %v771 = vld [vmem:[%s3 + $0xc] sm:$0xf]
  %v772 = vld [vmem:[%s3 + $0x10] sm:$0xf]
  %v773 = vld [vmem:[%s3 + $0x14] sm:$0xf]
  %v774 = vld [vmem:[%s3 + $0x18] sm:$0xf]
  %v775 = vld [vmem:[%s3 + $0x1c] sm:$0xf]
  %v776 = vld [vmem:[%s3 + $0x20] sm:$0xf]
  %v777 = vld [vmem:[%s3 + $0x24] sm:$0xf]
  %v778 = vld [vmem:[%s3 + $0x28] sm:$0xf]
  %v779 = vld [vmem:[%s3 + $0x2c] sm:$0xf]
  %v780 = vld [vmem:[%s3 + $0x30] sm:$0xf]
  %v781 = vld [vmem:[%s3 + $0x34] sm:$0xf]
  %v782 = vld [vmem:[%s3 + $0x38] sm:$0xf]
  %v783 = vld [vmem:[%s3 + $0x3c] sm:$0xf]
  %v784 = vld [vmem:[%s4] sm:$0x1]
  %v786 = vperm.slane %v784, 0
  %v804 = vunpack.c.l.b16 %v768
  %v805 = vunpack.c.l.b16 %v769
  %v806 = vunpack.c.l.b16 %v770
  %v807 = vunpack.c.l.b16 %v771
  %v808 = vunpack.c.l.b16 %v772
  %v809 = vunpack.c.l.b16 %v773
  %v810 = vunpack.c.l.b16 %v774
  %v811 = vunpack.c.l.b16 %v775
  %v812 = vunpack.c.l.b16 %v776
  %v813 = vunpack.c.l.b16 %v777
  %v814 = vunpack.c.l.b16 %v778
  %v815 = vunpack.c.l.b16 %v779
  %v816 = vunpack.c.l.b16 %v780
  %v817 = vunpack.c.l.b16 %v781
  %v818 = vunpack.c.l.b16 %v782
  %v819 = vunpack.c.l.b16 %v783
  %v820 = vpack.c.b16 %v805, %v804
  %v821 = vpack.c.b16 %v807, %v806
  %v822 = vpack.c.b16 %v809, %v808
  %v823 = vpack.c.b16 %v811, %v810
  %v824 = vpack.c.b16 %v813, %v812
  %v825 = vpack.c.b16 %v815, %v814
  %v826 = vpack.c.b16 %v817, %v816
  %v827 = vpack.c.b16 %v819, %v818
  %836 = vmatpush.bf16.msra.mxu0 %v827
  %837 = vmatpush.bf16.msra.mxu0 %v826
  %838 = vmatpush.bf16.msra.mxu0 %v825
  %839 = vmatpush.bf16.msra.mxu0 %v824
  %840 = vmatpush.bf16.msra.mxu0 %v823
  %841 = vmatpush.bf16.msra.mxu0 %v822
  %842 = vmatpush.bf16.msra.mxu0 %v821
  %843 = vmatpush.bf16.msra.mxu0 %v820
  %844 = vmatmul.bf16.gmra.mxu0 %v767
  %v845 = vpop.f32.mrf.mxu0
  %v846 = vadd.f32 %v786, %v845
  %v847 = vpop.f32.mrf.mxu0
  %848 = vdwg.mxu0
  %v849 = vmax.f32 %v846, 0.0
  %v850 = vpack.c.bf16 %v849, %v849
  %v851 = vld [vmem:[%s5] sm:$0xf]
  %v852 = vld [vmem:[%s5 + $0x4] sm:$0xf]
  %v853 = vld [vmem:[%s5 + $0x8] sm:$0xf]
  %v854 = vld [vmem:[%s5 + $0xc] sm:$0xf]
  %v855 = vld [vmem:[%s5 + $0x10] sm:$0xf]
  %v856 = vld [vmem:[%s5 + $0x14] sm:$0xf]
  %v857 = vld [vmem:[%s5 + $0x18] sm:$0xf]
  %v858 = vld [vmem:[%s5 + $0x1c] sm:$0xf]
  %v859 = vld [vmem:[%s5 + $0x20] sm:$0xf]
  %v860 = vld [vmem:[%s5 + $0x24] sm:$0xf]
  %v861 = vld [vmem:[%s5 + $0x28] sm:$0xf]
  %v862 = vld [vmem:[%s5 + $0x2c] sm:$0xf]
  %v863 = vld [vmem:[%s5 + $0x30] sm:$0xf]
  %v864 = vld [vmem:[%s5 + $0x34] sm:$0xf]
  %v865 = vld [vmem:[%s5 + $0x38] sm:$0xf]
  %v866 = vld [vmem:[%s5 + $0x3c] sm:$0xf]
  %v867 = vld [vmem:[%s6] sm:$0x1]
  %v869 = vperm.slane %v867, 0
  %v887 = vunpack.c.l.b16 %v851
  %v888 = vunpack.c.l.b16 %v852
  %v889 = vunpack.c.l.b16 %v853
  %v890 = vunpack.c.l.b16 %v854
  %v891 = vunpack.c.l.b16 %v855
  %v892 = vunpack.c.l.b16 %v856
  %v893 = vunpack.c.l.b16 %v857
  %v894 = vunpack.c.l.b16 %v858
  %v895 = vunpack.c.l.b16 %v859
  %v896 = vunpack.c.l.b16 %v860
  %v897 = vunpack.c.l.b16 %v861
  %v898 = vunpack.c.l.b16 %v862
  %v899 = vunpack.c.l.b16 %v863
  %v900 = vunpack.c.l.b16 %v864
  %v901 = vunpack.c.l.b16 %v865
  %v902 = vunpack.c.l.b16 %v866
  %v903 = vpack.c.b16 %v888, %v887
  %v904 = vpack.c.b16 %v890, %v889
  %v905 = vpack.c.b16 %v892, %v891
  %v906 = vpack.c.b16 %v894, %v893
  %v907 = vpack.c.b16 %v896, %v895
  %v908 = vpack.c.b16 %v898, %v897
  %v909 = vpack.c.b16 %v900, %v899
  %v910 = vpack.c.b16 %v902, %v901
  %919 = vmatpush.bf16.msra.mxu0 %v910
  %920 = vmatpush.bf16.msra.mxu0 %v909
  %921 = vmatpush.bf16.msra.mxu0 %v908
  %922 = vmatpush.bf16.msra.mxu0 %v907
  %923 = vmatpush.bf16.msra.mxu0 %v906
  %924 = vmatpush.bf16.msra.mxu0 %v905
  %925 = vmatpush.bf16.msra.mxu0 %v904
  %926 = vmatpush.bf16.msra.mxu0 %v903
  %927 = vmatmul.bf16.gmra.mxu0 %v850
  %v928 = vpop.f32.mrf.mxu0
  %v929 = vadd.f32 %v869, %v928
  %v930 = vpop.f32.mrf.mxu0
  %931 = vdwg.mxu0
  %v932 = vmax.f32 %v929, 0.0
  %v933 = vpack.c.bf16 %v932, %v932
  %v934 = vld [vmem:[%s7] sm:$0xf]
  %v935 = vld [vmem:[%s7 + $0x4] sm:$0xf]
  %v936 = vld [vmem:[%s7 + $0x8] sm:$0xf]
  %v937 = vld [vmem:[%s7 + $0xc] sm:$0xf]
  %v938 = vld [vmem:[%s7 + $0x10] sm:$0xf]
  %v939 = vld [vmem:[%s7 + $0x14] sm:$0xf]
  %v940 = vld [vmem:[%s7 + $0x18] sm:$0xf]
  %v941 = vld [vmem:[%s7 + $0x1c] sm:$0xf]
  %v942 = vld [vmem:[%s7 + $0x20] sm:$0xf]
  %v943 = vld [vmem:[%s7 + $0x24] sm:$0xf]
  %v944 = vld [vmem:[%s7 + $0x28] sm:$0xf]
  %v945 = vld [vmem:[%s7 + $0x2c] sm:$0xf]
  %v946 = vld [vmem:[%s7 + $0x30] sm:$0xf]
  %v947 = vld [vmem:[%s7 + $0x34] sm:$0xf]
  %v948 = vld [vmem:[%s7 + $0x38] sm:$0xf]
  %v949 = vld [vmem:[%s7 + $0x3c] sm:$0xf]
  %v950 = vld [vmem:[%s8] sm:$0x1]
  %v952 = vperm.slane %v950, 0
  %v970 = vunpack.c.l.b16 %v934
  %v971 = vunpack.c.l.b16 %v935
  %v972 = vunpack.c.l.b16 %v936
  %v973 = vunpack.c.l.b16 %v937
  %v974 = vunpack.c.l.b16 %v938
  %v975 = vunpack.c.l.b16 %v939
  %v976 = vunpack.c.l.b16 %v940
  %v977 = vunpack.c.l.b16 %v941
  %v978 = vunpack.c.l.b16 %v942
  %v979 = vunpack.c.l.b16 %v943
  %v980 = vunpack.c.l.b16 %v944
  %v981 = vunpack.c.l.b16 %v945
  %v982 = vunpack.c.l.b16 %v946
  %v983 = vunpack.c.l.b16 %v947
  %v984 = vunpack.c.l.b16 %v948
  %v985 = vunpack.c.l.b16 %v949
  %v986 = vpack.c.b16 %v971, %v970
  %v987 = vpack.c.b16 %v973, %v972
  %v988 = vpack.c.b16 %v975, %v974
  %v989 = vpack.c.b16 %v977, %v976
  %v990 = vpack.c.b16 %v979, %v978
  %v991 = vpack.c.b16 %v981, %v980
  %v992 = vpack.c.b16 %v983, %v982
  %v993 = vpack.c.b16 %v985, %v984
  %1002 = vmatpush.bf16.msra.mxu0 %v993
  %1003 = vmatpush.bf16.msra.mxu0 %v992
  %1004 = vmatpush.bf16.msra.mxu0 %v991
  %1005 = vmatpush.bf16.msra.mxu0 %v990
  %1006 = vmatpush.bf16.msra.mxu0 %v989
  %1007 = vmatpush.bf16.msra.mxu0 %v988
  %1008 = vmatpush.bf16.msra.mxu0 %v987
  %1009 = vmatpush.bf16.msra.mxu0 %v986
  %1010 = vmatmul.bf16.gmra.mxu0 %v933
  %v1011 = vpop.f32.mrf.mxu0
  %v1012 = vadd.f32 %v952, %v1011
  %v1013 = vpop.f32.mrf.mxu0
  %1014 = vdwg.mxu0
  %1015 = vst [vmem:[%s9] sm:$0xff] %v1012
  // Predicated region
  $region38: #{pilot_net_forward.11} parent=0 // pred_check
    _
  $region39: #{pilot_net_forward.11} parent=0 // pred_check_branch
    %1017 = sbr.rel (0) target = $region41
  $region40: #{pilot_net_forward.11} parent=0 // pred_region
    _
  $region41: #{pilot_net_forward.11} parent=0 // pred_fallthru
    _
  // Predicated region
  $region42: #{pilot_net_forward.11} parent=0 // pred_check
    _
  $region43: #{pilot_net_forward.11} parent=0 // pred_check_branch
    %1019 = sbr.rel (0) target = $region45
  $region44: #{pilot_net_forward.11} parent=0 // pred_region
    _
  $region45: #{pilot_net_forward.11} parent=0 // pred_fallthru
    _

</llo_original>
